<compile_context>
chip_gen: v7x
topology: tpu7x:2x2x1
jax: 0.10.0
libtpu: 0.0.40
codegen_flags: <defaults>
</compile_context>

<pallas_src>
import functools

import jax
import jax.numpy as jnp
from jax.experimental import pallas as pl
from jax.experimental.pallas import tpu as pltpu

LEAKY_SLOPE = 0.01  # F.leaky_relu default negative_slope
_VMEM_LIMIT = 32 * 1024 * 1024


def _leaky(y):
    return jnp.where(y > 0, y, LEAKY_SLOPE * y)


def _compiler_params():
    return pltpu.CompilerParams(
        dimension_semantics=("parallel",),
        vmem_limit_bytes=_VMEM_LIMIT,
    )


# ----------------------------------------------------------------------------
# Kernel 1: conv-as-matmul (+ bias + leaky), one image per grid step.
# Output layout (Cout, OH*OW) is lane-dense -> unmasked full-width stores.
# ----------------------------------------------------------------------------
def _conv_mm_kernel(p_ref, w_ref, b_ref, o_ref):
    # p: (K, M) bf16   w: (Cout, K) bf16   b: (Cout, 1) f32   o: (Cout, M)
    y = jnp.dot(w_ref[...], p_ref[...], preferred_element_type=jnp.float32)
    y = _leaky(y + b_ref[...])
    o_ref[...] = y.astype(o_ref.dtype)


def conv2d_leaky(x, weight, bias):
    """NCHW valid conv (stride 1) + leaky ReLU.

    Patch extraction is wrapper-side slicing (pure data movement, kh*kw
    slices); all MAC work runs in a Pallas kernel gridded over the batch.
    Returns (B, Cout, OH*OW) in bf16 plus (OH, OW).
    """
    B, Cin, H, W = x.shape
    Cout, Cin2, kh, kw = weight.shape
    assert Cin == Cin2
    OH, OW = H - kh + 1, W - kw + 1
    M, K = OH * OW, Cin * kh * kw

    # (B, Cin, kh*kw, OH, OW) -> (B, K, M); K ordered (ci, i, j) to match
    # the PyTorch weight.reshape(Cout, -1) layout.
    patches = jnp.stack(
        [x[:, :, i:i + OH, j:j + OW] for i in range(kh) for j in range(kw)],
        axis=2,
    ).reshape(B, K, M).astype(jnp.bfloat16)
    w2d = weight.reshape(Cout, K).astype(jnp.bfloat16)
    b2d = bias.reshape(Cout, 1).astype(jnp.float32)

    flops = 2 * B * Cout * K * M
    bytes_accessed = (patches.size + w2d.size) * 2 + b2d.size * 4 + B * Cout * M * 2

    out = pl.pallas_call(
        _conv_mm_kernel,
        out_shape=jax.ShapeDtypeStruct((B, Cout, M), jnp.bfloat16),
        grid=(B,),
        in_specs=[
            pl.BlockSpec((None, K, M), lambda b: (b, 0, 0)),
            pl.BlockSpec((Cout, K), lambda b: (0, 0)),
            pl.BlockSpec((Cout, 1), lambda b: (0, 0)),
        ],
        out_specs=pl.BlockSpec((None, Cout, M), lambda b: (b, 0, 0)),
        compiler_params=_compiler_params(),
        cost_estimate=pl.CostEstimate(
            flops=flops, transcendentals=0, bytes_accessed=bytes_accessed),
    )(patches, w2d, b2d)
    return out, (OH, OW)


# ----------------------------------------------------------------------------
# Kernel 2: 2x2/stride-2 max pool, one image per grid step.
# Row pairs arrive lane-concatenated via a free contiguous reshape; column
# pairs are reduced with max + 0/1 selection matmuls (no strided HBM slices).
# ----------------------------------------------------------------------------
def _pool_kernel(x_ref, o_ref, *, ow: int):
    x = x_ref[...].astype(jnp.float32)                 # (C*PH, 2*OW)
    rmax = jnp.maximum(x[:, :ow], x[:, ow:])           # max over the H pair
    pw = ow // 2
    wi = jax.lax.broadcasted_iota(jnp.int32, (ow, pw), 0)
    ji = jax.lax.broadcasted_iota(jnp.int32, (ow, pw), 1)
    sel_even = (wi == 2 * ji).astype(jnp.float32)      # picks column 2j
    sel_odd = (wi == 2 * ji + 1).astype(jnp.float32)   # picks column 2j+1
    even = jnp.dot(rmax, sel_even, preferred_element_type=jnp.float32)
    odd = jnp.dot(rmax, sel_odd, preferred_element_type=jnp.float32)
    o_ref[...] = jnp.maximum(even, odd).astype(o_ref.dtype)


def maxpool2x2(y_flat, C, OH, OW):
    """Input (B, C, OH*OW) -> output (B, C, PH*PW), all slicing done in-kernel."""
    assert OH % 2 == 0 and OW % 2 == 0, "maxpool2x2 requires even H and W"
    B = y_flat.shape[0]
    PH, PW = OH // 2, OW // 2
    rows = C * PH
    x = y_flat.reshape(B, rows, 2 * OW)                # contiguous, zero-cost
    kernel = functools.partial(_pool_kernel, ow=OW)
    out = pl.pallas_call(
        kernel,
        out_shape=jax.ShapeDtypeStruct((B, rows, PW), y_flat.dtype),
        grid=(B,),
        in_specs=[pl.BlockSpec((None, rows, 2 * OW), lambda b: (b, 0, 0))],
        out_specs=pl.BlockSpec((None, rows, PW), lambda b: (b, 0, 0)),
        compiler_params=_compiler_params(),
    )(x)
    return out.reshape(B, C, PH * PW)


# ----------------------------------------------------------------------------
# Kernel 3: fused fc1 + leaky + fc2; the hidden (Mt, 512) stays on-chip.
# ----------------------------------------------------------------------------
def _fc_fused_kernel(x_ref, w1_ref, b1_ref, w2_ref, b2_ref, o_ref):
    h = jnp.dot(x_ref[...], w1_ref[...], preferred_element_type=jnp.float32)
    h = _leaky(h + b1_ref[...])
    y = jnp.dot(h.astype(w2_ref.dtype), w2_ref[...],
                preferred_element_type=jnp.float32)
    o_ref[...] = (y + b2_ref[...]).astype(o_ref.dtype)


def fc1_fc2(x, w1, b1, w2, b2):
    B, K1 = x.shape
    K1b, N1 = w1.shape
    N1b, N2 = w2.shape
    assert K1 == K1b and N1 == N1b
    x = x.astype(jnp.bfloat16)
    w1 = w1.astype(jnp.bfloat16)
    w2 = w2.astype(jnp.bfloat16)
    b1 = b1.reshape(1, N1).astype(jnp.float32)
    b2 = b2.reshape(1, N2).astype(jnp.float32)

    mt = B if B <= 256 else 256                        # M tile (rows)
    grid = (pl.cdiv(B, mt),)
    flops = 2 * B * (K1 * N1 + N1 * N2)
    bytes_accessed = (x.size + w1.size + w2.size) * 2 + (b1.size + b2.size) * 4 + B * N2 * 4

    return pl.pallas_call(
        _fc_fused_kernel,
        out_shape=jax.ShapeDtypeStruct((B, N2), jnp.float32),
        grid=grid,
        in_specs=[
            pl.BlockSpec((mt, K1), lambda i: (i, 0)),
            pl.BlockSpec((K1, N1), lambda i: (0, 0)),
            pl.BlockSpec((1, N1), lambda i: (0, 0)),
            pl.BlockSpec((N1, N2), lambda i: (0, 0)),
            pl.BlockSpec((1, N2), lambda i: (0, 0)),
        ],
        out_specs=pl.BlockSpec((mt, N2), lambda i: (i, 0)),
        compiler_params=_compiler_params(),
        cost_estimate=pl.CostEstimate(
            flops=flops, transcendentals=0, bytes_accessed=bytes_accessed),
    )(x, w1, b1, w2, b2)


# ----------------------------------------------------------------------------
# Encoder parameters (deterministic, PyTorch-default-style uniform init)
# ----------------------------------------------------------------------------
def init_encoder_params(key):
    def uniform(key, shape, fan_in):
        bound = 1.0 / jnp.sqrt(jnp.float32(fan_in))
        return jax.random.uniform(key, shape, jnp.float32, -bound, bound)

    ks = jax.random.split(key, 8)
    return {
        "conv1_w": uniform(ks[0], (6, 1, 3, 3), 1 * 3 * 3),
        "conv1_b": uniform(ks[1], (6,), 1 * 3 * 3),
        "conv2_w": uniform(ks[2], (16, 6, 5, 5), 6 * 5 * 5),
        "conv2_b": uniform(ks[3], (16,), 6 * 5 * 5),
        "fc1_w": uniform(ks[4], (2704, 512), 2704),    # stored as (in, out)
        "fc1_b": uniform(ks[5], (512,), 2704),
        "fc2_w": uniform(ks[6], (512, 128), 512),
        "fc2_b": uniform(ks[7], (128,), 512),
    }


# ----------------------------------------------------------------------------
# Forward pass (mirrors Encoder.forward); all inter-stage reshapes are
# contiguous (free) and there are no NCHW<->NHWC transposes.
# ----------------------------------------------------------------------------
def encoder_forward(params, x):
    B = x.shape[0]
    y1, (oh1, ow1) = conv2d_leaky(x, params["conv1_w"], params["conv1_b"])   # (B,6,3600)
    p1 = maxpool2x2(y1, 6, oh1, ow1)                                         # (B,6,900)
    x2 = p1.reshape(B, 6, oh1 // 2, ow1 // 2)                                # (B,6,30,30)
    y2, (oh2, ow2) = conv2d_leaky(x2, params["conv2_w"], params["conv2_b"])  # (B,16,676)
    p2 = maxpool2x2(y2, 16, oh2, ow2)                                        # (B,16,169)
    feat = p2.reshape(B, 16 * (oh2 // 2) * (ow2 // 2))   # == view(-1, 2704), NCHW order
    return fc1_fc2(feat, params["fc1_w"], params["fc1_b"],
                   params["fc2_w"], params["fc2_b"])     # (B, 128) f32


if __name__ == "__main__":
    key = jax.random.PRNGKey(0)
    pkey, xkey = jax.random.split(key)
    params = init_encoder_params(pkey)

    # Smallest shape consistent with the module: fc1 expects 2704 = 16*13*13,
    # which forces 62x62 single-channel inputs.
    x = jax.random.normal(xkey, (2, 1, 62, 62), dtype=jnp.float32)

    fwd = jax.jit(encoder_forward)
    out = jax.block_until_ready(fwd(params, x))
    assert out.shape == (2, 128), out.shape
    assert bool(jnp.all(jnp.isfinite(out)))
    print("KERNEL_OK")
</pallas_src>

<mosaic_0001>
module attributes {stable_mosaic.version = 11 : i64} {
  func.func @_conv_mm_kernel(%arg0: i32, %arg1: memref<1x9x3600xbf16, #tpu.memory_space<vmem>>, %arg2: memref<6x9xbf16, #tpu.memory_space<vmem>>, %arg3: memref<6x1xf32, #tpu.memory_space<vmem>>, %arg4: memref<1x6x3600xbf16, #tpu.memory_space<vmem>>) attributes {dimension_semantics = [#tpu.dimension_semantics<parallel>], iteration_bounds = array<i64: 2>, scalar_prefetch = 0 : i64, scratch_operands = 0 : i64, tpu.core_type = #tpu.core_type<tc>, window_params = [{transform_indices = @transform_0, window_bounds = array<i64: 1, 9, 3600>}, {pipeline_mode = #tpu.pipeline_mode<synchronous>, transform_indices = @transform_1, window_bounds = array<i64: 6, 9>}, {pipeline_mode = #tpu.pipeline_mode<synchronous>, transform_indices = @transform_2, window_bounds = array<i64: 6, 1>}, {transform_indices = @transform_3, window_bounds = array<i64: 1, 6, 3600>}]} {
    %c0 = arith.constant 0 : index
    %c0_0 = arith.constant 0 : index
    %0 = vector.load %arg2[%c0, %c0_0] : memref<6x9xbf16, #tpu.memory_space<vmem>>, vector<6x9xbf16>
    %c0_1 = arith.constant 0 : index
    %c0_2 = arith.constant 0 : index
    %c0_3 = arith.constant 0 : index
    %1 = vector.load %arg1[%c0_1, %c0_2, %c0_3] : memref<1x9x3600xbf16, #tpu.memory_space<vmem>>, vector<1x9x3600xbf16>
    %2 = vector.shape_cast %1 : vector<1x9x3600xbf16> to vector<9x3600xbf16>
    %cst = arith.constant dense<0.000000e+00> : vector<6x3600xf32>
    %3 = tpu.matmul %0, %2, %cst {dimension_numbers = #tpu.dot_dimension_numbers<[1], [0], [0], [1], [0, 0, 1, 1], [], []>} : vector<6x9xbf16>, vector<9x3600xbf16>, vector<6x3600xf32> -> vector<6x3600xf32>
    %c0_4 = arith.constant 0 : index
    %c0_5 = arith.constant 0 : index
    %4 = vector.load %arg3[%c0_4, %c0_5] : memref<6x1xf32, #tpu.memory_space<vmem>>, vector<6x1xf32>
    %5 = vector.broadcast %4 : vector<6x1xf32> to vector<6x3600xf32>
    %6 = arith.addf %3, %5 : vector<6x3600xf32>
    %cst_6 = arith.constant 0.000000e+00 : f32
    %7 = vector.broadcast %cst_6 : f32 to vector<6x3600xf32>
    %8 = arith.cmpf ogt, %6, %7 : vector<6x3600xf32>
    %cst_7 = arith.constant 0.00999999977 : f32
    %9 = vector.broadcast %cst_7 : f32 to vector<6x3600xf32>
    %10 = arith.mulf %9, %6 : vector<6x3600xf32>
    %11 = arith.select %8, %6, %10 : vector<6x3600xi1>, vector<6x3600xf32>
    %12 = arith.truncf %11 : vector<6x3600xf32> to vector<6x3600xbf16>
    %c0_8 = arith.constant 0 : index
    %c0_9 = arith.constant 0 : index
    %c0_10 = arith.constant 0 : index
    %13 = vector.load %arg4[%c0_8, %c0_9, %c0_10] : memref<1x6x3600xbf16, #tpu.memory_space<vmem>>, vector<1x6x3600xbf16>
    %14 = vector.shape_cast %13 : vector<1x6x3600xbf16> to vector<6x3600xbf16>
    %15 = vector.shape_cast %12 : vector<6x3600xbf16> to vector<1x6x3600xbf16>
    tpu.vector_store %arg4[%c0_8, %c0_9, %c0_10], %15 {strides = array<i32>} : memref<1x6x3600xbf16, #tpu.memory_space<vmem>>, vector<1x6x3600xbf16>,
    return
  }
  func.func @transform_0(%arg0: i32) -> (i32, i32, i32) {
    %c0_i32 = arith.constant 0 : i32
    %c0_i32_0 = arith.constant 0 : i32
    %c0_i32_1 = arith.constant 0 : i32
    return %arg0, %c0_i32, %c0_i32_0 : i32, i32, i32
  }
  func.func @transform_1(%arg0: i32) -> (i32, i32) {
    %c0_i32 = arith.constant 0 : i32
    %c0_i32_0 = arith.constant 0 : i32
    %c0_i32_1 = arith.constant 0 : i32
    return %c0_i32, %c0_i32_0 : i32, i32
  }
  func.func @transform_2(%arg0: i32) -> (i32, i32) {
    %c0_i32 = arith.constant 0 : i32
    %c0_i32_0 = arith.constant 0 : i32
    %c0_i32_1 = arith.constant 0 : i32
    return %c0_i32, %c0_i32_0 : i32, i32
  }
  func.func @transform_3(%arg0: i32) -> (i32, i32, i32) {
    %c0_i32 = arith.constant 0 : i32
    %c0_i32_0 = arith.constant 0 : i32
    %c0_i32_1 = arith.constant 0 : i32
    return %arg0, %c0_i32, %c0_i32_0 : i32, i32, i32
  }
}

module attributes {stable_mosaic.version = 11 : i64} {
  func.func @_pool_kernel(%arg0: i32, %arg1: memref<1x180x120xbf16, #tpu.memory_space<vmem>>, %arg2: memref<1x180x30xbf16, #tpu.memory_space<vmem>>) attributes {dimension_semantics = [#tpu.dimension_semantics<parallel>], iteration_bounds = array<i64: 2>, scalar_prefetch = 0 : i64, scratch_operands = 0 : i64, tpu.core_type = #tpu.core_type<tc>, window_params = [{transform_indices = @transform_0, window_bounds = array<i64: 1, 180, 120>}, {transform_indices = @transform_1, window_bounds = array<i64: 1, 180, 30>}]} {
    %c0 = arith.constant 0 : index
    %c0_0 = arith.constant 0 : index
    %c0_1 = arith.constant 0 : index
    %0 = vector.load %arg1[%c0, %c0_0, %c0_1] : memref<1x180x120xbf16, #tpu.memory_space<vmem>>, vector<1x180x120xbf16>
    %1 = vector.shape_cast %0 : vector<1x180x120xbf16> to vector<180x120xbf16>
    %2 = arith.extf %1 : vector<180x120xbf16> to vector<180x120xf32>
    %3 = vector.extract_strided_slice %2 {offsets = [0, 0], sizes = [180, 60], strides = [1, 1]} : vector<180x120xf32> to vector<180x60xf32>
    %4 = vector.extract_strided_slice %2 {offsets = [0, 60], sizes = [180, 60], strides = [1, 1]} : vector<180x120xf32> to vector<180x60xf32>
    %5 = arith.maximumf %3, %4 : vector<180x60xf32>
    %6 = tpu.iota {dimensions = array<i32: 0>} : vector<60x30xi32>
    %7 = tpu.iota {dimensions = array<i32: 1>} : vector<60x30xi32>
    %c2_i32 = arith.constant 2 : i32
    %8 = vector.broadcast %c2_i32 : i32 to vector<60x30xi32>
    %9 = arith.muli %8, %7 : vector<60x30xi32>
    %10 = arith.cmpi eq, %6, %9 : vector<60x30xi32>
    %11 = arith.extui %10 : vector<60x30xi1> to vector<60x30xi32>
    %12 = arith.sitofp %11 : vector<60x30xi32> to vector<60x30xf32>
    %c2_i32_2 = arith.constant 2 : i32
    %13 = vector.broadcast %c2_i32_2 : i32 to vector<60x30xi32>
    %14 = arith.muli %13, %7 : vector<60x30xi32>
    %c1_i32 = arith.constant 1 : i32
    %15 = vector.broadcast %c1_i32 : i32 to vector<60x30xi32>
    %16 = arith.addi %14, %15 : vector<60x30xi32>
    %17 = arith.cmpi eq, %6, %16 : vector<60x30xi32>
    %18 = arith.extui %17 : vector<60x30xi1> to vector<60x30xi32>
    %19 = arith.sitofp %18 : vector<60x30xi32> to vector<60x30xf32>
    %cst = arith.constant dense<0.000000e+00> : vector<180x30xf32>
    %20 = tpu.matmul %5, %12, %cst {dimension_numbers = #tpu.dot_dimension_numbers<[1], [0], [0], [1], [0, 0, 1, 1], [], []>} : vector<180x60xf32>, vector<60x30xf32>, vector<180x30xf32> -> vector<180x30xf32>
    %cst_3 = arith.constant dense<0.000000e+00> : vector<180x30xf32>
    %21 = tpu.matmul %5, %19, %cst_3 {dimension_numbers = #tpu.dot_dimension_numbers<[1], [0], [0], [1], [0, 0, 1, 1], [], []>} : vector<180x60xf32>, vector<60x30xf32>, vector<180x30xf32> -> vector<180x30xf32>
    %22 = arith.maximumf %20, %21 : vector<180x30xf32>
    %23 = arith.truncf %22 : vector<180x30xf32> to vector<180x30xbf16>
    %c0_4 = arith.constant 0 : index
    %c0_5 = arith.constant 0 : index
    %c0_6 = arith.constant 0 : index
    %24 = vector.load %arg2[%c0_4, %c0_5, %c0_6] : memref<1x180x30xbf16, #tpu.memory_space<vmem>>, vector<1x180x30xbf16>
    %25 = vector.shape_cast %24 : vector<1x180x30xbf16> to vector<180x30xbf16>
    %26 = vector.shape_cast %23 : vector<180x30xbf16> to vector<1x180x30xbf16>
    tpu.vector_store %arg2[%c0_4, %c0_5, %c0_6], %26 {strides = array<i32>} : memref<1x180x30xbf16, #tpu.memory_space<vmem>>, vector<1x180x30xbf16>,
    return
  }
  func.func @transform_0(%arg0: i32) -> (i32, i32, i32) {
    %c0_i32 = arith.constant 0 : i32
    %c0_i32_0 = arith.constant 0 : i32
    %c0_i32_1 = arith.constant 0 : i32
    return %arg0, %c0_i32, %c0_i32_0 : i32, i32, i32
  }
  func.func @transform_1(%arg0: i32) -> (i32, i32, i32) {
    %c0_i32 = arith.constant 0 : i32
    %c0_i32_0 = arith.constant 0 : i32
    %c0_i32_1 = arith.constant 0 : i32
    return %arg0, %c0_i32, %c0_i32_0 : i32, i32, i32
  }
}

module attributes {stable_mosaic.version = 11 : i64} {
  func.func @_conv_mm_kernel(%arg0: i32, %arg1: memref<1x150x676xbf16, #tpu.memory_space<vmem>>, %arg2: memref<16x150xbf16, #tpu.memory_space<vmem>>, %arg3: memref<16x1xf32, #tpu.memory_space<vmem>>, %arg4: memref<1x16x676xbf16, #tpu.memory_space<vmem>>) attributes {dimension_semantics = [#tpu.dimension_semantics<parallel>], iteration_bounds = array<i64: 2>, scalar_prefetch = 0 : i64, scratch_operands = 0 : i64, tpu.core_type = #tpu.core_type<tc>, window_params = [{transform_indices = @transform_0, window_bounds = array<i64: 1, 150, 676>}, {pipeline_mode = #tpu.pipeline_mode<synchronous>, transform_indices = @transform_1, window_bounds = array<i64: 16, 150>}, {pipeline_mode = #tpu.pipeline_mode<synchronous>, transform_indices = @transform_2, window_bounds = array<i64: 16, 1>}, {transform_indices = @transform_3, window_bounds = array<i64: 1, 16, 676>}]} {
    %c0 = arith.constant 0 : index
    %c0_0 = arith.constant 0 : index
    %0 = vector.load %arg2[%c0, %c0_0] : memref<16x150xbf16, #tpu.memory_space<vmem>>, vector<16x150xbf16>
    %c0_1 = arith.constant 0 : index
    %c0_2 = arith.constant 0 : index
    %c0_3 = arith.constant 0 : index
    %1 = vector.load %arg1[%c0_1, %c0_2, %c0_3] : memref<1x150x676xbf16, #tpu.memory_space<vmem>>, vector<1x150x676xbf16>
    %2 = vector.shape_cast %1 : vector<1x150x676xbf16> to vector<150x676xbf16>
    %cst = arith.constant dense<0.000000e+00> : vector<16x676xf32>
    %3 = tpu.matmul %0, %2, %cst {dimension_numbers = #tpu.dot_dimension_numbers<[1], [0], [0], [1], [0, 0, 1, 1], [], []>} : vector<16x150xbf16>, vector<150x676xbf16>, vector<16x676xf32> -> vector<16x676xf32>
    %c0_4 = arith.constant 0 : index
    %c0_5 = arith.constant 0 : index
    %4 = vector.load %arg3[%c0_4, %c0_5] : memref<16x1xf32, #tpu.memory_space<vmem>>, vector<16x1xf32>
    %5 = vector.broadcast %4 : vector<16x1xf32> to vector<16x676xf32>
    %6 = arith.addf %3, %5 : vector<16x676xf32>
    %cst_6 = arith.constant 0.000000e+00 : f32
    %7 = vector.broadcast %cst_6 : f32 to vector<16x676xf32>
    %8 = arith.cmpf ogt, %6, %7 : vector<16x676xf32>
    %cst_7 = arith.constant 0.00999999977 : f32
    %9 = vector.broadcast %cst_7 : f32 to vector<16x676xf32>
    %10 = arith.mulf %9, %6 : vector<16x676xf32>
    %11 = arith.select %8, %6, %10 : vector<16x676xi1>, vector<16x676xf32>
    %12 = arith.truncf %11 : vector<16x676xf32> to vector<16x676xbf16>
    %c0_8 = arith.constant 0 : index
    %c0_9 = arith.constant 0 : index
    %c0_10 = arith.constant 0 : index
    %13 = vector.load %arg4[%c0_8, %c0_9, %c0_10] : memref<1x16x676xbf16, #tpu.memory_space<vmem>>, vector<1x16x676xbf16>
    %14 = vector.shape_cast %13 : vector<1x16x676xbf16> to vector<16x676xbf16>
    %15 = vector.shape_cast %12 : vector<16x676xbf16> to vector<1x16x676xbf16>
    tpu.vector_store %arg4[%c0_8, %c0_9, %c0_10], %15 {strides = array<i32>} : memref<1x16x676xbf16, #tpu.memory_space<vmem>>, vector<1x16x676xbf16>,
    return
  }
  func.func @transform_0(%arg0: i32) -> (i32, i32, i32) {
    %c0_i32 = arith.constant 0 : i32
    %c0_i32_0 = arith.constant 0 : i32
    %c0_i32_1 = arith.constant 0 : i32
    return %arg0, %c0_i32, %c0_i32_0 : i32, i32, i32
  }
  func.func @transform_1(%arg0: i32) -> (i32, i32) {
    %c0_i32 = arith.constant 0 : i32
    %c0_i32_0 = arith.constant 0 : i32
    %c0_i32_1 = arith.constant 0 : i32
    return %c0_i32, %c0_i32_0 : i32, i32
  }
  func.func @transform_2(%arg0: i32) -> (i32, i32) {
    %c0_i32 = arith.constant 0 : i32
    %c0_i32_0 = arith.constant 0 : i32
    %c0_i32_1 = arith.constant 0 : i32
    return %c0_i32, %c0_i32_0 : i32, i32
  }
  func.func @transform_3(%arg0: i32) -> (i32, i32, i32) {
    %c0_i32 = arith.constant 0 : i32
    %c0_i32_0 = arith.constant 0 : i32
    %c0_i32_1 = arith.constant 0 : i32
    return %arg0, %c0_i32, %c0_i32_0 : i32, i32, i32
  }
}

module attributes {stable_mosaic.version = 11 : i64} {
  func.func @_pool_kernel(%arg0: i32, %arg1: memref<1x208x52xbf16, #tpu.memory_space<vmem>>, %arg2: memref<1x208x13xbf16, #tpu.memory_space<vmem>>) attributes {dimension_semantics = [#tpu.dimension_semantics<parallel>], iteration_bounds = array<i64: 2>, scalar_prefetch = 0 : i64, scratch_operands = 0 : i64, tpu.core_type = #tpu.core_type<tc>, window_params = [{transform_indices = @transform_0, window_bounds = array<i64: 1, 208, 52>}, {transform_indices = @transform_1, window_bounds = array<i64: 1, 208, 13>}]} {
    %c0 = arith.constant 0 : index
    %c0_0 = arith.constant 0 : index
    %c0_1 = arith.constant 0 : index
    %0 = vector.load %arg1[%c0, %c0_0, %c0_1] : memref<1x208x52xbf16, #tpu.memory_space<vmem>>, vector<1x208x52xbf16>
    %1 = vector.shape_cast %0 : vector<1x208x52xbf16> to vector<208x52xbf16>
    %2 = arith.extf %1 : vector<208x52xbf16> to vector<208x52xf32>
    %3 = vector.extract_strided_slice %2 {offsets = [0, 0], sizes = [208, 26], strides = [1, 1]} : vector<208x52xf32> to vector<208x26xf32>
    %4 = vector.extract_strided_slice %2 {offsets = [0, 26], sizes = [208, 26], strides = [1, 1]} : vector<208x52xf32> to vector<208x26xf32>
    %5 = arith.maximumf %3, %4 : vector<208x26xf32>
    %6 = tpu.iota {dimensions = array<i32: 0>} : vector<26x13xi32>
    %7 = tpu.iota {dimensions = array<i32: 1>} : vector<26x13xi32>
    %c2_i32 = arith.constant 2 : i32
    %8 = vector.broadcast %c2_i32 : i32 to vector<26x13xi32>
    %9 = arith.muli %8, %7 : vector<26x13xi32>
    %10 = arith.cmpi eq, %6, %9 : vector<26x13xi32>
    %11 = arith.extui %10 : vector<26x13xi1> to vector<26x13xi32>
    %12 = arith.sitofp %11 : vector<26x13xi32> to vector<26x13xf32>
    %c2_i32_2 = arith.constant 2 : i32
    %13 = vector.broadcast %c2_i32_2 : i32 to vector<26x13xi32>
    %14 = arith.muli %13, %7 : vector<26x13xi32>
    %c1_i32 = arith.constant 1 : i32
    %15 = vector.broadcast %c1_i32 : i32 to vector<26x13xi32>
    %16 = arith.addi %14, %15 : vector<26x13xi32>
    %17 = arith.cmpi eq, %6, %16 : vector<26x13xi32>
    %18 = arith.extui %17 : vector<26x13xi1> to vector<26x13xi32>
    %19 = arith.sitofp %18 : vector<26x13xi32> to vector<26x13xf32>
    %cst = arith.constant dense<0.000000e+00> : vector<208x13xf32>
    %20 = tpu.matmul %5, %12, %cst {dimension_numbers = #tpu.dot_dimension_numbers<[1], [0], [0], [1], [0, 0, 1, 1], [], []>} : vector<208x26xf32>, vector<26x13xf32>, vector<208x13xf32> -> vector<208x13xf32>
    %cst_3 = arith.constant dense<0.000000e+00> : vector<208x13xf32>
    %21 = tpu.matmul %5, %19, %cst_3 {dimension_numbers = #tpu.dot_dimension_numbers<[1], [0], [0], [1], [0, 0, 1, 1], [], []>} : vector<208x26xf32>, vector<26x13xf32>, vector<208x13xf32> -> vector<208x13xf32>
    %22 = arith.maximumf %20, %21 : vector<208x13xf32>
    %23 = arith.truncf %22 : vector<208x13xf32> to vector<208x13xbf16>
    %c0_4 = arith.constant 0 : index
    %c0_5 = arith.constant 0 : index
    %c0_6 = arith.constant 0 : index
    %24 = vector.load %arg2[%c0_4, %c0_5, %c0_6] : memref<1x208x13xbf16, #tpu.memory_space<vmem>>, vector<1x208x13xbf16>
    %25 = vector.shape_cast %24 : vector<1x208x13xbf16> to vector<208x13xbf16>
    %26 = vector.shape_cast %23 : vector<208x13xbf16> to vector<1x208x13xbf16>
    tpu.vector_store %arg2[%c0_4, %c0_5, %c0_6], %26 {strides = array<i32>} : memref<1x208x13xbf16, #tpu.memory_space<vmem>>, vector<1x208x13xbf16>,
    return
  }
  func.func @transform_0(%arg0: i32) -> (i32, i32, i32) {
    %c0_i32 = arith.constant 0 : i32
    %c0_i32_0 = arith.constant 0 : i32
    %c0_i32_1 = arith.constant 0 : i32
    return %arg0, %c0_i32, %c0_i32_0 : i32, i32, i32
  }
  func.func @transform_1(%arg0: i32) -> (i32, i32, i32) {
    %c0_i32 = arith.constant 0 : i32
    %c0_i32_0 = arith.constant 0 : i32
    %c0_i32_1 = arith.constant 0 : i32
    return %arg0, %c0_i32, %c0_i32_0 : i32, i32, i32
  }
}

module attributes {stable_mosaic.version = 11 : i64} {
  func.func @_fc_fused_kernel(%arg0: i32, %arg1: memref<2x2704xbf16, #tpu.memory_space<vmem>>, %arg2: memref<2704x512xbf16, #tpu.memory_space<vmem>>, %arg3: memref<1x512xf32, #tpu.memory_space<vmem>>, %arg4: memref<512x128xbf16, #tpu.memory_space<vmem>>, %arg5: memref<1x128xf32, #tpu.memory_space<vmem>>, %arg6: memref<2x128xf32, #tpu.memory_space<vmem>>) attributes {dimension_semantics = [#tpu.dimension_semantics<parallel>], iteration_bounds = array<i64: 1>, scalar_prefetch = 0 : i64, scratch_operands = 0 : i64, tpu.core_type = #tpu.core_type<tc>, window_params = [{transform_indices = @transform_0, window_bounds = array<i64: 2, 2704>}, {pipeline_mode = #tpu.pipeline_mode<synchronous>, transform_indices = @transform_1, window_bounds = array<i64: 2704, 512>}, {pipeline_mode = #tpu.pipeline_mode<synchronous>, transform_indices = @transform_2, window_bounds = array<i64: 1, 512>}, {pipeline_mode = #tpu.pipeline_mode<synchronous>, transform_indices = @transform_3, window_bounds = array<i64: 512, 128>}, {pipeline_mode = #tpu.pipeline_mode<synchronous>, transform_indices = @transform_4, window_bounds = array<i64: 1, 128>}, {transform_indices = @transform_5, window_bounds = array<i64: 2, 128>}]} {
    %c0 = arith.constant 0 : index
    %c0_0 = arith.constant 0 : index
    %0 = vector.load %arg1[%c0, %c0_0] : memref<2x2704xbf16, #tpu.memory_space<vmem>>, vector<2x2704xbf16>
    %c0_1 = arith.constant 0 : index
    %c0_2 = arith.constant 0 : index
    %1 = vector.load %arg2[%c0_1, %c0_2] : memref<2704x512xbf16, #tpu.memory_space<vmem>>, vector<2704x512xbf16>
    %cst = arith.constant dense<0.000000e+00> : vector<2x512xf32>
    %2 = tpu.matmul %0, %1, %cst {dimension_numbers = #tpu.dot_dimension_numbers<[1], [0], [0], [1], [0, 0, 1, 1], [], []>} : vector<2x2704xbf16>, vector<2704x512xbf16>, vector<2x512xf32> -> vector<2x512xf32>
    %c0_3 = arith.constant 0 : index
    %c0_4 = arith.constant 0 : index
    %3 = vector.load %arg3[%c0_3, %c0_4] : memref<1x512xf32, #tpu.memory_space<vmem>>, vector<1x512xf32>
    %4 = vector.broadcast %3 : vector<1x512xf32> to vector<2x512xf32>
    %5 = arith.addf %2, %4 : vector<2x512xf32>
    %cst_5 = arith.constant 0.000000e+00 : f32
    %6 = vector.broadcast %cst_5 : f32 to vector<2x512xf32>
    %7 = arith.cmpf ogt, %5, %6 : vector<2x512xf32>
    %cst_6 = arith.constant 0.00999999977 : f32
    %8 = vector.broadcast %cst_6 : f32 to vector<2x512xf32>
    %9 = arith.mulf %8, %5 : vector<2x512xf32>
    %10 = arith.select %7, %5, %9 : vector<2x512xi1>, vector<2x512xf32>
    %11 = arith.truncf %10 : vector<2x512xf32> to vector<2x512xbf16>
    %c0_7 = arith.constant 0 : index
    %c0_8 = arith.constant 0 : index
    %12 = vector.load %arg4[%c0_7, %c0_8] : memref<512x128xbf16, #tpu.memory_space<vmem>>, vector<512x128xbf16>
    %cst_9 = arith.constant dense<0.000000e+00> : vector<2x128xf32>
    %13 = tpu.matmul %11, %12, %cst_9 {dimension_numbers = #tpu.dot_dimension_numbers<[1], [0], [0], [1], [0, 0, 1, 1], [], []>} : vector<2x512xbf16>, vector<512x128xbf16>, vector<2x128xf32> -> vector<2x128xf32>
    %c0_10 = arith.constant 0 : index
    %c0_11 = arith.constant 0 : index
    %14 = vector.load %arg5[%c0_10, %c0_11] : memref<1x128xf32, #tpu.memory_space<vmem>>, vector<1x128xf32>
    %15 = vector.broadcast %14 : vector<1x128xf32> to vector<2x128xf32>
    %16 = arith.addf %13, %15 : vector<2x128xf32>
    %c0_12 = arith.constant 0 : index
    %c0_13 = arith.constant 0 : index
    %17 = vector.load %arg6[%c0_12, %c0_13] : memref<2x128xf32, #tpu.memory_space<vmem>>, vector<2x128xf32>
    tpu.vector_store %arg6[%c0_12, %c0_13], %16 {strides = array<i32>} : memref<2x128xf32, #tpu.memory_space<vmem>>, vector<2x128xf32>,
    return
  }
  func.func @transform_0(%arg0: i32) -> (i32, i32) {
    %c0_i32 = arith.constant 0 : i32
    %c0_i32_0 = arith.constant 0 : i32
    return %arg0, %c0_i32 : i32, i32
  }
  func.func @transform_1(%arg0: i32) -> (i32, i32) {
    %c0_i32 = arith.constant 0 : i32
    %c0_i32_0 = arith.constant 0 : i32
    %c0_i32_1 = arith.constant 0 : i32
    return %c0_i32, %c0_i32_0 : i32, i32
  }
  func.func @transform_2(%arg0: i32) -> (i32, i32) {
    %c0_i32 = arith.constant 0 : i32
    %c0_i32_0 = arith.constant 0 : i32
    %c0_i32_1 = arith.constant 0 : i32
    return %c0_i32, %c0_i32_0 : i32, i32
  }
  func.func @transform_3(%arg0: i32) -> (i32, i32) {
    %c0_i32 = arith.constant 0 : i32
    %c0_i32_0 = arith.constant 0 : i32
    %c0_i32_1 = arith.constant 0 : i32
    return %c0_i32, %c0_i32_0 : i32, i32
  }
  func.func @transform_4(%arg0: i32) -> (i32, i32) {
    %c0_i32 = arith.constant 0 : i32
    %c0_i32_0 = arith.constant 0 : i32
    %c0_i32_1 = arith.constant 0 : i32
    return %c0_i32, %c0_i32_0 : i32, i32
  }
  func.func @transform_5(%arg0: i32) -> (i32, i32) {
    %c0_i32 = arith.constant 0 : i32
    %c0_i32_0 = arith.constant 0 : i32
    return %arg0, %c0_i32 : i32, i32
  }
}

</mosaic_0001>

<llo_original>
// kernel: encoder_forward.5
$region0: #{encoder_forward.5}
  #allocation0 [shape = 'u32[]', space=smem, size = 0x4, offset = 0x4, fixed_abs, tag = 'smem constant byte address 0x4 - core index']
  #allocation1 [shape = 'u32[144,128]{1,0:T(1,128)}', space=vmem, size = 0x12000, scoped, tag = 'internal scratch']
  %s0 = inlined_call_operand.vmem [shape: bf16[2,9,3600], index: 0, kind: input, shape index: {}]
  %s1 = inlined_call_operand.vmem [shape: bf16[6,9], index: 1, kind: input, shape index: {}]
  %s2 = inlined_call_operand.vmem [shape: f32[6,1], index: 2, kind: input, shape index: {}]
  %s3 = inlined_call_operand.vmem [shape: bf16[2,6,3600], index: 3, kind: output, shape index: {}]
  %s4 = sld [smem:[#allocation0]]
  $region45: #{encoder_forward.5} parent=0
    _
  %s6 = ssub.s32 1, %s4
  %s7 = scalar_select 0, %s6, %s4
  loop: start=0, step=1, limit=4
  $region2: #{encoder_forward.5} parent=0 // loop_pre_header
    _
  $region3: #{encoder_forward.5} parent=0 // loop_header
    %s9 = sphi 0, %s13
    %p10 = scmp.ge.s32.totalorder %s9, 4
    %s19 = sphi 0, %s21
    %s22 = sphi 0, %s19
    %s23 = sphi 0, %s22
    %s39 = sphi 0, %s23
    %s43 = sphi 0, %s43
    %s45 = sphi 0, %s43
    %s46 = sphi 0, %s45
    %s60 = sphi 0, %s46
    %s64 = sphi 0, %s64
    %s66 = sphi 0, %s64
    %s67 = sphi 0, %s66
    %s81 = sphi 0, %s67
    %s87 = sphi 0, %s89
    %s90 = sphi 0, %s87
    %s91 = sphi 0, %s90
    %s107 = sphi 0, %s91
  $region4: #{encoder_forward.5} parent=0 // loop_header_branch
    %12 = sbr.rel (%p10) target = $region8
  $region5: #{encoder_forward.5} parent=0 // loop_body
    %s14 = ssub.s32 %s9, 1
    %s15 = ssub.s32 %s9, 2
    %s16 = sadd.s32 %s9, 1
    %s17 = ssub.s32 %s9, %s16
    %p18 = scmp.eq.s32.totalorder %s17, 0
    %s20 = sadd.s32 %s19, 1
    %s21 = scalar_select %p18, %s19, %s20
    %p24 = pneg %p18
    %p25 = scmp.eq.s32.totalorder %s9, 1
    %p26 = por %p24, %p25
    %p27 = scmp.ne.s32.totalorder %s19, %s22
    %p28 = scmp.eq.s32.totalorder %s9, 0
    %p29 = por %p27, %p28
    %p30 = scmp.ne.s32.totalorder %s19, %s22
    %p31 = scmp.eq.s32.totalorder %s14, 1
    %p32 = por %p30, %p31
    %p33 = scmp.ne.s32.totalorder %s22, %s23
    %p34 = scmp.eq.s32.totalorder %s14, 0
    %p35 = por %p33, %p34
    %p36 = scmp.ne.s32.totalorder %s22, %s23
    %p37 = scmp.eq.s32.totalorder %s15, 1
    %p38 = por %p36, %p37
    %p40 = scmp.ne.s32.totalorder %s23, %s39
    %p41 = scmp.eq.s32.totalorder %s15, 0
    %p42 = por %p40, %p41
    %s44 = sadd.s32 %s43, 1
    %p47 = scmp.eq.s32.totalorder %s9, 1
    %p48 = scmp.ne.s32.totalorder %s43, %s45
    %p49 = scmp.eq.s32.totalorder %s9, 0
    %p50 = por %p48, %p49
    %p51 = scmp.ne.s32.totalorder %s43, %s45
    %p52 = scmp.eq.s32.totalorder %s14, 1
    %p53 = por %p51, %p52
    %p54 = scmp.ne.s32.totalorder %s45, %s46
    %p55 = scmp.eq.s32.totalorder %s14, 0
    %p56 = por %p54, %p55
    %p57 = scmp.ne.s32.totalorder %s45, %s46
    %p58 = scmp.eq.s32.totalorder %s15, 1
    %p59 = por %p57, %p58
    %p61 = scmp.ne.s32.totalorder %s46, %s60
    %p62 = scmp.eq.s32.totalorder %s15, 0
    %p63 = por %p61, %p62
    %s65 = sadd.s32 %s64, 1
    %p68 = scmp.eq.s32.totalorder %s9, 1
    %p69 = scmp.ne.s32.totalorder %s64, %s66
    %p70 = scmp.eq.s32.totalorder %s9, 0
    %p71 = por %p69, %p70
    %p72 = scmp.ne.s32.totalorder %s64, %s66
    %p73 = scmp.eq.s32.totalorder %s14, 1
    %p74 = por %p72, %p73
    %p75 = scmp.ne.s32.totalorder %s66, %s67
    %p76 = scmp.eq.s32.totalorder %s14, 0
    %p77 = por %p75, %p76
    %p78 = scmp.ne.s32.totalorder %s66, %s67
    %p79 = scmp.eq.s32.totalorder %s15, 1
    %p80 = por %p78, %p79
    %p82 = scmp.ne.s32.totalorder %s67, %s81
    %p83 = scmp.eq.s32.totalorder %s15, 0
    %p84 = por %p82, %p83
    %s85 = ssub.s32 %s9, %s16
    %p86 = scmp.eq.s32.totalorder %s85, 0
    %s88 = sadd.s32 %s87, 1
    %s89 = scalar_select %p86, %s87, %s88
    %p92 = pneg %p86
    %p93 = scmp.eq.s32.totalorder %s9, 1
    %p94 = por %p92, %p93
    %p95 = scmp.ne.s32.totalorder %s87, %s90
    %p96 = scmp.eq.s32.totalorder %s9, 0
    %p97 = por %p95, %p96
    %p98 = scmp.ne.s32.totalorder %s87, %s90
    %p99 = scmp.eq.s32.totalorder %s14, 1
    %p100 = por %p98, %p99
    %p101 = scmp.ne.s32.totalorder %s90, %s91
    %p102 = scmp.eq.s32.totalorder %s14, 0
    %p103 = por %p101, %p102
    %p104 = scmp.ne.s32.totalorder %s90, %s91
    %p105 = scmp.eq.s32.totalorder %s15, 1
    %p106 = por %p104, %p105
    %p108 = scmp.ne.s32.totalorder %s91, %s107
    %p109 = scmp.eq.s32.totalorder %s15, 0
    %p110 = por %p108, %p109
    %p111 = scmp.le.s32.totalorder 1, %s9
    %p112 = scmp.lt.s32.totalorder %s9, 3
    %p113 = pnand %p111, %p112
    %p114 = pneg %p113
    // Predicated region
    $region9: #{encoder_forward.5} parent=5 // pred_check
      _
    $region10: #{encoder_forward.5} parent=5 // pred_check_branch
      %116 = sbr.rel (%p113) target = $region12
    $region11: #{encoder_forward.5} parent=5 // pred_region
      %s117 = ssub.s32 %s9, 1
      // Predicated region
      $region13: #{encoder_forward.5} parent=11 // pred_check
        %p118 = pneg %p56
      $region14: #{encoder_forward.5} parent=11 // pred_check_branch
        %120 = sbr.rel (%p118) target = $region16
      $region15: #{encoder_forward.5} parent=11 // pred_region
        _
      $region16: #{encoder_forward.5} parent=11 // pred_fallthru
        _
      // Predicated region
      $region17: #{encoder_forward.5} parent=11 // pred_check
        %p121 = pneg %p77
      $region18: #{encoder_forward.5} parent=11 // pred_check_branch
        %123 = sbr.rel (%p121) target = $region20
      $region19: #{encoder_forward.5} parent=11 // pred_region
        _
      $region20: #{encoder_forward.5} parent=11 // pred_fallthru
        _
    $region12: #{encoder_forward.5} parent=5 // pred_fallthru
      _
    %p124 = scmp.lt.s32.totalorder %s9, 2
    // Predicated region
    $region21: #{encoder_forward.5} parent=5 // pred_check
      %p125 = pneg %p124
    $region22: #{encoder_forward.5} parent=5 // pred_check_branch
      %127 = sbr.rel (%p125) target = $region24
    $region23: #{encoder_forward.5} parent=5 // pred_region
      // Predicated region
      $region25: #{encoder_forward.5} parent=23 // pred_check
        %p128 = pneg %p29
      $region26: #{encoder_forward.5} parent=23 // pred_check_branch
        %130 = sbr.rel (%p128) target = $region28
      $region27: #{encoder_forward.5} parent=23 // pred_region
        %p131 = scmp.lt.s32.totalorder %s9, 1
        %s132 = scalar_select %p131, %s9, 1
        %s133 = smul.addr %s132, 58
        %s134 = smul.addr %s133, 4
        %s135 = scalar_lea.vmem %s0, %s134
      $region28: #{encoder_forward.5} parent=23 // pred_fallthru
        _
    $region24: #{encoder_forward.5} parent=5 // pred_fallthru
      _
    %p136 = scmp.le.s32.totalorder 1, %s9
    %p137 = scmp.lt.s32.totalorder %s9, 3
    %p138 = pnand %p136, %p137
    %p139 = pneg %p138
    // Predicated region
    $region29: #{encoder_forward.5} parent=5 // pred_check
      _
    $region30: #{encoder_forward.5} parent=5 // pred_check_branch
      %141 = sbr.rel (%p138) target = $region32
    $region31: #{encoder_forward.5} parent=5 // pred_region
      %s142 = ssub.s32 %s9, 1
      %p143 = scmp.lt.s32.totalorder %s14, 1
      %s144 = scalar_select %p143, %s14, 1
      %s145 = smul.addr %s144, 58
      %s146 = smul.addr %s145, 4
      %s147 = scalar_lea.vmem %s0, %s146
      %p148 = pneg %p35
      %p149 = pneg %p32
      %p150 = pneg %p56
      %p151 = pneg %p53
      %p152 = pneg %p77
      %p153 = pneg %p74
      %p154 = pneg %p103
      %p155 = pneg %p100
      %p156 = scmp.lt.s32.totalorder %s14, 1
      %s157 = scalar_select %p156, %s14, 1
      %s158 = smul.addr %s157, 29
      %s159 = smul.addr %s158, 4
      %s160 = scalar_lea.vmem %s3, %s159
      %p161 = scmp.lt.s32.totalorder %s14, 1
      %s162 = scalar_select %p161, %s14, 1
      %s163 = smul.addr %s162, 58
      %s164 = smul.addr %s163, 4
      %s165 = scalar_lea.vmem %s0, %s164
      %p166 = scmp.lt.s32.totalorder %s14, 1
      %s167 = scalar_select %p166, %s14, 1
      %s168 = smul.addr %s167, 29
      %s169 = smul.addr %s168, 4
      %s170 = scalar_lea.vmem %s3, %s169
      %v172 = vld [vmem:[%s1] sm:$0x7]
      %v173 = vld [vmem:[%s165] sm:$0xff]
      %v174 = vld [vmem:[%s165 + $0x8] sm:$0xff]
      %v175 = vld [vmem:[%s165 + $0x10] sm:$0xff]
      %v176 = vld [vmem:[%s165 + $0x18] sm:$0xff]
      %v177 = vld [vmem:[%s165 + $0x20] sm:$0xff]
      %v178 = vld [vmem:[%s165 + $0x28] sm:$0xff]
      %v179 = vld [vmem:[%s165 + $0x30] sm:$0xff]
      %v180 = vld [vmem:[%s165 + $0x38] sm:$0xff]
      %v181 = vld [vmem:[%s165 + $0x40] sm:$0xff]
      %v182 = vld [vmem:[%s165 + $0x48] sm:$0xff]
      %v183 = vld [vmem:[%s165 + $0x50] sm:$0xff]
      %v184 = vld [vmem:[%s165 + $0x58] sm:$0xff]
      %v185 = vld [vmem:[%s165 + $0x60] sm:$0xff]
      %v186 = vld [vmem:[%s165 + $0x68] sm:$0xff]
      %v187 = vld [vmem:[%s165 + $0x70] sm:$0xf]
      %v188 = vld [vmem:[%s165 + $0x74] sm:$0x11]
      %v189 = vld [vmem:[%s165 + $0x7c] sm:$0x11]
      %v190 = vld [vmem:[%s165 + $0x84] sm:$0x11]
      %v191 = vld [vmem:[%s165 + $0x8c] sm:$0x11]
      %v192 = vld [vmem:[%s165 + $0x94] sm:$0x11]
      %v193 = vld [vmem:[%s165 + $0x9c] sm:$0x11]
      %v194 = vld [vmem:[%s165 + $0xa4] sm:$0x11]
      %v195 = vld [vmem:[%s165 + $0xac] sm:$0x11]
      %v196 = vld [vmem:[%s165 + $0xb4] sm:$0x11]
      %v197 = vld [vmem:[%s165 + $0xbc] sm:$0x11]
      %v198 = vld [vmem:[%s165 + $0xc4] sm:$0x11]
      %v199 = vld [vmem:[%s165 + $0xcc] sm:$0x11]
      %v200 = vld [vmem:[%s165 + $0xd4] sm:$0x11]
      %v201 = vld [vmem:[%s165 + $0xdc] sm:$0x11]
      %v202 = vld [vmem:[%s165 + $0xe4] sm:$0x1]
      %v203 = vld [vmem:[%s2] sm:$0x3f]
      %205 = vset.pattern.permute.xlu0 0
      %206 = vperm.xlu0 %205, %v203
      %v207 = vpop.permute.xlu0 %206
      %v239 = vunpack.c.l.b16 %v173
      %v240 = vunpack.c.h.b16 %v173
      %v241 = vunpack.c.l.b16 %v174
      %v242 = vunpack.c.h.b16 %v174
      %v243 = vunpack.c.l.b16 %v175
      %v244 = vunpack.c.h.b16 %v175
      %v245 = vunpack.c.l.b16 %v176
      %v246 = vunpack.c.h.b16 %v176
      %v247 = vunpack.c.l.b16 %v177
      %v248 = vunpack.c.h.b16 %v177
      %v249 = vunpack.c.l.b16 %v178
      %v250 = vunpack.c.h.b16 %v178
      %v251 = vunpack.c.l.b16 %v179
      %v252 = vunpack.c.h.b16 %v179
      %v253 = vunpack.c.l.b16 %v180
      %v254 = vunpack.c.h.b16 %v180
      %v255 = vunpack.c.l.b16 %v181
      %v256 = vunpack.c.h.b16 %v181
      %v257 = vunpack.c.l.b16 %v182
      %v258 = vunpack.c.h.b16 %v182
      %v259 = vunpack.c.l.b16 %v183
      %v260 = vunpack.c.h.b16 %v183
      %v261 = vunpack.c.l.b16 %v184
      %v262 = vunpack.c.h.b16 %v184
      %v263 = vunpack.c.l.b16 %v185
      %v264 = vunpack.c.h.b16 %v185
      %v265 = vunpack.c.l.b16 %v186
      %v266 = vunpack.c.h.b16 %v186
      %v267 = vunpack.c.l.b16 %v187
      %v268 = vunpack.c.l.b16 %v188
      %v269 = vunpack.c.h.b16 %v188
      %v270 = vunpack.c.l.b16 %v189
      %v271 = vunpack.c.h.b16 %v189
      %v272 = vunpack.c.l.b16 %v190
      %v273 = vunpack.c.h.b16 %v190
      %v274 = vunpack.c.l.b16 %v191
      %v275 = vunpack.c.h.b16 %v191
      %v276 = vunpack.c.l.b16 %v192
      %v277 = vunpack.c.h.b16 %v192
      %v278 = vunpack.c.l.b16 %v193
      %v279 = vunpack.c.h.b16 %v193
      %v280 = vunpack.c.l.b16 %v194
      %v281 = vunpack.c.h.b16 %v194
      %v282 = vunpack.c.l.b16 %v195
      %v283 = vunpack.c.h.b16 %v195
      %v284 = vunpack.c.l.b16 %v196
      %v285 = vunpack.c.h.b16 %v196
      %v286 = vunpack.c.l.b16 %v197
      %v287 = vunpack.c.h.b16 %v197
      %v288 = vunpack.c.l.b16 %v198
      %v289 = vunpack.c.h.b16 %v198
      %v290 = vunpack.c.l.b16 %v199
      %v291 = vunpack.c.h.b16 %v199
      %v292 = vunpack.c.l.b16 %v200
      %v293 = vunpack.c.h.b16 %v200
      %v294 = vunpack.c.l.b16 %v201
      %v295 = vunpack.c.h.b16 %v201
      %v296 = vunpack.c.l.b16 %v202
      %v297 = vpack.c.b16 %v268, %v239
      %v298 = vpack.c.b16 %v269, %v240
      %v299 = vpack.c.b16 %v270, %v241
      %v300 = vpack.c.b16 %v271, %v242
      %v301 = vpack.c.b16 %v272, %v243
      %v302 = vpack.c.b16 %v273, %v244
      %v303 = vpack.c.b16 %v274, %v245
      %v304 = vpack.c.b16 %v275, %v246
      %v305 = vpack.c.b16 %v276, %v247
      %v306 = vpack.c.b16 %v277, %v248
      %v307 = vpack.c.b16 %v278, %v249
      %v308 = vpack.c.b16 %v279, %v250
      %v309 = vpack.c.b16 %v280, %v251
      %v310 = vpack.c.b16 %v281, %v252
      %v311 = vpack.c.b16 %v282, %v253
      %v312 = vpack.c.b16 %v283, %v254
      %v313 = vpack.c.b16 %v284, %v255
      %v314 = vpack.c.b16 %v285, %v256
      %v315 = vpack.c.b16 %v286, %v257
      %v316 = vpack.c.b16 %v287, %v258
      %v317 = vpack.c.b16 %v288, %v259
      %v318 = vpack.c.b16 %v289, %v260
      %v319 = vpack.c.b16 %v290, %v261
      %v320 = vpack.c.b16 %v291, %v262
      %v321 = vpack.c.b16 %v292, %v263
      %v322 = vpack.c.b16 %v293, %v264
      %v323 = vpack.c.b16 %v294, %v265
      %v324 = vpack.c.b16 %v295, %v266
      %v325 = vpack.c.b16 %v296, %v267
      %vm326 = vcmask 72704
      %v328 = vsel %vm326, %v172, 0
      %vm330 = vcmask 1043456
      %vm331 = vcmask 1044480
      %v332 = vsel %vm330, 4294967295, 65535
      %v333 = vsel %vm331, %v332, 0
      %v335 = vand.u32 %v297, %v333
      %v338 = vand.u32 %v298, %v333
      %v341 = vand.u32 %v299, %v333
      %v344 = vand.u32 %v300, %v333
      %v347 = vand.u32 %v301, %v333
      %v350 = vand.u32 %v302, %v333
      %v353 = vand.u32 %v303, %v333
      %v356 = vand.u32 %v304, %v333
      %v359 = vand.u32 %v305, %v333
      %v362 = vand.u32 %v306, %v333
      %v365 = vand.u32 %v307, %v333
      %v368 = vand.u32 %v308, %v333
      %v371 = vand.u32 %v309, %v333
      %v374 = vand.u32 %v310, %v333
      %v377 = vand.u32 %v311, %v333
      %v380 = vand.u32 %v312, %v333
      %v383 = vand.u32 %v313, %v333
      %v386 = vand.u32 %v314, %v333
      %v389 = vand.u32 %v315, %v333
      %v392 = vand.u32 %v316, %v333
      %v395 = vand.u32 %v317, %v333
      %v398 = vand.u32 %v318, %v333
      %v401 = vand.u32 %v319, %v333
      %v404 = vand.u32 %v320, %v333
      %v407 = vand.u32 %v321, %v333
      %v410 = vand.u32 %v322, %v333
      %v413 = vand.u32 %v323, %v333
      %v416 = vand.u32 %v324, %v333
      %v419 = vand.u32 %v325, %v333
      %421 = vmatprep.subr.bf16.mxu0 %v338
      %422 = vmatpush1.bf16.msra.mxu0 %v335
      %423 = vmatprep.subr.bf16.mxu0 0
      %424 = vmatpush1.bf16.msra.mxu0 0
      %425 = vmatprep.subr.bf16.mxu0 0
      %426 = vmatpush1.bf16.msra.mxu0 0
      %427 = vmatprep.subr.bf16.mxu0 0
      %428 = vmatpush1.bf16.msra.mxu0 0
      %429 = vmatprep.subr.bf16.mxu0 0
      %430 = vmatpush1.bf16.msra.mxu0 0
      %431 = vmatprep.subr.bf16.mxu0 0
      %432 = vmatpush1.bf16.msra.mxu0 0
      %433 = vmatprep.subr.bf16.mxu0 0
      %434 = vmatpush1.bf16.msra.mxu0 0
      %435 = vmatprep.subr.bf16.mxu0 0
      %436 = vmatpush1.bf16.msra.mxu0 0
      %437 = vmatprep.subr.bf16.mxu0 0
      %438 = vmatpush1.bf16.msra.mxu0 0
      %439 = vmatprep.subr.bf16.mxu0 0
      %440 = vmatpush1.bf16.msra.mxu0 0
      %441 = vmatprep.subr.bf16.mxu0 0
      %442 = vmatpush1.bf16.msra.mxu0 0
      %443 = vmatprep.subr.bf16.mxu0 0
      %444 = vmatpush1.bf16.msra.mxu0 0
      %445 = vmatprep.subr.bf16.mxu0 0
      %446 = vmatpush1.bf16.msra.mxu0 0
      %447 = vmatprep.subr.bf16.mxu0 0
      %448 = vmatpush1.bf16.msra.mxu0 0
      %449 = vmatprep.subr.bf16.mxu0 0
      %450 = vmatpush1.bf16.msra.mxu0 0
      %451 = vmatprep.subr.bf16.mxu0 0
      %452 = vmatpush1.bf16.msra.mxu0 0
      %453 = vmatprep.mubr.bf16.mxu0 0
      %454 = vmatmul.mubr.bf16.gmra.mrb[0].mxu0 %v328
      %v455 = vpop.f32.mrb[0].mxu0
      %v456 = vadd.f32 %v207, %v455
      %v457 = vpop.f32.mrb[0].mxu0
      %v458 = vadd.f32 %v207, %v457
      %v459 = vpop.f32.mrb[0].mxu0
      %v460 = vpop.f32.mrb[0].mxu0
      %461 = vdwg.mxu0
      %462 = vmatprep.subr.bf16.mxu0 %v344
      %463 = vmatpush1.bf16.msra.mxu0 %v341
      %464 = vmatprep.subr.bf16.mxu0 0
      %465 = vmatpush1.bf16.msra.mxu0 0
      %466 = vmatprep.subr.bf16.mxu0 0
      %467 = vmatpush1.bf16.msra.mxu0 0
      %468 = vmatprep.subr.bf16.mxu0 0
      %469 = vmatpush1.bf16.msra.mxu0 0
      %470 = vmatprep.subr.bf16.mxu0 0
      %471 = vmatpush1.bf16.msra.mxu0 0
      %472 = vmatprep.subr.bf16.mxu0 0
      %473 = vmatpush1.bf16.msra.mxu0 0
      %474 = vmatprep.subr.bf16.mxu0 0
      %475 = vmatpush1.bf16.msra.mxu0 0
      %476 = vmatprep.subr.bf16.mxu0 0
      %477 = vmatpush1.bf16.msra.mxu0 0
      %478 = vmatprep.subr.bf16.mxu0 0
      %479 = vmatpush1.bf16.msra.mxu0 0
      %480 = vmatprep.subr.bf16.mxu0 0
      %481 = vmatpush1.bf16.msra.mxu0 0
      %482 = vmatprep.subr.bf16.mxu0 0
      %483 = vmatpush1.bf16.msra.mxu0 0
      %484 = vmatprep.subr.bf16.mxu0 0
      %485 = vmatpush1.bf16.msra.mxu0 0
      %486 = vmatprep.subr.bf16.mxu0 0
      %487 = vmatpush1.bf16.msra.mxu0 0
      %488 = vmatprep.subr.bf16.mxu0 0
      %489 = vmatpush1.bf16.msra.mxu0 0
      %490 = vmatprep.subr.bf16.mxu0 0
      %491 = vmatpush1.bf16.msra.mxu0 0
      %492 = vmatprep.subr.bf16.mxu0 0
      %493 = vmatpush1.bf16.msra.mxu0 0
      %494 = vmatprep.mubr.bf16.mxu0 0
      %495 = vmatmul.mubr.bf16.gmra.mrb[0].mxu0 %v328
      %v496 = vpop.f32.mrb[0].mxu0
      %v497 = vadd.f32 %v207, %v496
      %v498 = vpop.f32.mrb[0].mxu0
      %v499 = vadd.f32 %v207, %v498
      %v500 = vpop.f32.mrb[0].mxu0
      %v501 = vpop.f32.mrb[0].mxu0
      %502 = vdwg.mxu0
      %503 = vmatprep.subr.bf16.mxu0 %v350
      %504 = vmatpush1.bf16.msra.mxu0 %v347
      %505 = vmatprep.subr.bf16.mxu0 0
      %506 = vmatpush1.bf16.msra.mxu0 0
      %507 = vmatprep.subr.bf16.mxu0 0
      %508 = vmatpush1.bf16.msra.mxu0 0
      %509 = vmatprep.subr.bf16.mxu0 0
      %510 = vmatpush1.bf16.msra.mxu0 0
      %511 = vmatprep.subr.bf16.mxu0 0
      %512 = vmatpush1.bf16.msra.mxu0 0
      %513 = vmatprep.subr.bf16.mxu0 0
      %514 = vmatpush1.bf16.msra.mxu0 0
      %515 = vmatprep.subr.bf16.mxu0 0
      %516 = vmatpush1.bf16.msra.mxu0 0
      %517 = vmatprep.subr.bf16.mxu0 0
      %518 = vmatpush1.bf16.msra.mxu0 0
      %519 = vmatprep.subr.bf16.mxu0 0
      %520 = vmatpush1.bf16.msra.mxu0 0
      %521 = vmatprep.subr.bf16.mxu0 0
      %522 = vmatpush1.bf16.msra.mxu0 0
      %523 = vmatprep.subr.bf16.mxu0 0
      %524 = vmatpush1.bf16.msra.mxu0 0
      %525 = vmatprep.subr.bf16.mxu0 0
      %526 = vmatpush1.bf16.msra.mxu0 0
      %527 = vmatprep.subr.bf16.mxu0 0
      %528 = vmatpush1.bf16.msra.mxu0 0
      %529 = vmatprep.subr.bf16.mxu0 0
      %530 = vmatpush1.bf16.msra.mxu0 0
      %531 = vmatprep.subr.bf16.mxu0 0
      %532 = vmatpush1.bf16.msra.mxu0 0
      %533 = vmatprep.subr.bf16.mxu0 0
      %534 = vmatpush1.bf16.msra.mxu0 0
      %535 = vmatprep.mubr.bf16.mxu0 0
      %536 = vmatmul.mubr.bf16.gmra.mrb[0].mxu0 %v328
      %v537 = vpop.f32.mrb[0].mxu0
      %v538 = vadd.f32 %v207, %v537
      %v539 = vpop.f32.mrb[0].mxu0
      %v540 = vadd.f32 %v207, %v539
      %v541 = vpop.f32.mrb[0].mxu0
      %v542 = vpop.f32.mrb[0].mxu0
      %543 = vdwg.mxu0
      %544 = vmatprep.subr.bf16.mxu0 %v356
      %545 = vmatpush1.bf16.msra.mxu0 %v353
      %546 = vmatprep.subr.bf16.mxu0 0
      %547 = vmatpush1.bf16.msra.mxu0 0
      %548 = vmatprep.subr.bf16.mxu0 0
      %549 = vmatpush1.bf16.msra.mxu0 0
      %550 = vmatprep.subr.bf16.mxu0 0
      %551 = vmatpush1.bf16.msra.mxu0 0
      %552 = vmatprep.subr.bf16.mxu0 0
      %553 = vmatpush1.bf16.msra.mxu0 0
      %554 = vmatprep.subr.bf16.mxu0 0
      %555 = vmatpush1.bf16.msra.mxu0 0
      %556 = vmatprep.subr.bf16.mxu0 0
      %557 = vmatpush1.bf16.msra.mxu0 0
      %558 = vmatprep.subr.bf16.mxu0 0
      %559 = vmatpush1.bf16.msra.mxu0 0
      %560 = vmatprep.subr.bf16.mxu0 0
      %561 = vmatpush1.bf16.msra.mxu0 0
      %562 = vmatprep.subr.bf16.mxu0 0
      %563 = vmatpush1.bf16.msra.mxu0 0
      %564 = vmatprep.subr.bf16.mxu0 0
      %565 = vmatpush1.bf16.msra.mxu0 0
      %566 = vmatprep.subr.bf16.mxu0 0
      %567 = vmatpush1.bf16.msra.mxu0 0
      %568 = vmatprep.subr.bf16.mxu0 0
      %569 = vmatpush1.bf16.msra.mxu0 0
      %570 = vmatprep.subr.bf16.mxu0 0
      %571 = vmatpush1.bf16.msra.mxu0 0
      %572 = vmatprep.subr.bf16.mxu0 0
      %573 = vmatpush1.bf16.msra.mxu0 0
      %574 = vmatprep.subr.bf16.mxu0 0
      %575 = vmatpush1.bf16.msra.mxu0 0
      %576 = vmatprep.mubr.bf16.mxu0 0
      %577 = vmatmul.mubr.bf16.gmra.mrb[0].mxu0 %v328
      %v578 = vpop.f32.mrb[0].mxu0
      %v579 = vadd.f32 %v207, %v578
      %v580 = vpop.f32.mrb[0].mxu0
      %v581 = vadd.f32 %v207, %v580
      %v582 = vpop.f32.mrb[0].mxu0
      %v583 = vpop.f32.mrb[0].mxu0
      %584 = vdwg.mxu0
      %585 = vmatprep.subr.bf16.mxu0 %v362
      %586 = vmatpush1.bf16.msra.mxu0 %v359
      %587 = vmatprep.subr.bf16.mxu0 0
      %588 = vmatpush1.bf16.msra.mxu0 0
      %589 = vmatprep.subr.bf16.mxu0 0
      %590 = vmatpush1.bf16.msra.mxu0 0
      %591 = vmatprep.subr.bf16.mxu0 0
      %592 = vmatpush1.bf16.msra.mxu0 0
      %593 = vmatprep.subr.bf16.mxu0 0
      %594 = vmatpush1.bf16.msra.mxu0 0
      %595 = vmatprep.subr.bf16.mxu0 0
      %596 = vmatpush1.bf16.msra.mxu0 0
      %597 = vmatprep.subr.bf16.mxu0 0
      %598 = vmatpush1.bf16.msra.mxu0 0
      %599 = vmatprep.subr.bf16.mxu0 0
      %600 = vmatpush1.bf16.msra.mxu0 0
      %601 = vmatprep.subr.bf16.mxu0 0
      %602 = vmatpush1.bf16.msra.mxu0 0
      %603 = vmatprep.subr.bf16.mxu0 0
      %604 = vmatpush1.bf16.msra.mxu0 0
      %605 = vmatprep.subr.bf16.mxu0 0
      %606 = vmatpush1.bf16.msra.mxu0 0
      %607 = vmatprep.subr.bf16.mxu0 0
      %608 = vmatpush1.bf16.msra.mxu0 0
      %609 = vmatprep.subr.bf16.mxu0 0
      %610 = vmatpush1.bf16.msra.mxu0 0
      %611 = vmatprep.subr.bf16.mxu0 0
      %612 = vmatpush1.bf16.msra.mxu0 0
      %613 = vmatprep.subr.bf16.mxu0 0
      %614 = vmatpush1.bf16.msra.mxu0 0
      %615 = vmatprep.subr.bf16.mxu0 0
      %616 = vmatpush1.bf16.msra.mxu0 0
      %617 = vmatprep.mubr.bf16.mxu0 0
      %618 = vmatmul.mubr.bf16.gmra.mrb[0].mxu0 %v328
      %v619 = vpop.f32.mrb[0].mxu0
      %v620 = vadd.f32 %v207, %v619
      %v621 = vpop.f32.mrb[0].mxu0
      %v622 = vadd.f32 %v207, %v621
      %v623 = vpop.f32.mrb[0].mxu0
      %v624 = vpop.f32.mrb[0].mxu0
      %625 = vdwg.mxu0
      %626 = vmatprep.subr.bf16.mxu0 %v368
      %627 = vmatpush1.bf16.msra.mxu0 %v365
      %628 = vmatprep.subr.bf16.mxu0 0
      %629 = vmatpush1.bf16.msra.mxu0 0
      %630 = vmatprep.subr.bf16.mxu0 0
      %631 = vmatpush1.bf16.msra.mxu0 0
      %632 = vmatprep.subr.bf16.mxu0 0
      %633 = vmatpush1.bf16.msra.mxu0 0
      %634 = vmatprep.subr.bf16.mxu0 0
      %635 = vmatpush1.bf16.msra.mxu0 0
      %636 = vmatprep.subr.bf16.mxu0 0
      %637 = vmatpush1.bf16.msra.mxu0 0
      %638 = vmatprep.subr.bf16.mxu0 0
      %639 = vmatpush1.bf16.msra.mxu0 0
      %640 = vmatprep.subr.bf16.mxu0 0
      %641 = vmatpush1.bf16.msra.mxu0 0
      %642 = vmatprep.subr.bf16.mxu0 0
      %643 = vmatpush1.bf16.msra.mxu0 0
      %644 = vmatprep.subr.bf16.mxu0 0
      %645 = vmatpush1.bf16.msra.mxu0 0
      %646 = vmatprep.subr.bf16.mxu0 0
      %647 = vmatpush1.bf16.msra.mxu0 0
      %648 = vmatprep.subr.bf16.mxu0 0
      %649 = vmatpush1.bf16.msra.mxu0 0
      %650 = vmatprep.subr.bf16.mxu0 0
      %651 = vmatpush1.bf16.msra.mxu0 0
      %652 = vmatprep.subr.bf16.mxu0 0
      %653 = vmatpush1.bf16.msra.mxu0 0
      %654 = vmatprep.subr.bf16.mxu0 0
      %655 = vmatpush1.bf16.msra.mxu0 0
      %656 = vmatprep.subr.bf16.mxu0 0
      %657 = vmatpush1.bf16.msra.mxu0 0
      %658 = vmatprep.mubr.bf16.mxu0 0
      %659 = vmatmul.mubr.bf16.gmra.mrb[0].mxu0 %v328
      %v660 = vpop.f32.mrb[0].mxu0
      %v661 = vadd.f32 %v207, %v660
      %v662 = vpop.f32.mrb[0].mxu0
      %v663 = vadd.f32 %v207, %v662
      %v664 = vpop.f32.mrb[0].mxu0
      %v665 = vpop.f32.mrb[0].mxu0
      %666 = vdwg.mxu0
      %667 = vmatprep.subr.bf16.mxu0 %v374
      %668 = vmatpush1.bf16.msra.mxu0 %v371
      %669 = vmatprep.subr.bf16.mxu0 0
      %670 = vmatpush1.bf16.msra.mxu0 0
      %671 = vmatprep.subr.bf16.mxu0 0
      %672 = vmatpush1.bf16.msra.mxu0 0
      %673 = vmatprep.subr.bf16.mxu0 0
      %674 = vmatpush1.bf16.msra.mxu0 0
      %675 = vmatprep.subr.bf16.mxu0 0
      %676 = vmatpush1.bf16.msra.mxu0 0
      %677 = vmatprep.subr.bf16.mxu0 0
      %678 = vmatpush1.bf16.msra.mxu0 0
      %679 = vmatprep.subr.bf16.mxu0 0
      %680 = vmatpush1.bf16.msra.mxu0 0
      %681 = vmatprep.subr.bf16.mxu0 0
      %682 = vmatpush1.bf16.msra.mxu0 0
      %683 = vmatprep.subr.bf16.mxu0 0
      %684 = vmatpush1.bf16.msra.mxu0 0
      %685 = vmatprep.subr.bf16.mxu0 0
      %686 = vmatpush1.bf16.msra.mxu0 0
      %687 = vmatprep.subr.bf16.mxu0 0
      %688 = vmatpush1.bf16.msra.mxu0 0
      %689 = vmatprep.subr.bf16.mxu0 0
      %690 = vmatpush1.bf16.msra.mxu0 0
      %691 = vmatprep.subr.bf16.mxu0 0
      %692 = vmatpush1.bf16.msra.mxu0 0
      %693 = vmatprep.subr.bf16.mxu0 0
      %694 = vmatpush1.bf16.msra.mxu0 0
      %695 = vmatprep.subr.bf16.mxu0 0
      %696 = vmatpush1.bf16.msra.mxu0 0
      %697 = vmatprep.subr.bf16.mxu0 0
      %698 = vmatpush1.bf16.msra.mxu0 0
      %699 = vmatprep.mubr.bf16.mxu0 0
      %700 = vmatmul.mubr.bf16.gmra.mrb[0].mxu0 %v328
      %v701 = vpop.f32.mrb[0].mxu0
      %v702 = vadd.f32 %v207, %v701
      %v703 = vpop.f32.mrb[0].mxu0
      %v704 = vadd.f32 %v207, %v703
      %v705 = vpop.f32.mrb[0].mxu0
      %v706 = vpop.f32.mrb[0].mxu0
      %707 = vdwg.mxu0
      %708 = vmatprep.subr.bf16.mxu0 %v380
      %709 = vmatpush1.bf16.msra.mxu0 %v377
      %710 = vmatprep.subr.bf16.mxu0 0
      %711 = vmatpush1.bf16.msra.mxu0 0
      %712 = vmatprep.subr.bf16.mxu0 0
      %713 = vmatpush1.bf16.msra.mxu0 0
      %714 = vmatprep.subr.bf16.mxu0 0
      %715 = vmatpush1.bf16.msra.mxu0 0
      %716 = vmatprep.subr.bf16.mxu0 0
      %717 = vmatpush1.bf16.msra.mxu0 0
      %718 = vmatprep.subr.bf16.mxu0 0
      %719 = vmatpush1.bf16.msra.mxu0 0
      %720 = vmatprep.subr.bf16.mxu0 0
      %721 = vmatpush1.bf16.msra.mxu0 0
      %722 = vmatprep.subr.bf16.mxu0 0
      %723 = vmatpush1.bf16.msra.mxu0 0
      %724 = vmatprep.subr.bf16.mxu0 0
      %725 = vmatpush1.bf16.msra.mxu0 0
      %726 = vmatprep.subr.bf16.mxu0 0
      %727 = vmatpush1.bf16.msra.mxu0 0
      %728 = vmatprep.subr.bf16.mxu0 0
      %729 = vmatpush1.bf16.msra.mxu0 0
      %730 = vmatprep.subr.bf16.mxu0 0
      %731 = vmatpush1.bf16.msra.mxu0 0
      %732 = vmatprep.subr.bf16.mxu0 0
      %733 = vmatpush1.bf16.msra.mxu0 0
      %734 = vmatprep.subr.bf16.mxu0 0
      %735 = vmatpush1.bf16.msra.mxu0 0
      %736 = vmatprep.subr.bf16.mxu0 0
      %737 = vmatpush1.bf16.msra.mxu0 0
      %738 = vmatprep.subr.bf16.mxu0 0
      %739 = vmatpush1.bf16.msra.mxu0 0
      %740 = vmatprep.mubr.bf16.mxu0 0
      %741 = vmatmul.mubr.bf16.gmra.mrb[0].mxu0 %v328
      %v742 = vpop.f32.mrb[0].mxu0
      %v743 = vadd.f32 %v207, %v742
      %v744 = vpop.f32.mrb[0].mxu0
      %v745 = vadd.f32 %v207, %v744
      %v746 = vpop.f32.mrb[0].mxu0
      %v747 = vpop.f32.mrb[0].mxu0
      %748 = vdwg.mxu0
      %749 = vmatprep.subr.bf16.mxu0 %v386
      %750 = vmatpush1.bf16.msra.mxu0 %v383
      %751 = vmatprep.subr.bf16.mxu0 0
      %752 = vmatpush1.bf16.msra.mxu0 0
      %753 = vmatprep.subr.bf16.mxu0 0
      %754 = vmatpush1.bf16.msra.mxu0 0
      %755 = vmatprep.subr.bf16.mxu0 0
      %756 = vmatpush1.bf16.msra.mxu0 0
      %757 = vmatprep.subr.bf16.mxu0 0
      %758 = vmatpush1.bf16.msra.mxu0 0
      %759 = vmatprep.subr.bf16.mxu0 0
      %760 = vmatpush1.bf16.msra.mxu0 0
      %761 = vmatprep.subr.bf16.mxu0 0
      %762 = vmatpush1.bf16.msra.mxu0 0
      %763 = vmatprep.subr.bf16.mxu0 0
      %764 = vmatpush1.bf16.msra.mxu0 0
      %765 = vmatprep.subr.bf16.mxu0 0
      %766 = vmatpush1.bf16.msra.mxu0 0
      %767 = vmatprep.subr.bf16.mxu0 0
      %768 = vmatpush1.bf16.msra.mxu0 0
      %769 = vmatprep.subr.bf16.mxu0 0
      %770 = vmatpush1.bf16.msra.mxu0 0
      %771 = vmatprep.subr.bf16.mxu0 0
      %772 = vmatpush1.bf16.msra.mxu0 0
      %773 = vmatprep.subr.bf16.mxu0 0
      %774 = vmatpush1.bf16.msra.mxu0 0
      %775 = vmatprep.subr.bf16.mxu0 0
      %776 = vmatpush1.bf16.msra.mxu0 0
      %777 = vmatprep.subr.bf16.mxu0 0
      %778 = vmatpush1.bf16.msra.mxu0 0
      %779 = vmatprep.subr.bf16.mxu0 0
      %780 = vmatpush1.bf16.msra.mxu0 0
      %781 = vmatprep.mubr.bf16.mxu0 0
      %782 = vmatmul.mubr.bf16.gmra.mrb[0].mxu0 %v328
      %v783 = vpop.f32.mrb[0].mxu0
      %v784 = vadd.f32 %v207, %v783
      %v785 = vpop.f32.mrb[0].mxu0
      %v786 = vadd.f32 %v207, %v785
      %v787 = vpop.f32.mrb[0].mxu0
      %v788 = vpop.f32.mrb[0].mxu0
      %789 = vdwg.mxu0
      %790 = vmatprep.subr.bf16.mxu0 %v392
      %791 = vmatpush1.bf16.msra.mxu0 %v389
      %792 = vmatprep.subr.bf16.mxu0 0
      %793 = vmatpush1.bf16.msra.mxu0 0
      %794 = vmatprep.subr.bf16.mxu0 0
      %795 = vmatpush1.bf16.msra.mxu0 0
      %796 = vmatprep.subr.bf16.mxu0 0
      %797 = vmatpush1.bf16.msra.mxu0 0
      %798 = vmatprep.subr.bf16.mxu0 0
      %799 = vmatpush1.bf16.msra.mxu0 0
      %800 = vmatprep.subr.bf16.mxu0 0
      %801 = vmatpush1.bf16.msra.mxu0 0
      %802 = vmatprep.subr.bf16.mxu0 0
      %803 = vmatpush1.bf16.msra.mxu0 0
      %804 = vmatprep.subr.bf16.mxu0 0
      %805 = vmatpush1.bf16.msra.mxu0 0
      %806 = vmatprep.subr.bf16.mxu0 0
      %807 = vmatpush1.bf16.msra.mxu0 0
      %808 = vmatprep.subr.bf16.mxu0 0
      %809 = vmatpush1.bf16.msra.mxu0 0
      %810 = vmatprep.subr.bf16.mxu0 0
      %811 = vmatpush1.bf16.msra.mxu0 0
      %812 = vmatprep.subr.bf16.mxu0 0
      %813 = vmatpush1.bf16.msra.mxu0 0
      %814 = vmatprep.subr.bf16.mxu0 0
      %815 = vmatpush1.bf16.msra.mxu0 0
      %816 = vmatprep.subr.bf16.mxu0 0
      %817 = vmatpush1.bf16.msra.mxu0 0
      %818 = vmatprep.subr.bf16.mxu0 0
      %819 = vmatpush1.bf16.msra.mxu0 0
      %820 = vmatprep.subr.bf16.mxu0 0
      %821 = vmatpush1.bf16.msra.mxu0 0
      %822 = vmatprep.mubr.bf16.mxu0 0
      %823 = vmatmul.mubr.bf16.gmra.mrb[0].mxu0 %v328
      %v824 = vpop.f32.mrb[0].mxu0
      %v825 = vadd.f32 %v207, %v824
      %v826 = vpop.f32.mrb[0].mxu0
      %v827 = vadd.f32 %v207, %v826
      %v828 = vpop.f32.mrb[0].mxu0
      %v829 = vpop.f32.mrb[0].mxu0
      %830 = vdwg.mxu0
      %831 = vmatprep.subr.bf16.mxu0 %v398
      %832 = vmatpush1.bf16.msra.mxu0 %v395
      %833 = vmatprep.subr.bf16.mxu0 0
      %834 = vmatpush1.bf16.msra.mxu0 0
      %835 = vmatprep.subr.bf16.mxu0 0
      %836 = vmatpush1.bf16.msra.mxu0 0
      %837 = vmatprep.subr.bf16.mxu0 0
      %838 = vmatpush1.bf16.msra.mxu0 0
      %839 = vmatprep.subr.bf16.mxu0 0
      %840 = vmatpush1.bf16.msra.mxu0 0
      %841 = vmatprep.subr.bf16.mxu0 0
      %842 = vmatpush1.bf16.msra.mxu0 0
      %843 = vmatprep.subr.bf16.mxu0 0
      %844 = vmatpush1.bf16.msra.mxu0 0
      %845 = vmatprep.subr.bf16.mxu0 0
      %846 = vmatpush1.bf16.msra.mxu0 0
      %847 = vmatprep.subr.bf16.mxu0 0
      %848 = vmatpush1.bf16.msra.mxu0 0
      %849 = vmatprep.subr.bf16.mxu0 0
      %850 = vmatpush1.bf16.msra.mxu0 0
      %851 = vmatprep.subr.bf16.mxu0 0
      %852 = vmatpush1.bf16.msra.mxu0 0
      %853 = vmatprep.subr.bf16.mxu0 0
      %854 = vmatpush1.bf16.msra.mxu0 0
      %855 = vmatprep.subr.bf16.mxu0 0
      %856 = vmatpush1.bf16.msra.mxu0 0
      %857 = vmatprep.subr.bf16.mxu0 0
      %858 = vmatpush1.bf16.msra.mxu0 0
      %859 = vmatprep.subr.bf16.mxu0 0
      %860 = vmatpush1.bf16.msra.mxu0 0
      %861 = vmatprep.subr.bf16.mxu0 0
      %862 = vmatpush1.bf16.msra.mxu0 0
      %863 = vmatprep.mubr.bf16.mxu0 0
      %864 = vmatmul.mubr.bf16.gmra.mrb[0].mxu0 %v328
      %v865 = vpop.f32.mrb[0].mxu0
      %v866 = vadd.f32 %v207, %v865
      %v867 = vpop.f32.mrb[0].mxu0
      %v868 = vadd.f32 %v207, %v867
      %v869 = vpop.f32.mrb[0].mxu0
      %v870 = vpop.f32.mrb[0].mxu0
      %871 = vdwg.mxu0
      %872 = vmatprep.subr.bf16.mxu0 %v404
      %873 = vmatpush1.bf16.msra.mxu0 %v401
      %874 = vmatprep.subr.bf16.mxu0 0
      %875 = vmatpush1.bf16.msra.mxu0 0
      %876 = vmatprep.subr.bf16.mxu0 0
      %877 = vmatpush1.bf16.msra.mxu0 0
      %878 = vmatprep.subr.bf16.mxu0 0
      %879 = vmatpush1.bf16.msra.mxu0 0
      %880 = vmatprep.subr.bf16.mxu0 0
      %881 = vmatpush1.bf16.msra.mxu0 0
      %882 = vmatprep.subr.bf16.mxu0 0
      %883 = vmatpush1.bf16.msra.mxu0 0
      %884 = vmatprep.subr.bf16.mxu0 0
      %885 = vmatpush1.bf16.msra.mxu0 0
      %886 = vmatprep.subr.bf16.mxu0 0
      %887 = vmatpush1.bf16.msra.mxu0 0
      %888 = vmatprep.subr.bf16.mxu0 0
      %889 = vmatpush1.bf16.msra.mxu0 0
      %890 = vmatprep.subr.bf16.mxu0 0
      %891 = vmatpush1.bf16.msra.mxu0 0
      %892 = vmatprep.subr.bf16.mxu0 0
      %893 = vmatpush1.bf16.msra.mxu0 0
      %894 = vmatprep.subr.bf16.mxu0 0
      %895 = vmatpush1.bf16.msra.mxu0 0
      %896 = vmatprep.subr.bf16.mxu0 0
      %897 = vmatpush1.bf16.msra.mxu0 0
      %898 = vmatprep.subr.bf16.mxu0 0
      %899 = vmatpush1.bf16.msra.mxu0 0
      %900 = vmatprep.subr.bf16.mxu0 0
      %901 = vmatpush1.bf16.msra.mxu0 0
      %902 = vmatprep.subr.bf16.mxu0 0
      %903 = vmatpush1.bf16.msra.mxu0 0
      %904 = vmatprep.mubr.bf16.mxu0 0
      %905 = vmatmul.mubr.bf16.gmra.mrb[0].mxu0 %v328
      %v906 = vpop.f32.mrb[0].mxu0
      %v907 = vadd.f32 %v207, %v906
      %v908 = vpop.f32.mrb[0].mxu0
      %v909 = vadd.f32 %v207, %v908
      %v910 = vpop.f32.mrb[0].mxu0
      %v911 = vpop.f32.mrb[0].mxu0
      %912 = vdwg.mxu0
      %913 = vmatprep.subr.bf16.mxu0 %v410
      %914 = vmatpush1.bf16.msra.mxu0 %v407
      %915 = vmatprep.subr.bf16.mxu0 0
      %916 = vmatpush1.bf16.msra.mxu0 0
      %917 = vmatprep.subr.bf16.mxu0 0
      %918 = vmatpush1.bf16.msra.mxu0 0
      %919 = vmatprep.subr.bf16.mxu0 0
      %920 = vmatpush1.bf16.msra.mxu0 0
      %921 = vmatprep.subr.bf16.mxu0 0
      %922 = vmatpush1.bf16.msra.mxu0 0
      %923 = vmatprep.subr.bf16.mxu0 0
      %924 = vmatpush1.bf16.msra.mxu0 0
      %925 = vmatprep.subr.bf16.mxu0 0
      %926 = vmatpush1.bf16.msra.mxu0 0
      %927 = vmatprep.subr.bf16.mxu0 0
      %928 = vmatpush1.bf16.msra.mxu0 0
      %929 = vmatprep.subr.bf16.mxu0 0
      %930 = vmatpush1.bf16.msra.mxu0 0
      %931 = vmatprep.subr.bf16.mxu0 0
      %932 = vmatpush1.bf16.msra.mxu0 0
      %933 = vmatprep.subr.bf16.mxu0 0
      %934 = vmatpush1.bf16.msra.mxu0 0
      %935 = vmatprep.subr.bf16.mxu0 0
      %936 = vmatpush1.bf16.msra.mxu0 0
      %937 = vmatprep.subr.bf16.mxu0 0
      %938 = vmatpush1.bf16.msra.mxu0 0
      %939 = vmatprep.subr.bf16.mxu0 0
      %940 = vmatpush1.bf16.msra.mxu0 0
      %941 = vmatprep.subr.bf16.mxu0 0
      %942 = vmatpush1.bf16.msra.mxu0 0
      %943 = vmatprep.subr.bf16.mxu0 0
      %944 = vmatpush1.bf16.msra.mxu0 0
      %945 = vmatprep.mubr.bf16.mxu0 0
      %946 = vmatmul.mubr.bf16.gmra.mrb[0].mxu0 %v328
      %v947 = vpop.f32.mrb[0].mxu0
      %v948 = vadd.f32 %v207, %v947
      %v949 = vpop.f32.mrb[0].mxu0
      %v950 = vadd.f32 %v207, %v949
      %v951 = vpop.f32.mrb[0].mxu0
      %v952 = vpop.f32.mrb[0].mxu0
      %953 = vdwg.mxu0
      %954 = vmatprep.subr.bf16.mxu0 %v416
      %955 = vmatpush1.bf16.msra.mxu0 %v413
      %956 = vmatprep.subr.bf16.mxu0 0
      %957 = vmatpush1.bf16.msra.mxu0 0
      %958 = vmatprep.subr.bf16.mxu0 0
      %959 = vmatpush1.bf16.msra.mxu0 0
      %960 = vmatprep.subr.bf16.mxu0 0
      %961 = vmatpush1.bf16.msra.mxu0 0
      %962 = vmatprep.subr.bf16.mxu0 0
      %963 = vmatpush1.bf16.msra.mxu0 0
      %964 = vmatprep.subr.bf16.mxu0 0
      %965 = vmatpush1.bf16.msra.mxu0 0
      %966 = vmatprep.subr.bf16.mxu0 0
      %967 = vmatpush1.bf16.msra.mxu0 0
      %968 = vmatprep.subr.bf16.mxu0 0
      %969 = vmatpush1.bf16.msra.mxu0 0
      %970 = vmatprep.subr.bf16.mxu0 0
      %971 = vmatpush1.bf16.msra.mxu0 0
      %972 = vmatprep.subr.bf16.mxu0 0
      %973 = vmatpush1.bf16.msra.mxu0 0
      %974 = vmatprep.subr.bf16.mxu0 0
      %975 = vmatpush1.bf16.msra.mxu0 0
      %976 = vmatprep.subr.bf16.mxu0 0
      %977 = vmatpush1.bf16.msra.mxu0 0
      %978 = vmatprep.subr.bf16.mxu0 0
      %979 = vmatpush1.bf16.msra.mxu0 0
      %980 = vmatprep.subr.bf16.mxu0 0
      %981 = vmatpush1.bf16.msra.mxu0 0
      %982 = vmatprep.subr.bf16.mxu0 0
      %983 = vmatpush1.bf16.msra.mxu0 0
      %984 = vmatprep.subr.bf16.mxu0 0
      %985 = vmatpush1.bf16.msra.mxu0 0
      %986 = vmatprep.mubr.bf16.mxu0 0
      %987 = vmatmul.mubr.bf16.gmra.mrb[0].mxu0 %v328
      %v988 = vpop.f32.mrb[0].mxu0
      %v989 = vadd.f32 %v207, %v988
      %v990 = vpop.f32.mrb[0].mxu0
      %v991 = vadd.f32 %v207, %v990
      %v992 = vpop.f32.mrb[0].mxu0
      %v993 = vpop.f32.mrb[0].mxu0
      %994 = vdwg.mxu0
      %995 = vmatprep.subr.bf16.mxu0 0
      %996 = vmatpush1.bf16.msra.mxu0 %v419
      %997 = vmatprep.subr.bf16.mxu0 0
      %998 = vmatpush1.bf16.msra.mxu0 0
      %999 = vmatprep.subr.bf16.mxu0 0
      %1000 = vmatpush1.bf16.msra.mxu0 0
      %1001 = vmatprep.subr.bf16.mxu0 0
      %1002 = vmatpush1.bf16.msra.mxu0 0
      %1003 = vmatprep.subr.bf16.mxu0 0
      %1004 = vmatpush1.bf16.msra.mxu0 0
      %1005 = vmatprep.subr.bf16.mxu0 0
      %1006 = vmatpush1.bf16.msra.mxu0 0
      %1007 = vmatprep.subr.bf16.mxu0 0
      %1008 = vmatpush1.bf16.msra.mxu0 0
      %1009 = vmatprep.subr.bf16.mxu0 0
      %1010 = vmatpush1.bf16.msra.mxu0 0
      %1011 = vmatprep.subr.bf16.mxu0 0
      %1012 = vmatpush1.bf16.msra.mxu0 0
      %1013 = vmatprep.subr.bf16.mxu0 0
      %1014 = vmatpush1.bf16.msra.mxu0 0
      %1015 = vmatprep.subr.bf16.mxu0 0
      %1016 = vmatpush1.bf16.msra.mxu0 0
      %1017 = vmatprep.subr.bf16.mxu0 0
      %1018 = vmatpush1.bf16.msra.mxu0 0
      %1019 = vmatprep.subr.bf16.mxu0 0
      %1020 = vmatpush1.bf16.msra.mxu0 0
      %1021 = vmatprep.subr.bf16.mxu0 0
      %1022 = vmatpush1.bf16.msra.mxu0 0
      %1023 = vmatprep.subr.bf16.mxu0 0
      %1024 = vmatpush1.bf16.msra.mxu0 0
      %1025 = vmatprep.subr.bf16.mxu0 0
      %1026 = vmatpush1.bf16.msra.mxu0 0
      %1027 = vmatprep.mubr.bf16.mxu0 0
      %1028 = vmatmul.mubr.bf16.gmra.mrb[0].mxu0 %v328
      %v1029 = vpop.f32.mrb[0].mxu0
      %v1030 = vadd.f32 %v207, %v1029
      %v1031 = vpop.f32.mrb[0].mxu0
      %v1032 = vpop.f32.mrb[0].mxu0
      %v1033 = vpop.f32.mrb[0].mxu0
      %1034 = vdwg.mxu0
      %vm1035 = vcmp.gt.f32.partialorder %v456, 0.0
      %vm1036 = vcmp.gt.f32.partialorder %v458, 0.0
      %vm1037 = vcmp.gt.f32.partialorder %v497, 0.0
      %vm1038 = vcmp.gt.f32.partialorder %v499, 0.0
      %vm1039 = vcmp.gt.f32.partialorder %v538, 0.0
      %vm1040 = vcmp.gt.f32.partialorder %v540, 0.0
      %vm1041 = vcmp.gt.f32.partialorder %v579, 0.0
      %vm1042 = vcmp.gt.f32.partialorder %v581, 0.0
      %vm1043 = vcmp.gt.f32.partialorder %v620, 0.0
      %vm1044 = vcmp.gt.f32.partialorder %v622, 0.0
      %vm1045 = vcmp.gt.f32.partialorder %v661, 0.0
      %vm1046 = vcmp.gt.f32.partialorder %v663, 0.0
      %vm1047 = vcmp.gt.f32.partialorder %v702, 0.0
      %vm1048 = vcmp.gt.f32.partialorder %v704, 0.0
      %vm1049 = vcmp.gt.f32.partialorder %v743, 0.0
      %vm1050 = vcmp.gt.f32.partialorder %v745, 0.0
      %vm1051 = vcmp.gt.f32.partialorder %v784, 0.0
      %vm1052 = vcmp.gt.f32.partialorder %v786, 0.0
      %vm1053 = vcmp.gt.f32.partialorder %v825, 0.0
      %vm1054 = vcmp.gt.f32.partialorder %v827, 0.0
      %vm1055 = vcmp.gt.f32.partialorder %v866, 0.0
      %vm1056 = vcmp.gt.f32.partialorder %v868, 0.0
      %vm1057 = vcmp.gt.f32.partialorder %v907, 0.0
      %vm1058 = vcmp.gt.f32.partialorder %v909, 0.0
      %vm1059 = vcmp.gt.f32.partialorder %v948, 0.0
      %vm1060 = vcmp.gt.f32.partialorder %v950, 0.0
      %vm1061 = vcmp.gt.f32.partialorder %v989, 0.0
      %vm1062 = vcmp.gt.f32.partialorder %v991, 0.0
      %vm1063 = vcmp.gt.f32.partialorder %v1030, 0.0
      %v1064 = vmul.f32 %v456, 0.01
      %v1065 = vmul.f32 %v458, 0.01
      %v1066 = vmul.f32 %v497, 0.01
      %v1067 = vmul.f32 %v499, 0.01
      %v1068 = vmul.f32 %v538, 0.01
      %v1069 = vmul.f32 %v540, 0.01
      %v1070 = vmul.f32 %v579, 0.01
      %v1071 = vmul.f32 %v581, 0.01
      %v1072 = vmul.f32 %v620, 0.01
      %v1073 = vmul.f32 %v622, 0.01
      %v1074 = vmul.f32 %v661, 0.01
      %v1075 = vmul.f32 %v663, 0.01
      %v1076 = vmul.f32 %v702, 0.01
      %v1077 = vmul.f32 %v704, 0.01
      %v1078 = vmul.f32 %v743, 0.01
      %v1079 = vmul.f32 %v745, 0.01
      %v1080 = vmul.f32 %v784, 0.01
      %v1081 = vmul.f32 %v786, 0.01
      %v1082 = vmul.f32 %v825, 0.01
      %v1083 = vmul.f32 %v827, 0.01
      %v1084 = vmul.f32 %v866, 0.01
      %v1085 = vmul.f32 %v868, 0.01
      %v1086 = vmul.f32 %v907, 0.01
      %v1087 = vmul.f32 %v909, 0.01
      %v1088 = vmul.f32 %v948, 0.01
      %v1089 = vmul.f32 %v950, 0.01
      %v1090 = vmul.f32 %v989, 0.01
      %v1091 = vmul.f32 %v991, 0.01
      %v1092 = vmul.f32 %v1030, 0.01
      %v1093 = vsel %vm1035, %v456, %v1064
      %v1094 = vsel %vm1036, %v458, %v1065
      %v1095 = vsel %vm1037, %v497, %v1066
      %v1096 = vsel %vm1038, %v499, %v1067
      %v1097 = vsel %vm1039, %v538, %v1068
      %v1098 = vsel %vm1040, %v540, %v1069
      %v1099 = vsel %vm1041, %v579, %v1070
      %v1100 = vsel %vm1042, %v581, %v1071
      %v1101 = vsel %vm1043, %v620, %v1072
      %v1102 = vsel %vm1044, %v622, %v1073
      %v1103 = vsel %vm1045, %v661, %v1074
      %v1104 = vsel %vm1046, %v663, %v1075
      %v1105 = vsel %vm1047, %v702, %v1076
      %v1106 = vsel %vm1048, %v704, %v1077
      %v1107 = vsel %vm1049, %v743, %v1078
      %v1108 = vsel %vm1050, %v745, %v1079
      %v1109 = vsel %vm1051, %v784, %v1080
      %v1110 = vsel %vm1052, %v786, %v1081
      %v1111 = vsel %vm1053, %v825, %v1082
      %v1112 = vsel %vm1054, %v827, %v1083
      %v1113 = vsel %vm1055, %v866, %v1084
      %v1114 = vsel %vm1056, %v868, %v1085
      %v1115 = vsel %vm1057, %v907, %v1086
      %v1116 = vsel %vm1058, %v909, %v1087
      %v1117 = vsel %vm1059, %v948, %v1088
      %v1118 = vsel %vm1060, %v950, %v1089
      %v1119 = vsel %vm1061, %v989, %v1090
      %v1120 = vsel %vm1062, %v991, %v1091
      %v1121 = vsel %vm1063, %v1030, %v1092
      %v1122 = vpack.c.bf16 %v1093, %v1093
      %v1123 = vpack.c.bf16 %v1094, %v1094
      %v1124 = vpack.c.bf16 %v1095, %v1095
      %v1125 = vpack.c.bf16 %v1096, %v1096
      %v1126 = vpack.c.bf16 %v1097, %v1097
      %v1127 = vpack.c.bf16 %v1098, %v1098
      %v1128 = vpack.c.bf16 %v1099, %v1099
      %v1129 = vpack.c.bf16 %v1100, %v1100
      %v1130 = vpack.c.bf16 %v1101, %v1101
      %v1131 = vpack.c.bf16 %v1102, %v1102
      %v1132 = vpack.c.bf16 %v1103, %v1103
      %v1133 = vpack.c.bf16 %v1104, %v1104
      %v1134 = vpack.c.bf16 %v1105, %v1105
      %v1135 = vpack.c.bf16 %v1106, %v1106
      %v1136 = vpack.c.bf16 %v1107, %v1107
      %v1137 = vpack.c.bf16 %v1108, %v1108
      %v1138 = vpack.c.bf16 %v1109, %v1109
      %v1139 = vpack.c.bf16 %v1110, %v1110
      %v1140 = vpack.c.bf16 %v1111, %v1111
      %v1141 = vpack.c.bf16 %v1112, %v1112
      %v1142 = vpack.c.bf16 %v1113, %v1113
      %v1143 = vpack.c.bf16 %v1114, %v1114
      %v1144 = vpack.c.bf16 %v1115, %v1115
      %v1145 = vpack.c.bf16 %v1116, %v1116
      %v1146 = vpack.c.bf16 %v1117, %v1117
      %v1147 = vpack.c.bf16 %v1118, %v1118
      %v1148 = vpack.c.bf16 %v1119, %v1119
      %v1149 = vpack.c.bf16 %v1120, %v1120
      %v1150 = vpack.c.bf16 %v1121, %v1121
      %v1180 = vunpack.c.l.b16 %v1122
      %v1181 = vunpack.c.l.b16 %v1123
      %v1182 = vunpack.c.l.b16 %v1124
      %v1183 = vunpack.c.l.b16 %v1125
      %v1184 = vunpack.c.l.b16 %v1126
      %v1185 = vunpack.c.l.b16 %v1127
      %v1186 = vunpack.c.l.b16 %v1128
      %v1187 = vunpack.c.l.b16 %v1129
      %v1188 = vunpack.c.l.b16 %v1130
      %v1189 = vunpack.c.l.b16 %v1131
      %v1190 = vunpack.c.l.b16 %v1132
      %v1191 = vunpack.c.l.b16 %v1133
      %v1192 = vunpack.c.l.b16 %v1134
      %v1193 = vunpack.c.l.b16 %v1135
      %v1194 = vunpack.c.l.b16 %v1136
      %v1195 = vunpack.c.l.b16 %v1137
      %v1196 = vunpack.c.l.b16 %v1138
      %v1197 = vunpack.c.l.b16 %v1139
      %v1198 = vunpack.c.l.b16 %v1140
      %v1199 = vunpack.c.l.b16 %v1141
      %v1200 = vunpack.c.l.b16 %v1142
      %v1201 = vunpack.c.l.b16 %v1143
      %v1202 = vunpack.c.l.b16 %v1144
      %v1203 = vunpack.c.l.b16 %v1145
      %v1204 = vunpack.c.l.b16 %v1146
      %v1205 = vunpack.c.l.b16 %v1147
      %v1206 = vunpack.c.l.b16 %v1148
      %v1207 = vunpack.c.l.b16 %v1149
      %v1208 = vunpack.c.l.b16 %v1150
      %v1209 = vpack.c.b16 %v1181, %v1180
      %v1210 = vpack.c.b16 %v1183, %v1182
      %v1211 = vpack.c.b16 %v1185, %v1184
      %v1212 = vpack.c.b16 %v1187, %v1186
      %v1213 = vpack.c.b16 %v1189, %v1188
      %v1214 = vpack.c.b16 %v1191, %v1190
      %v1215 = vpack.c.b16 %v1193, %v1192
      %v1216 = vpack.c.b16 %v1195, %v1194
      %v1217 = vpack.c.b16 %v1197, %v1196
      %v1218 = vpack.c.b16 %v1199, %v1198
      %v1219 = vpack.c.b16 %v1201, %v1200
      %v1220 = vpack.c.b16 %v1203, %v1202
      %v1221 = vpack.c.b16 %v1205, %v1204
      %v1222 = vpack.c.b16 %v1207, %v1206
      %v1223 = vpack.c.b16 %v1208, %v1208
      %1239 = vst [vmem:[%s170] sm:$0x77] %v1209
      %1240 = vst [vmem:[%s170 + $0x8] sm:$0x77] %v1210
      %1241 = vst [vmem:[%s170 + $0x10] sm:$0x77] %v1211
      %1242 = vst [vmem:[%s170 + $0x18] sm:$0x77] %v1212
      %1243 = vst [vmem:[%s170 + $0x20] sm:$0x77] %v1213
      %1244 = vst [vmem:[%s170 + $0x28] sm:$0x77] %v1214
      %1245 = vst [vmem:[%s170 + $0x30] sm:$0x77] %v1215
      %1246 = vst [vmem:[%s170 + $0x38] sm:$0x77] %v1216
      %1247 = vst [vmem:[%s170 + $0x40] sm:$0x77] %v1217
      %1248 = vst [vmem:[%s170 + $0x48] sm:$0x77] %v1218
      %1249 = vst [vmem:[%s170 + $0x50] sm:$0x77] %v1219
      %1250 = vst [vmem:[%s170 + $0x58] sm:$0x77] %v1220
      %1251 = vst [vmem:[%s170 + $0x60] sm:$0x77] %v1221
      %1252 = vst [vmem:[%s170 + $0x68] sm:$0x77] %v1222
      %vm1253 = vcmask 124928
      %1254 = vst.msk [vmem:[%s170 + $0x70] sm:$0x7] %vm1253, %v1223
      %p1255 = scmp.lt.s32.totalorder %s14, 1
      %s1256 = scalar_select %p1255, %s14, 1
      %s1257 = smul.addr %s1256, 29
      %s1258 = smul.addr %s1257, 4
      %s1259 = scalar_lea.vmem %s3, %s1258
      // Predicated region
      $region33: #{encoder_forward.5} parent=31 // pred_check
        %p1260 = pneg %p100
      $region34: #{encoder_forward.5} parent=31 // pred_check_branch
        %1262 = sbr.rel (%p1260) target = $region36
      $region35: #{encoder_forward.5} parent=31 // pred_region
        _
      $region36: #{encoder_forward.5} parent=31 // pred_fallthru
        _
    $region32: #{encoder_forward.5} parent=5 // pred_fallthru
      _
    %p1263 = scmp.le.s32.totalorder 2, %s9
    // Predicated region
    $region37: #{encoder_forward.5} parent=5 // pred_check
      %p1264 = pneg %p1263
    $region38: #{encoder_forward.5} parent=5 // pred_check_branch
      %1266 = sbr.rel (%p1264) target = $region40
    $region39: #{encoder_forward.5} parent=5 // pred_region
      %s1267 = ssub.s32 %s9, 2
      // Predicated region
      $region41: #{encoder_forward.5} parent=39 // pred_check
        %p1268 = pneg %p106
      $region42: #{encoder_forward.5} parent=39 // pred_check_branch
        %1270 = sbr.rel (%p1268) target = $region44
      $region43: #{encoder_forward.5} parent=39 // pred_region
        %p1271 = scmp.lt.s32.totalorder %s15, 1
        %s1272 = scalar_select %p1271, %s15, 1
        %s1273 = smul.addr %s1272, 29
        %s1274 = smul.addr %s1273, 4
        %s1275 = scalar_lea.vmem %s3, %s1274
      $region44: #{encoder_forward.5} parent=39 // pred_fallthru
        _
    $region40: #{encoder_forward.5} parent=5 // pred_fallthru
      _
  $region6: #{encoder_forward.5} parent=0 // loop_footer
    %s13 = sadd.s32 1, %s9
  $region7: #{encoder_forward.5} parent=0 // loop_footer_branch
    %8 = sbr.rel target = $region3
  $region8: #{encoder_forward.5} parent=0 // loop_exit
    _

// kernel: encoder_forward.6
$region0: #{encoder_forward.6}
  #allocation0 [shape = 'u32[]', space=smem, size = 0x4, offset = 0x4, fixed_abs, tag = 'smem constant byte address 0x4 - core index']
  #allocation1 [shape = 'u32[144,128]{1,0:T(1,128)}', space=vmem, size = 0x12000, scoped, tag = 'internal scratch']
  %s0 = inlined_call_operand.vmem [shape: bf16[2,180,120], index: 0, kind: input, shape index: {}]
  %s1 = inlined_call_operand.vmem [shape: bf16[2,180,30], index: 1, kind: output, shape index: {}]
  %s2 = sld [smem:[#allocation0]]
  $region37: #{encoder_forward.6} parent=0
    _
  %s4 = ssub.s32 1, %s2
  %s5 = scalar_select 0, %s4, %s2
  loop: start=0, step=1, limit=4
  $region2: #{encoder_forward.6} parent=0 // loop_pre_header
    _
  $region3: #{encoder_forward.6} parent=0 // loop_header
    %s7 = sphi 0, %s11
    %p8 = scmp.ge.s32.totalorder %s7, 4
    %s17 = sphi 0, %s19
    %s20 = sphi 0, %s17
    %s21 = sphi 0, %s20
    %s37 = sphi 0, %s21
    %s43 = sphi 0, %s45
    %s46 = sphi 0, %s43
    %s47 = sphi 0, %s46
    %s63 = sphi 0, %s47
  $region4: #{encoder_forward.6} parent=0 // loop_header_branch
    %10 = sbr.rel (%p8) target = $region8
  $region5: #{encoder_forward.6} parent=0 // loop_body
    %s12 = ssub.s32 %s7, 1
    %s13 = ssub.s32 %s7, 2
    %s14 = sadd.s32 %s7, 1
    %s15 = ssub.s32 %s7, %s14
    %p16 = scmp.eq.s32.totalorder %s15, 0
    %s18 = sadd.s32 %s17, 1
    %s19 = scalar_select %p16, %s17, %s18
    %p22 = pneg %p16
    %p23 = scmp.eq.s32.totalorder %s7, 1
    %p24 = por %p22, %p23
    %p25 = scmp.ne.s32.totalorder %s17, %s20
    %p26 = scmp.eq.s32.totalorder %s7, 0
    %p27 = por %p25, %p26
    %p28 = scmp.ne.s32.totalorder %s17, %s20
    %p29 = scmp.eq.s32.totalorder %s12, 1
    %p30 = por %p28, %p29
    %p31 = scmp.ne.s32.totalorder %s20, %s21
    %p32 = scmp.eq.s32.totalorder %s12, 0
    %p33 = por %p31, %p32
    %p34 = scmp.ne.s32.totalorder %s20, %s21
    %p35 = scmp.eq.s32.totalorder %s13, 1
    %p36 = por %p34, %p35
    %p38 = scmp.ne.s32.totalorder %s21, %s37
    %p39 = scmp.eq.s32.totalorder %s13, 0
    %p40 = por %p38, %p39
    %s41 = ssub.s32 %s7, %s14
    %p42 = scmp.eq.s32.totalorder %s41, 0
    %s44 = sadd.s32 %s43, 1
    %s45 = scalar_select %p42, %s43, %s44
    %p48 = pneg %p42
    %p49 = scmp.eq.s32.totalorder %s7, 1
    %p50 = por %p48, %p49
    %p51 = scmp.ne.s32.totalorder %s43, %s46
    %p52 = scmp.eq.s32.totalorder %s7, 0
    %p53 = por %p51, %p52
    %p54 = scmp.ne.s32.totalorder %s43, %s46
    %p55 = scmp.eq.s32.totalorder %s12, 1
    %p56 = por %p54, %p55
    %p57 = scmp.ne.s32.totalorder %s46, %s47
    %p58 = scmp.eq.s32.totalorder %s12, 0
    %p59 = por %p57, %p58
    %p60 = scmp.ne.s32.totalorder %s46, %s47
    %p61 = scmp.eq.s32.totalorder %s13, 1
    %p62 = por %p60, %p61
    %p64 = scmp.ne.s32.totalorder %s47, %s63
    %p65 = scmp.eq.s32.totalorder %s13, 0
    %p66 = por %p64, %p65
    %p67 = scmp.le.s32.totalorder 1, %s7
    %p68 = scmp.lt.s32.totalorder %s7, 3
    %p69 = pnand %p67, %p68
    %p70 = pneg %p69
    // Predicated region
    $region9: #{encoder_forward.6} parent=5 // pred_check
      _
    $region10: #{encoder_forward.6} parent=5 // pred_check_branch
      %72 = sbr.rel (%p69) target = $region12
    $region11: #{encoder_forward.6} parent=5 // pred_region
      %s73 = ssub.s32 %s7, 1
    $region12: #{encoder_forward.6} parent=5 // pred_fallthru
      _
    %p74 = scmp.lt.s32.totalorder %s7, 2
    // Predicated region
    $region13: #{encoder_forward.6} parent=5 // pred_check
      %p75 = pneg %p74
    $region14: #{encoder_forward.6} parent=5 // pred_check_branch
      %77 = sbr.rel (%p75) target = $region16
    $region15: #{encoder_forward.6} parent=5 // pred_region
      // Predicated region
      $region17: #{encoder_forward.6} parent=15 // pred_check
        %p78 = pneg %p27
      $region18: #{encoder_forward.6} parent=15 // pred_check_branch
        %80 = sbr.rel (%p78) target = $region20
      $region19: #{encoder_forward.6} parent=15 // pred_region
        %p81 = scmp.lt.s32.totalorder %s7, 1
        %s82 = scalar_select %p81, %s7, 1
        %s83 = smul.addr %s82, 23
        %s84 = smul.addr %s83, 4
        %s85 = scalar_lea.vmem %s0, %s84
      $region20: #{encoder_forward.6} parent=15 // pred_fallthru
        _
    $region16: #{encoder_forward.6} parent=5 // pred_fallthru
      _
    %p86 = scmp.le.s32.totalorder 1, %s7
    %p87 = scmp.lt.s32.totalorder %s7, 3
    %p88 = pnand %p86, %p87
    %p89 = pneg %p88
    // Predicated region
    $region21: #{encoder_forward.6} parent=5 // pred_check
      _
    $region22: #{encoder_forward.6} parent=5 // pred_check_branch
      %91 = sbr.rel (%p88) target = $region24
    $region23: #{encoder_forward.6} parent=5 // pred_region
      %s92 = ssub.s32 %s7, 1
      %p93 = scmp.lt.s32.totalorder %s12, 1
      %s94 = scalar_select %p93, %s12, 1
      %s95 = smul.addr %s94, 23
      %s96 = smul.addr %s95, 4
      %s97 = scalar_lea.vmem %s0, %s96
      %p98 = pneg %p33
      %p99 = pneg %p30
      %p100 = pneg %p59
      %p101 = pneg %p56
      %p102 = scmp.lt.s32.totalorder %s12, 1
      %s103 = scalar_select %p102, %s12, 1
      %s104 = smul.addr %s103, 23
      %s105 = smul.addr %s104, 4
      %s106 = scalar_lea.vmem %s1, %s105
      %p107 = scmp.lt.s32.totalorder %s12, 1
      %s108 = scalar_select %p107, %s12, 1
      %s109 = smul.addr %s108, 23
      %s110 = smul.addr %s109, 4
      %s111 = scalar_lea.vmem %s0, %s110
      %p112 = scmp.lt.s32.totalorder %s12, 1
      %s113 = scalar_select %p112, %s12, 1
      %s114 = smul.addr %s113, 23
      %s115 = smul.addr %s114, 4
      %s116 = scalar_lea.vmem %s1, %s115
      %v117 = vld [vmem:[%s111] sm:$0xf]
      %v118 = vld [vmem:[%s111 + $0x4] sm:$0xf]
      %v119 = vld [vmem:[%s111 + $0x8] sm:$0xf]
      %v120 = vld [vmem:[%s111 + $0xc] sm:$0xf]
      %v121 = vld [vmem:[%s111 + $0x10] sm:$0xf]
      %v122 = vld [vmem:[%s111 + $0x14] sm:$0xf]
      %v123 = vld [vmem:[%s111 + $0x18] sm:$0xf]
      %v124 = vld [vmem:[%s111 + $0x1c] sm:$0xf]
      %v125 = vld [vmem:[%s111 + $0x20] sm:$0xf]
      %v126 = vld [vmem:[%s111 + $0x24] sm:$0xf]
      %v127 = vld [vmem:[%s111 + $0x28] sm:$0xf]
      %v128 = vld [vmem:[%s111 + $0x2c] sm:$0xf]
      %v129 = vld [vmem:[%s111 + $0x30] sm:$0xf]
      %v130 = vld [vmem:[%s111 + $0x34] sm:$0xf]
      %v131 = vld [vmem:[%s111 + $0x38] sm:$0xf]
      %v132 = vld [vmem:[%s111 + $0x3c] sm:$0xf]
      %v133 = vld [vmem:[%s111 + $0x40] sm:$0xf]
      %v134 = vld [vmem:[%s111 + $0x44] sm:$0xf]
      %v135 = vld [vmem:[%s111 + $0x48] sm:$0xf]
      %v136 = vld [vmem:[%s111 + $0x4c] sm:$0xf]
      %v137 = vld [vmem:[%s111 + $0x50] sm:$0xf]
      %v138 = vld [vmem:[%s111 + $0x54] sm:$0xf]
      %v139 = vld [vmem:[%s111 + $0x58] sm:$0x3]
      %v140 = vunpack.c.l.bf16 %v117
      %v141 = vunpack.c.l.bf16 %v118
      %v142 = vunpack.c.l.bf16 %v119
      %v143 = vunpack.c.l.bf16 %v120
      %v144 = vunpack.c.l.bf16 %v121
      %v145 = vunpack.c.l.bf16 %v122
      %v146 = vunpack.c.l.bf16 %v123
      %v147 = vunpack.c.l.bf16 %v124
      %v148 = vunpack.c.l.bf16 %v125
      %v149 = vunpack.c.l.bf16 %v126
      %v150 = vunpack.c.l.bf16 %v127
      %v151 = vunpack.c.l.bf16 %v128
      %v152 = vunpack.c.l.bf16 %v129
      %v153 = vunpack.c.l.bf16 %v130
      %v154 = vunpack.c.l.bf16 %v131
      %v155 = vunpack.c.l.bf16 %v132
      %v156 = vunpack.c.l.bf16 %v133
      %v157 = vunpack.c.l.bf16 %v134
      %v158 = vunpack.c.l.bf16 %v135
      %v159 = vunpack.c.l.bf16 %v136
      %v160 = vunpack.c.l.bf16 %v137
      %v161 = vunpack.c.l.bf16 %v138
      %v162 = vunpack.c.l.bf16 %v139
      %186 = vrot.lane.b32.xlu0 %v140, 68
      %v187 = vpop.permute.xlu0 %186
      %188 = vrot.lane.b32.xlu0 %v141, 68
      %v189 = vpop.permute.xlu0 %188
      %190 = vrot.lane.b32.xlu0 %v142, 68
      %v191 = vpop.permute.xlu0 %190
      %192 = vrot.lane.b32.xlu0 %v143, 68
      %v193 = vpop.permute.xlu0 %192
      %194 = vrot.lane.b32.xlu0 %v144, 68
      %v195 = vpop.permute.xlu0 %194
      %196 = vrot.lane.b32.xlu0 %v145, 68
      %v197 = vpop.permute.xlu0 %196
      %198 = vrot.lane.b32.xlu0 %v146, 68
      %v199 = vpop.permute.xlu0 %198
      %200 = vrot.lane.b32.xlu0 %v147, 68
      %v201 = vpop.permute.xlu0 %200
      %202 = vrot.lane.b32.xlu0 %v148, 68
      %v203 = vpop.permute.xlu0 %202
      %204 = vrot.lane.b32.xlu0 %v149, 68
      %v205 = vpop.permute.xlu0 %204
      %206 = vrot.lane.b32.xlu0 %v150, 68
      %v207 = vpop.permute.xlu0 %206
      %208 = vrot.lane.b32.xlu0 %v151, 68
      %v209 = vpop.permute.xlu0 %208
      %210 = vrot.lane.b32.xlu0 %v152, 68
      %v211 = vpop.permute.xlu0 %210
      %212 = vrot.lane.b32.xlu0 %v153, 68
      %v213 = vpop.permute.xlu0 %212
      %214 = vrot.lane.b32.xlu0 %v154, 68
      %v215 = vpop.permute.xlu0 %214
      %216 = vrot.lane.b32.xlu0 %v155, 68
      %v217 = vpop.permute.xlu0 %216
      %218 = vrot.lane.b32.xlu0 %v156, 68
      %v219 = vpop.permute.xlu0 %218
      %220 = vrot.lane.b32.xlu0 %v157, 68
      %v221 = vpop.permute.xlu0 %220
      %222 = vrot.lane.b32.xlu0 %v158, 68
      %v223 = vpop.permute.xlu0 %222
      %224 = vrot.lane.b32.xlu0 %v159, 68
      %v225 = vpop.permute.xlu0 %224
      %226 = vrot.lane.b32.xlu0 %v160, 68
      %v227 = vpop.permute.xlu0 %226
      %228 = vrot.lane.b32.xlu0 %v161, 68
      %v229 = vpop.permute.xlu0 %228
      %230 = vrot.lane.b32.xlu0 %v162, 68
      %v231 = vpop.permute.xlu0 %230
      %v255 = vmax.f32 %v140, %v187
      %v256 = vmax.f32 %v141, %v189
      %v257 = vmax.f32 %v142, %v191
      %v258 = vmax.f32 %v143, %v193
      %v259 = vmax.f32 %v144, %v195
      %v260 = vmax.f32 %v145, %v197
      %v261 = vmax.f32 %v146, %v199
      %v262 = vmax.f32 %v147, %v201
      %v263 = vmax.f32 %v148, %v203
      %v264 = vmax.f32 %v149, %v205
      %v265 = vmax.f32 %v150, %v207
      %v266 = vmax.f32 %v151, %v209
      %v267 = vmax.f32 %v152, %v211
      %v268 = vmax.f32 %v153, %v213
      %v269 = vmax.f32 %v154, %v215
      %v270 = vmax.f32 %v155, %v217
      %v271 = vmax.f32 %v156, %v219
      %v272 = vmax.f32 %v157, %v221
      %v273 = vmax.f32 %v158, %v223
      %v274 = vmax.f32 %v159, %v225
      %v275 = vmax.f32 %v160, %v227
      %v276 = vmax.f32 %v161, %v229
      %v277 = vmax.f32 %v162, %v231
      %v278 = vlaneseq
      %v279 = vshrl.u32 %v278, 7
      %v280 = vadd.s32 %v279, 8
      %v281 = vadd.s32 %v279, 16
      %v282 = vadd.s32 %v279, 24
      %v283 = vadd.s32 %v279, 32
      %v284 = vadd.s32 %v279, 40
      %v285 = vadd.s32 %v279, 48
      %v286 = vadd.s32 %v279, 56
      %v287 = vlaneseq
      %v288 = vand.u32 %v287, 127
      %v289 = vmul.u32 %v288, 2
      %vm290 = vcmp.eq.s32.totalorder %v279, %v289
      %vm291 = vcmp.eq.s32.totalorder %v280, %v289
      %vm292 = vcmp.eq.s32.totalorder %v281, %v289
      %vm293 = vcmp.eq.s32.totalorder %v282, %v289
      %vm294 = vcmp.eq.s32.totalorder %v283, %v289
      %vm295 = vcmp.eq.s32.totalorder %v284, %v289
      %vm296 = vcmp.eq.s32.totalorder %v285, %v289
      %vm297 = vcmp.eq.s32.totalorder %v286, %v289
      %v298 = vsel %vm290, 1, 0
      %v299 = vsel %vm291, 1, 0
      %v300 = vsel %vm292, 1, 0
      %v301 = vsel %vm293, 1, 0
      %v302 = vsel %vm294, 1, 0
      %v303 = vsel %vm295, 1, 0
      %v304 = vsel %vm296, 1, 0
      %v305 = vsel %vm297, 1, 0
      %v306 = vcvt.s32.f32 %v298
      %v307 = vcvt.s32.f32 %v299
      %v308 = vcvt.s32.f32 %v300
      %v309 = vcvt.s32.f32 %v301
      %v310 = vcvt.s32.f32 %v302
      %v311 = vcvt.s32.f32 %v303
      %v312 = vcvt.s32.f32 %v304
      %v313 = vcvt.s32.f32 %v305
      %v314 = vadd.s32 %v289, 1
      %vm315 = vcmp.eq.s32.totalorder %v279, %v314
      %vm316 = vcmp.eq.s32.totalorder %v280, %v314
      %vm317 = vcmp.eq.s32.totalorder %v281, %v314
      %vm318 = vcmp.eq.s32.totalorder %v282, %v314
      %vm319 = vcmp.eq.s32.totalorder %v283, %v314
      %vm320 = vcmp.eq.s32.totalorder %v284, %v314
      %vm321 = vcmp.eq.s32.totalorder %v285, %v314
      %vm322 = vcmp.eq.s32.totalorder %v286, %v314
      %v323 = vsel %vm315, 1, 0
      %v324 = vsel %vm316, 1, 0
      %v325 = vsel %vm317, 1, 0
      %v326 = vsel %vm318, 1, 0
      %v327 = vsel %vm319, 1, 0
      %v328 = vsel %vm320, 1, 0
      %v329 = vsel %vm321, 1, 0
      %v330 = vsel %vm322, 1, 0
      %v331 = vcvt.s32.f32 %v323
      %v332 = vcvt.s32.f32 %v324
      %v333 = vcvt.s32.f32 %v325
      %v334 = vcvt.s32.f32 %v326
      %v335 = vcvt.s32.f32 %v327
      %v336 = vcvt.s32.f32 %v328
      %v337 = vcvt.s32.f32 %v329
      %v338 = vcvt.s32.f32 %v330
      %vm339 = vcmask 490496
      %v341 = vsel %vm339, %v255, 0
      %v344 = vsel %vm339, %v256, 0
      %v347 = vsel %vm339, %v257, 0
      %v350 = vsel %vm339, %v258, 0
      %v353 = vsel %vm339, %v259, 0
      %v356 = vsel %vm339, %v260, 0
      %v359 = vsel %vm339, %v261, 0
      %v362 = vsel %vm339, %v262, 0
      %v365 = vsel %vm339, %v263, 0
      %v368 = vsel %vm339, %v264, 0
      %v371 = vsel %vm339, %v265, 0
      %v374 = vsel %vm339, %v266, 0
      %v377 = vsel %vm339, %v267, 0
      %v380 = vsel %vm339, %v268, 0
      %v383 = vsel %vm339, %v269, 0
      %v386 = vsel %vm339, %v270, 0
      %v389 = vsel %vm339, %v271, 0
      %v392 = vsel %vm339, %v272, 0
      %v395 = vsel %vm339, %v273, 0
      %v398 = vsel %vm339, %v274, 0
      %v401 = vsel %vm339, %v275, 0
      %v404 = vsel %vm339, %v276, 0
      %v407 = vsel %vm339, %v277, 0
      %vm409 = vcmask 1043456
      %v411 = vsel %vm409, %v313, 0
      %413 = vmatprep.subr.mxu0 0.0
      %414 = vmatpush1.msra.mxu0 %v306
      %415 = vmatprep.subr.mxu0 0.0
      %416 = vmatpush1.msra.mxu0 %v307
      %417 = vmatprep.subr.mxu0 0.0
      %418 = vmatpush1.msra.mxu0 %v308
      %419 = vmatprep.subr.mxu0 0.0
      %420 = vmatpush1.msra.mxu0 %v309
      %421 = vmatprep.subr.mxu0 0.0
      %422 = vmatpush1.msra.mxu0 %v310
      %423 = vmatprep.subr.mxu0 0.0
      %424 = vmatpush1.msra.mxu0 %v311
      %425 = vmatprep.subr.mxu0 0.0
      %426 = vmatpush1.msra.mxu0 %v312
      %427 = vmatprep.subr.mxu0 0.0
      %428 = vmatpush1.msra.mxu0 %v411
      %429 = vmatprep.subr.mxu0 0.0
      %430 = vmatpush1.msra.mxu0 0.0
      %431 = vmatprep.subr.mxu0 0.0
      %432 = vmatpush1.msra.mxu0 0.0
      %433 = vmatprep.subr.mxu0 0.0
      %434 = vmatpush1.msra.mxu0 0.0
      %435 = vmatprep.subr.mxu0 0.0
      %436 = vmatpush1.msra.mxu0 0.0
      %437 = vmatprep.subr.mxu0 0.0
      %438 = vmatpush1.msra.mxu0 0.0
      %439 = vmatprep.subr.mxu0 0.0
      %440 = vmatpush1.msra.mxu0 0.0
      %441 = vmatprep.subr.mxu0 0.0
      %442 = vmatpush1.msra.mxu0 0.0
      %443 = vmatprep.subr.mxu0 0.0
      %444 = vmatpush1.msra.mxu0 0.0
      %445 = vmatprep.subr.mxu0 0.0
      %446 = vmatpush1.msra.mxu0 0.0
      %447 = vmatprep.subr.mxu0 0.0
      %448 = vmatpush1.msra.mxu0 0.0
      %449 = vmatprep.subr.mxu0 0.0
      %450 = vmatpush1.msra.mxu0 0.0
      %451 = vmatprep.subr.mxu0 0.0
      %452 = vmatpush1.msra.mxu0 0.0
      %453 = vmatprep.subr.mxu0 0.0
      %454 = vmatpush1.msra.mxu0 0.0
      %455 = vmatprep.subr.mxu0 0.0
      %456 = vmatpush1.msra.mxu0 0.0
      %457 = vmatprep.subr.mxu0 0.0
      %458 = vmatpush1.msra.mxu0 0.0
      %459 = vmatprep.subr.mxu0 0.0
      %460 = vmatpush1.msra.mxu0 0.0
      %461 = vmatprep.subr.mxu0 0.0
      %462 = vmatpush1.msra.mxu0 0.0
      %463 = vmatprep.subr.mxu0 0.0
      %464 = vmatpush1.msra.mxu0 0.0
      %465 = vmatprep.subr.mxu0 0.0
      %466 = vmatpush1.msra.mxu0 0.0
      %467 = vmatprep.subr.mxu0 0.0
      %468 = vmatpush1.msra.mxu0 0.0
      %469 = vmatprep.subr.mxu0 0.0
      %470 = vmatpush1.msra.mxu0 0.0
      %471 = vmatprep.subr.mxu0 0.0
      %472 = vmatpush1.msra.mxu0 0.0
      %473 = vmatprep.subr.mxu0 0.0
      %474 = vmatpush1.msra.mxu0 0.0
      %475 = vmatprep.subr.mxu0 0.0
      %476 = vmatpush1.msra.mxu0 0.0
      %477 = vmatprep.mubr.f32.mxu0 0.0
      %478 = vmatmul.mubr.f32.gmra.mrb[0].mxu0 %v341
      %v479 = vpop.f32.mrb[0].mxu0
      %v480 = vadd.f32 0.0, %v479
      %v481 = vpop.f32.mrb[0].mxu0
      %482 = vmatprep.mubr.f32.mxu0 0.0
      %483 = vmatmul.mubr.f32.gmra.mrb[0].mxu0 %v344
      %v484 = vpop.f32.mrb[0].mxu0
      %v485 = vadd.f32 0.0, %v484
      %v486 = vpop.f32.mrb[0].mxu0
      %487 = vmatprep.mubr.f32.mxu0 0.0
      %488 = vmatmul.mubr.f32.gmra.mrb[0].mxu0 %v347
      %v489 = vpop.f32.mrb[0].mxu0
      %v490 = vadd.f32 0.0, %v489
      %v491 = vpop.f32.mrb[0].mxu0
      %492 = vmatprep.mubr.f32.mxu0 0.0
      %493 = vmatmul.mubr.f32.gmra.mrb[0].mxu0 %v350
      %v494 = vpop.f32.mrb[0].mxu0
      %v495 = vadd.f32 0.0, %v494
      %v496 = vpop.f32.mrb[0].mxu0
      %497 = vmatprep.mubr.f32.mxu0 0.0
      %498 = vmatmul.mubr.f32.gmra.mrb[0].mxu0 %v353
      %v499 = vpop.f32.mrb[0].mxu0
      %v500 = vadd.f32 0.0, %v499
      %v501 = vpop.f32.mrb[0].mxu0
      %502 = vmatprep.mubr.f32.mxu0 0.0
      %503 = vmatmul.mubr.f32.gmra.mrb[0].mxu0 %v356
      %v504 = vpop.f32.mrb[0].mxu0
      %v505 = vadd.f32 0.0, %v504
      %v506 = vpop.f32.mrb[0].mxu0
      %507 = vmatprep.mubr.f32.mxu0 0.0
      %508 = vmatmul.mubr.f32.gmra.mrb[0].mxu0 %v359
      %v509 = vpop.f32.mrb[0].mxu0
      %v510 = vadd.f32 0.0, %v509
      %v511 = vpop.f32.mrb[0].mxu0
      %512 = vmatprep.mubr.f32.mxu0 0.0
      %513 = vmatmul.mubr.f32.gmra.mrb[0].mxu0 %v362
      %v514 = vpop.f32.mrb[0].mxu0
      %v515 = vadd.f32 0.0, %v514
      %v516 = vpop.f32.mrb[0].mxu0
      %517 = vmatprep.mubr.f32.mxu0 0.0
      %518 = vmatmul.mubr.f32.gmra.mrb[0].mxu0 %v365
      %v519 = vpop.f32.mrb[0].mxu0
      %v520 = vadd.f32 0.0, %v519
      %v521 = vpop.f32.mrb[0].mxu0
      %522 = vmatprep.mubr.f32.mxu0 0.0
      %523 = vmatmul.mubr.f32.gmra.mrb[0].mxu0 %v368
      %v524 = vpop.f32.mrb[0].mxu0
      %v525 = vadd.f32 0.0, %v524
      %v526 = vpop.f32.mrb[0].mxu0
      %527 = vmatprep.mubr.f32.mxu0 0.0
      %528 = vmatmul.mubr.f32.gmra.mrb[0].mxu0 %v371
      %v529 = vpop.f32.mrb[0].mxu0
      %v530 = vadd.f32 0.0, %v529
      %v531 = vpop.f32.mrb[0].mxu0
      %532 = vmatprep.mubr.f32.mxu0 0.0
      %533 = vmatmul.mubr.f32.gmra.mrb[0].mxu0 %v374
      %v534 = vpop.f32.mrb[0].mxu0
      %v535 = vadd.f32 0.0, %v534
      %v536 = vpop.f32.mrb[0].mxu0
      %537 = vmatprep.mubr.f32.mxu0 0.0
      %538 = vmatmul.mubr.f32.gmra.mrb[0].mxu0 %v377
      %v539 = vpop.f32.mrb[0].mxu0
      %v540 = vadd.f32 0.0, %v539
      %v541 = vpop.f32.mrb[0].mxu0
      %542 = vmatprep.mubr.f32.mxu0 0.0
      %543 = vmatmul.mubr.f32.gmra.mrb[0].mxu0 %v380
      %v544 = vpop.f32.mrb[0].mxu0
      %v545 = vadd.f32 0.0, %v544
      %v546 = vpop.f32.mrb[0].mxu0
      %547 = vmatprep.mubr.f32.mxu0 0.0
      %548 = vmatmul.mubr.f32.gmra.mrb[0].mxu0 %v383
      %v549 = vpop.f32.mrb[0].mxu0
      %v550 = vadd.f32 0.0, %v549
      %v551 = vpop.f32.mrb[0].mxu0
      %552 = vmatprep.mubr.f32.mxu0 0.0
      %553 = vmatmul.mubr.f32.gmra.mrb[0].mxu0 %v386
      %v554 = vpop.f32.mrb[0].mxu0
      %v555 = vadd.f32 0.0, %v554
      %v556 = vpop.f32.mrb[0].mxu0
      %557 = vmatprep.mubr.f32.mxu0 0.0
      %558 = vmatmul.mubr.f32.gmra.mrb[0].mxu0 %v389
      %v559 = vpop.f32.mrb[0].mxu0
      %v560 = vadd.f32 0.0, %v559
      %v561 = vpop.f32.mrb[0].mxu0
      %562 = vmatprep.mubr.f32.mxu0 0.0
      %563 = vmatmul.mubr.f32.gmra.mrb[0].mxu0 %v392
      %v564 = vpop.f32.mrb[0].mxu0
      %v565 = vadd.f32 0.0, %v564
      %v566 = vpop.f32.mrb[0].mxu0
      %567 = vmatprep.mubr.f32.mxu0 0.0
      %568 = vmatmul.mubr.f32.gmra.mrb[0].mxu0 %v395
      %v569 = vpop.f32.mrb[0].mxu0
      %v570 = vadd.f32 0.0, %v569
      %v571 = vpop.f32.mrb[0].mxu0
      %572 = vmatprep.mubr.f32.mxu0 0.0
      %573 = vmatmul.mubr.f32.gmra.mrb[0].mxu0 %v398
      %v574 = vpop.f32.mrb[0].mxu0
      %v575 = vadd.f32 0.0, %v574
      %v576 = vpop.f32.mrb[0].mxu0
      %577 = vmatprep.mubr.f32.mxu0 0.0
      %578 = vmatmul.mubr.f32.gmra.mrb[0].mxu0 %v401
      %v579 = vpop.f32.mrb[0].mxu0
      %v580 = vadd.f32 0.0, %v579
      %v581 = vpop.f32.mrb[0].mxu0
      %582 = vmatprep.mubr.f32.mxu0 0.0
      %583 = vmatmul.mubr.f32.gmra.mrb[0].mxu0 %v404
      %v584 = vpop.f32.mrb[0].mxu0
      %v585 = vadd.f32 0.0, %v584
      %v586 = vpop.f32.mrb[0].mxu0
      %587 = vmatprep.mubr.f32.mxu0 0.0
      %588 = vmatmul.mubr.f32.gmra.mrb[0].mxu0 %v407
      %v589 = vpop.f32.mrb[0].mxu0
      %v590 = vadd.f32 0.0, %v589
      %v591 = vpop.f32.mrb[0].mxu0
      %592 = vdwg.mxu0
      %v594 = vsel %vm409, %v338, 0
      %596 = vmatprep.subr.mxu0 0.0
      %597 = vmatpush1.msra.mxu0 %v331
      %598 = vmatprep.subr.mxu0 0.0
      %599 = vmatpush1.msra.mxu0 %v332
      %600 = vmatprep.subr.mxu0 0.0
      %601 = vmatpush1.msra.mxu0 %v333
      %602 = vmatprep.subr.mxu0 0.0
      %603 = vmatpush1.msra.mxu0 %v334
      %604 = vmatprep.subr.mxu0 0.0
      %605 = vmatpush1.msra.mxu0 %v335
      %606 = vmatprep.subr.mxu0 0.0
      %607 = vmatpush1.msra.mxu0 %v336
      %608 = vmatprep.subr.mxu0 0.0
      %609 = vmatpush1.msra.mxu0 %v337
      %610 = vmatprep.subr.mxu0 0.0
      %611 = vmatpush1.msra.mxu0 %v594
      %612 = vmatprep.subr.mxu0 0.0
      %613 = vmatpush1.msra.mxu0 0.0
      %614 = vmatprep.subr.mxu0 0.0
      %615 = vmatpush1.msra.mxu0 0.0
      %616 = vmatprep.subr.mxu0 0.0
      %617 = vmatpush1.msra.mxu0 0.0
      %618 = vmatprep.subr.mxu0 0.0
      %619 = vmatpush1.msra.mxu0 0.0
      %620 = vmatprep.subr.mxu0 0.0
      %621 = vmatpush1.msra.mxu0 0.0
      %622 = vmatprep.subr.mxu0 0.0
      %623 = vmatpush1.msra.mxu0 0.0
      %624 = vmatprep.subr.mxu0 0.0
      %625 = vmatpush1.msra.mxu0 0.0
      %626 = vmatprep.subr.mxu0 0.0
      %627 = vmatpush1.msra.mxu0 0.0
      %628 = vmatprep.subr.mxu0 0.0
      %629 = vmatpush1.msra.mxu0 0.0
      %630 = vmatprep.subr.mxu0 0.0
      %631 = vmatpush1.msra.mxu0 0.0
      %632 = vmatprep.subr.mxu0 0.0
      %633 = vmatpush1.msra.mxu0 0.0
      %634 = vmatprep.subr.mxu0 0.0
      %635 = vmatpush1.msra.mxu0 0.0
      %636 = vmatprep.subr.mxu0 0.0
      %637 = vmatpush1.msra.mxu0 0.0
      %638 = vmatprep.subr.mxu0 0.0
      %639 = vmatpush1.msra.mxu0 0.0
      %640 = vmatprep.subr.mxu0 0.0
      %641 = vmatpush1.msra.mxu0 0.0
      %642 = vmatprep.subr.mxu0 0.0
      %643 = vmatpush1.msra.mxu0 0.0
      %644 = vmatprep.subr.mxu0 0.0
      %645 = vmatpush1.msra.mxu0 0.0
      %646 = vmatprep.subr.mxu0 0.0
      %647 = vmatpush1.msra.mxu0 0.0
      %648 = vmatprep.subr.mxu0 0.0
      %649 = vmatpush1.msra.mxu0 0.0
      %650 = vmatprep.subr.mxu0 0.0
      %651 = vmatpush1.msra.mxu0 0.0
      %652 = vmatprep.subr.mxu0 0.0
      %653 = vmatpush1.msra.mxu0 0.0
      %654 = vmatprep.subr.mxu0 0.0
      %655 = vmatpush1.msra.mxu0 0.0
      %656 = vmatprep.subr.mxu0 0.0
      %657 = vmatpush1.msra.mxu0 0.0
      %658 = vmatprep.subr.mxu0 0.0
      %659 = vmatpush1.msra.mxu0 0.0
      %660 = vmatprep.mubr.f32.mxu0 0.0
      %661 = vmatmul.mubr.f32.gmra.mrb[0].mxu0 %v341
      %v662 = vpop.f32.mrb[0].mxu0
      %v663 = vadd.f32 0.0, %v662
      %v664 = vpop.f32.mrb[0].mxu0
      %665 = vmatprep.mubr.f32.mxu0 0.0
      %666 = vmatmul.mubr.f32.gmra.mrb[0].mxu0 %v344
      %v667 = vpop.f32.mrb[0].mxu0
      %v668 = vadd.f32 0.0, %v667
      %v669 = vpop.f32.mrb[0].mxu0
      %670 = vmatprep.mubr.f32.mxu0 0.0
      %671 = vmatmul.mubr.f32.gmra.mrb[0].mxu0 %v347
      %v672 = vpop.f32.mrb[0].mxu0
      %v673 = vadd.f32 0.0, %v672
      %v674 = vpop.f32.mrb[0].mxu0
      %675 = vmatprep.mubr.f32.mxu0 0.0
      %676 = vmatmul.mubr.f32.gmra.mrb[0].mxu0 %v350
      %v677 = vpop.f32.mrb[0].mxu0
      %v678 = vadd.f32 0.0, %v677
      %v679 = vpop.f32.mrb[0].mxu0
      %680 = vmatprep.mubr.f32.mxu0 0.0
      %681 = vmatmul.mubr.f32.gmra.mrb[0].mxu0 %v353
      %v682 = vpop.f32.mrb[0].mxu0
      %v683 = vadd.f32 0.0, %v682
      %v684 = vpop.f32.mrb[0].mxu0
      %685 = vmatprep.mubr.f32.mxu0 0.0
      %686 = vmatmul.mubr.f32.gmra.mrb[0].mxu0 %v356
      %v687 = vpop.f32.mrb[0].mxu0
      %v688 = vadd.f32 0.0, %v687
      %v689 = vpop.f32.mrb[0].mxu0
      %690 = vmatprep.mubr.f32.mxu0 0.0
      %691 = vmatmul.mubr.f32.gmra.mrb[0].mxu0 %v359
      %v692 = vpop.f32.mrb[0].mxu0
      %v693 = vadd.f32 0.0, %v692
      %v694 = vpop.f32.mrb[0].mxu0
      %695 = vmatprep.mubr.f32.mxu0 0.0
      %696 = vmatmul.mubr.f32.gmra.mrb[0].mxu0 %v362
      %v697 = vpop.f32.mrb[0].mxu0
      %v698 = vadd.f32 0.0, %v697
      %v699 = vpop.f32.mrb[0].mxu0
      %700 = vmatprep.mubr.f32.mxu0 0.0
      %701 = vmatmul.mubr.f32.gmra.mrb[0].mxu0 %v365
      %v702 = vpop.f32.mrb[0].mxu0
      %v703 = vadd.f32 0.0, %v702
      %v704 = vpop.f32.mrb[0].mxu0
      %705 = vmatprep.mubr.f32.mxu0 0.0
      %706 = vmatmul.mubr.f32.gmra.mrb[0].mxu0 %v368
      %v707 = vpop.f32.mrb[0].mxu0
      %v708 = vadd.f32 0.0, %v707
      %v709 = vpop.f32.mrb[0].mxu0
      %710 = vmatprep.mubr.f32.mxu0 0.0
      %711 = vmatmul.mubr.f32.gmra.mrb[0].mxu0 %v371
      %v712 = vpop.f32.mrb[0].mxu0
      %v713 = vadd.f32 0.0, %v712
      %v714 = vpop.f32.mrb[0].mxu0
      %715 = vmatprep.mubr.f32.mxu0 0.0
      %716 = vmatmul.mubr.f32.gmra.mrb[0].mxu0 %v374
      %v717 = vpop.f32.mrb[0].mxu0
      %v718 = vadd.f32 0.0, %v717
      %v719 = vpop.f32.mrb[0].mxu0
      %720 = vmatprep.mubr.f32.mxu0 0.0
      %721 = vmatmul.mubr.f32.gmra.mrb[0].mxu0 %v377
      %v722 = vpop.f32.mrb[0].mxu0
      %v723 = vadd.f32 0.0, %v722
      %v724 = vpop.f32.mrb[0].mxu0
      %725 = vmatprep.mubr.f32.mxu0 0.0
      %726 = vmatmul.mubr.f32.gmra.mrb[0].mxu0 %v380
      %v727 = vpop.f32.mrb[0].mxu0
      %v728 = vadd.f32 0.0, %v727
      %v729 = vpop.f32.mrb[0].mxu0
      %730 = vmatprep.mubr.f32.mxu0 0.0
      %731 = vmatmul.mubr.f32.gmra.mrb[0].mxu0 %v383
      %v732 = vpop.f32.mrb[0].mxu0
      %v733 = vadd.f32 0.0, %v732
      %v734 = vpop.f32.mrb[0].mxu0
      %735 = vmatprep.mubr.f32.mxu0 0.0
      %736 = vmatmul.mubr.f32.gmra.mrb[0].mxu0 %v386
      %v737 = vpop.f32.mrb[0].mxu0
      %v738 = vadd.f32 0.0, %v737
      %v739 = vpop.f32.mrb[0].mxu0
      %740 = vmatprep.mubr.f32.mxu0 0.0
      %741 = vmatmul.mubr.f32.gmra.mrb[0].mxu0 %v389
      %v742 = vpop.f32.mrb[0].mxu0
      %v743 = vadd.f32 0.0, %v742
      %v744 = vpop.f32.mrb[0].mxu0
      %745 = vmatprep.mubr.f32.mxu0 0.0
      %746 = vmatmul.mubr.f32.gmra.mrb[0].mxu0 %v392
      %v747 = vpop.f32.mrb[0].mxu0
      %v748 = vadd.f32 0.0, %v747
      %v749 = vpop.f32.mrb[0].mxu0
      %750 = vmatprep.mubr.f32.mxu0 0.0
      %751 = vmatmul.mubr.f32.gmra.mrb[0].mxu0 %v395
      %v752 = vpop.f32.mrb[0].mxu0
      %v753 = vadd.f32 0.0, %v752
      %v754 = vpop.f32.mrb[0].mxu0
      %755 = vmatprep.mubr.f32.mxu0 0.0
      %756 = vmatmul.mubr.f32.gmra.mrb[0].mxu0 %v398
      %v757 = vpop.f32.mrb[0].mxu0
      %v758 = vadd.f32 0.0, %v757
      %v759 = vpop.f32.mrb[0].mxu0
      %760 = vmatprep.mubr.f32.mxu0 0.0
      %761 = vmatmul.mubr.f32.gmra.mrb[0].mxu0 %v401
      %v762 = vpop.f32.mrb[0].mxu0
      %v763 = vadd.f32 0.0, %v762
      %v764 = vpop.f32.mrb[0].mxu0
      %765 = vmatprep.mubr.f32.mxu0 0.0
      %766 = vmatmul.mubr.f32.gmra.mrb[0].mxu0 %v404
      %v767 = vpop.f32.mrb[0].mxu0
      %v768 = vadd.f32 0.0, %v767
      %v769 = vpop.f32.mrb[0].mxu0
      %770 = vmatprep.mubr.f32.mxu0 0.0
      %771 = vmatmul.mubr.f32.gmra.mrb[0].mxu0 %v407
      %v772 = vpop.f32.mrb[0].mxu0
      %v773 = vadd.f32 0.0, %v772
      %v774 = vpop.f32.mrb[0].mxu0
      %775 = vdwg.mxu0
      %v776 = vmax.f32 %v480, %v663
      %v777 = vmax.f32 %v485, %v668
      %v778 = vmax.f32 %v490, %v673
      %v779 = vmax.f32 %v495, %v678
      %v780 = vmax.f32 %v500, %v683
      %v781 = vmax.f32 %v505, %v688
      %v782 = vmax.f32 %v510, %v693
      %v783 = vmax.f32 %v515, %v698
      %v784 = vmax.f32 %v520, %v703
      %v785 = vmax.f32 %v525, %v708
      %v786 = vmax.f32 %v530, %v713
      %v787 = vmax.f32 %v535, %v718
      %v788 = vmax.f32 %v540, %v723
      %v789 = vmax.f32 %v545, %v728
      %v790 = vmax.f32 %v550, %v733
      %v791 = vmax.f32 %v555, %v738
      %v792 = vmax.f32 %v560, %v743
      %v793 = vmax.f32 %v565, %v748
      %v794 = vmax.f32 %v570, %v753
      %v795 = vmax.f32 %v575, %v758
      %v796 = vmax.f32 %v580, %v763
      %v797 = vmax.f32 %v585, %v768
      %v798 = vmax.f32 %v590, %v773
      %v799 = vpack.c.bf16 %v777, %v776
      %v800 = vpack.c.bf16 %v779, %v778
      %v801 = vpack.c.bf16 %v781, %v780
      %v802 = vpack.c.bf16 %v783, %v782
      %v803 = vpack.c.bf16 %v785, %v784
      %v804 = vpack.c.bf16 %v787, %v786
      %v805 = vpack.c.bf16 %v789, %v788
      %v806 = vpack.c.bf16 %v791, %v790
      %v807 = vpack.c.bf16 %v793, %v792
      %v808 = vpack.c.bf16 %v795, %v794
      %v809 = vpack.c.bf16 %v797, %v796
      %v810 = vpack.c.bf16 %v798, %v798
      %v823 = vunpack.c.l.b16 %v799
      %v824 = vunpack.c.h.b16 %v799
      %v825 = vunpack.c.l.b16 %v800
      %v826 = vunpack.c.h.b16 %v800
      %v827 = vunpack.c.l.b16 %v801
      %v828 = vunpack.c.h.b16 %v801
      %v829 = vunpack.c.l.b16 %v802
      %v830 = vunpack.c.h.b16 %v802
      %v831 = vunpack.c.l.b16 %v803
      %v832 = vunpack.c.h.b16 %v803
      %v833 = vunpack.c.l.b16 %v804
      %v834 = vunpack.c.h.b16 %v804
      %v835 = vunpack.c.l.b16 %v805
      %v836 = vunpack.c.h.b16 %v805
      %v837 = vunpack.c.l.b16 %v806
      %v838 = vunpack.c.h.b16 %v806
      %v839 = vunpack.c.l.b16 %v807
      %v840 = vunpack.c.h.b16 %v807
      %v841 = vunpack.c.l.b16 %v808
      %v842 = vunpack.c.h.b16 %v808
      %v843 = vunpack.c.l.b16 %v809
      %v844 = vunpack.c.h.b16 %v809
      %v845 = vunpack.c.l.b16 %v810
      %v846 = vpack.c.b16 %v823, %v823
      %v847 = vpack.c.b16 %v824, %v824
      %v848 = vpack.c.b16 %v825, %v825
      %v849 = vpack.c.b16 %v826, %v826
      %v850 = vpack.c.b16 %v827, %v827
      %v851 = vpack.c.b16 %v828, %v828
      %v852 = vpack.c.b16 %v829, %v829
      %v853 = vpack.c.b16 %v830, %v830
      %v854 = vpack.c.b16 %v831, %v831
      %v855 = vpack.c.b16 %v832, %v832
      %v856 = vpack.c.b16 %v833, %v833
      %v857 = vpack.c.b16 %v834, %v834
      %v858 = vpack.c.b16 %v835, %v835
      %v859 = vpack.c.b16 %v836, %v836
      %v860 = vpack.c.b16 %v837, %v837
      %v861 = vpack.c.b16 %v838, %v838
      %v862 = vpack.c.b16 %v839, %v839
      %v863 = vpack.c.b16 %v840, %v840
      %v864 = vpack.c.b16 %v841, %v841
      %v865 = vpack.c.b16 %v842, %v842
      %v866 = vpack.c.b16 %v843, %v843
      %v867 = vpack.c.b16 %v844, %v844
      %v868 = vpack.c.b16 %v845, %v845
      %vm892 = vcmask 240640
      %893 = vst.msk [vmem:[%s116] sm:$0xf] %vm892, %v846
      %894 = vst.msk [vmem:[%s116 + $0x4] sm:$0xf] %vm892, %v847
      %895 = vst.msk [vmem:[%s116 + $0x8] sm:$0xf] %vm892, %v848
      %896 = vst.msk [vmem:[%s116 + $0xc] sm:$0xf] %vm892, %v849
      %897 = vst.msk [vmem:[%s116 + $0x10] sm:$0xf] %vm892, %v850
      %898 = vst.msk [vmem:[%s116 + $0x14] sm:$0xf] %vm892, %v851
      %899 = vst.msk [vmem:[%s116 + $0x18] sm:$0xf] %vm892, %v852
      %900 = vst.msk [vmem:[%s116 + $0x1c] sm:$0xf] %vm892, %v853
      %901 = vst.msk [vmem:[%s116 + $0x20] sm:$0xf] %vm892, %v854
      %902 = vst.msk [vmem:[%s116 + $0x24] sm:$0xf] %vm892, %v855
      %903 = vst.msk [vmem:[%s116 + $0x28] sm:$0xf] %vm892, %v856
      %904 = vst.msk [vmem:[%s116 + $0x2c] sm:$0xf] %vm892, %v857
      %905 = vst.msk [vmem:[%s116 + $0x30] sm:$0xf] %vm892, %v858
      %906 = vst.msk [vmem:[%s116 + $0x34] sm:$0xf] %vm892, %v859
      %907 = vst.msk [vmem:[%s116 + $0x38] sm:$0xf] %vm892, %v860
      %908 = vst.msk [vmem:[%s116 + $0x3c] sm:$0xf] %vm892, %v861
      %909 = vst.msk [vmem:[%s116 + $0x40] sm:$0xf] %vm892, %v862
      %910 = vst.msk [vmem:[%s116 + $0x44] sm:$0xf] %vm892, %v863
      %911 = vst.msk [vmem:[%s116 + $0x48] sm:$0xf] %vm892, %v864
      %912 = vst.msk [vmem:[%s116 + $0x4c] sm:$0xf] %vm892, %v865
      %913 = vst.msk [vmem:[%s116 + $0x50] sm:$0xf] %vm892, %v866
      %914 = vst.msk [vmem:[%s116 + $0x54] sm:$0xf] %vm892, %v867
      %vm915 = vcmask 238592
      %916 = vst.msk [vmem:[%s116 + $0x58] sm:$0x3] %vm915, %v868
      %p917 = scmp.lt.s32.totalorder %s12, 1
      %s918 = scalar_select %p917, %s12, 1
      %s919 = smul.addr %s918, 23
      %s920 = smul.addr %s919, 4
      %s921 = scalar_lea.vmem %s1, %s920
      // Predicated region
      $region25: #{encoder_forward.6} parent=23 // pred_check
        %p922 = pneg %p56
      $region26: #{encoder_forward.6} parent=23 // pred_check_branch
        %924 = sbr.rel (%p922) target = $region28
      $region27: #{encoder_forward.6} parent=23 // pred_region
        _
      $region28: #{encoder_forward.6} parent=23 // pred_fallthru
        _
    $region24: #{encoder_forward.6} parent=5 // pred_fallthru
      _
    %p925 = scmp.le.s32.totalorder 2, %s7
    // Predicated region
    $region29: #{encoder_forward.6} parent=5 // pred_check
      %p926 = pneg %p925
    $region30: #{encoder_forward.6} parent=5 // pred_check_branch
      %928 = sbr.rel (%p926) target = $region32
    $region31: #{encoder_forward.6} parent=5 // pred_region
      %s929 = ssub.s32 %s7, 2
      // Predicated region
      $region33: #{encoder_forward.6} parent=31 // pred_check
        %p930 = pneg %p62
      $region34: #{encoder_forward.6} parent=31 // pred_check_branch
        %932 = sbr.rel (%p930) target = $region36
      $region35: #{encoder_forward.6} parent=31 // pred_region
        %p933 = scmp.lt.s32.totalorder %s13, 1
        %s934 = scalar_select %p933, %s13, 1
        %s935 = smul.addr %s934, 23
        %s936 = smul.addr %s935, 4
        %s937 = scalar_lea.vmem %s1, %s936
      $region36: #{encoder_forward.6} parent=31 // pred_fallthru
        _
    $region32: #{encoder_forward.6} parent=5 // pred_fallthru
      _
  $region6: #{encoder_forward.6} parent=0 // loop_footer
    %s11 = sadd.s32 1, %s7
  $region7: #{encoder_forward.6} parent=0 // loop_footer_branch
    %6 = sbr.rel target = $region3
  $region8: #{encoder_forward.6} parent=0 // loop_exit
    _

// kernel: encoder_forward.7
$region0: #{encoder_forward.7}
  #allocation0 [shape = 'u32[]', space=smem, size = 0x4, offset = 0x4, fixed_abs, tag = 'smem constant byte address 0x4 - core index']
  #allocation1 [shape = 'u32[144,128]{1,0:T(1,128)}', space=vmem, size = 0x12000, scoped, tag = 'internal scratch']
  %s0 = inlined_call_operand.vmem [shape: bf16[2,150,676], index: 0, kind: input, shape index: {}]
  %s1 = inlined_call_operand.vmem [shape: bf16[16,150], index: 1, kind: input, shape index: {}]
  %s2 = inlined_call_operand.vmem [shape: f32[16,1], index: 2, kind: input, shape index: {}]
  %s3 = inlined_call_operand.vmem [shape: bf16[2,16,676], index: 3, kind: output, shape index: {}]
  %s4 = sld [smem:[#allocation0]]
  $region45: #{encoder_forward.7} parent=0
    _
  %s6 = ssub.s32 1, %s4
  %s7 = scalar_select 0, %s6, %s4
  loop: start=0, step=1, limit=4
  $region2: #{encoder_forward.7} parent=0 // loop_pre_header
    _
  $region3: #{encoder_forward.7} parent=0 // loop_header
    %s9 = sphi 0, %s13
    %p10 = scmp.ge.s32.totalorder %s9, 4
    %s19 = sphi 0, %s21
    %s22 = sphi 0, %s19
    %s23 = sphi 0, %s22
    %s39 = sphi 0, %s23
    %s43 = sphi 0, %s43
    %s45 = sphi 0, %s43
    %s46 = sphi 0, %s45
    %s60 = sphi 0, %s46
    %s64 = sphi 0, %s64
    %s66 = sphi 0, %s64
    %s67 = sphi 0, %s66
    %s81 = sphi 0, %s67
    %s87 = sphi 0, %s89
    %s90 = sphi 0, %s87
    %s91 = sphi 0, %s90
    %s107 = sphi 0, %s91
  $region4: #{encoder_forward.7} parent=0 // loop_header_branch
    %12 = sbr.rel (%p10) target = $region8
  $region5: #{encoder_forward.7} parent=0 // loop_body
    %s14 = ssub.s32 %s9, 1
    %s15 = ssub.s32 %s9, 2
    %s16 = sadd.s32 %s9, 1
    %s17 = ssub.s32 %s9, %s16
    %p18 = scmp.eq.s32.totalorder %s17, 0
    %s20 = sadd.s32 %s19, 1
    %s21 = scalar_select %p18, %s19, %s20
    %p24 = pneg %p18
    %p25 = scmp.eq.s32.totalorder %s9, 1
    %p26 = por %p24, %p25
    %p27 = scmp.ne.s32.totalorder %s19, %s22
    %p28 = scmp.eq.s32.totalorder %s9, 0
    %p29 = por %p27, %p28
    %p30 = scmp.ne.s32.totalorder %s19, %s22
    %p31 = scmp.eq.s32.totalorder %s14, 1
    %p32 = por %p30, %p31
    %p33 = scmp.ne.s32.totalorder %s22, %s23
    %p34 = scmp.eq.s32.totalorder %s14, 0
    %p35 = por %p33, %p34
    %p36 = scmp.ne.s32.totalorder %s22, %s23
    %p37 = scmp.eq.s32.totalorder %s15, 1
    %p38 = por %p36, %p37
    %p40 = scmp.ne.s32.totalorder %s23, %s39
    %p41 = scmp.eq.s32.totalorder %s15, 0
    %p42 = por %p40, %p41
    %s44 = sadd.s32 %s43, 1
    %p47 = scmp.eq.s32.totalorder %s9, 1
    %p48 = scmp.ne.s32.totalorder %s43, %s45
    %p49 = scmp.eq.s32.totalorder %s9, 0
    %p50 = por %p48, %p49
    %p51 = scmp.ne.s32.totalorder %s43, %s45
    %p52 = scmp.eq.s32.totalorder %s14, 1
    %p53 = por %p51, %p52
    %p54 = scmp.ne.s32.totalorder %s45, %s46
    %p55 = scmp.eq.s32.totalorder %s14, 0
    %p56 = por %p54, %p55
    %p57 = scmp.ne.s32.totalorder %s45, %s46
    %p58 = scmp.eq.s32.totalorder %s15, 1
    %p59 = por %p57, %p58
    %p61 = scmp.ne.s32.totalorder %s46, %s60
    %p62 = scmp.eq.s32.totalorder %s15, 0
    %p63 = por %p61, %p62
    %s65 = sadd.s32 %s64, 1
    %p68 = scmp.eq.s32.totalorder %s9, 1
    %p69 = scmp.ne.s32.totalorder %s64, %s66
    %p70 = scmp.eq.s32.totalorder %s9, 0
    %p71 = por %p69, %p70
    %p72 = scmp.ne.s32.totalorder %s64, %s66
    %p73 = scmp.eq.s32.totalorder %s14, 1
    %p74 = por %p72, %p73
    %p75 = scmp.ne.s32.totalorder %s66, %s67
    %p76 = scmp.eq.s32.totalorder %s14, 0
    %p77 = por %p75, %p76
    %p78 = scmp.ne.s32.totalorder %s66, %s67
    %p79 = scmp.eq.s32.totalorder %s15, 1
    %p80 = por %p78, %p79
    %p82 = scmp.ne.s32.totalorder %s67, %s81
    %p83 = scmp.eq.s32.totalorder %s15, 0
    %p84 = por %p82, %p83
    %s85 = ssub.s32 %s9, %s16
    %p86 = scmp.eq.s32.totalorder %s85, 0
    %s88 = sadd.s32 %s87, 1
    %s89 = scalar_select %p86, %s87, %s88
    %p92 = pneg %p86
    %p93 = scmp.eq.s32.totalorder %s9, 1
    %p94 = por %p92, %p93
    %p95 = scmp.ne.s32.totalorder %s87, %s90
    %p96 = scmp.eq.s32.totalorder %s9, 0
    %p97 = por %p95, %p96
    %p98 = scmp.ne.s32.totalorder %s87, %s90
    %p99 = scmp.eq.s32.totalorder %s14, 1
    %p100 = por %p98, %p99
    %p101 = scmp.ne.s32.totalorder %s90, %s91
    %p102 = scmp.eq.s32.totalorder %s14, 0
    %p103 = por %p101, %p102
    %p104 = scmp.ne.s32.totalorder %s90, %s91
    %p105 = scmp.eq.s32.totalorder %s15, 1
    %p106 = por %p104, %p105
    %p108 = scmp.ne.s32.totalorder %s91, %s107
    %p109 = scmp.eq.s32.totalorder %s15, 0
    %p110 = por %p108, %p109
    %p111 = scmp.le.s32.totalorder 1, %s9
    %p112 = scmp.lt.s32.totalorder %s9, 3
    %p113 = pnand %p111, %p112
    %p114 = pneg %p113
    // Predicated region
    $region9: #{encoder_forward.7} parent=5 // pred_check
      _
    $region10: #{encoder_forward.7} parent=5 // pred_check_branch
      %116 = sbr.rel (%p113) target = $region12
    $region11: #{encoder_forward.7} parent=5 // pred_region
      %s117 = ssub.s32 %s9, 1
      // Predicated region
      $region13: #{encoder_forward.7} parent=11 // pred_check
        %p118 = pneg %p56
      $region14: #{encoder_forward.7} parent=11 // pred_check_branch
        %120 = sbr.rel (%p118) target = $region16
      $region15: #{encoder_forward.7} parent=11 // pred_region
        _
      $region16: #{encoder_forward.7} parent=11 // pred_fallthru
        _
      // Predicated region
      $region17: #{encoder_forward.7} parent=11 // pred_check
        %p121 = pneg %p77
      $region18: #{encoder_forward.7} parent=11 // pred_check_branch
        %123 = sbr.rel (%p121) target = $region20
      $region19: #{encoder_forward.7} parent=11 // pred_region
        _
      $region20: #{encoder_forward.7} parent=11 // pred_fallthru
        _
    $region12: #{encoder_forward.7} parent=5 // pred_fallthru
      _
    %p124 = scmp.lt.s32.totalorder %s9, 2
    // Predicated region
    $region21: #{encoder_forward.7} parent=5 // pred_check
      %p125 = pneg %p124
    $region22: #{encoder_forward.7} parent=5 // pred_check_branch
      %127 = sbr.rel (%p125) target = $region24
    $region23: #{encoder_forward.7} parent=5 // pred_region
      // Predicated region
      $region25: #{encoder_forward.7} parent=23 // pred_check
        %p128 = pneg %p29
      $region26: #{encoder_forward.7} parent=23 // pred_check_branch
        %130 = sbr.rel (%p128) target = $region28
      $region27: #{encoder_forward.7} parent=23 // pred_region
        %p131 = scmp.lt.s32.totalorder %s9, 1
        %s132 = scalar_select %p131, %s9, 1
        %s133 = smul.addr %s132, 114
        %s134 = smul.addr %s133, 4
        %s135 = scalar_lea.vmem %s0, %s134
      $region28: #{encoder_forward.7} parent=23 // pred_fallthru
        _
    $region24: #{encoder_forward.7} parent=5 // pred_fallthru
      _
    %p136 = scmp.le.s32.totalorder 1, %s9
    %p137 = scmp.lt.s32.totalorder %s9, 3
    %p138 = pnand %p136, %p137
    %p139 = pneg %p138
    // Predicated region
    $region29: #{encoder_forward.7} parent=5 // pred_check
      _
    $region30: #{encoder_forward.7} parent=5 // pred_check_branch
      %141 = sbr.rel (%p138) target = $region32
    $region31: #{encoder_forward.7} parent=5 // pred_region
      %s142 = ssub.s32 %s9, 1
      %p143 = scmp.lt.s32.totalorder %s14, 1
      %s144 = scalar_select %p143, %s14, 1
      %s145 = smul.addr %s144, 114
      %s146 = smul.addr %s145, 4
      %s147 = scalar_lea.vmem %s0, %s146
      %p148 = pneg %p35
      %p149 = pneg %p32
      %p150 = pneg %p56
      %p151 = pneg %p53
      %p152 = pneg %p77
      %p153 = pneg %p74
      %p154 = pneg %p103
      %p155 = pneg %p100
      %p156 = scmp.lt.s32.totalorder %s14, 1
      %s157 = scalar_select %p156, %s14, 1
      %s158 = smul.addr %s157, 12
      %s159 = smul.addr %s158, 4
      %s160 = scalar_lea.vmem %s3, %s159
      %p161 = scmp.lt.s32.totalorder %s14, 1
      %s162 = scalar_select %p161, %s14, 1
      %s163 = smul.addr %s162, 114
      %s164 = smul.addr %s163, 4
      %s165 = scalar_lea.vmem %s0, %s164
      %p166 = scmp.lt.s32.totalorder %s14, 1
      %s167 = scalar_select %p166, %s14, 1
      %s168 = smul.addr %s167, 12
      %s169 = smul.addr %s168, 4
      %s170 = scalar_lea.vmem %s3, %s169
      %v172 = vld [vmem:[%s1] sm:$0xff]
      %v173 = vld [vmem:[%s1 + $0x8] sm:$0xff]
      %v174 = vld [vmem:[%s165] sm:$0xff]
      %v175 = vld [vmem:[%s165 + $0x8] sm:$0xff]
      %v176 = vld [vmem:[%s165 + $0x10] sm:$0xff]
      %v177 = vld [vmem:[%s165 + $0x18] sm:$0xff]
      %v178 = vld [vmem:[%s165 + $0x20] sm:$0xff]
      %v179 = vld [vmem:[%s165 + $0x28] sm:$0xff]
      %v180 = vld [vmem:[%s165 + $0x30] sm:$0xff]
      %v181 = vld [vmem:[%s165 + $0x38] sm:$0xff]
      %v182 = vld [vmem:[%s165 + $0x40] sm:$0xff]
      %v183 = vld [vmem:[%s165 + $0x48] sm:$0xff]
      %v184 = vld [vmem:[%s165 + $0x50] sm:$0xff]
      %v185 = vld [vmem:[%s165 + $0x58] sm:$0xff]
      %v186 = vld [vmem:[%s165 + $0x60] sm:$0xff]
      %v187 = vld [vmem:[%s165 + $0x68] sm:$0xff]
      %v188 = vld [vmem:[%s165 + $0x70] sm:$0xff]
      %v189 = vld [vmem:[%s165 + $0x78] sm:$0xff]
      %v190 = vld [vmem:[%s165 + $0x80] sm:$0xff]
      %v191 = vld [vmem:[%s165 + $0x88] sm:$0xff]
      %v192 = vld [vmem:[%s165 + $0x90] sm:$0xff]
      %v193 = vld [vmem:[%s165 + $0x98] sm:$0xff]
      %v194 = vld [vmem:[%s165 + $0xa0] sm:$0xff]
      %v195 = vld [vmem:[%s165 + $0xa8] sm:$0xff]
      %v196 = vld [vmem:[%s165 + $0xb0] sm:$0xff]
      %v197 = vld [vmem:[%s165 + $0xb8] sm:$0xff]
      %v198 = vld [vmem:[%s165 + $0xc0] sm:$0xff]
      %v199 = vld [vmem:[%s165 + $0xc8] sm:$0xff]
      %v200 = vld [vmem:[%s165 + $0xd0] sm:$0xff]
      %v201 = vld [vmem:[%s165 + $0xd8] sm:$0xff]
      %v202 = vld [vmem:[%s165 + $0xe0] sm:$0xff]
      %v203 = vld [vmem:[%s165 + $0xe8] sm:$0xff]
      %v204 = vld [vmem:[%s165 + $0xf0] sm:$0xff]
      %v205 = vld [vmem:[%s165 + $0xf8] sm:$0xff]
      %v206 = vld [vmem:[%s165 + $0x100] sm:$0xff]
      %v207 = vld [vmem:[%s165 + $0x108] sm:$0xff]
      %v208 = vld [vmem:[%s165 + $0x110] sm:$0xff]
      %v209 = vld [vmem:[%s165 + $0x118] sm:$0xff]
      %v210 = vld [vmem:[%s165 + $0x120] sm:$0xff]
      %v211 = vld [vmem:[%s165 + $0x128] sm:$0xff]
      %v212 = vld [vmem:[%s165 + $0x130] sm:$0xff]
      %v213 = vld [vmem:[%s165 + $0x138] sm:$0xff]
      %v214 = vld [vmem:[%s165 + $0x140] sm:$0xff]
      %v215 = vld [vmem:[%s165 + $0x148] sm:$0xff]
      %v216 = vld [vmem:[%s165 + $0x150] sm:$0xff]
      %v217 = vld [vmem:[%s165 + $0x158] sm:$0xff]
      %v218 = vld [vmem:[%s165 + $0x160] sm:$0xff]
      %v219 = vld [vmem:[%s165 + $0x168] sm:$0xff]
      %v220 = vld [vmem:[%s165 + $0x170] sm:$0xff]
      %v221 = vld [vmem:[%s165 + $0x178] sm:$0xff]
      %v222 = vld [vmem:[%s165 + $0x180] sm:$0xff]
      %v223 = vld [vmem:[%s165 + $0x188] sm:$0xff]
      %v224 = vld [vmem:[%s165 + $0x190] sm:$0xff]
      %v225 = vld [vmem:[%s165 + $0x198] sm:$0xff]
      %v226 = vld [vmem:[%s165 + $0x1a0] sm:$0xff]
      %v227 = vld [vmem:[%s165 + $0x1a8] sm:$0xff]
      %v228 = vld [vmem:[%s165 + $0x1b0] sm:$0x77]
      %v229 = vld [vmem:[%s165 + $0x1b8] sm:$0x77]
      %v230 = vld [vmem:[%s165 + $0x1c0] sm:$0x77]
      %v231 = vld [vmem:[%s2] sm:$0xff]
      %v232 = vld [vmem:[%s2 + $0x8] sm:$0xff]
      %234 = vset.pattern.permute.xlu0 0
      %235 = vperm.xlu0 %234, %v231
      %v236 = vpop.permute.xlu0 %235
      %239 = vset.pattern.permute.xlu0 0
      %240 = vperm.xlu0 %239, %v232
      %v241 = vpop.permute.xlu0 %240
      %v245 = vunpack.c.l.b16 %v172
      %v246 = vunpack.c.h.b16 %v172
      %v247 = vunpack.c.l.b16 %v173
      %v248 = vunpack.c.h.b16 %v173
      %v249 = vpack.c.b16 %v247, %v245
      %v250 = vpack.c.b16 %v248, %v246
      %v309 = vunpack.c.l.b16 %v174
      %v310 = vunpack.c.h.b16 %v174
      %v311 = vunpack.c.l.b16 %v175
      %v312 = vunpack.c.h.b16 %v175
      %v313 = vunpack.c.l.b16 %v176
      %v314 = vunpack.c.h.b16 %v176
      %v315 = vunpack.c.l.b16 %v177
      %v316 = vunpack.c.h.b16 %v177
      %v317 = vunpack.c.l.b16 %v178
      %v318 = vunpack.c.h.b16 %v178
      %v319 = vunpack.c.l.b16 %v179
      %v320 = vunpack.c.h.b16 %v179
      %v321 = vunpack.c.l.b16 %v180
      %v322 = vunpack.c.h.b16 %v180
      %v323 = vunpack.c.l.b16 %v181
      %v324 = vunpack.c.h.b16 %v181
      %v325 = vunpack.c.l.b16 %v182
      %v326 = vunpack.c.h.b16 %v182
      %v327 = vunpack.c.l.b16 %v183
      %v328 = vunpack.c.h.b16 %v183
      %v329 = vunpack.c.l.b16 %v184
      %v330 = vunpack.c.h.b16 %v184
      %v331 = vunpack.c.l.b16 %v185
      %v332 = vunpack.c.h.b16 %v185
      %v333 = vunpack.c.l.b16 %v186
      %v334 = vunpack.c.h.b16 %v186
      %v335 = vunpack.c.l.b16 %v187
      %v336 = vunpack.c.h.b16 %v187
      %v337 = vunpack.c.l.b16 %v188
      %v338 = vunpack.c.h.b16 %v188
      %v339 = vunpack.c.l.b16 %v189
      %v340 = vunpack.c.h.b16 %v189
      %v341 = vunpack.c.l.b16 %v190
      %v342 = vunpack.c.h.b16 %v190
      %v343 = vunpack.c.l.b16 %v191
      %v344 = vunpack.c.h.b16 %v191
      %v345 = vunpack.c.l.b16 %v192
      %v346 = vunpack.c.h.b16 %v192
      %v347 = vunpack.c.l.b16 %v193
      %v348 = vunpack.c.h.b16 %v193
      %v349 = vunpack.c.l.b16 %v194
      %v350 = vunpack.c.h.b16 %v194
      %v351 = vunpack.c.l.b16 %v195
      %v352 = vunpack.c.h.b16 %v195
      %v353 = vunpack.c.l.b16 %v196
      %v354 = vunpack.c.h.b16 %v196
      %v355 = vunpack.c.l.b16 %v197
      %v356 = vunpack.c.h.b16 %v197
      %v357 = vunpack.c.l.b16 %v198
      %v358 = vunpack.c.h.b16 %v198
      %v359 = vunpack.c.l.b16 %v199
      %v360 = vunpack.c.h.b16 %v199
      %v361 = vunpack.c.l.b16 %v200
      %v362 = vunpack.c.h.b16 %v200
      %v363 = vunpack.c.l.b16 %v201
      %v364 = vunpack.c.h.b16 %v201
      %v365 = vunpack.c.l.b16 %v202
      %v366 = vunpack.c.h.b16 %v202
      %v367 = vunpack.c.l.b16 %v203
      %v368 = vunpack.c.h.b16 %v203
      %v369 = vunpack.c.l.b16 %v204
      %v370 = vunpack.c.h.b16 %v204
      %v371 = vunpack.c.l.b16 %v205
      %v372 = vunpack.c.h.b16 %v205
      %v373 = vunpack.c.l.b16 %v206
      %v374 = vunpack.c.h.b16 %v206
      %v375 = vunpack.c.l.b16 %v207
      %v376 = vunpack.c.h.b16 %v207
      %v377 = vunpack.c.l.b16 %v208
      %v378 = vunpack.c.h.b16 %v208
      %v379 = vunpack.c.l.b16 %v209
      %v380 = vunpack.c.h.b16 %v209
      %v381 = vunpack.c.l.b16 %v210
      %v382 = vunpack.c.h.b16 %v210
      %v383 = vunpack.c.l.b16 %v211
      %v384 = vunpack.c.h.b16 %v211
      %v385 = vunpack.c.l.b16 %v212
      %v386 = vunpack.c.h.b16 %v212
      %v387 = vunpack.c.l.b16 %v213
      %v388 = vunpack.c.h.b16 %v213
      %v389 = vunpack.c.l.b16 %v214
      %v390 = vunpack.c.h.b16 %v214
      %v391 = vunpack.c.l.b16 %v215
      %v392 = vunpack.c.h.b16 %v215
      %v393 = vunpack.c.l.b16 %v216
      %v394 = vunpack.c.h.b16 %v216
      %v395 = vunpack.c.l.b16 %v217
      %v396 = vunpack.c.h.b16 %v217
      %v397 = vunpack.c.l.b16 %v218
      %v398 = vunpack.c.h.b16 %v218
      %v399 = vunpack.c.l.b16 %v219
      %v400 = vunpack.c.h.b16 %v219
      %v401 = vunpack.c.l.b16 %v220
      %v402 = vunpack.c.h.b16 %v220
      %v403 = vunpack.c.l.b16 %v221
      %v404 = vunpack.c.h.b16 %v221
      %v405 = vunpack.c.l.b16 %v222
      %v406 = vunpack.c.h.b16 %v222
      %v407 = vunpack.c.l.b16 %v223
      %v408 = vunpack.c.h.b16 %v223
      %v409 = vunpack.c.l.b16 %v224
      %v410 = vunpack.c.h.b16 %v224
      %v411 = vunpack.c.l.b16 %v225
      %v412 = vunpack.c.h.b16 %v225
      %v413 = vunpack.c.l.b16 %v226
      %v414 = vunpack.c.h.b16 %v226
      %v415 = vunpack.c.l.b16 %v227
      %v416 = vunpack.c.h.b16 %v227
      %v417 = vunpack.c.l.b16 %v228
      %v418 = vunpack.c.h.b16 %v228
      %v419 = vunpack.c.l.b16 %v229
      %v420 = vunpack.c.h.b16 %v229
      %v421 = vunpack.c.l.b16 %v230
      %v422 = vunpack.c.h.b16 %v230
      %v423 = vpack.c.b16 %v315, %v309
      %v424 = vpack.c.b16 %v316, %v310
      %v425 = vpack.c.b16 %v317, %v311
      %v426 = vpack.c.b16 %v318, %v312
      %v427 = vpack.c.b16 %v319, %v313
      %v428 = vpack.c.b16 %v320, %v314
      %v429 = vpack.c.b16 %v327, %v321
      %v430 = vpack.c.b16 %v328, %v322
      %v431 = vpack.c.b16 %v329, %v323
      %v432 = vpack.c.b16 %v330, %v324
      %v433 = vpack.c.b16 %v331, %v325
      %v434 = vpack.c.b16 %v332, %v326
      %v435 = vpack.c.b16 %v339, %v333
      %v436 = vpack.c.b16 %v340, %v334
      %v437 = vpack.c.b16 %v341, %v335
      %v438 = vpack.c.b16 %v342, %v336
      %v439 = vpack.c.b16 %v343, %v337
      %v440 = vpack.c.b16 %v344, %v338
      %v441 = vpack.c.b16 %v351, %v345
      %v442 = vpack.c.b16 %v352, %v346
      %v443 = vpack.c.b16 %v353, %v347
      %v444 = vpack.c.b16 %v354, %v348
      %v445 = vpack.c.b16 %v355, %v349
      %v446 = vpack.c.b16 %v356, %v350
      %v447 = vpack.c.b16 %v363, %v357
      %v448 = vpack.c.b16 %v364, %v358
      %v449 = vpack.c.b16 %v365, %v359
      %v450 = vpack.c.b16 %v366, %v360
      %v451 = vpack.c.b16 %v367, %v361
      %v452 = vpack.c.b16 %v368, %v362
      %v453 = vpack.c.b16 %v375, %v369
      %v454 = vpack.c.b16 %v376, %v370
      %v455 = vpack.c.b16 %v377, %v371
      %v456 = vpack.c.b16 %v378, %v372
      %v457 = vpack.c.b16 %v379, %v373
      %v458 = vpack.c.b16 %v380, %v374
      %v459 = vpack.c.b16 %v387, %v381
      %v460 = vpack.c.b16 %v388, %v382
      %v461 = vpack.c.b16 %v389, %v383
      %v462 = vpack.c.b16 %v390, %v384
      %v463 = vpack.c.b16 %v391, %v385
      %v464 = vpack.c.b16 %v392, %v386
      %v465 = vpack.c.b16 %v399, %v393
      %v466 = vpack.c.b16 %v400, %v394
      %v467 = vpack.c.b16 %v401, %v395
      %v468 = vpack.c.b16 %v402, %v396
      %v469 = vpack.c.b16 %v403, %v397
      %v470 = vpack.c.b16 %v404, %v398
      %v471 = vpack.c.b16 %v411, %v405
      %v472 = vpack.c.b16 %v412, %v406
      %v473 = vpack.c.b16 %v413, %v407
      %v474 = vpack.c.b16 %v414, %v408
      %v475 = vpack.c.b16 %v415, %v409
      %v476 = vpack.c.b16 %v416, %v410
      %v477 = vpack.c.b16 %v417, %v417
      %v478 = vpack.c.b16 %v418, %v418
      %v479 = vpack.c.b16 %v419, %v419
      %v480 = vpack.c.b16 %v420, %v420
      %v481 = vpack.c.b16 %v421, %v421
      %v482 = vpack.c.b16 %v422, %v422
      %vm537 = vcmask 179200
      %v539 = vsel %vm537, %v250, 0
      %vm541 = vcmask 1042432
      %v543 = vsel %vm541, %v477, 0
      %v546 = vsel %vm541, %v478, 0
      %v549 = vsel %vm541, %v479, 0
      %v552 = vsel %vm541, %v480, 0
      %v555 = vsel %vm541, %v481, 0
      %v558 = vsel %vm541, %v482, 0
      %560 = vmatprep.subr.bf16.mxu0 %v424
      %561 = vmatpush1.bf16.msra.mxu0 %v423
      %562 = vmatprep.subr.bf16.mxu0 %v430
      %563 = vmatpush1.bf16.msra.mxu0 %v429
      %564 = vmatprep.subr.bf16.mxu0 %v436
      %565 = vmatpush1.bf16.msra.mxu0 %v435
      %566 = vmatprep.subr.bf16.mxu0 %v442
      %567 = vmatpush1.bf16.msra.mxu0 %v441
      %568 = vmatprep.subr.bf16.mxu0 %v448
      %569 = vmatpush1.bf16.msra.mxu0 %v447
      %570 = vmatprep.subr.bf16.mxu0 %v454
      %571 = vmatpush1.bf16.msra.mxu0 %v453
      %572 = vmatprep.subr.bf16.mxu0 %v460
      %573 = vmatpush1.bf16.msra.mxu0 %v459
      %574 = vmatprep.subr.bf16.mxu0 %v466
      %575 = vmatpush1.bf16.msra.mxu0 %v465
      %576 = vmatprep.subr.bf16.mxu0 %v472
      %577 = vmatpush1.bf16.msra.mxu0 %v471
      %578 = vmatprep.subr.bf16.mxu0 %v546
      %579 = vmatpush1.bf16.msra.mxu0 %v543
      %580 = vmatprep.subr.bf16.mxu0 0
      %581 = vmatpush1.bf16.msra.mxu0 0
      %582 = vmatprep.subr.bf16.mxu0 0
      %583 = vmatpush1.bf16.msra.mxu0 0
      %584 = vmatprep.subr.bf16.mxu0 0
      %585 = vmatpush1.bf16.msra.mxu0 0
      %586 = vmatprep.subr.bf16.mxu0 0
      %587 = vmatpush1.bf16.msra.mxu0 0
      %588 = vmatprep.subr.bf16.mxu0 0
      %589 = vmatpush1.bf16.msra.mxu0 0
      %590 = vmatprep.subr.bf16.mxu0 0
      %591 = vmatpush1.bf16.msra.mxu0 0
      %592 = vmatprep.mubr.bf16.mxu0 %v539
      %593 = vmatmul.mubr.bf16.gmra.mrb[0].mxu0 %v249
      %v594 = vpop.f32.mrb[0].mxu0
      %v595 = vadd.f32 %v236, %v594
      %v596 = vpop.f32.mrb[0].mxu0
      %v597 = vadd.f32 %v236, %v596
      %v598 = vpop.f32.mrb[0].mxu0
      %v599 = vadd.f32 %v241, %v598
      %v600 = vpop.f32.mrb[0].mxu0
      %v601 = vadd.f32 %v241, %v600
      %602 = vdwg.mxu0
      %603 = vmatprep.subr.bf16.mxu0 %v426
      %604 = vmatpush1.bf16.msra.mxu0 %v425
      %605 = vmatprep.subr.bf16.mxu0 %v432
      %606 = vmatpush1.bf16.msra.mxu0 %v431
      %607 = vmatprep.subr.bf16.mxu0 %v438
      %608 = vmatpush1.bf16.msra.mxu0 %v437
      %609 = vmatprep.subr.bf16.mxu0 %v444
      %610 = vmatpush1.bf16.msra.mxu0 %v443
      %611 = vmatprep.subr.bf16.mxu0 %v450
      %612 = vmatpush1.bf16.msra.mxu0 %v449
      %613 = vmatprep.subr.bf16.mxu0 %v456
      %614 = vmatpush1.bf16.msra.mxu0 %v455
      %615 = vmatprep.subr.bf16.mxu0 %v462
      %616 = vmatpush1.bf16.msra.mxu0 %v461
      %617 = vmatprep.subr.bf16.mxu0 %v468
      %618 = vmatpush1.bf16.msra.mxu0 %v467
      %619 = vmatprep.subr.bf16.mxu0 %v474
      %620 = vmatpush1.bf16.msra.mxu0 %v473
      %621 = vmatprep.subr.bf16.mxu0 %v552
      %622 = vmatpush1.bf16.msra.mxu0 %v549
      %623 = vmatprep.subr.bf16.mxu0 0
      %624 = vmatpush1.bf16.msra.mxu0 0
      %625 = vmatprep.subr.bf16.mxu0 0
      %626 = vmatpush1.bf16.msra.mxu0 0
      %627 = vmatprep.subr.bf16.mxu0 0
      %628 = vmatpush1.bf16.msra.mxu0 0
      %629 = vmatprep.subr.bf16.mxu0 0
      %630 = vmatpush1.bf16.msra.mxu0 0
      %631 = vmatprep.subr.bf16.mxu0 0
      %632 = vmatpush1.bf16.msra.mxu0 0
      %633 = vmatprep.subr.bf16.mxu0 0
      %634 = vmatpush1.bf16.msra.mxu0 0
      %635 = vmatprep.mubr.bf16.mxu0 %v539
      %636 = vmatmul.mubr.bf16.gmra.mrb[0].mxu0 %v249
      %v637 = vpop.f32.mrb[0].mxu0
      %v638 = vadd.f32 %v236, %v637
      %v639 = vpop.f32.mrb[0].mxu0
      %v640 = vadd.f32 %v236, %v639
      %v641 = vpop.f32.mrb[0].mxu0
      %v642 = vadd.f32 %v241, %v641
      %v643 = vpop.f32.mrb[0].mxu0
      %v644 = vadd.f32 %v241, %v643
      %645 = vdwg.mxu0
      %646 = vmatprep.subr.bf16.mxu0 %v428
      %647 = vmatpush1.bf16.msra.mxu0 %v427
      %648 = vmatprep.subr.bf16.mxu0 %v434
      %649 = vmatpush1.bf16.msra.mxu0 %v433
      %650 = vmatprep.subr.bf16.mxu0 %v440
      %651 = vmatpush1.bf16.msra.mxu0 %v439
      %652 = vmatprep.subr.bf16.mxu0 %v446
      %653 = vmatpush1.bf16.msra.mxu0 %v445
      %654 = vmatprep.subr.bf16.mxu0 %v452
      %655 = vmatpush1.bf16.msra.mxu0 %v451
      %656 = vmatprep.subr.bf16.mxu0 %v458
      %657 = vmatpush1.bf16.msra.mxu0 %v457
      %658 = vmatprep.subr.bf16.mxu0 %v464
      %659 = vmatpush1.bf16.msra.mxu0 %v463
      %660 = vmatprep.subr.bf16.mxu0 %v470
      %661 = vmatpush1.bf16.msra.mxu0 %v469
      %662 = vmatprep.subr.bf16.mxu0 %v476
      %663 = vmatpush1.bf16.msra.mxu0 %v475
      %664 = vmatprep.subr.bf16.mxu0 %v558
      %665 = vmatpush1.bf16.msra.mxu0 %v555
      %666 = vmatprep.subr.bf16.mxu0 0
      %667 = vmatpush1.bf16.msra.mxu0 0
      %668 = vmatprep.subr.bf16.mxu0 0
      %669 = vmatpush1.bf16.msra.mxu0 0
      %670 = vmatprep.subr.bf16.mxu0 0
      %671 = vmatpush1.bf16.msra.mxu0 0
      %672 = vmatprep.subr.bf16.mxu0 0
      %673 = vmatpush1.bf16.msra.mxu0 0
      %674 = vmatprep.subr.bf16.mxu0 0
      %675 = vmatpush1.bf16.msra.mxu0 0
      %676 = vmatprep.subr.bf16.mxu0 0
      %677 = vmatpush1.bf16.msra.mxu0 0
      %678 = vmatprep.mubr.bf16.mxu0 %v539
      %679 = vmatmul.mubr.bf16.gmra.mrb[0].mxu0 %v249
      %v680 = vpop.f32.mrb[0].mxu0
      %v681 = vadd.f32 %v236, %v680
      %v682 = vpop.f32.mrb[0].mxu0
      %v683 = vadd.f32 %v236, %v682
      %v684 = vpop.f32.mrb[0].mxu0
      %v685 = vadd.f32 %v241, %v684
      %v686 = vpop.f32.mrb[0].mxu0
      %v687 = vadd.f32 %v241, %v686
      %688 = vdwg.mxu0
      %vm689 = vcmp.gt.f32.partialorder %v595, 0.0
      %vm690 = vcmp.gt.f32.partialorder %v597, 0.0
      %vm691 = vcmp.gt.f32.partialorder %v638, 0.0
      %vm692 = vcmp.gt.f32.partialorder %v640, 0.0
      %vm693 = vcmp.gt.f32.partialorder %v681, 0.0
      %vm694 = vcmp.gt.f32.partialorder %v683, 0.0
      %vm695 = vcmp.gt.f32.partialorder %v599, 0.0
      %vm696 = vcmp.gt.f32.partialorder %v601, 0.0
      %vm697 = vcmp.gt.f32.partialorder %v642, 0.0
      %vm698 = vcmp.gt.f32.partialorder %v644, 0.0
      %vm699 = vcmp.gt.f32.partialorder %v685, 0.0
      %vm700 = vcmp.gt.f32.partialorder %v687, 0.0
      %v701 = vmul.f32 %v595, 0.01
      %v702 = vmul.f32 %v597, 0.01
      %v703 = vmul.f32 %v638, 0.01
      %v704 = vmul.f32 %v640, 0.01
      %v705 = vmul.f32 %v681, 0.01
      %v706 = vmul.f32 %v683, 0.01
      %v707 = vmul.f32 %v599, 0.01
      %v708 = vmul.f32 %v601, 0.01
      %v709 = vmul.f32 %v642, 0.01
      %v710 = vmul.f32 %v644, 0.01
      %v711 = vmul.f32 %v685, 0.01
      %v712 = vmul.f32 %v687, 0.01
      %v713 = vsel %vm689, %v595, %v701
      %v714 = vsel %vm690, %v597, %v702
      %v715 = vsel %vm691, %v638, %v703
      %v716 = vsel %vm692, %v640, %v704
      %v717 = vsel %vm693, %v681, %v705
      %v718 = vsel %vm694, %v683, %v706
      %v719 = vsel %vm695, %v599, %v707
      %v720 = vsel %vm696, %v601, %v708
      %v721 = vsel %vm697, %v642, %v709
      %v722 = vsel %vm698, %v644, %v710
      %v723 = vsel %vm699, %v685, %v711
      %v724 = vsel %vm700, %v687, %v712
      %v725 = vpack.c.bf16 %v719, %v713
      %v726 = vpack.c.bf16 %v720, %v714
      %v727 = vpack.c.bf16 %v721, %v715
      %v728 = vpack.c.bf16 %v722, %v716
      %v729 = vpack.c.bf16 %v723, %v717
      %v730 = vpack.c.bf16 %v724, %v718
      %v737 = vunpack.c.l.b16 %v725
      %v738 = vunpack.c.l.b16 %v726
      %v739 = vunpack.c.l.b16 %v727
      %v740 = vunpack.c.l.b16 %v728
      %v741 = vunpack.c.l.b16 %v729
      %v742 = vunpack.c.l.b16 %v730
      %v743 = vunpack.c.h.b16 %v725
      %v744 = vunpack.c.h.b16 %v726
      %v745 = vunpack.c.h.b16 %v727
      %v746 = vunpack.c.h.b16 %v728
      %v747 = vunpack.c.h.b16 %v729
      %v748 = vunpack.c.h.b16 %v730
      %v749 = vpack.c.b16 %v738, %v737
      %v750 = vpack.c.b16 %v740, %v739
      %v751 = vpack.c.b16 %v742, %v741
      %v752 = vpack.c.b16 %v744, %v743
      %v753 = vpack.c.b16 %v746, %v745
      %v754 = vpack.c.b16 %v748, %v747
      %761 = vst [vmem:[%s170] sm:$0xff] %v749
      %762 = vst [vmem:[%s170 + $0x8] sm:$0xff] %v750
      %vm763 = vcmask 1043456
      %vm764 = vcmask 293892
      %vm765 = vmor %vm764, %vm763
      %766 = vst.msk [vmem:[%s170 + $0x10] sm:$0xff] %vm765, %v751
      %767 = vst [vmem:[%s170 + $0x18] sm:$0xff] %v752
      %768 = vst [vmem:[%s170 + $0x20] sm:$0xff] %v753
      %769 = vst.msk [vmem:[%s170 + $0x28] sm:$0xff] %vm765, %v754
      %p770 = scmp.lt.s32.totalorder %s14, 1
      %s771 = scalar_select %p770, %s14, 1
      %s772 = smul.addr %s771, 12
      %s773 = smul.addr %s772, 4
      %s774 = scalar_lea.vmem %s3, %s773
      // Predicated region
      $region33: #{encoder_forward.7} parent=31 // pred_check
        %p775 = pneg %p100
      $region34: #{encoder_forward.7} parent=31 // pred_check_branch
        %777 = sbr.rel (%p775) target = $region36
      $region35: #{encoder_forward.7} parent=31 // pred_region
        _
      $region36: #{encoder_forward.7} parent=31 // pred_fallthru
        _
    $region32: #{encoder_forward.7} parent=5 // pred_fallthru
      _
    %p778 = scmp.le.s32.totalorder 2, %s9
    // Predicated region
    $region37: #{encoder_forward.7} parent=5 // pred_check
      %p779 = pneg %p778
    $region38: #{encoder_forward.7} parent=5 // pred_check_branch
      %781 = sbr.rel (%p779) target = $region40
    $region39: #{encoder_forward.7} parent=5 // pred_region
      %s782 = ssub.s32 %s9, 2
      // Predicated region
      $region41: #{encoder_forward.7} parent=39 // pred_check
        %p783 = pneg %p106
      $region42: #{encoder_forward.7} parent=39 // pred_check_branch
        %785 = sbr.rel (%p783) target = $region44
      $region43: #{encoder_forward.7} parent=39 // pred_region
        %p786 = scmp.lt.s32.totalorder %s15, 1
        %s787 = scalar_select %p786, %s15, 1
        %s788 = smul.addr %s787, 12
        %s789 = smul.addr %s788, 4
        %s790 = scalar_lea.vmem %s3, %s789
      $region44: #{encoder_forward.7} parent=39 // pred_fallthru
        _
    $region40: #{encoder_forward.7} parent=5 // pred_fallthru
      _
  $region6: #{encoder_forward.7} parent=0 // loop_footer
    %s13 = sadd.s32 1, %s9
  $region7: #{encoder_forward.7} parent=0 // loop_footer_branch
    %8 = sbr.rel target = $region3
  $region8: #{encoder_forward.7} parent=0 // loop_exit
    _

// kernel: encoder_forward.8
$region0: #{encoder_forward.8}
  #allocation0 [shape = 'u32[]', space=smem, size = 0x4, offset = 0x4, fixed_abs, tag = 'smem constant byte address 0x4 - core index']
  #allocation1 [shape = 'u32[144,128]{1,0:T(1,128)}', space=vmem, size = 0x12000, scoped, tag = 'internal scratch']
  %s0 = inlined_call_operand.vmem [shape: bf16[2,208,52], index: 0, kind: input, shape index: {}]
  %s1 = inlined_call_operand.vmem [shape: bf16[2,208,13], index: 1, kind: output, shape index: {}]
  %s2 = sld [smem:[#allocation0]]
  $region37: #{encoder_forward.8} parent=0
    _
  %s4 = ssub.s32 1, %s2
  %s5 = scalar_select 0, %s4, %s2
  loop: start=0, step=1, limit=4
  $region2: #{encoder_forward.8} parent=0 // loop_pre_header
    _
  $region3: #{encoder_forward.8} parent=0 // loop_header
    %s7 = sphi 0, %s11
    %p8 = scmp.ge.s32.totalorder %s7, 4
    %s17 = sphi 0, %s19
    %s20 = sphi 0, %s17
    %s21 = sphi 0, %s20
    %s37 = sphi 0, %s21
    %s43 = sphi 0, %s45
    %s46 = sphi 0, %s43
    %s47 = sphi 0, %s46
    %s63 = sphi 0, %s47
  $region4: #{encoder_forward.8} parent=0 // loop_header_branch
    %10 = sbr.rel (%p8) target = $region8
  $region5: #{encoder_forward.8} parent=0 // loop_body
    %s12 = ssub.s32 %s7, 1
    %s13 = ssub.s32 %s7, 2
    %s14 = sadd.s32 %s7, 1
    %s15 = ssub.s32 %s7, %s14
    %p16 = scmp.eq.s32.totalorder %s15, 0
    %s18 = sadd.s32 %s17, 1
    %s19 = scalar_select %p16, %s17, %s18
    %p22 = pneg %p16
    %p23 = scmp.eq.s32.totalorder %s7, 1
    %p24 = por %p22, %p23
    %p25 = scmp.ne.s32.totalorder %s17, %s20
    %p26 = scmp.eq.s32.totalorder %s7, 0
    %p27 = por %p25, %p26
    %p28 = scmp.ne.s32.totalorder %s17, %s20
    %p29 = scmp.eq.s32.totalorder %s12, 1
    %p30 = por %p28, %p29
    %p31 = scmp.ne.s32.totalorder %s20, %s21
    %p32 = scmp.eq.s32.totalorder %s12, 0
    %p33 = por %p31, %p32
    %p34 = scmp.ne.s32.totalorder %s20, %s21
    %p35 = scmp.eq.s32.totalorder %s13, 1
    %p36 = por %p34, %p35
    %p38 = scmp.ne.s32.totalorder %s21, %s37
    %p39 = scmp.eq.s32.totalorder %s13, 0
    %p40 = por %p38, %p39
    %s41 = ssub.s32 %s7, %s14
    %p42 = scmp.eq.s32.totalorder %s41, 0
    %s44 = sadd.s32 %s43, 1
    %s45 = scalar_select %p42, %s43, %s44
    %p48 = pneg %p42
    %p49 = scmp.eq.s32.totalorder %s7, 1
    %p50 = por %p48, %p49
    %p51 = scmp.ne.s32.totalorder %s43, %s46
    %p52 = scmp.eq.s32.totalorder %s7, 0
    %p53 = por %p51, %p52
    %p54 = scmp.ne.s32.totalorder %s43, %s46
    %p55 = scmp.eq.s32.totalorder %s12, 1
    %p56 = por %p54, %p55
    %p57 = scmp.ne.s32.totalorder %s46, %s47
    %p58 = scmp.eq.s32.totalorder %s12, 0
    %p59 = por %p57, %p58
    %p60 = scmp.ne.s32.totalorder %s46, %s47
    %p61 = scmp.eq.s32.totalorder %s13, 1
    %p62 = por %p60, %p61
    %p64 = scmp.ne.s32.totalorder %s47, %s63
    %p65 = scmp.eq.s32.totalorder %s13, 0
    %p66 = por %p64, %p65
    %p67 = scmp.le.s32.totalorder 1, %s7
    %p68 = scmp.lt.s32.totalorder %s7, 3
    %p69 = pnand %p67, %p68
    %p70 = pneg %p69
    // Predicated region
    $region9: #{encoder_forward.8} parent=5 // pred_check
      _
    $region10: #{encoder_forward.8} parent=5 // pred_check_branch
      %72 = sbr.rel (%p69) target = $region12
    $region11: #{encoder_forward.8} parent=5 // pred_region
      %s73 = ssub.s32 %s7, 1
    $region12: #{encoder_forward.8} parent=5 // pred_fallthru
      _
    %p74 = scmp.lt.s32.totalorder %s7, 2
    // Predicated region
    $region13: #{encoder_forward.8} parent=5 // pred_check
      %p75 = pneg %p74
    $region14: #{encoder_forward.8} parent=5 // pred_check_branch
      %77 = sbr.rel (%p75) target = $region16
    $region15: #{encoder_forward.8} parent=5 // pred_region
      // Predicated region
      $region17: #{encoder_forward.8} parent=15 // pred_check
        %p78 = pneg %p27
      $region18: #{encoder_forward.8} parent=15 // pred_check_branch
        %80 = sbr.rel (%p78) target = $region20
      $region19: #{encoder_forward.8} parent=15 // pred_region
        %p81 = scmp.lt.s32.totalorder %s7, 1
        %s82 = scalar_select %p81, %s7, 1
        %s83 = smul.addr %s82, 26
        %s84 = smul.addr %s83, 4
        %s85 = scalar_lea.vmem %s0, %s84
      $region20: #{encoder_forward.8} parent=15 // pred_fallthru
        _
    $region16: #{encoder_forward.8} parent=5 // pred_fallthru
      _
    %p86 = scmp.le.s32.totalorder 1, %s7
    %p87 = scmp.lt.s32.totalorder %s7, 3
    %p88 = pnand %p86, %p87
    %p89 = pneg %p88
    // Predicated region
    $region21: #{encoder_forward.8} parent=5 // pred_check
      _
    $region22: #{encoder_forward.8} parent=5 // pred_check_branch
      %91 = sbr.rel (%p88) target = $region24
    $region23: #{encoder_forward.8} parent=5 // pred_region
      %s92 = ssub.s32 %s7, 1
      %p93 = scmp.lt.s32.totalorder %s12, 1
      %s94 = scalar_select %p93, %s12, 1
      %s95 = smul.addr %s94, 26
      %s96 = smul.addr %s95, 4
      %s97 = scalar_lea.vmem %s0, %s96
      %p98 = pneg %p33
      %p99 = pneg %p30
      %p100 = pneg %p59
      %p101 = pneg %p56
      %p102 = scmp.lt.s32.totalorder %s12, 1
      %s103 = scalar_select %p102, %s12, 1
      %s104 = smul.addr %s103, 26
      %s105 = smul.addr %s104, 4
      %s106 = scalar_lea.vmem %s1, %s105
      %p107 = scmp.lt.s32.totalorder %s12, 1
      %s108 = scalar_select %p107, %s12, 1
      %s109 = smul.addr %s108, 26
      %s110 = smul.addr %s109, 4
      %s111 = scalar_lea.vmem %s0, %s110
      %p112 = scmp.lt.s32.totalorder %s12, 1
      %s113 = scalar_select %p112, %s12, 1
      %s114 = smul.addr %s113, 26
      %s115 = smul.addr %s114, 4
      %s116 = scalar_lea.vmem %s1, %s115
      %v117 = vld [vmem:[%s111] sm:$0xf]
      %v118 = vld [vmem:[%s111 + $0x4] sm:$0xf]
      %v119 = vld [vmem:[%s111 + $0x8] sm:$0xf]
      %v120 = vld [vmem:[%s111 + $0xc] sm:$0xf]
      %v121 = vld [vmem:[%s111 + $0x10] sm:$0xf]
      %v122 = vld [vmem:[%s111 + $0x14] sm:$0xf]
      %v123 = vld [vmem:[%s111 + $0x18] sm:$0xf]
      %v124 = vld [vmem:[%s111 + $0x1c] sm:$0xf]
      %v125 = vld [vmem:[%s111 + $0x20] sm:$0xf]
      %v126 = vld [vmem:[%s111 + $0x24] sm:$0xf]
      %v127 = vld [vmem:[%s111 + $0x28] sm:$0xf]
      %v128 = vld [vmem:[%s111 + $0x2c] sm:$0xf]
      %v129 = vld [vmem:[%s111 + $0x30] sm:$0xf]
      %v130 = vld [vmem:[%s111 + $0x34] sm:$0xf]
      %v131 = vld [vmem:[%s111 + $0x38] sm:$0xf]
      %v132 = vld [vmem:[%s111 + $0x3c] sm:$0xf]
      %v133 = vld [vmem:[%s111 + $0x40] sm:$0xf]
      %v134 = vld [vmem:[%s111 + $0x44] sm:$0xf]
      %v135 = vld [vmem:[%s111 + $0x48] sm:$0xf]
      %v136 = vld [vmem:[%s111 + $0x4c] sm:$0xf]
      %v137 = vld [vmem:[%s111 + $0x50] sm:$0xf]
      %v138 = vld [vmem:[%s111 + $0x54] sm:$0xf]
      %v139 = vld [vmem:[%s111 + $0x58] sm:$0xf]
      %v140 = vld [vmem:[%s111 + $0x5c] sm:$0xf]
      %v141 = vld [vmem:[%s111 + $0x60] sm:$0xf]
      %v142 = vld [vmem:[%s111 + $0x64] sm:$0xf]
      %v143 = vunpack.c.l.bf16 %v117
      %v144 = vunpack.c.l.bf16 %v118
      %v145 = vunpack.c.l.bf16 %v119
      %v146 = vunpack.c.l.bf16 %v120
      %v147 = vunpack.c.l.bf16 %v121
      %v148 = vunpack.c.l.bf16 %v122
      %v149 = vunpack.c.l.bf16 %v123
      %v150 = vunpack.c.l.bf16 %v124
      %v151 = vunpack.c.l.bf16 %v125
      %v152 = vunpack.c.l.bf16 %v126
      %v153 = vunpack.c.l.bf16 %v127
      %v154 = vunpack.c.l.bf16 %v128
      %v155 = vunpack.c.l.bf16 %v129
      %v156 = vunpack.c.l.bf16 %v130
      %v157 = vunpack.c.l.bf16 %v131
      %v158 = vunpack.c.l.bf16 %v132
      %v159 = vunpack.c.l.bf16 %v133
      %v160 = vunpack.c.l.bf16 %v134
      %v161 = vunpack.c.l.bf16 %v135
      %v162 = vunpack.c.l.bf16 %v136
      %v163 = vunpack.c.l.bf16 %v137
      %v164 = vunpack.c.l.bf16 %v138
      %v165 = vunpack.c.l.bf16 %v139
      %v166 = vunpack.c.l.bf16 %v140
      %v167 = vunpack.c.l.bf16 %v141
      %v168 = vunpack.c.l.bf16 %v142
      %195 = vrot.lane.b32.xlu0 %v143, 102
      %v196 = vpop.permute.xlu0 %195
      %197 = vrot.lane.b32.xlu0 %v144, 102
      %v198 = vpop.permute.xlu0 %197
      %199 = vrot.lane.b32.xlu0 %v145, 102
      %v200 = vpop.permute.xlu0 %199
      %201 = vrot.lane.b32.xlu0 %v146, 102
      %v202 = vpop.permute.xlu0 %201
      %203 = vrot.lane.b32.xlu0 %v147, 102
      %v204 = vpop.permute.xlu0 %203
      %205 = vrot.lane.b32.xlu0 %v148, 102
      %v206 = vpop.permute.xlu0 %205
      %207 = vrot.lane.b32.xlu0 %v149, 102
      %v208 = vpop.permute.xlu0 %207
      %209 = vrot.lane.b32.xlu0 %v150, 102
      %v210 = vpop.permute.xlu0 %209
      %211 = vrot.lane.b32.xlu0 %v151, 102
      %v212 = vpop.permute.xlu0 %211
      %213 = vrot.lane.b32.xlu0 %v152, 102
      %v214 = vpop.permute.xlu0 %213
      %215 = vrot.lane.b32.xlu0 %v153, 102
      %v216 = vpop.permute.xlu0 %215
      %217 = vrot.lane.b32.xlu0 %v154, 102
      %v218 = vpop.permute.xlu0 %217
      %219 = vrot.lane.b32.xlu0 %v155, 102
      %v220 = vpop.permute.xlu0 %219
      %221 = vrot.lane.b32.xlu0 %v156, 102
      %v222 = vpop.permute.xlu0 %221
      %223 = vrot.lane.b32.xlu0 %v157, 102
      %v224 = vpop.permute.xlu0 %223
      %225 = vrot.lane.b32.xlu0 %v158, 102
      %v226 = vpop.permute.xlu0 %225
      %227 = vrot.lane.b32.xlu0 %v159, 102
      %v228 = vpop.permute.xlu0 %227
      %229 = vrot.lane.b32.xlu0 %v160, 102
      %v230 = vpop.permute.xlu0 %229
      %231 = vrot.lane.b32.xlu0 %v161, 102
      %v232 = vpop.permute.xlu0 %231
      %233 = vrot.lane.b32.xlu0 %v162, 102
      %v234 = vpop.permute.xlu0 %233
      %235 = vrot.lane.b32.xlu0 %v163, 102
      %v236 = vpop.permute.xlu0 %235
      %237 = vrot.lane.b32.xlu0 %v164, 102
      %v238 = vpop.permute.xlu0 %237
      %239 = vrot.lane.b32.xlu0 %v165, 102
      %v240 = vpop.permute.xlu0 %239
      %241 = vrot.lane.b32.xlu0 %v166, 102
      %v242 = vpop.permute.xlu0 %241
      %243 = vrot.lane.b32.xlu0 %v167, 102
      %v244 = vpop.permute.xlu0 %243
      %245 = vrot.lane.b32.xlu0 %v168, 102
      %v246 = vpop.permute.xlu0 %245
      %v273 = vmax.f32 %v143, %v196
      %v274 = vmax.f32 %v144, %v198
      %v275 = vmax.f32 %v145, %v200
      %v276 = vmax.f32 %v146, %v202
      %v277 = vmax.f32 %v147, %v204
      %v278 = vmax.f32 %v148, %v206
      %v279 = vmax.f32 %v149, %v208
      %v280 = vmax.f32 %v150, %v210
      %v281 = vmax.f32 %v151, %v212
      %v282 = vmax.f32 %v152, %v214
      %v283 = vmax.f32 %v153, %v216
      %v284 = vmax.f32 %v154, %v218
      %v285 = vmax.f32 %v155, %v220
      %v286 = vmax.f32 %v156, %v222
      %v287 = vmax.f32 %v157, %v224
      %v288 = vmax.f32 %v158, %v226
      %v289 = vmax.f32 %v159, %v228
      %v290 = vmax.f32 %v160, %v230
      %v291 = vmax.f32 %v161, %v232
      %v292 = vmax.f32 %v162, %v234
      %v293 = vmax.f32 %v163, %v236
      %v294 = vmax.f32 %v164, %v238
      %v295 = vmax.f32 %v165, %v240
      %v296 = vmax.f32 %v166, %v242
      %v297 = vmax.f32 %v167, %v244
      %v298 = vmax.f32 %v168, %v246
      %v299 = vlaneseq
      %v300 = vshrl.u32 %v299, 7
      %v301 = vadd.s32 %v300, 8
      %v302 = vadd.s32 %v300, 16
      %v303 = vadd.s32 %v300, 24
      %v304 = vlaneseq
      %v305 = vand.u32 %v304, 127
      %v306 = vmul.u32 %v305, 2
      %vm307 = vcmp.eq.s32.totalorder %v300, %v306
      %vm308 = vcmp.eq.s32.totalorder %v301, %v306
      %vm309 = vcmp.eq.s32.totalorder %v302, %v306
      %vm310 = vcmp.eq.s32.totalorder %v303, %v306
      %v311 = vsel %vm307, 1, 0
      %v312 = vsel %vm308, 1, 0
      %v313 = vsel %vm309, 1, 0
      %v314 = vsel %vm310, 1, 0
      %v315 = vcvt.s32.f32 %v311
      %v316 = vcvt.s32.f32 %v312
      %v317 = vcvt.s32.f32 %v313
      %v318 = vcvt.s32.f32 %v314
      %v319 = vadd.s32 %v306, 1
      %vm320 = vcmp.eq.s32.totalorder %v300, %v319
      %vm321 = vcmp.eq.s32.totalorder %v301, %v319
      %vm322 = vcmp.eq.s32.totalorder %v302, %v319
      %vm323 = vcmp.eq.s32.totalorder %v303, %v319
      %v324 = vsel %vm320, 1, 0
      %v325 = vsel %vm321, 1, 0
      %v326 = vsel %vm322, 1, 0
      %v327 = vsel %vm323, 1, 0
      %v328 = vcvt.s32.f32 %v324
      %v329 = vcvt.s32.f32 %v325
      %v330 = vcvt.s32.f32 %v326
      %v331 = vcvt.s32.f32 %v327
      %vm332 = vcmask 211968
      %v334 = vsel %vm332, %v273, 0
      %v337 = vsel %vm332, %v274, 0
      %v340 = vsel %vm332, %v275, 0
      %v343 = vsel %vm332, %v276, 0
      %v346 = vsel %vm332, %v277, 0
      %v349 = vsel %vm332, %v278, 0
      %v352 = vsel %vm332, %v279, 0
      %v355 = vsel %vm332, %v280, 0
      %v358 = vsel %vm332, %v281, 0
      %v361 = vsel %vm332, %v282, 0
      %v364 = vsel %vm332, %v283, 0
      %v367 = vsel %vm332, %v284, 0
      %v370 = vsel %vm332, %v285, 0
      %v373 = vsel %vm332, %v286, 0
      %v376 = vsel %vm332, %v287, 0
      %v379 = vsel %vm332, %v288, 0
      %v382 = vsel %vm332, %v289, 0
      %v385 = vsel %vm332, %v290, 0
      %v388 = vsel %vm332, %v291, 0
      %v391 = vsel %vm332, %v292, 0
      %v394 = vsel %vm332, %v293, 0
      %v397 = vsel %vm332, %v294, 0
      %v400 = vsel %vm332, %v295, 0
      %v403 = vsel %vm332, %v296, 0
      %v406 = vsel %vm332, %v297, 0
      %v409 = vsel %vm332, %v298, 0
      %vm411 = vcmask 1041408
      %v413 = vsel %vm411, %v318, 0
      %415 = vmatprep.subr.mxu0 0.0
      %416 = vmatpush1.msra.mxu0 %v315
      %417 = vmatprep.subr.mxu0 0.0
      %418 = vmatpush1.msra.mxu0 %v316
      %419 = vmatprep.subr.mxu0 0.0
      %420 = vmatpush1.msra.mxu0 %v317
      %421 = vmatprep.subr.mxu0 0.0
      %422 = vmatpush1.msra.mxu0 %v413
      %423 = vmatprep.subr.mxu0 0.0
      %424 = vmatpush1.msra.mxu0 0.0
      %425 = vmatprep.subr.mxu0 0.0
      %426 = vmatpush1.msra.mxu0 0.0
      %427 = vmatprep.subr.mxu0 0.0
      %428 = vmatpush1.msra.mxu0 0.0
      %429 = vmatprep.subr.mxu0 0.0
      %430 = vmatpush1.msra.mxu0 0.0
      %431 = vmatprep.subr.mxu0 0.0
      %432 = vmatpush1.msra.mxu0 0.0
      %433 = vmatprep.subr.mxu0 0.0
      %434 = vmatpush1.msra.mxu0 0.0
      %435 = vmatprep.subr.mxu0 0.0
      %436 = vmatpush1.msra.mxu0 0.0
      %437 = vmatprep.subr.mxu0 0.0
      %438 = vmatpush1.msra.mxu0 0.0
      %439 = vmatprep.subr.mxu0 0.0
      %440 = vmatpush1.msra.mxu0 0.0
      %441 = vmatprep.subr.mxu0 0.0
      %442 = vmatpush1.msra.mxu0 0.0
      %443 = vmatprep.subr.mxu0 0.0
      %444 = vmatpush1.msra.mxu0 0.0
      %445 = vmatprep.subr.mxu0 0.0
      %446 = vmatpush1.msra.mxu0 0.0
      %447 = vmatprep.subr.mxu0 0.0
      %448 = vmatpush1.msra.mxu0 0.0
      %449 = vmatprep.subr.mxu0 0.0
      %450 = vmatpush1.msra.mxu0 0.0
      %451 = vmatprep.subr.mxu0 0.0
      %452 = vmatpush1.msra.mxu0 0.0
      %453 = vmatprep.subr.mxu0 0.0
      %454 = vmatpush1.msra.mxu0 0.0
      %455 = vmatprep.subr.mxu0 0.0
      %456 = vmatpush1.msra.mxu0 0.0
      %457 = vmatprep.subr.mxu0 0.0
      %458 = vmatpush1.msra.mxu0 0.0
      %459 = vmatprep.subr.mxu0 0.0
      %460 = vmatpush1.msra.mxu0 0.0
      %461 = vmatprep.subr.mxu0 0.0
      %462 = vmatpush1.msra.mxu0 0.0
      %463 = vmatprep.subr.mxu0 0.0
      %464 = vmatpush1.msra.mxu0 0.0
      %465 = vmatprep.subr.mxu0 0.0
      %466 = vmatpush1.msra.mxu0 0.0
      %467 = vmatprep.subr.mxu0 0.0
      %468 = vmatpush1.msra.mxu0 0.0
      %469 = vmatprep.subr.mxu0 0.0
      %470 = vmatpush1.msra.mxu0 0.0
      %471 = vmatprep.subr.mxu0 0.0
      %472 = vmatpush1.msra.mxu0 0.0
      %473 = vmatprep.subr.mxu0 0.0
      %474 = vmatpush1.msra.mxu0 0.0
      %475 = vmatprep.subr.mxu0 0.0
      %476 = vmatpush1.msra.mxu0 0.0
      %477 = vmatprep.subr.mxu0 0.0
      %478 = vmatpush1.msra.mxu0 0.0
      %479 = vmatprep.mubr.f32.mxu0 0.0
      %480 = vmatmul.mubr.f32.gmra.mrb[0].mxu0 %v334
      %v481 = vpop.f32.mrb[0].mxu0
      %v482 = vadd.f32 0.0, %v481
      %v483 = vpop.f32.mrb[0].mxu0
      %484 = vmatprep.mubr.f32.mxu0 0.0
      %485 = vmatmul.mubr.f32.gmra.mrb[0].mxu0 %v337
      %v486 = vpop.f32.mrb[0].mxu0
      %v487 = vadd.f32 0.0, %v486
      %v488 = vpop.f32.mrb[0].mxu0
      %489 = vmatprep.mubr.f32.mxu0 0.0
      %490 = vmatmul.mubr.f32.gmra.mrb[0].mxu0 %v340
      %v491 = vpop.f32.mrb[0].mxu0
      %v492 = vadd.f32 0.0, %v491
      %v493 = vpop.f32.mrb[0].mxu0
      %494 = vmatprep.mubr.f32.mxu0 0.0
      %495 = vmatmul.mubr.f32.gmra.mrb[0].mxu0 %v343
      %v496 = vpop.f32.mrb[0].mxu0
      %v497 = vadd.f32 0.0, %v496
      %v498 = vpop.f32.mrb[0].mxu0
      %499 = vmatprep.mubr.f32.mxu0 0.0
      %500 = vmatmul.mubr.f32.gmra.mrb[0].mxu0 %v346
      %v501 = vpop.f32.mrb[0].mxu0
      %v502 = vadd.f32 0.0, %v501
      %v503 = vpop.f32.mrb[0].mxu0
      %504 = vmatprep.mubr.f32.mxu0 0.0
      %505 = vmatmul.mubr.f32.gmra.mrb[0].mxu0 %v349
      %v506 = vpop.f32.mrb[0].mxu0
      %v507 = vadd.f32 0.0, %v506
      %v508 = vpop.f32.mrb[0].mxu0
      %509 = vmatprep.mubr.f32.mxu0 0.0
      %510 = vmatmul.mubr.f32.gmra.mrb[0].mxu0 %v352
      %v511 = vpop.f32.mrb[0].mxu0
      %v512 = vadd.f32 0.0, %v511
      %v513 = vpop.f32.mrb[0].mxu0
      %514 = vmatprep.mubr.f32.mxu0 0.0
      %515 = vmatmul.mubr.f32.gmra.mrb[0].mxu0 %v355
      %v516 = vpop.f32.mrb[0].mxu0
      %v517 = vadd.f32 0.0, %v516
      %v518 = vpop.f32.mrb[0].mxu0
      %519 = vmatprep.mubr.f32.mxu0 0.0
      %520 = vmatmul.mubr.f32.gmra.mrb[0].mxu0 %v358
      %v521 = vpop.f32.mrb[0].mxu0
      %v522 = vadd.f32 0.0, %v521
      %v523 = vpop.f32.mrb[0].mxu0
      %524 = vmatprep.mubr.f32.mxu0 0.0
      %525 = vmatmul.mubr.f32.gmra.mrb[0].mxu0 %v361
      %v526 = vpop.f32.mrb[0].mxu0
      %v527 = vadd.f32 0.0, %v526
      %v528 = vpop.f32.mrb[0].mxu0
      %529 = vmatprep.mubr.f32.mxu0 0.0
      %530 = vmatmul.mubr.f32.gmra.mrb[0].mxu0 %v364
      %v531 = vpop.f32.mrb[0].mxu0
      %v532 = vadd.f32 0.0, %v531
      %v533 = vpop.f32.mrb[0].mxu0
      %534 = vmatprep.mubr.f32.mxu0 0.0
      %535 = vmatmul.mubr.f32.gmra.mrb[0].mxu0 %v367
      %v536 = vpop.f32.mrb[0].mxu0
      %v537 = vadd.f32 0.0, %v536
      %v538 = vpop.f32.mrb[0].mxu0
      %539 = vmatprep.mubr.f32.mxu0 0.0
      %540 = vmatmul.mubr.f32.gmra.mrb[0].mxu0 %v370
      %v541 = vpop.f32.mrb[0].mxu0
      %v542 = vadd.f32 0.0, %v541
      %v543 = vpop.f32.mrb[0].mxu0
      %544 = vmatprep.mubr.f32.mxu0 0.0
      %545 = vmatmul.mubr.f32.gmra.mrb[0].mxu0 %v373
      %v546 = vpop.f32.mrb[0].mxu0
      %v547 = vadd.f32 0.0, %v546
      %v548 = vpop.f32.mrb[0].mxu0
      %549 = vmatprep.mubr.f32.mxu0 0.0
      %550 = vmatmul.mubr.f32.gmra.mrb[0].mxu0 %v376
      %v551 = vpop.f32.mrb[0].mxu0
      %v552 = vadd.f32 0.0, %v551
      %v553 = vpop.f32.mrb[0].mxu0
      %554 = vmatprep.mubr.f32.mxu0 0.0
      %555 = vmatmul.mubr.f32.gmra.mrb[0].mxu0 %v379
      %v556 = vpop.f32.mrb[0].mxu0
      %v557 = vadd.f32 0.0, %v556
      %v558 = vpop.f32.mrb[0].mxu0
      %559 = vmatprep.mubr.f32.mxu0 0.0
      %560 = vmatmul.mubr.f32.gmra.mrb[0].mxu0 %v382
      %v561 = vpop.f32.mrb[0].mxu0
      %v562 = vadd.f32 0.0, %v561
      %v563 = vpop.f32.mrb[0].mxu0
      %564 = vmatprep.mubr.f32.mxu0 0.0
      %565 = vmatmul.mubr.f32.gmra.mrb[0].mxu0 %v385
      %v566 = vpop.f32.mrb[0].mxu0
      %v567 = vadd.f32 0.0, %v566
      %v568 = vpop.f32.mrb[0].mxu0
      %569 = vmatprep.mubr.f32.mxu0 0.0
      %570 = vmatmul.mubr.f32.gmra.mrb[0].mxu0 %v388
      %v571 = vpop.f32.mrb[0].mxu0
      %v572 = vadd.f32 0.0, %v571
      %v573 = vpop.f32.mrb[0].mxu0
      %574 = vmatprep.mubr.f32.mxu0 0.0
      %575 = vmatmul.mubr.f32.gmra.mrb[0].mxu0 %v391
      %v576 = vpop.f32.mrb[0].mxu0
      %v577 = vadd.f32 0.0, %v576
      %v578 = vpop.f32.mrb[0].mxu0
      %579 = vmatprep.mubr.f32.mxu0 0.0
      %580 = vmatmul.mubr.f32.gmra.mrb[0].mxu0 %v394
      %v581 = vpop.f32.mrb[0].mxu0
      %v582 = vadd.f32 0.0, %v581
      %v583 = vpop.f32.mrb[0].mxu0
      %584 = vmatprep.mubr.f32.mxu0 0.0
      %585 = vmatmul.mubr.f32.gmra.mrb[0].mxu0 %v397
      %v586 = vpop.f32.mrb[0].mxu0
      %v587 = vadd.f32 0.0, %v586
      %v588 = vpop.f32.mrb[0].mxu0
      %589 = vmatprep.mubr.f32.mxu0 0.0
      %590 = vmatmul.mubr.f32.gmra.mrb[0].mxu0 %v400
      %v591 = vpop.f32.mrb[0].mxu0
      %v592 = vadd.f32 0.0, %v591
      %v593 = vpop.f32.mrb[0].mxu0
      %594 = vmatprep.mubr.f32.mxu0 0.0
      %595 = vmatmul.mubr.f32.gmra.mrb[0].mxu0 %v403
      %v596 = vpop.f32.mrb[0].mxu0
      %v597 = vadd.f32 0.0, %v596
      %v598 = vpop.f32.mrb[0].mxu0
      %599 = vmatprep.mubr.f32.mxu0 0.0
      %600 = vmatmul.mubr.f32.gmra.mrb[0].mxu0 %v406
      %v601 = vpop.f32.mrb[0].mxu0
      %v602 = vadd.f32 0.0, %v601
      %v603 = vpop.f32.mrb[0].mxu0
      %604 = vmatprep.mubr.f32.mxu0 0.0
      %605 = vmatmul.mubr.f32.gmra.mrb[0].mxu0 %v409
      %v606 = vpop.f32.mrb[0].mxu0
      %v607 = vadd.f32 0.0, %v606
      %v608 = vpop.f32.mrb[0].mxu0
      %609 = vdwg.mxu0
      %v611 = vsel %vm411, %v331, 0
      %613 = vmatprep.subr.mxu0 0.0
      %614 = vmatpush1.msra.mxu0 %v328
      %615 = vmatprep.subr.mxu0 0.0
      %616 = vmatpush1.msra.mxu0 %v329
      %617 = vmatprep.subr.mxu0 0.0
      %618 = vmatpush1.msra.mxu0 %v330
      %619 = vmatprep.subr.mxu0 0.0
      %620 = vmatpush1.msra.mxu0 %v611
      %621 = vmatprep.subr.mxu0 0.0
      %622 = vmatpush1.msra.mxu0 0.0
      %623 = vmatprep.subr.mxu0 0.0
      %624 = vmatpush1.msra.mxu0 0.0
      %625 = vmatprep.subr.mxu0 0.0
      %626 = vmatpush1.msra.mxu0 0.0
      %627 = vmatprep.subr.mxu0 0.0
      %628 = vmatpush1.msra.mxu0 0.0
      %629 = vmatprep.subr.mxu0 0.0
      %630 = vmatpush1.msra.mxu0 0.0
      %631 = vmatprep.subr.mxu0 0.0
      %632 = vmatpush1.msra.mxu0 0.0
      %633 = vmatprep.subr.mxu0 0.0
      %634 = vmatpush1.msra.mxu0 0.0
      %635 = vmatprep.subr.mxu0 0.0
      %636 = vmatpush1.msra.mxu0 0.0
      %637 = vmatprep.subr.mxu0 0.0
      %638 = vmatpush1.msra.mxu0 0.0
      %639 = vmatprep.subr.mxu0 0.0
      %640 = vmatpush1.msra.mxu0 0.0
      %641 = vmatprep.subr.mxu0 0.0
      %642 = vmatpush1.msra.mxu0 0.0
      %643 = vmatprep.subr.mxu0 0.0
      %644 = vmatpush1.msra.mxu0 0.0
      %645 = vmatprep.subr.mxu0 0.0
      %646 = vmatpush1.msra.mxu0 0.0
      %647 = vmatprep.subr.mxu0 0.0
      %648 = vmatpush1.msra.mxu0 0.0
      %649 = vmatprep.subr.mxu0 0.0
      %650 = vmatpush1.msra.mxu0 0.0
      %651 = vmatprep.subr.mxu0 0.0
      %652 = vmatpush1.msra.mxu0 0.0
      %653 = vmatprep.subr.mxu0 0.0
      %654 = vmatpush1.msra.mxu0 0.0
      %655 = vmatprep.subr.mxu0 0.0
      %656 = vmatpush1.msra.mxu0 0.0
      %657 = vmatprep.subr.mxu0 0.0
      %658 = vmatpush1.msra.mxu0 0.0
      %659 = vmatprep.subr.mxu0 0.0
      %660 = vmatpush1.msra.mxu0 0.0
      %661 = vmatprep.subr.mxu0 0.0
      %662 = vmatpush1.msra.mxu0 0.0
      %663 = vmatprep.subr.mxu0 0.0
      %664 = vmatpush1.msra.mxu0 0.0
      %665 = vmatprep.subr.mxu0 0.0
      %666 = vmatpush1.msra.mxu0 0.0
      %667 = vmatprep.subr.mxu0 0.0
      %668 = vmatpush1.msra.mxu0 0.0
      %669 = vmatprep.subr.mxu0 0.0
      %670 = vmatpush1.msra.mxu0 0.0
      %671 = vmatprep.subr.mxu0 0.0
      %672 = vmatpush1.msra.mxu0 0.0
      %673 = vmatprep.subr.mxu0 0.0
      %674 = vmatpush1.msra.mxu0 0.0
      %675 = vmatprep.subr.mxu0 0.0
      %676 = vmatpush1.msra.mxu0 0.0
      %677 = vmatprep.mubr.f32.mxu0 0.0
      %678 = vmatmul.mubr.f32.gmra.mrb[0].mxu0 %v334
      %v679 = vpop.f32.mrb[0].mxu0
      %v680 = vadd.f32 0.0, %v679
      %v681 = vpop.f32.mrb[0].mxu0
      %682 = vmatprep.mubr.f32.mxu0 0.0
      %683 = vmatmul.mubr.f32.gmra.mrb[0].mxu0 %v337
      %v684 = vpop.f32.mrb[0].mxu0
      %v685 = vadd.f32 0.0, %v684
      %v686 = vpop.f32.mrb[0].mxu0
      %687 = vmatprep.mubr.f32.mxu0 0.0
      %688 = vmatmul.mubr.f32.gmra.mrb[0].mxu0 %v340
      %v689 = vpop.f32.mrb[0].mxu0
      %v690 = vadd.f32 0.0, %v689
      %v691 = vpop.f32.mrb[0].mxu0
      %692 = vmatprep.mubr.f32.mxu0 0.0
      %693 = vmatmul.mubr.f32.gmra.mrb[0].mxu0 %v343
      %v694 = vpop.f32.mrb[0].mxu0
      %v695 = vadd.f32 0.0, %v694
      %v696 = vpop.f32.mrb[0].mxu0
      %697 = vmatprep.mubr.f32.mxu0 0.0
      %698 = vmatmul.mubr.f32.gmra.mrb[0].mxu0 %v346
      %v699 = vpop.f32.mrb[0].mxu0
      %v700 = vadd.f32 0.0, %v699
      %v701 = vpop.f32.mrb[0].mxu0
      %702 = vmatprep.mubr.f32.mxu0 0.0
      %703 = vmatmul.mubr.f32.gmra.mrb[0].mxu0 %v349
      %v704 = vpop.f32.mrb[0].mxu0
      %v705 = vadd.f32 0.0, %v704
      %v706 = vpop.f32.mrb[0].mxu0
      %707 = vmatprep.mubr.f32.mxu0 0.0
      %708 = vmatmul.mubr.f32.gmra.mrb[0].mxu0 %v352
      %v709 = vpop.f32.mrb[0].mxu0
      %v710 = vadd.f32 0.0, %v709
      %v711 = vpop.f32.mrb[0].mxu0
      %712 = vmatprep.mubr.f32.mxu0 0.0
      %713 = vmatmul.mubr.f32.gmra.mrb[0].mxu0 %v355
      %v714 = vpop.f32.mrb[0].mxu0
      %v715 = vadd.f32 0.0, %v714
      %v716 = vpop.f32.mrb[0].mxu0
      %717 = vmatprep.mubr.f32.mxu0 0.0
      %718 = vmatmul.mubr.f32.gmra.mrb[0].mxu0 %v358
      %v719 = vpop.f32.mrb[0].mxu0
      %v720 = vadd.f32 0.0, %v719
      %v721 = vpop.f32.mrb[0].mxu0
      %722 = vmatprep.mubr.f32.mxu0 0.0
      %723 = vmatmul.mubr.f32.gmra.mrb[0].mxu0 %v361
      %v724 = vpop.f32.mrb[0].mxu0
      %v725 = vadd.f32 0.0, %v724
      %v726 = vpop.f32.mrb[0].mxu0
      %727 = vmatprep.mubr.f32.mxu0 0.0
      %728 = vmatmul.mubr.f32.gmra.mrb[0].mxu0 %v364
      %v729 = vpop.f32.mrb[0].mxu0
      %v730 = vadd.f32 0.0, %v729
      %v731 = vpop.f32.mrb[0].mxu0
      %732 = vmatprep.mubr.f32.mxu0 0.0
      %733 = vmatmul.mubr.f32.gmra.mrb[0].mxu0 %v367
      %v734 = vpop.f32.mrb[0].mxu0
      %v735 = vadd.f32 0.0, %v734
      %v736 = vpop.f32.mrb[0].mxu0
      %737 = vmatprep.mubr.f32.mxu0 0.0
      %738 = vmatmul.mubr.f32.gmra.mrb[0].mxu0 %v370
      %v739 = vpop.f32.mrb[0].mxu0
      %v740 = vadd.f32 0.0, %v739
      %v741 = vpop.f32.mrb[0].mxu0
      %742 = vmatprep.mubr.f32.mxu0 0.0
      %743 = vmatmul.mubr.f32.gmra.mrb[0].mxu0 %v373
      %v744 = vpop.f32.mrb[0].mxu0
      %v745 = vadd.f32 0.0, %v744
      %v746 = vpop.f32.mrb[0].mxu0
      %747 = vmatprep.mubr.f32.mxu0 0.0
      %748 = vmatmul.mubr.f32.gmra.mrb[0].mxu0 %v376
      %v749 = vpop.f32.mrb[0].mxu0
      %v750 = vadd.f32 0.0, %v749
      %v751 = vpop.f32.mrb[0].mxu0
      %752 = vmatprep.mubr.f32.mxu0 0.0
      %753 = vmatmul.mubr.f32.gmra.mrb[0].mxu0 %v379
      %v754 = vpop.f32.mrb[0].mxu0
      %v755 = vadd.f32 0.0, %v754
      %v756 = vpop.f32.mrb[0].mxu0
      %757 = vmatprep.mubr.f32.mxu0 0.0
      %758 = vmatmul.mubr.f32.gmra.mrb[0].mxu0 %v382
      %v759 = vpop.f32.mrb[0].mxu0
      %v760 = vadd.f32 0.0, %v759
      %v761 = vpop.f32.mrb[0].mxu0
      %762 = vmatprep.mubr.f32.mxu0 0.0
      %763 = vmatmul.mubr.f32.gmra.mrb[0].mxu0 %v385
      %v764 = vpop.f32.mrb[0].mxu0
      %v765 = vadd.f32 0.0, %v764
      %v766 = vpop.f32.mrb[0].mxu0
      %767 = vmatprep.mubr.f32.mxu0 0.0
      %768 = vmatmul.mubr.f32.gmra.mrb[0].mxu0 %v388
      %v769 = vpop.f32.mrb[0].mxu0
      %v770 = vadd.f32 0.0, %v769
      %v771 = vpop.f32.mrb[0].mxu0
      %772 = vmatprep.mubr.f32.mxu0 0.0
      %773 = vmatmul.mubr.f32.gmra.mrb[0].mxu0 %v391
      %v774 = vpop.f32.mrb[0].mxu0
      %v775 = vadd.f32 0.0, %v774
      %v776 = vpop.f32.mrb[0].mxu0
      %777 = vmatprep.mubr.f32.mxu0 0.0
      %778 = vmatmul.mubr.f32.gmra.mrb[0].mxu0 %v394
      %v779 = vpop.f32.mrb[0].mxu0
      %v780 = vadd.f32 0.0, %v779
      %v781 = vpop.f32.mrb[0].mxu0
      %782 = vmatprep.mubr.f32.mxu0 0.0
      %783 = vmatmul.mubr.f32.gmra.mrb[0].mxu0 %v397
      %v784 = vpop.f32.mrb[0].mxu0
      %v785 = vadd.f32 0.0, %v784
      %v786 = vpop.f32.mrb[0].mxu0
      %787 = vmatprep.mubr.f32.mxu0 0.0
      %788 = vmatmul.mubr.f32.gmra.mrb[0].mxu0 %v400
      %v789 = vpop.f32.mrb[0].mxu0
      %v790 = vadd.f32 0.0, %v789
      %v791 = vpop.f32.mrb[0].mxu0
      %792 = vmatprep.mubr.f32.mxu0 0.0
      %793 = vmatmul.mubr.f32.gmra.mrb[0].mxu0 %v403
      %v794 = vpop.f32.mrb[0].mxu0
      %v795 = vadd.f32 0.0, %v794
      %v796 = vpop.f32.mrb[0].mxu0
      %797 = vmatprep.mubr.f32.mxu0 0.0
      %798 = vmatmul.mubr.f32.gmra.mrb[0].mxu0 %v406
      %v799 = vpop.f32.mrb[0].mxu0
      %v800 = vadd.f32 0.0, %v799
      %v801 = vpop.f32.mrb[0].mxu0
      %802 = vmatprep.mubr.f32.mxu0 0.0
      %803 = vmatmul.mubr.f32.gmra.mrb[0].mxu0 %v409
      %v804 = vpop.f32.mrb[0].mxu0
      %v805 = vadd.f32 0.0, %v804
      %v806 = vpop.f32.mrb[0].mxu0
      %807 = vdwg.mxu0
      %v808 = vmax.f32 %v482, %v680
      %v809 = vmax.f32 %v487, %v685
      %v810 = vmax.f32 %v492, %v690
      %v811 = vmax.f32 %v497, %v695
      %v812 = vmax.f32 %v502, %v700
      %v813 = vmax.f32 %v507, %v705
      %v814 = vmax.f32 %v512, %v710
      %v815 = vmax.f32 %v517, %v715
      %v816 = vmax.f32 %v522, %v720
      %v817 = vmax.f32 %v527, %v725
      %v818 = vmax.f32 %v532, %v730
      %v819 = vmax.f32 %v537, %v735
      %v820 = vmax.f32 %v542, %v740
      %v821 = vmax.f32 %v547, %v745
      %v822 = vmax.f32 %v552, %v750
      %v823 = vmax.f32 %v557, %v755
      %v824 = vmax.f32 %v562, %v760
      %v825 = vmax.f32 %v567, %v765
      %v826 = vmax.f32 %v572, %v770
      %v827 = vmax.f32 %v577, %v775
      %v828 = vmax.f32 %v582, %v780
      %v829 = vmax.f32 %v587, %v785
      %v830 = vmax.f32 %v592, %v790
      %v831 = vmax.f32 %v597, %v795
      %v832 = vmax.f32 %v602, %v800
      %v833 = vmax.f32 %v607, %v805
      %v834 = vpack.c.bf16 %v809, %v808
      %v835 = vpack.c.bf16 %v811, %v810
      %v836 = vpack.c.bf16 %v813, %v812
      %v837 = vpack.c.bf16 %v815, %v814
      %v838 = vpack.c.bf16 %v817, %v816
      %v839 = vpack.c.bf16 %v819, %v818
      %v840 = vpack.c.bf16 %v821, %v820
      %v841 = vpack.c.bf16 %v823, %v822
      %v842 = vpack.c.bf16 %v825, %v824
      %v843 = vpack.c.bf16 %v827, %v826
      %v844 = vpack.c.bf16 %v829, %v828
      %v845 = vpack.c.bf16 %v831, %v830
      %v846 = vpack.c.bf16 %v833, %v832
      %v860 = vunpack.c.l.b16 %v834
      %v861 = vunpack.c.h.b16 %v834
      %v862 = vunpack.c.l.b16 %v835
      %v863 = vunpack.c.h.b16 %v835
      %v864 = vunpack.c.l.b16 %v836
      %v865 = vunpack.c.h.b16 %v836
      %v866 = vunpack.c.l.b16 %v837
      %v867 = vunpack.c.h.b16 %v837
      %v868 = vunpack.c.l.b16 %v838
      %v869 = vunpack.c.h.b16 %v838
      %v870 = vunpack.c.l.b16 %v839
      %v871 = vunpack.c.h.b16 %v839
      %v872 = vunpack.c.l.b16 %v840
      %v873 = vunpack.c.h.b16 %v840
      %v874 = vunpack.c.l.b16 %v841
      %v875 = vunpack.c.h.b16 %v841
      %v876 = vunpack.c.l.b16 %v842
      %v877 = vunpack.c.h.b16 %v842
      %v878 = vunpack.c.l.b16 %v843
      %v879 = vunpack.c.h.b16 %v843
      %v880 = vunpack.c.l.b16 %v844
      %v881 = vunpack.c.h.b16 %v844
      %v882 = vunpack.c.l.b16 %v845
      %v883 = vunpack.c.h.b16 %v845
      %v884 = vunpack.c.l.b16 %v846
      %v885 = vunpack.c.h.b16 %v846
      %v886 = vpack.c.b16 %v860, %v860
      %v887 = vpack.c.b16 %v861, %v861
      %v888 = vpack.c.b16 %v862, %v862
      %v889 = vpack.c.b16 %v863, %v863
      %v890 = vpack.c.b16 %v864, %v864
      %v891 = vpack.c.b16 %v865, %v865
      %v892 = vpack.c.b16 %v866, %v866
      %v893 = vpack.c.b16 %v867, %v867
      %v894 = vpack.c.b16 %v868, %v868
      %v895 = vpack.c.b16 %v869, %v869
      %v896 = vpack.c.b16 %v870, %v870
      %v897 = vpack.c.b16 %v871, %v871
      %v898 = vpack.c.b16 %v872, %v872
      %v899 = vpack.c.b16 %v873, %v873
      %v900 = vpack.c.b16 %v874, %v874
      %v901 = vpack.c.b16 %v875, %v875
      %v902 = vpack.c.b16 %v876, %v876
      %v903 = vpack.c.b16 %v877, %v877
      %v904 = vpack.c.b16 %v878, %v878
      %v905 = vpack.c.b16 %v879, %v879
      %v906 = vpack.c.b16 %v880, %v880
      %v907 = vpack.c.b16 %v881, %v881
      %v908 = vpack.c.b16 %v882, %v882
      %v909 = vpack.c.b16 %v883, %v883
      %v910 = vpack.c.b16 %v884, %v884
      %v911 = vpack.c.b16 %v885, %v885
      %vm938 = vcmask 101376
      %939 = vst.msk [vmem:[%s116] sm:$0xf] %vm938, %v886
      %940 = vst.msk [vmem:[%s116 + $0x4] sm:$0xf] %vm938, %v887
      %941 = vst.msk [vmem:[%s116 + $0x8] sm:$0xf] %vm938, %v888
      %942 = vst.msk [vmem:[%s116 + $0xc] sm:$0xf] %vm938, %v889
      %943 = vst.msk [vmem:[%s116 + $0x10] sm:$0xf] %vm938, %v890
      %944 = vst.msk [vmem:[%s116 + $0x14] sm:$0xf] %vm938, %v891
      %945 = vst.msk [vmem:[%s116 + $0x18] sm:$0xf] %vm938, %v892
      %946 = vst.msk [vmem:[%s116 + $0x1c] sm:$0xf] %vm938, %v893
      %947 = vst.msk [vmem:[%s116 + $0x20] sm:$0xf] %vm938, %v894
      %948 = vst.msk [vmem:[%s116 + $0x24] sm:$0xf] %vm938, %v895
      %949 = vst.msk [vmem:[%s116 + $0x28] sm:$0xf] %vm938, %v896
      %950 = vst.msk [vmem:[%s116 + $0x2c] sm:$0xf] %vm938, %v897
      %951 = vst.msk [vmem:[%s116 + $0x30] sm:$0xf] %vm938, %v898
      %952 = vst.msk [vmem:[%s116 + $0x34] sm:$0xf] %vm938, %v899
      %953 = vst.msk [vmem:[%s116 + $0x38] sm:$0xf] %vm938, %v900
      %954 = vst.msk [vmem:[%s116 + $0x3c] sm:$0xf] %vm938, %v901
      %955 = vst.msk [vmem:[%s116 + $0x40] sm:$0xf] %vm938, %v902
      %956 = vst.msk [vmem:[%s116 + $0x44] sm:$0xf] %vm938, %v903
      %957 = vst.msk [vmem:[%s116 + $0x48] sm:$0xf] %vm938, %v904
      %958 = vst.msk [vmem:[%s116 + $0x4c] sm:$0xf] %vm938, %v905
      %959 = vst.msk [vmem:[%s116 + $0x50] sm:$0xf] %vm938, %v906
      %960 = vst.msk [vmem:[%s116 + $0x54] sm:$0xf] %vm938, %v907
      %961 = vst.msk [vmem:[%s116 + $0x58] sm:$0xf] %vm938, %v908
      %962 = vst.msk [vmem:[%s116 + $0x5c] sm:$0xf] %vm938, %v909
      %963 = vst.msk [vmem:[%s116 + $0x60] sm:$0xf] %vm938, %v910
      %964 = vst.msk [vmem:[%s116 + $0x64] sm:$0xf] %vm938, %v911
      %p965 = scmp.lt.s32.totalorder %s12, 1
      %s966 = scalar_select %p965, %s12, 1
      %s967 = smul.addr %s966, 26
      %s968 = smul.addr %s967, 4
      %s969 = scalar_lea.vmem %s1, %s968
      // Predicated region
      $region25: #{encoder_forward.8} parent=23 // pred_check
        %p970 = pneg %p56
      $region26: #{encoder_forward.8} parent=23 // pred_check_branch
        %972 = sbr.rel (%p970) target = $region28
      $region27: #{encoder_forward.8} parent=23 // pred_region
        _
      $region28: #{encoder_forward.8} parent=23 // pred_fallthru
        _
    $region24: #{encoder_forward.8} parent=5 // pred_fallthru
      _
    %p973 = scmp.le.s32.totalorder 2, %s7
    // Predicated region
    $region29: #{encoder_forward.8} parent=5 // pred_check
      %p974 = pneg %p973
    $region30: #{encoder_forward.8} parent=5 // pred_check_branch
      %976 = sbr.rel (%p974) target = $region32
    $region31: #{encoder_forward.8} parent=5 // pred_region
      %s977 = ssub.s32 %s7, 2
      // Predicated region
      $region33: #{encoder_forward.8} parent=31 // pred_check
        %p978 = pneg %p62
      $region34: #{encoder_forward.8} parent=31 // pred_check_branch
        %980 = sbr.rel (%p978) target = $region36
      $region35: #{encoder_forward.8} parent=31 // pred_region
        %p981 = scmp.lt.s32.totalorder %s13, 1
        %s982 = scalar_select %p981, %s13, 1
        %s983 = smul.addr %s982, 26
        %s984 = smul.addr %s983, 4
        %s985 = scalar_lea.vmem %s1, %s984
      $region36: #{encoder_forward.8} parent=31 // pred_fallthru
        _
    $region32: #{encoder_forward.8} parent=5 // pred_fallthru
      _
  $region6: #{encoder_forward.8} parent=0 // loop_footer
    %s11 = sadd.s32 1, %s7
  $region7: #{encoder_forward.8} parent=0 // loop_footer_branch
    %6 = sbr.rel target = $region3
  $region8: #{encoder_forward.8} parent=0 // loop_exit
    _

// kernel: encoder_forward.9
$region0: #{encoder_forward.9}
  #allocation0 [shape = 'u32[]', space=smem, size = 0x4, offset = 0x4, fixed_abs, tag = 'smem constant byte address 0x4 - core index']
  #allocation1 [shape = 'u32[144,128]{1,0:T(1,128)}', space=vmem, size = 0x12000, scoped, tag = 'internal scratch']
  %s0 = inlined_call_operand.vmem [shape: bf16[2,2704], index: 0, kind: input, shape index: {}]
  %s1 = inlined_call_operand.vmem [shape: bf16[2704,512], index: 1, kind: input, shape index: {}]
  %s2 = inlined_call_operand.vmem [shape: f32[1,512], index: 2, kind: input, shape index: {}]
  %s3 = inlined_call_operand.vmem [shape: bf16[512,128], index: 3, kind: input, shape index: {}]
  %s4 = inlined_call_operand.vmem [shape: f32[1,128], index: 4, kind: input, shape index: {}]
  %s5 = inlined_call_operand.hbm [shape: f32[2,128], index: 5, kind: output, shape index: {}]
  %s6 = sld [smem:[#allocation0]]
  $region30: #{encoder_forward.9} parent=0
    _
  %s8 = ssub.s32 1, %s6
  %s9 = scalar_select 0, %s8, %s6
  $region1: #{encoder_forward.9} parent=0
    #allocation2 [shape = 'u8[1024]{0}', space=vmem, size = 0x400, scoped, tag = 'output window, operand 0, single buffered']
    #allocation3 [shape = 's32[1]{0}', space=sflag, size = 0x4, scoped, tag = 'scoped memory for encoder_forward.9']
    %10 = vsyncpa [#allocation3], 0
    // Predicated region
    $region2: #{encoder_forward.9} parent=1 // pred_check
      _
    $region3: #{encoder_forward.9} parent=1 // pred_check_branch
      %12 = sbr.rel (0) target = $region5
    $region4: #{encoder_forward.9} parent=1 // pred_region
      _
    $region5: #{encoder_forward.9} parent=1 // pred_fallthru
      _
    // Predicated region
    $region6: #{encoder_forward.9} parent=1 // pred_check
      _
    $region7: #{encoder_forward.9} parent=1 // pred_check_branch
      %14 = sbr.rel (0) target = $region9
    $region8: #{encoder_forward.9} parent=1 // pred_region
      _
    $region9: #{encoder_forward.9} parent=1 // pred_fallthru
      _
    // Predicated region
    $region10: #{encoder_forward.9} parent=1 // pred_check
      _
    $region11: #{encoder_forward.9} parent=1 // pred_check_branch
      %16 = sbr.rel (0) target = $region13
    $region12: #{encoder_forward.9} parent=1 // pred_region
      _
    $region13: #{encoder_forward.9} parent=1 // pred_fallthru
      _
    // Predicated region
    $region14: #{encoder_forward.9} parent=1 // pred_check
      _
    $region15: #{encoder_forward.9} parent=1 // pred_check_branch
      %18 = sbr.rel (0) target = $region17
    $region16: #{encoder_forward.9} parent=1 // pred_region
      _
    $region17: #{encoder_forward.9} parent=1 // pred_fallthru
      _
    // Predicated region
    $region18: #{encoder_forward.9} parent=1 // pred_check
      _
    $region19: #{encoder_forward.9} parent=1 // pred_check_branch
      %20 = sbr.rel (0) target = $region21
    $region20: #{encoder_forward.9} parent=1 // pred_region
      _
    $region21: #{encoder_forward.9} parent=1 // pred_fallthru
      _
    %v22 = vld [vmem:[%s0] sm:$0xff]
    %v23 = vld [vmem:[%s0 + $0x8] sm:$0xff]
    %v24 = vld [vmem:[%s0 + $0x10] sm:$0x3f]
    %v25 = vld [vmem:[%s1] sm:$0xff]
    %v26 = vld [vmem:[%s1 + $0x8] sm:$0xff]
    %v27 = vld [vmem:[%s1 + $0x10] sm:$0xff]
    %v28 = vld [vmem:[%s1 + $0x18] sm:$0xff]
    %v29 = vld [vmem:[%s1 + $0x20] sm:$0xff]
    %v30 = vld [vmem:[%s1 + $0x28] sm:$0xff]
    %v31 = vld [vmem:[%s1 + $0x30] sm:$0xff]
    %v32 = vld [vmem:[%s1 + $0x38] sm:$0xff]
    %v33 = vld [vmem:[%s1 + $0x40] sm:$0xff]
    %v34 = vld [vmem:[%s1 + $0x48] sm:$0xff]
    %v35 = vld [vmem:[%s1 + $0x50] sm:$0xff]
    %v36 = vld [vmem:[%s1 + $0x58] sm:$0xff]
    %v37 = vld [vmem:[%s1 + $0x60] sm:$0xff]
    %v38 = vld [vmem:[%s1 + $0x68] sm:$0xff]
    %v39 = vld [vmem:[%s1 + $0x70] sm:$0xff]
    %v40 = vld [vmem:[%s1 + $0x78] sm:$0xff]
    %v41 = vld [vmem:[%s1 + $0x80] sm:$0xff]
    %v42 = vld [vmem:[%s1 + $0x88] sm:$0xff]
    %v43 = vld [vmem:[%s1 + $0x90] sm:$0xff]
    %v44 = vld [vmem:[%s1 + $0x98] sm:$0xff]
    %v45 = vld [vmem:[%s1 + $0xa0] sm:$0xff]
    %v46 = vld [vmem:[%s1 + $0xa8] sm:$0xff]
    %v47 = vld [vmem:[%s1 + $0xb0] sm:$0xff]
    %v48 = vld [vmem:[%s1 + $0xb8] sm:$0xff]
    %v49 = vld [vmem:[%s1 + $0xc0] sm:$0xff]
    %v50 = vld [vmem:[%s1 + $0xc8] sm:$0xff]
    %v51 = vld [vmem:[%s1 + $0xd0] sm:$0xff]
    %v52 = vld [vmem:[%s1 + $0xd8] sm:$0xff]
    %v53 = vld [vmem:[%s1 + $0xe0] sm:$0xff]
    %v54 = vld [vmem:[%s1 + $0xe8] sm:$0xff]
    %v55 = vld [vmem:[%s1 + $0xf0] sm:$0xff]
    %v56 = vld [vmem:[%s1 + $0xf8] sm:$0xff]
    %v57 = vld [vmem:[%s1 + $0x100] sm:$0xff]
    %v58 = vld [vmem:[%s1 + $0x108] sm:$0xff]
    %v59 = vld [vmem:[%s1 + $0x110] sm:$0xff]
    %v60 = vld [vmem:[%s1 + $0x118] sm:$0xff]
    %v61 = vld [vmem:[%s1 + $0x120] sm:$0xff]
    %v62 = vld [vmem:[%s1 + $0x128] sm:$0xff]
    %v63 = vld [vmem:[%s1 + $0x130] sm:$0xff]
    %v64 = vld [vmem:[%s1 + $0x138] sm:$0xff]
    %v65 = vld [vmem:[%s1 + $0x140] sm:$0xff]
    %v66 = vld [vmem:[%s1 + $0x148] sm:$0xff]
    %v67 = vld [vmem:[%s1 + $0x150] sm:$0xff]
    %v68 = vld [vmem:[%s1 + $0x158] sm:$0xff]
    %v69 = vld [vmem:[%s1 + $0x160] sm:$0xff]
    %v70 = vld [vmem:[%s1 + $0x168] sm:$0xff]
    %v71 = vld [vmem:[%s1 + $0x170] sm:$0xff]
    %v72 = vld [vmem:[%s1 + $0x178] sm:$0xff]
    %v73 = vld [vmem:[%s1 + $0x180] sm:$0xff]
    %v74 = vld [vmem:[%s1 + $0x188] sm:$0xff]
    %v75 = vld [vmem:[%s1 + $0x190] sm:$0xff]
    %v76 = vld [vmem:[%s1 + $0x198] sm:$0xff]
    %v77 = vld [vmem:[%s1 + $0x1a0] sm:$0xff]
    %v78 = vld [vmem:[%s1 + $0x1a8] sm:$0xff]
    %v79 = vld [vmem:[%s1 + $0x1b0] sm:$0xff]
    %v80 = vld [vmem:[%s1 + $0x1b8] sm:$0xff]
    %v81 = vld [vmem:[%s1 + $0x1c0] sm:$0xff]
    %v82 = vld [vmem:[%s1 + $0x1c8] sm:$0xff]
    %v83 = vld [vmem:[%s1 + $0x1d0] sm:$0xff]
    %v84 = vld [vmem:[%s1 + $0x1d8] sm:$0xff]
    %v85 = vld [vmem:[%s1 + $0x1e0] sm:$0xff]
    %v86 = vld [vmem:[%s1 + $0x1e8] sm:$0xff]
    %v87 = vld [vmem:[%s1 + $0x1f0] sm:$0xff]
    %v88 = vld [vmem:[%s1 + $0x1f8] sm:$0xff]
    %v89 = vld [vmem:[%s1 + $0x200] sm:$0xff]
    %v90 = vld [vmem:[%s1 + $0x208] sm:$0xff]
    %v91 = vld [vmem:[%s1 + $0x210] sm:$0xff]
    %v92 = vld [vmem:[%s1 + $0x218] sm:$0xff]
    %v93 = vld [vmem:[%s1 + $0x220] sm:$0xff]
    %v94 = vld [vmem:[%s1 + $0x228] sm:$0xff]
    %v95 = vld [vmem:[%s1 + $0x230] sm:$0xff]
    %v96 = vld [vmem:[%s1 + $0x238] sm:$0xff]
    %v97 = vld [vmem:[%s1 + $0x240] sm:$0xff]
    %v98 = vld [vmem:[%s1 + $0x248] sm:$0xff]
    %v99 = vld [vmem:[%s1 + $0x250] sm:$0xff]
    %v100 = vld [vmem:[%s1 + $0x258] sm:$0xff]
    %v101 = vld [vmem:[%s1 + $0x260] sm:$0xff]
    %v102 = vld [vmem:[%s1 + $0x268] sm:$0xff]
    %v103 = vld [vmem:[%s1 + $0x270] sm:$0xff]
    %v104 = vld [vmem:[%s1 + $0x278] sm:$0xff]
    %v105 = vld [vmem:[%s1 + $0x280] sm:$0xff]
    %v106 = vld [vmem:[%s1 + $0x288] sm:$0xff]
    %v107 = vld [vmem:[%s1 + $0x290] sm:$0xff]
    %v108 = vld [vmem:[%s1 + $0x298] sm:$0xff]
    %v109 = vld [vmem:[%s1 + $0x2a0] sm:$0xff]
    %v110 = vld [vmem:[%s1 + $0x2a8] sm:$0xff]
    %v111 = vld [vmem:[%s1 + $0x2b0] sm:$0xff]
    %v112 = vld [vmem:[%s1 + $0x2b8] sm:$0xff]
    %v113 = vld [vmem:[%s1 + $0x2c0] sm:$0xff]
    %v114 = vld [vmem:[%s1 + $0x2c8] sm:$0xff]
    %v115 = vld [vmem:[%s1 + $0x2d0] sm:$0xff]
    %v116 = vld [vmem:[%s1 + $0x2d8] sm:$0xff]
    %v117 = vld [vmem:[%s1 + $0x2e0] sm:$0xff]
    %v118 = vld [vmem:[%s1 + $0x2e8] sm:$0xff]
    %v119 = vld [vmem:[%s1 + $0x2f0] sm:$0xff]
    %v120 = vld [vmem:[%s1 + $0x2f8] sm:$0xff]
    %v121 = vld [vmem:[%s1 + $0x300] sm:$0xff]
    %v122 = vld [vmem:[%s1 + $0x308] sm:$0xff]
    %v123 = vld [vmem:[%s1 + $0x310] sm:$0xff]
    %v124 = vld [vmem:[%s1 + $0x318] sm:$0xff]
    %v125 = vld [vmem:[%s1 + $0x320] sm:$0xff]
    %v126 = vld [vmem:[%s1 + $0x328] sm:$0xff]
    %v127 = vld [vmem:[%s1 + $0x330] sm:$0xff]
    %v128 = vld [vmem:[%s1 + $0x338] sm:$0xff]
    %v129 = vld [vmem:[%s1 + $0x340] sm:$0xff]
    %v130 = vld [vmem:[%s1 + $0x348] sm:$0xff]
    %v131 = vld [vmem:[%s1 + $0x350] sm:$0xff]
    %v132 = vld [vmem:[%s1 + $0x358] sm:$0xff]
    %v133 = vld [vmem:[%s1 + $0x360] sm:$0xff]
    %v134 = vld [vmem:[%s1 + $0x368] sm:$0xff]
    %v135 = vld [vmem:[%s1 + $0x370] sm:$0xff]
    %v136 = vld [vmem:[%s1 + $0x378] sm:$0xff]
    %v137 = vld [vmem:[%s1 + $0x380] sm:$0xff]
    %v138 = vld [vmem:[%s1 + $0x388] sm:$0xff]
    %v139 = vld [vmem:[%s1 + $0x390] sm:$0xff]
    %v140 = vld [vmem:[%s1 + $0x398] sm:$0xff]
    %v141 = vld [vmem:[%s1 + $0x3a0] sm:$0xff]
    %v142 = vld [vmem:[%s1 + $0x3a8] sm:$0xff]
    %v143 = vld [vmem:[%s1 + $0x3b0] sm:$0xff]
    %v144 = vld [vmem:[%s1 + $0x3b8] sm:$0xff]
    %v145 = vld [vmem:[%s1 + $0x3c0] sm:$0xff]
    %v146 = vld [vmem:[%s1 + $0x3c8] sm:$0xff]
    %v147 = vld [vmem:[%s1 + $0x3d0] sm:$0xff]
    %v148 = vld [vmem:[%s1 + $0x3d8] sm:$0xff]
    %v149 = vld [vmem:[%s1 + $0x3e0] sm:$0xff]
    %v150 = vld [vmem:[%s1 + $0x3e8] sm:$0xff]
    %v151 = vld [vmem:[%s1 + $0x3f0] sm:$0xff]
    %v152 = vld [vmem:[%s1 + $0x3f8] sm:$0xff]
    %v153 = vld [vmem:[%s1 + $0x400] sm:$0xff]
    %v154 = vld [vmem:[%s1 + $0x408] sm:$0xff]
    %v155 = vld [vmem:[%s1 + $0x410] sm:$0xff]
    %v156 = vld [vmem:[%s1 + $0x418] sm:$0xff]
    %v157 = vld [vmem:[%s1 + $0x420] sm:$0xff]
    %v158 = vld [vmem:[%s1 + $0x428] sm:$0xff]
    %v159 = vld [vmem:[%s1 + $0x430] sm:$0xff]
    %v160 = vld [vmem:[%s1 + $0x438] sm:$0xff]
    %v161 = vld [vmem:[%s1 + $0x440] sm:$0xff]
    %v162 = vld [vmem:[%s1 + $0x448] sm:$0xff]
    %v163 = vld [vmem:[%s1 + $0x450] sm:$0xff]
    %v164 = vld [vmem:[%s1 + $0x458] sm:$0xff]
    %v165 = vld [vmem:[%s1 + $0x460] sm:$0xff]
    %v166 = vld [vmem:[%s1 + $0x468] sm:$0xff]
    %v167 = vld [vmem:[%s1 + $0x470] sm:$0xff]
    %v168 = vld [vmem:[%s1 + $0x478] sm:$0xff]
    %v169 = vld [vmem:[%s1 + $0x480] sm:$0xff]
    %v170 = vld [vmem:[%s1 + $0x488] sm:$0xff]
    %v171 = vld [vmem:[%s1 + $0x490] sm:$0xff]
    %v172 = vld [vmem:[%s1 + $0x498] sm:$0xff]
    %v173 = vld [vmem:[%s1 + $0x4a0] sm:$0xff]
    %v174 = vld [vmem:[%s1 + $0x4a8] sm:$0xff]
    %v175 = vld [vmem:[%s1 + $0x4b0] sm:$0xff]
    %v176 = vld [vmem:[%s1 + $0x4b8] sm:$0xff]
    %v177 = vld [vmem:[%s1 + $0x4c0] sm:$0xff]
    %v178 = vld [vmem:[%s1 + $0x4c8] sm:$0xff]
    %v179 = vld [vmem:[%s1 + $0x4d0] sm:$0xff]
    %v180 = vld [vmem:[%s1 + $0x4d8] sm:$0xff]
    %v181 = vld [vmem:[%s1 + $0x4e0] sm:$0xff]
    %v182 = vld [vmem:[%s1 + $0x4e8] sm:$0xff]
    %v183 = vld [vmem:[%s1 + $0x4f0] sm:$0xff]
    %v184 = vld [vmem:[%s1 + $0x4f8] sm:$0xff]
    %v185 = vld [vmem:[%s1 + $0x500] sm:$0xff]
    %v186 = vld [vmem:[%s1 + $0x508] sm:$0xff]
    %v187 = vld [vmem:[%s1 + $0x510] sm:$0xff]
    %v188 = vld [vmem:[%s1 + $0x518] sm:$0xff]
    %v189 = vld [vmem:[%s1 + $0x520] sm:$0xff]
    %v190 = vld [vmem:[%s1 + $0x528] sm:$0xff]
    %v191 = vld [vmem:[%s1 + $0x530] sm:$0xff]
    %v192 = vld [vmem:[%s1 + $0x538] sm:$0xff]
    %v193 = vld [vmem:[%s1 + $0x540] sm:$0xff]
    %v194 = vld [vmem:[%s1 + $0x548] sm:$0xff]
    %v195 = vld [vmem:[%s1 + $0x550] sm:$0xff]
    %v196 = vld [vmem:[%s1 + $0x558] sm:$0xff]
    %v197 = vld [vmem:[%s1 + $0x560] sm:$0xff]
    %v198 = vld [vmem:[%s1 + $0x568] sm:$0xff]
    %v199 = vld [vmem:[%s1 + $0x570] sm:$0xff]
    %v200 = vld [vmem:[%s1 + $0x578] sm:$0xff]
    %v201 = vld [vmem:[%s1 + $0x580] sm:$0xff]
    %v202 = vld [vmem:[%s1 + $0x588] sm:$0xff]
    %v203 = vld [vmem:[%s1 + $0x590] sm:$0xff]
    %v204 = vld [vmem:[%s1 + $0x598] sm:$0xff]
    %v205 = vld [vmem:[%s1 + $0x5a0] sm:$0xff]
    %v206 = vld [vmem:[%s1 + $0x5a8] sm:$0xff]
    %v207 = vld [vmem:[%s1 + $0x5b0] sm:$0xff]
    %v208 = vld [vmem:[%s1 + $0x5b8] sm:$0xff]
    %v209 = vld [vmem:[%s1 + $0x5c0] sm:$0xff]
    %v210 = vld [vmem:[%s1 + $0x5c8] sm:$0xff]
    %v211 = vld [vmem:[%s1 + $0x5d0] sm:$0xff]
    %v212 = vld [vmem:[%s1 + $0x5d8] sm:$0xff]
    %v213 = vld [vmem:[%s1 + $0x5e0] sm:$0xff]
    %v214 = vld [vmem:[%s1 + $0x5e8] sm:$0xff]
    %v215 = vld [vmem:[%s1 + $0x5f0] sm:$0xff]
    %v216 = vld [vmem:[%s1 + $0x5f8] sm:$0xff]
    %v217 = vld [vmem:[%s1 + $0x600] sm:$0xff]
    %v218 = vld [vmem:[%s1 + $0x608] sm:$0xff]
    %v219 = vld [vmem:[%s1 + $0x610] sm:$0xff]
    %v220 = vld [vmem:[%s1 + $0x618] sm:$0xff]
    %v221 = vld [vmem:[%s1 + $0x620] sm:$0xff]
    %v222 = vld [vmem:[%s1 + $0x628] sm:$0xff]
    %v223 = vld [vmem:[%s1 + $0x630] sm:$0xff]
    %v224 = vld [vmem:[%s1 + $0x638] sm:$0xff]
    %v225 = vld [vmem:[%s1 + $0x640] sm:$0xff]
    %v226 = vld [vmem:[%s1 + $0x648] sm:$0xff]
    %v227 = vld [vmem:[%s1 + $0x650] sm:$0xff]
    %v228 = vld [vmem:[%s1 + $0x658] sm:$0xff]
    %v229 = vld [vmem:[%s1 + $0x660] sm:$0xff]
    %v230 = vld [vmem:[%s1 + $0x668] sm:$0xff]
    %v231 = vld [vmem:[%s1 + $0x670] sm:$0xff]
    %v232 = vld [vmem:[%s1 + $0x678] sm:$0xff]
    %v233 = vld [vmem:[%s1 + $0x680] sm:$0xff]
    %v234 = vld [vmem:[%s1 + $0x688] sm:$0xff]
    %v235 = vld [vmem:[%s1 + $0x690] sm:$0xff]
    %v236 = vld [vmem:[%s1 + $0x698] sm:$0xff]
    %v237 = vld [vmem:[%s1 + $0x6a0] sm:$0xff]
    %v238 = vld [vmem:[%s1 + $0x6a8] sm:$0xff]
    %v239 = vld [vmem:[%s1 + $0x6b0] sm:$0xff]
    %v240 = vld [vmem:[%s1 + $0x6b8] sm:$0xff]
    %v241 = vld [vmem:[%s1 + $0x6c0] sm:$0xff]
    %v242 = vld [vmem:[%s1 + $0x6c8] sm:$0xff]
    %v243 = vld [vmem:[%s1 + $0x6d0] sm:$0xff]
    %v244 = vld [vmem:[%s1 + $0x6d8] sm:$0xff]
    %v245 = vld [vmem:[%s1 + $0x6e0] sm:$0xff]
    %v246 = vld [vmem:[%s1 + $0x6e8] sm:$0xff]
    %v247 = vld [vmem:[%s1 + $0x6f0] sm:$0xff]
    %v248 = vld [vmem:[%s1 + $0x6f8] sm:$0xff]
    %v249 = vld [vmem:[%s1 + $0x700] sm:$0xff]
    %v250 = vld [vmem:[%s1 + $0x708] sm:$0xff]
    %v251 = vld [vmem:[%s1 + $0x710] sm:$0xff]
    %v252 = vld [vmem:[%s1 + $0x718] sm:$0xff]
    %v253 = vld [vmem:[%s1 + $0x720] sm:$0xff]
    %v254 = vld [vmem:[%s1 + $0x728] sm:$0xff]
    %v255 = vld [vmem:[%s1 + $0x730] sm:$0xff]
    %v256 = vld [vmem:[%s1 + $0x738] sm:$0xff]
    %v257 = vld [vmem:[%s1 + $0x740] sm:$0xff]
    %v258 = vld [vmem:[%s1 + $0x748] sm:$0xff]
    %v259 = vld [vmem:[%s1 + $0x750] sm:$0xff]
    %v260 = vld [vmem:[%s1 + $0x758] sm:$0xff]
    %v261 = vld [vmem:[%s1 + $0x760] sm:$0xff]
    %v262 = vld [vmem:[%s1 + $0x768] sm:$0xff]
    %v263 = vld [vmem:[%s1 + $0x770] sm:$0xff]
    %v264 = vld [vmem:[%s1 + $0x778] sm:$0xff]
    %v265 = vld [vmem:[%s1 + $0x780] sm:$0xff]
    %v266 = vld [vmem:[%s1 + $0x788] sm:$0xff]
    %v267 = vld [vmem:[%s1 + $0x790] sm:$0xff]
    %v268 = vld [vmem:[%s1 + $0x798] sm:$0xff]
    %v269 = vld [vmem:[%s1 + $0x7a0] sm:$0xff]
    %v270 = vld [vmem:[%s1 + $0x7a8] sm:$0xff]
    %v271 = vld [vmem:[%s1 + $0x7b0] sm:$0xff]
    %v272 = vld [vmem:[%s1 + $0x7b8] sm:$0xff]
    %v273 = vld [vmem:[%s1 + $0x7c0] sm:$0xff]
    %v274 = vld [vmem:[%s1 + $0x7c8] sm:$0xff]
    %v275 = vld [vmem:[%s1 + $0x7d0] sm:$0xff]
    %v276 = vld [vmem:[%s1 + $0x7d8] sm:$0xff]
    %v277 = vld [vmem:[%s1 + $0x7e0] sm:$0xff]
    %v278 = vld [vmem:[%s1 + $0x7e8] sm:$0xff]
    %v279 = vld [vmem:[%s1 + $0x7f0] sm:$0xff]
    %v280 = vld [vmem:[%s1 + $0x7f8] sm:$0xff]
    %v281 = vld [vmem:[%s1 + $0x800] sm:$0xff]
    %v282 = vld [vmem:[%s1 + $0x808] sm:$0xff]
    %v283 = vld [vmem:[%s1 + $0x810] sm:$0xff]
    %v284 = vld [vmem:[%s1 + $0x818] sm:$0xff]
    %v285 = vld [vmem:[%s1 + $0x820] sm:$0xff]
    %v286 = vld [vmem:[%s1 + $0x828] sm:$0xff]
    %v287 = vld [vmem:[%s1 + $0x830] sm:$0xff]
    %v288 = vld [vmem:[%s1 + $0x838] sm:$0xff]
    %v289 = vld [vmem:[%s1 + $0x840] sm:$0xff]
    %v290 = vld [vmem:[%s1 + $0x848] sm:$0xff]
    %v291 = vld [vmem:[%s1 + $0x850] sm:$0xff]
    %v292 = vld [vmem:[%s1 + $0x858] sm:$0xff]
    %v293 = vld [vmem:[%s1 + $0x860] sm:$0xff]
    %v294 = vld [vmem:[%s1 + $0x868] sm:$0xff]
    %v295 = vld [vmem:[%s1 + $0x870] sm:$0xff]
    %v296 = vld [vmem:[%s1 + $0x878] sm:$0xff]
    %v297 = vld [vmem:[%s1 + $0x880] sm:$0xff]
    %v298 = vld [vmem:[%s1 + $0x888] sm:$0xff]
    %v299 = vld [vmem:[%s1 + $0x890] sm:$0xff]
    %v300 = vld [vmem:[%s1 + $0x898] sm:$0xff]
    %v301 = vld [vmem:[%s1 + $0x8a0] sm:$0xff]
    %v302 = vld [vmem:[%s1 + $0x8a8] sm:$0xff]
    %v303 = vld [vmem:[%s1 + $0x8b0] sm:$0xff]
    %v304 = vld [vmem:[%s1 + $0x8b8] sm:$0xff]
    %v305 = vld [vmem:[%s1 + $0x8c0] sm:$0xff]
    %v306 = vld [vmem:[%s1 + $0x8c8] sm:$0xff]
    %v307 = vld [vmem:[%s1 + $0x8d0] sm:$0xff]
    %v308 = vld [vmem:[%s1 + $0x8d8] sm:$0xff]
    %v309 = vld [vmem:[%s1 + $0x8e0] sm:$0xff]
    %v310 = vld [vmem:[%s1 + $0x8e8] sm:$0xff]
    %v311 = vld [vmem:[%s1 + $0x8f0] sm:$0xff]
    %v312 = vld [vmem:[%s1 + $0x8f8] sm:$0xff]
    %v313 = vld [vmem:[%s1 + $0x900] sm:$0xff]
    %v314 = vld [vmem:[%s1 + $0x908] sm:$0xff]
    %v315 = vld [vmem:[%s1 + $0x910] sm:$0xff]
    %v316 = vld [vmem:[%s1 + $0x918] sm:$0xff]
    %v317 = vld [vmem:[%s1 + $0x920] sm:$0xff]
    %v318 = vld [vmem:[%s1 + $0x928] sm:$0xff]
    %v319 = vld [vmem:[%s1 + $0x930] sm:$0xff]
    %v320 = vld [vmem:[%s1 + $0x938] sm:$0xff]
    %v321 = vld [vmem:[%s1 + $0x940] sm:$0xff]
    %v322 = vld [vmem:[%s1 + $0x948] sm:$0xff]
    %v323 = vld [vmem:[%s1 + $0x950] sm:$0xff]
    %v324 = vld [vmem:[%s1 + $0x958] sm:$0xff]
    %v325 = vld [vmem:[%s1 + $0x960] sm:$0xff]
    %v326 = vld [vmem:[%s1 + $0x968] sm:$0xff]
    %v327 = vld [vmem:[%s1 + $0x970] sm:$0xff]
    %v328 = vld [vmem:[%s1 + $0x978] sm:$0xff]
    %v329 = vld [vmem:[%s1 + $0x980] sm:$0xff]
    %v330 = vld [vmem:[%s1 + $0x988] sm:$0xff]
    %v331 = vld [vmem:[%s1 + $0x990] sm:$0xff]
    %v332 = vld [vmem:[%s1 + $0x998] sm:$0xff]
    %v333 = vld [vmem:[%s1 + $0x9a0] sm:$0xff]
    %v334 = vld [vmem:[%s1 + $0x9a8] sm:$0xff]
    %v335 = vld [vmem:[%s1 + $0x9b0] sm:$0xff]
    %v336 = vld [vmem:[%s1 + $0x9b8] sm:$0xff]
    %v337 = vld [vmem:[%s1 + $0x9c0] sm:$0xff]
    %v338 = vld [vmem:[%s1 + $0x9c8] sm:$0xff]
    %v339 = vld [vmem:[%s1 + $0x9d0] sm:$0xff]
    %v340 = vld [vmem:[%s1 + $0x9d8] sm:$0xff]
    %v341 = vld [vmem:[%s1 + $0x9e0] sm:$0xff]
    %v342 = vld [vmem:[%s1 + $0x9e8] sm:$0xff]
    %v343 = vld [vmem:[%s1 + $0x9f0] sm:$0xff]
    %v344 = vld [vmem:[%s1 + $0x9f8] sm:$0xff]
    %v345 = vld [vmem:[%s1 + $0xa00] sm:$0xff]
    %v346 = vld [vmem:[%s1 + $0xa08] sm:$0xff]
    %v347 = vld [vmem:[%s1 + $0xa10] sm:$0xff]
    %v348 = vld [vmem:[%s1 + $0xa18] sm:$0xff]
    %v349 = vld [vmem:[%s1 + $0xa20] sm:$0xff]
    %v350 = vld [vmem:[%s1 + $0xa28] sm:$0xff]
    %v351 = vld [vmem:[%s1 + $0xa30] sm:$0xff]
    %v352 = vld [vmem:[%s1 + $0xa38] sm:$0xff]
    %v353 = vld [vmem:[%s1 + $0xa40] sm:$0xff]
    %v354 = vld [vmem:[%s1 + $0xa48] sm:$0xff]
    %v355 = vld [vmem:[%s1 + $0xa50] sm:$0xff]
    %v356 = vld [vmem:[%s1 + $0xa58] sm:$0xff]
    %v357 = vld [vmem:[%s1 + $0xa60] sm:$0xff]
    %v358 = vld [vmem:[%s1 + $0xa68] sm:$0xff]
    %v359 = vld [vmem:[%s1 + $0xa70] sm:$0xff]
    %v360 = vld [vmem:[%s1 + $0xa78] sm:$0xff]
    %v361 = vld [vmem:[%s1 + $0xa80] sm:$0xff]
    %v362 = vld [vmem:[%s1 + $0xa88] sm:$0xff]
    %v363 = vld [vmem:[%s1 + $0xa90] sm:$0xff]
    %v364 = vld [vmem:[%s1 + $0xa98] sm:$0xff]
    %v365 = vld [vmem:[%s1 + $0xaa0] sm:$0xff]
    %v366 = vld [vmem:[%s1 + $0xaa8] sm:$0xff]
    %v367 = vld [vmem:[%s1 + $0xab0] sm:$0xff]
    %v368 = vld [vmem:[%s1 + $0xab8] sm:$0xff]
    %v369 = vld [vmem:[%s1 + $0xac0] sm:$0xff]
    %v370 = vld [vmem:[%s1 + $0xac8] sm:$0xff]
    %v371 = vld [vmem:[%s1 + $0xad0] sm:$0xff]
    %v372 = vld [vmem:[%s1 + $0xad8] sm:$0xff]
    %v373 = vld [vmem:[%s1 + $0xae0] sm:$0xff]
    %v374 = vld [vmem:[%s1 + $0xae8] sm:$0xff]
    %v375 = vld [vmem:[%s1 + $0xaf0] sm:$0xff]
    %v376 = vld [vmem:[%s1 + $0xaf8] sm:$0xff]
    %v377 = vld [vmem:[%s1 + $0xb00] sm:$0xff]
    %v378 = vld [vmem:[%s1 + $0xb08] sm:$0xff]
    %v379 = vld [vmem:[%s1 + $0xb10] sm:$0xff]
    %v380 = vld [vmem:[%s1 + $0xb18] sm:$0xff]
    %v381 = vld [vmem:[%s1 + $0xb20] sm:$0xff]
    %v382 = vld [vmem:[%s1 + $0xb28] sm:$0xff]
    %v383 = vld [vmem:[%s1 + $0xb30] sm:$0xff]
    %v384 = vld [vmem:[%s1 + $0xb38] sm:$0xff]
    %v385 = vld [vmem:[%s1 + $0xb40] sm:$0xff]
    %v386 = vld [vmem:[%s1 + $0xb48] sm:$0xff]
    %v387 = vld [vmem:[%s1 + $0xb50] sm:$0xff]
    %v388 = vld [vmem:[%s1 + $0xb58] sm:$0xff]
    %v389 = vld [vmem:[%s1 + $0xb60] sm:$0xff]
    %v390 = vld [vmem:[%s1 + $0xb68] sm:$0xff]
    %v391 = vld [vmem:[%s1 + $0xb70] sm:$0xff]
    %v392 = vld [vmem:[%s1 + $0xb78] sm:$0xff]
    %v393 = vld [vmem:[%s1 + $0xb80] sm:$0xff]
    %v394 = vld [vmem:[%s1 + $0xb88] sm:$0xff]
    %v395 = vld [vmem:[%s1 + $0xb90] sm:$0xff]
    %v396 = vld [vmem:[%s1 + $0xb98] sm:$0xff]
    %v397 = vld [vmem:[%s1 + $0xba0] sm:$0xff]
    %v398 = vld [vmem:[%s1 + $0xba8] sm:$0xff]
    %v399 = vld [vmem:[%s1 + $0xbb0] sm:$0xff]
    %v400 = vld [vmem:[%s1 + $0xbb8] sm:$0xff]
    %v401 = vld [vmem:[%s1 + $0xbc0] sm:$0xff]
    %v402 = vld [vmem:[%s1 + $0xbc8] sm:$0xff]
    %v403 = vld [vmem:[%s1 + $0xbd0] sm:$0xff]
    %v404 = vld [vmem:[%s1 + $0xbd8] sm:$0xff]
    %v405 = vld [vmem:[%s1 + $0xbe0] sm:$0xff]
    %v406 = vld [vmem:[%s1 + $0xbe8] sm:$0xff]
    %v407 = vld [vmem:[%s1 + $0xbf0] sm:$0xff]
    %v408 = vld [vmem:[%s1 + $0xbf8] sm:$0xff]
    %v409 = vld [vmem:[%s1 + $0xc00] sm:$0xff]
    %v410 = vld [vmem:[%s1 + $0xc08] sm:$0xff]
    %v411 = vld [vmem:[%s1 + $0xc10] sm:$0xff]
    %v412 = vld [vmem:[%s1 + $0xc18] sm:$0xff]
    %v413 = vld [vmem:[%s1 + $0xc20] sm:$0xff]
    %v414 = vld [vmem:[%s1 + $0xc28] sm:$0xff]
    %v415 = vld [vmem:[%s1 + $0xc30] sm:$0xff]
    %v416 = vld [vmem:[%s1 + $0xc38] sm:$0xff]
    %v417 = vld [vmem:[%s1 + $0xc40] sm:$0xff]
    %v418 = vld [vmem:[%s1 + $0xc48] sm:$0xff]
    %v419 = vld [vmem:[%s1 + $0xc50] sm:$0xff]
    %v420 = vld [vmem:[%s1 + $0xc58] sm:$0xff]
    %v421 = vld [vmem:[%s1 + $0xc60] sm:$0xff]
    %v422 = vld [vmem:[%s1 + $0xc68] sm:$0xff]
    %v423 = vld [vmem:[%s1 + $0xc70] sm:$0xff]
    %v424 = vld [vmem:[%s1 + $0xc78] sm:$0xff]
    %v425 = vld [vmem:[%s1 + $0xc80] sm:$0xff]
    %v426 = vld [vmem:[%s1 + $0xc88] sm:$0xff]
    %v427 = vld [vmem:[%s1 + $0xc90] sm:$0xff]
    %v428 = vld [vmem:[%s1 + $0xc98] sm:$0xff]
    %v429 = vld [vmem:[%s1 + $0xca0] sm:$0xff]
    %v430 = vld [vmem:[%s1 + $0xca8] sm:$0xff]
    %v431 = vld [vmem:[%s1 + $0xcb0] sm:$0xff]
    %v432 = vld [vmem:[%s1 + $0xcb8] sm:$0xff]
    %v433 = vld [vmem:[%s1 + $0xcc0] sm:$0xff]
    %v434 = vld [vmem:[%s1 + $0xcc8] sm:$0xff]
    %v435 = vld [vmem:[%s1 + $0xcd0] sm:$0xff]
    %v436 = vld [vmem:[%s1 + $0xcd8] sm:$0xff]
    %v437 = vld [vmem:[%s1 + $0xce0] sm:$0xff]
    %v438 = vld [vmem:[%s1 + $0xce8] sm:$0xff]
    %v439 = vld [vmem:[%s1 + $0xcf0] sm:$0xff]
    %v440 = vld [vmem:[%s1 + $0xcf8] sm:$0xff]
    %v441 = vld [vmem:[%s1 + $0xd00] sm:$0xff]
    %v442 = vld [vmem:[%s1 + $0xd08] sm:$0xff]
    %v443 = vld [vmem:[%s1 + $0xd10] sm:$0xff]
    %v444 = vld [vmem:[%s1 + $0xd18] sm:$0xff]
    %v445 = vld [vmem:[%s1 + $0xd20] sm:$0xff]
    %v446 = vld [vmem:[%s1 + $0xd28] sm:$0xff]
    %v447 = vld [vmem:[%s1 + $0xd30] sm:$0xff]
    %v448 = vld [vmem:[%s1 + $0xd38] sm:$0xff]
    %v449 = vld [vmem:[%s1 + $0xd40] sm:$0xff]
    %v450 = vld [vmem:[%s1 + $0xd48] sm:$0xff]
    %v451 = vld [vmem:[%s1 + $0xd50] sm:$0xff]
    %v452 = vld [vmem:[%s1 + $0xd58] sm:$0xff]
    %v453 = vld [vmem:[%s1 + $0xd60] sm:$0xff]
    %v454 = vld [vmem:[%s1 + $0xd68] sm:$0xff]
    %v455 = vld [vmem:[%s1 + $0xd70] sm:$0xff]
    %v456 = vld [vmem:[%s1 + $0xd78] sm:$0xff]
    %v457 = vld [vmem:[%s1 + $0xd80] sm:$0xff]
    %v458 = vld [vmem:[%s1 + $0xd88] sm:$0xff]
    %v459 = vld [vmem:[%s1 + $0xd90] sm:$0xff]
    %v460 = vld [vmem:[%s1 + $0xd98] sm:$0xff]
    %v461 = vld [vmem:[%s1 + $0xda0] sm:$0xff]
    %v462 = vld [vmem:[%s1 + $0xda8] sm:$0xff]
    %v463 = vld [vmem:[%s1 + $0xdb0] sm:$0xff]
    %v464 = vld [vmem:[%s1 + $0xdb8] sm:$0xff]
    %v465 = vld [vmem:[%s1 + $0xdc0] sm:$0xff]
    %v466 = vld [vmem:[%s1 + $0xdc8] sm:$0xff]
    %v467 = vld [vmem:[%s1 + $0xdd0] sm:$0xff]
    %v468 = vld [vmem:[%s1 + $0xdd8] sm:$0xff]
    %v469 = vld [vmem:[%s1 + $0xde0] sm:$0xff]
    %v470 = vld [vmem:[%s1 + $0xde8] sm:$0xff]
    %v471 = vld [vmem:[%s1 + $0xdf0] sm:$0xff]
    %v472 = vld [vmem:[%s1 + $0xdf8] sm:$0xff]
    %v473 = vld [vmem:[%s1 + $0xe00] sm:$0xff]
    %v474 = vld [vmem:[%s1 + $0xe08] sm:$0xff]
    %v475 = vld [vmem:[%s1 + $0xe10] sm:$0xff]
    %v476 = vld [vmem:[%s1 + $0xe18] sm:$0xff]
    %v477 = vld [vmem:[%s1 + $0xe20] sm:$0xff]
    %v478 = vld [vmem:[%s1 + $0xe28] sm:$0xff]
    %v479 = vld [vmem:[%s1 + $0xe30] sm:$0xff]
    %v480 = vld [vmem:[%s1 + $0xe38] sm:$0xff]
    %v481 = vld [vmem:[%s1 + $0xe40] sm:$0xff]
    %v482 = vld [vmem:[%s1 + $0xe48] sm:$0xff]
    %v483 = vld [vmem:[%s1 + $0xe50] sm:$0xff]
    %v484 = vld [vmem:[%s1 + $0xe58] sm:$0xff]
    %v485 = vld [vmem:[%s1 + $0xe60] sm:$0xff]
    %v486 = vld [vmem:[%s1 + $0xe68] sm:$0xff]
    %v487 = vld [vmem:[%s1 + $0xe70] sm:$0xff]
    %v488 = vld [vmem:[%s1 + $0xe78] sm:$0xff]
    %v489 = vld [vmem:[%s1 + $0xe80] sm:$0xff]
    %v490 = vld [vmem:[%s1 + $0xe88] sm:$0xff]
    %v491 = vld [vmem:[%s1 + $0xe90] sm:$0xff]
    %v492 = vld [vmem:[%s1 + $0xe98] sm:$0xff]
    %v493 = vld [vmem:[%s1 + $0xea0] sm:$0xff]
    %v494 = vld [vmem:[%s1 + $0xea8] sm:$0xff]
    %v495 = vld [vmem:[%s1 + $0xeb0] sm:$0xff]
    %v496 = vld [vmem:[%s1 + $0xeb8] sm:$0xff]
    %v497 = vld [vmem:[%s1 + $0xec0] sm:$0xff]
    %v498 = vld [vmem:[%s1 + $0xec8] sm:$0xff]
    %v499 = vld [vmem:[%s1 + $0xed0] sm:$0xff]
    %v500 = vld [vmem:[%s1 + $0xed8] sm:$0xff]
    %v501 = vld [vmem:[%s1 + $0xee0] sm:$0xff]
    %v502 = vld [vmem:[%s1 + $0xee8] sm:$0xff]
    %v503 = vld [vmem:[%s1 + $0xef0] sm:$0xff]
    %v504 = vld [vmem:[%s1 + $0xef8] sm:$0xff]
    %v505 = vld [vmem:[%s1 + $0xf00] sm:$0xff]
    %v506 = vld [vmem:[%s1 + $0xf08] sm:$0xff]
    %v507 = vld [vmem:[%s1 + $0xf10] sm:$0xff]
    %v508 = vld [vmem:[%s1 + $0xf18] sm:$0xff]
    %v509 = vld [vmem:[%s1 + $0xf20] sm:$0xff]
    %v510 = vld [vmem:[%s1 + $0xf28] sm:$0xff]
    %v511 = vld [vmem:[%s1 + $0xf30] sm:$0xff]
    %v512 = vld [vmem:[%s1 + $0xf38] sm:$0xff]
    %v513 = vld [vmem:[%s1 + $0xf40] sm:$0xff]
    %v514 = vld [vmem:[%s1 + $0xf48] sm:$0xff]
    %v515 = vld [vmem:[%s1 + $0xf50] sm:$0xff]
    %v516 = vld [vmem:[%s1 + $0xf58] sm:$0xff]
    %v517 = vld [vmem:[%s1 + $0xf60] sm:$0xff]
    %v518 = vld [vmem:[%s1 + $0xf68] sm:$0xff]
    %v519 = vld [vmem:[%s1 + $0xf70] sm:$0xff]
    %v520 = vld [vmem:[%s1 + $0xf78] sm:$0xff]
    %v521 = vld [vmem:[%s1 + $0xf80] sm:$0xff]
    %v522 = vld [vmem:[%s1 + $0xf88] sm:$0xff]
    %v523 = vld [vmem:[%s1 + $0xf90] sm:$0xff]
    %v524 = vld [vmem:[%s1 + $0xf98] sm:$0xff]
    %v525 = vld [vmem:[%s1 + $0xfa0] sm:$0xff]
    %v526 = vld [vmem:[%s1 + $0xfa8] sm:$0xff]
    %v527 = vld [vmem:[%s1 + $0xfb0] sm:$0xff]
    %v528 = vld [vmem:[%s1 + $0xfb8] sm:$0xff]
    %v529 = vld [vmem:[%s1 + $0xfc0] sm:$0xff]
    %v530 = vld [vmem:[%s1 + $0xfc8] sm:$0xff]
    %v531 = vld [vmem:[%s1 + $0xfd0] sm:$0xff]
    %v532 = vld [vmem:[%s1 + $0xfd8] sm:$0xff]
    %v533 = vld [vmem:[%s1 + $0xfe0] sm:$0xff]
    %v534 = vld [vmem:[%s1 + $0xfe8] sm:$0xff]
    %v535 = vld [vmem:[%s1 + $0xff0] sm:$0xff]
    %v536 = vld [vmem:[%s1 + $0xff8] sm:$0xff]
    %v537 = vld [vmem:[%s1 + $0x1000] sm:$0xff]
    %v538 = vld [vmem:[%s1 + $0x1008] sm:$0xff]
    %v539 = vld [vmem:[%s1 + $0x1010] sm:$0xff]
    %v540 = vld [vmem:[%s1 + $0x1018] sm:$0xff]
    %v541 = vld [vmem:[%s1 + $0x1020] sm:$0xff]
    %v542 = vld [vmem:[%s1 + $0x1028] sm:$0xff]
    %v543 = vld [vmem:[%s1 + $0x1030] sm:$0xff]
    %v544 = vld [vmem:[%s1 + $0x1038] sm:$0xff]
    %v545 = vld [vmem:[%s1 + $0x1040] sm:$0xff]
    %v546 = vld [vmem:[%s1 + $0x1048] sm:$0xff]
    %v547 = vld [vmem:[%s1 + $0x1050] sm:$0xff]
    %v548 = vld [vmem:[%s1 + $0x1058] sm:$0xff]
    %v549 = vld [vmem:[%s1 + $0x1060] sm:$0xff]
    %v550 = vld [vmem:[%s1 + $0x1068] sm:$0xff]
    %v551 = vld [vmem:[%s1 + $0x1070] sm:$0xff]
    %v552 = vld [vmem:[%s1 + $0x1078] sm:$0xff]
    %v553 = vld [vmem:[%s1 + $0x1080] sm:$0xff]
    %v554 = vld [vmem:[%s1 + $0x1088] sm:$0xff]
    %v555 = vld [vmem:[%s1 + $0x1090] sm:$0xff]
    %v556 = vld [vmem:[%s1 + $0x1098] sm:$0xff]
    %v557 = vld [vmem:[%s1 + $0x10a0] sm:$0xff]
    %v558 = vld [vmem:[%s1 + $0x10a8] sm:$0xff]
    %v559 = vld [vmem:[%s1 + $0x10b0] sm:$0xff]
    %v560 = vld [vmem:[%s1 + $0x10b8] sm:$0xff]
    %v561 = vld [vmem:[%s1 + $0x10c0] sm:$0xff]
    %v562 = vld [vmem:[%s1 + $0x10c8] sm:$0xff]
    %v563 = vld [vmem:[%s1 + $0x10d0] sm:$0xff]
    %v564 = vld [vmem:[%s1 + $0x10d8] sm:$0xff]
    %v565 = vld [vmem:[%s1 + $0x10e0] sm:$0xff]
    %v566 = vld [vmem:[%s1 + $0x10e8] sm:$0xff]
    %v567 = vld [vmem:[%s1 + $0x10f0] sm:$0xff]
    %v568 = vld [vmem:[%s1 + $0x10f8] sm:$0xff]
    %v569 = vld [vmem:[%s1 + $0x1100] sm:$0xff]
    %v570 = vld [vmem:[%s1 + $0x1108] sm:$0xff]
    %v571 = vld [vmem:[%s1 + $0x1110] sm:$0xff]
    %v572 = vld [vmem:[%s1 + $0x1118] sm:$0xff]
    %v573 = vld [vmem:[%s1 + $0x1120] sm:$0xff]
    %v574 = vld [vmem:[%s1 + $0x1128] sm:$0xff]
    %v575 = vld [vmem:[%s1 + $0x1130] sm:$0xff]
    %v576 = vld [vmem:[%s1 + $0x1138] sm:$0xff]
    %v577 = vld [vmem:[%s1 + $0x1140] sm:$0xff]
    %v578 = vld [vmem:[%s1 + $0x1148] sm:$0xff]
    %v579 = vld [vmem:[%s1 + $0x1150] sm:$0xff]
    %v580 = vld [vmem:[%s1 + $0x1158] sm:$0xff]
    %v581 = vld [vmem:[%s1 + $0x1160] sm:$0xff]
    %v582 = vld [vmem:[%s1 + $0x1168] sm:$0xff]
    %v583 = vld [vmem:[%s1 + $0x1170] sm:$0xff]
    %v584 = vld [vmem:[%s1 + $0x1178] sm:$0xff]
    %v585 = vld [vmem:[%s1 + $0x1180] sm:$0xff]
    %v586 = vld [vmem:[%s1 + $0x1188] sm:$0xff]
    %v587 = vld [vmem:[%s1 + $0x1190] sm:$0xff]
    %v588 = vld [vmem:[%s1 + $0x1198] sm:$0xff]
    %v589 = vld [vmem:[%s1 + $0x11a0] sm:$0xff]
    %v590 = vld [vmem:[%s1 + $0x11a8] sm:$0xff]
    %v591 = vld [vmem:[%s1 + $0x11b0] sm:$0xff]
    %v592 = vld [vmem:[%s1 + $0x11b8] sm:$0xff]
    %v593 = vld [vmem:[%s1 + $0x11c0] sm:$0xff]
    %v594 = vld [vmem:[%s1 + $0x11c8] sm:$0xff]
    %v595 = vld [vmem:[%s1 + $0x11d0] sm:$0xff]
    %v596 = vld [vmem:[%s1 + $0x11d8] sm:$0xff]
    %v597 = vld [vmem:[%s1 + $0x11e0] sm:$0xff]
    %v598 = vld [vmem:[%s1 + $0x11e8] sm:$0xff]
    %v599 = vld [vmem:[%s1 + $0x11f0] sm:$0xff]
    %v600 = vld [vmem:[%s1 + $0x11f8] sm:$0xff]
    %v601 = vld [vmem:[%s1 + $0x1200] sm:$0xff]
    %v602 = vld [vmem:[%s1 + $0x1208] sm:$0xff]
    %v603 = vld [vmem:[%s1 + $0x1210] sm:$0xff]
    %v604 = vld [vmem:[%s1 + $0x1218] sm:$0xff]
    %v605 = vld [vmem:[%s1 + $0x1220] sm:$0xff]
    %v606 = vld [vmem:[%s1 + $0x1228] sm:$0xff]
    %v607 = vld [vmem:[%s1 + $0x1230] sm:$0xff]
    %v608 = vld [vmem:[%s1 + $0x1238] sm:$0xff]
    %v609 = vld [vmem:[%s1 + $0x1240] sm:$0xff]
    %v610 = vld [vmem:[%s1 + $0x1248] sm:$0xff]
    %v611 = vld [vmem:[%s1 + $0x1250] sm:$0xff]
    %v612 = vld [vmem:[%s1 + $0x1258] sm:$0xff]
    %v613 = vld [vmem:[%s1 + $0x1260] sm:$0xff]
    %v614 = vld [vmem:[%s1 + $0x1268] sm:$0xff]
    %v615 = vld [vmem:[%s1 + $0x1270] sm:$0xff]
    %v616 = vld [vmem:[%s1 + $0x1278] sm:$0xff]
    %v617 = vld [vmem:[%s1 + $0x1280] sm:$0xff]
    %v618 = vld [vmem:[%s1 + $0x1288] sm:$0xff]
    %v619 = vld [vmem:[%s1 + $0x1290] sm:$0xff]
    %v620 = vld [vmem:[%s1 + $0x1298] sm:$0xff]
    %v621 = vld [vmem:[%s1 + $0x12a0] sm:$0xff]
    %v622 = vld [vmem:[%s1 + $0x12a8] sm:$0xff]
    %v623 = vld [vmem:[%s1 + $0x12b0] sm:$0xff]
    %v624 = vld [vmem:[%s1 + $0x12b8] sm:$0xff]
    %v625 = vld [vmem:[%s1 + $0x12c0] sm:$0xff]
    %v626 = vld [vmem:[%s1 + $0x12c8] sm:$0xff]
    %v627 = vld [vmem:[%s1 + $0x12d0] sm:$0xff]
    %v628 = vld [vmem:[%s1 + $0x12d8] sm:$0xff]
    %v629 = vld [vmem:[%s1 + $0x12e0] sm:$0xff]
    %v630 = vld [vmem:[%s1 + $0x12e8] sm:$0xff]
    %v631 = vld [vmem:[%s1 + $0x12f0] sm:$0xff]
    %v632 = vld [vmem:[%s1 + $0x12f8] sm:$0xff]
    %v633 = vld [vmem:[%s1 + $0x1300] sm:$0xff]
    %v634 = vld [vmem:[%s1 + $0x1308] sm:$0xff]
    %v635 = vld [vmem:[%s1 + $0x1310] sm:$0xff]
    %v636 = vld [vmem:[%s1 + $0x1318] sm:$0xff]
    %v637 = vld [vmem:[%s1 + $0x1320] sm:$0xff]
    %v638 = vld [vmem:[%s1 + $0x1328] sm:$0xff]
    %v639 = vld [vmem:[%s1 + $0x1330] sm:$0xff]
    %v640 = vld [vmem:[%s1 + $0x1338] sm:$0xff]
    %v641 = vld [vmem:[%s1 + $0x1340] sm:$0xff]
    %v642 = vld [vmem:[%s1 + $0x1348] sm:$0xff]
    %v643 = vld [vmem:[%s1 + $0x1350] sm:$0xff]
    %v644 = vld [vmem:[%s1 + $0x1358] sm:$0xff]
    %v645 = vld [vmem:[%s1 + $0x1360] sm:$0xff]
    %v646 = vld [vmem:[%s1 + $0x1368] sm:$0xff]
    %v647 = vld [vmem:[%s1 + $0x1370] sm:$0xff]
    %v648 = vld [vmem:[%s1 + $0x1378] sm:$0xff]
    %v649 = vld [vmem:[%s1 + $0x1380] sm:$0xff]
    %v650 = vld [vmem:[%s1 + $0x1388] sm:$0xff]
    %v651 = vld [vmem:[%s1 + $0x1390] sm:$0xff]
    %v652 = vld [vmem:[%s1 + $0x1398] sm:$0xff]
    %v653 = vld [vmem:[%s1 + $0x13a0] sm:$0xff]
    %v654 = vld [vmem:[%s1 + $0x13a8] sm:$0xff]
    %v655 = vld [vmem:[%s1 + $0x13b0] sm:$0xff]
    %v656 = vld [vmem:[%s1 + $0x13b8] sm:$0xff]
    %v657 = vld [vmem:[%s1 + $0x13c0] sm:$0xff]
    %v658 = vld [vmem:[%s1 + $0x13c8] sm:$0xff]
    %v659 = vld [vmem:[%s1 + $0x13d0] sm:$0xff]
    %v660 = vld [vmem:[%s1 + $0x13d8] sm:$0xff]
    %v661 = vld [vmem:[%s1 + $0x13e0] sm:$0xff]
    %v662 = vld [vmem:[%s1 + $0x13e8] sm:$0xff]
    %v663 = vld [vmem:[%s1 + $0x13f0] sm:$0xff]
    %v664 = vld [vmem:[%s1 + $0x13f8] sm:$0xff]
    %v665 = vld [vmem:[%s1 + $0x1400] sm:$0xff]
    %v666 = vld [vmem:[%s1 + $0x1408] sm:$0xff]
    %v667 = vld [vmem:[%s1 + $0x1410] sm:$0xff]
    %v668 = vld [vmem:[%s1 + $0x1418] sm:$0xff]
    %v669 = vld [vmem:[%s1 + $0x1420] sm:$0xff]
    %v670 = vld [vmem:[%s1 + $0x1428] sm:$0xff]
    %v671 = vld [vmem:[%s1 + $0x1430] sm:$0xff]
    %v672 = vld [vmem:[%s1 + $0x1438] sm:$0xff]
    %v673 = vld [vmem:[%s1 + $0x1440] sm:$0xff]
    %v674 = vld [vmem:[%s1 + $0x1448] sm:$0xff]
    %v675 = vld [vmem:[%s1 + $0x1450] sm:$0xff]
    %v676 = vld [vmem:[%s1 + $0x1458] sm:$0xff]
    %v677 = vld [vmem:[%s1 + $0x1460] sm:$0xff]
    %v678 = vld [vmem:[%s1 + $0x1468] sm:$0xff]
    %v679 = vld [vmem:[%s1 + $0x1470] sm:$0xff]
    %v680 = vld [vmem:[%s1 + $0x1478] sm:$0xff]
    %v681 = vld [vmem:[%s1 + $0x1480] sm:$0xff]
    %v682 = vld [vmem:[%s1 + $0x1488] sm:$0xff]
    %v683 = vld [vmem:[%s1 + $0x1490] sm:$0xff]
    %v684 = vld [vmem:[%s1 + $0x1498] sm:$0xff]
    %v685 = vld [vmem:[%s1 + $0x14a0] sm:$0xff]
    %v686 = vld [vmem:[%s1 + $0x14a8] sm:$0xff]
    %v687 = vld [vmem:[%s1 + $0x14b0] sm:$0xff]
    %v688 = vld [vmem:[%s1 + $0x14b8] sm:$0xff]
    %v689 = vld [vmem:[%s1 + $0x14c0] sm:$0xff]
    %v690 = vld [vmem:[%s1 + $0x14c8] sm:$0xff]
    %v691 = vld [vmem:[%s1 + $0x14d0] sm:$0xff]
    %v692 = vld [vmem:[%s1 + $0x14d8] sm:$0xff]
    %v693 = vld [vmem:[%s1 + $0x14e0] sm:$0xff]
    %v694 = vld [vmem:[%s1 + $0x14e8] sm:$0xff]
    %v695 = vld [vmem:[%s1 + $0x14f0] sm:$0xff]
    %v696 = vld [vmem:[%s1 + $0x14f8] sm:$0xff]
    %v697 = vld [vmem:[%s1 + $0x1500] sm:$0xff]
    %v698 = vld [vmem:[%s1 + $0x1508] sm:$0xff]
    %v699 = vld [vmem:[%s1 + $0x1510] sm:$0xff]
    %v700 = vld [vmem:[%s1 + $0x1518] sm:$0xff]
    %v701 = vld [vmem:[%s2] sm:$0xf]
    %v703 = vlaneseq
    %v704 = vshrl.u32 %v703, 7
    %v705 = vsub.s32 0, %v704
    %v706 = vrot.slane %v701, %v705
    %v707 = vlaneseq
    %v708 = vshrl.u32 %v707, 7
    %v709 = vsub.s32 1, %v708
    %v710 = vrot.slane %v701, %v709
    %v711 = vlaneseq
    %v712 = vshrl.u32 %v711, 7
    %v713 = vsub.s32 2, %v712
    %v714 = vrot.slane %v701, %v713
    %v715 = vlaneseq
    %v716 = vshrl.u32 %v715, 7
    %v717 = vsub.s32 3, %v716
    %v718 = vrot.slane %v701, %v717
    %v726 = vcombine.high %v22, %v22
    %v728 = vunpack.c.l.s4 1966171168
    %v729 = vunpack.c.0.s8 %v728
    %v730 = vlaneseq
    %v731 = vshrl.u32 %v730, 7
    %v732 = vsub.s32 %v729, %v731
    %v733 = vrot.slane %v22, %v732
    %v735 = vunpack.c.l.s4 1966171168
    %v736 = vunpack.c.0.s8 %v735
    %v737 = vlaneseq
    %v738 = vshrl.u32 %v737, 7
    %v739 = vsub.s32 %v736, %v738
    %v740 = vrot.slane %v726, %v739
    %v741 = vcombine.high %v733, %v733
    %v742 = vcombine.high %v740, %v740
    %v744 = vunpack.c.l.s4 1966171168
    %v745 = vunpack.c.0.s8 %v744
    %v746 = vlaneseq
    %v747 = vshrl.u32 %v746, 7
    %v748 = vsub.s32 %v745, %v747
    %v749 = vrot.slane %v733, %v748
    %v751 = vunpack.c.l.s4 1966171168
    %v752 = vunpack.c.0.s8 %v751
    %v753 = vlaneseq
    %v754 = vshrl.u32 %v753, 7
    %v755 = vsub.s32 %v752, %v754
    %v756 = vrot.slane %v740, %v755
    %v758 = vunpack.c.l.s4 1966171168
    %v759 = vunpack.c.0.s8 %v758
    %v760 = vlaneseq
    %v761 = vshrl.u32 %v760, 7
    %v762 = vsub.s32 %v759, %v761
    %v763 = vrot.slane %v741, %v762
    %v765 = vunpack.c.l.s4 1966171168
    %v766 = vunpack.c.0.s8 %v765
    %v767 = vlaneseq
    %v768 = vshrl.u32 %v767, 7
    %v769 = vsub.s32 %v766, %v768
    %v770 = vrot.slane %v742, %v769
    %v771 = vcombine.high %v749, %v749
    %v772 = vcombine.high %v756, %v756
    %v773 = vcombine.high %v763, %v763
    %v774 = vcombine.high %v770, %v770
    %v775 = vcombine.high %v23, %v23
    %v777 = vunpack.c.l.s4 1966171168
    %v778 = vunpack.c.0.s8 %v777
    %v779 = vlaneseq
    %v780 = vshrl.u32 %v779, 7
    %v781 = vsub.s32 %v778, %v780
    %v782 = vrot.slane %v23, %v781
    %v784 = vunpack.c.l.s4 1966171168
    %v785 = vunpack.c.0.s8 %v784
    %v786 = vlaneseq
    %v787 = vshrl.u32 %v786, 7
    %v788 = vsub.s32 %v785, %v787
    %v789 = vrot.slane %v775, %v788
    %v790 = vcombine.high %v782, %v782
    %v791 = vcombine.high %v789, %v789
    %v793 = vunpack.c.l.s4 1966171168
    %v794 = vunpack.c.0.s8 %v793
    %v795 = vlaneseq
    %v796 = vshrl.u32 %v795, 7
    %v797 = vsub.s32 %v794, %v796
    %v798 = vrot.slane %v782, %v797
    %v800 = vunpack.c.l.s4 1966171168
    %v801 = vunpack.c.0.s8 %v800
    %v802 = vlaneseq
    %v803 = vshrl.u32 %v802, 7
    %v804 = vsub.s32 %v801, %v803
    %v805 = vrot.slane %v789, %v804
    %v807 = vunpack.c.l.s4 1966171168
    %v808 = vunpack.c.0.s8 %v807
    %v809 = vlaneseq
    %v810 = vshrl.u32 %v809, 7
    %v811 = vsub.s32 %v808, %v810
    %v812 = vrot.slane %v790, %v811
    %v814 = vunpack.c.l.s4 1966171168
    %v815 = vunpack.c.0.s8 %v814
    %v816 = vlaneseq
    %v817 = vshrl.u32 %v816, 7
    %v818 = vsub.s32 %v815, %v817
    %v819 = vrot.slane %v791, %v818
    %v820 = vcombine.high %v798, %v798
    %v821 = vcombine.high %v805, %v805
    %v822 = vcombine.high %v812, %v812
    %v823 = vcombine.high %v819, %v819
    %v824 = vcombine.high %v24, %v24
    %v826 = vunpack.c.l.s4 1966171168
    %v827 = vunpack.c.0.s8 %v826
    %v828 = vlaneseq
    %v829 = vshrl.u32 %v828, 7
    %v830 = vsub.s32 %v827, %v829
    %v831 = vrot.slane %v24, %v830
    %v833 = vunpack.c.l.s4 1966171168
    %v834 = vunpack.c.0.s8 %v833
    %v835 = vlaneseq
    %v836 = vshrl.u32 %v835, 7
    %v837 = vsub.s32 %v834, %v836
    %v838 = vrot.slane %v824, %v837
    %v839 = vcombine.high %v831, %v831
    %v840 = vcombine.high %v838, %v838
    %v842 = vunpack.c.l.s4 1966171168
    %v843 = vunpack.c.0.s8 %v842
    %v844 = vlaneseq
    %v845 = vshrl.u32 %v844, 7
    %v846 = vsub.s32 %v843, %v845
    %v847 = vrot.slane %v831, %v846
    %v849 = vunpack.c.l.s4 1966171168
    %v850 = vunpack.c.0.s8 %v849
    %v851 = vlaneseq
    %v852 = vshrl.u32 %v851, 7
    %v853 = vsub.s32 %v850, %v852
    %v854 = vrot.slane %v838, %v853
    %v856 = vunpack.c.l.s4 1966171168
    %v857 = vunpack.c.0.s8 %v856
    %v858 = vlaneseq
    %v859 = vshrl.u32 %v858, 7
    %v860 = vsub.s32 %v857, %v859
    %v861 = vrot.slane %v839, %v860
    %v863 = vunpack.c.l.s4 1966171168
    %v864 = vunpack.c.0.s8 %v863
    %v865 = vlaneseq
    %v866 = vshrl.u32 %v865, 7
    %v867 = vsub.s32 %v864, %v866
    %v868 = vrot.slane %v840, %v867
    %v869 = vcombine.high %v847, %v847
    %v870 = vcombine.high %v861, %v861
    %v1568 = vunpack.c.l.b16 %v25
    %v1569 = vunpack.c.h.b16 %v25
    %v1570 = vunpack.c.l.b16 %v26
    %v1571 = vunpack.c.h.b16 %v26
    %v1572 = vunpack.c.l.b16 %v27
    %v1573 = vunpack.c.h.b16 %v27
    %v1574 = vunpack.c.l.b16 %v28
    %v1575 = vunpack.c.h.b16 %v28
    %v1576 = vunpack.c.l.b16 %v29
    %v1577 = vunpack.c.h.b16 %v29
    %v1578 = vunpack.c.l.b16 %v30
    %v1579 = vunpack.c.h.b16 %v30
    %v1580 = vunpack.c.l.b16 %v31
    %v1581 = vunpack.c.h.b16 %v31
    %v1582 = vunpack.c.l.b16 %v32
    %v1583 = vunpack.c.h.b16 %v32
    %v1584 = vunpack.c.l.b16 %v33
    %v1585 = vunpack.c.h.b16 %v33
    %v1586 = vunpack.c.l.b16 %v34
    %v1587 = vunpack.c.h.b16 %v34
    %v1588 = vunpack.c.l.b16 %v35
    %v1589 = vunpack.c.h.b16 %v35
    %v1590 = vunpack.c.l.b16 %v36
    %v1591 = vunpack.c.h.b16 %v36
    %v1592 = vunpack.c.l.b16 %v37
    %v1593 = vunpack.c.h.b16 %v37
    %v1594 = vunpack.c.l.b16 %v38
    %v1595 = vunpack.c.h.b16 %v38
    %v1596 = vunpack.c.l.b16 %v39
    %v1597 = vunpack.c.h.b16 %v39
    %v1598 = vunpack.c.l.b16 %v40
    %v1599 = vunpack.c.h.b16 %v40
    %v1600 = vunpack.c.l.b16 %v41
    %v1601 = vunpack.c.h.b16 %v41
    %v1602 = vunpack.c.l.b16 %v42
    %v1603 = vunpack.c.h.b16 %v42
    %v1604 = vunpack.c.l.b16 %v43
    %v1605 = vunpack.c.h.b16 %v43
    %v1606 = vunpack.c.l.b16 %v44
    %v1607 = vunpack.c.h.b16 %v44
    %v1608 = vunpack.c.l.b16 %v45
    %v1609 = vunpack.c.h.b16 %v45
    %v1610 = vunpack.c.l.b16 %v46
    %v1611 = vunpack.c.h.b16 %v46
    %v1612 = vunpack.c.l.b16 %v47
    %v1613 = vunpack.c.h.b16 %v47
    %v1614 = vunpack.c.l.b16 %v48
    %v1615 = vunpack.c.h.b16 %v48
    %v1616 = vunpack.c.l.b16 %v49
    %v1617 = vunpack.c.h.b16 %v49
    %v1618 = vunpack.c.l.b16 %v50
    %v1619 = vunpack.c.h.b16 %v50
    %v1620 = vunpack.c.l.b16 %v51
    %v1621 = vunpack.c.h.b16 %v51
    %v1622 = vunpack.c.l.b16 %v52
    %v1623 = vunpack.c.h.b16 %v52
    %v1624 = vunpack.c.l.b16 %v53
    %v1625 = vunpack.c.h.b16 %v53
    %v1626 = vunpack.c.l.b16 %v54
    %v1627 = vunpack.c.h.b16 %v54
    %v1628 = vunpack.c.l.b16 %v55
    %v1629 = vunpack.c.h.b16 %v55
    %v1630 = vunpack.c.l.b16 %v56
    %v1631 = vunpack.c.h.b16 %v56
    %v1632 = vunpack.c.l.b16 %v57
    %v1633 = vunpack.c.h.b16 %v57
    %v1634 = vunpack.c.l.b16 %v58
    %v1635 = vunpack.c.h.b16 %v58
    %v1636 = vunpack.c.l.b16 %v59
    %v1637 = vunpack.c.h.b16 %v59
    %v1638 = vunpack.c.l.b16 %v60
    %v1639 = vunpack.c.h.b16 %v60
    %v1640 = vunpack.c.l.b16 %v61
    %v1641 = vunpack.c.h.b16 %v61
    %v1642 = vunpack.c.l.b16 %v62
    %v1643 = vunpack.c.h.b16 %v62
    %v1644 = vunpack.c.l.b16 %v63
    %v1645 = vunpack.c.h.b16 %v63
    %v1646 = vunpack.c.l.b16 %v64
    %v1647 = vunpack.c.h.b16 %v64
    %v1648 = vunpack.c.l.b16 %v65
    %v1649 = vunpack.c.h.b16 %v65
    %v1650 = vunpack.c.l.b16 %v66
    %v1651 = vunpack.c.h.b16 %v66
    %v1652 = vunpack.c.l.b16 %v67
    %v1653 = vunpack.c.h.b16 %v67
    %v1654 = vunpack.c.l.b16 %v68
    %v1655 = vunpack.c.h.b16 %v68
    %v1656 = vunpack.c.l.b16 %v69
    %v1657 = vunpack.c.h.b16 %v69
    %v1658 = vunpack.c.l.b16 %v70
    %v1659 = vunpack.c.h.b16 %v70
    %v1660 = vunpack.c.l.b16 %v71
    %v1661 = vunpack.c.h.b16 %v71
    %v1662 = vunpack.c.l.b16 %v72
    %v1663 = vunpack.c.h.b16 %v72
    %v1664 = vunpack.c.l.b16 %v73
    %v1665 = vunpack.c.h.b16 %v73
    %v1666 = vunpack.c.l.b16 %v74
    %v1667 = vunpack.c.h.b16 %v74
    %v1668 = vunpack.c.l.b16 %v75
    %v1669 = vunpack.c.h.b16 %v75
    %v1670 = vunpack.c.l.b16 %v76
    %v1671 = vunpack.c.h.b16 %v76
    %v1672 = vunpack.c.l.b16 %v77
    %v1673 = vunpack.c.h.b16 %v77
    %v1674 = vunpack.c.l.b16 %v78
    %v1675 = vunpack.c.h.b16 %v78
    %v1676 = vunpack.c.l.b16 %v79
    %v1677 = vunpack.c.h.b16 %v79
    %v1678 = vunpack.c.l.b16 %v80
    %v1679 = vunpack.c.h.b16 %v80
    %v1680 = vunpack.c.l.b16 %v81
    %v1681 = vunpack.c.h.b16 %v81
    %v1682 = vunpack.c.l.b16 %v82
    %v1683 = vunpack.c.h.b16 %v82
    %v1684 = vunpack.c.l.b16 %v83
    %v1685 = vunpack.c.h.b16 %v83
    %v1686 = vunpack.c.l.b16 %v84
    %v1687 = vunpack.c.h.b16 %v84
    %v1688 = vunpack.c.l.b16 %v85
    %v1689 = vunpack.c.h.b16 %v85
    %v1690 = vunpack.c.l.b16 %v86
    %v1691 = vunpack.c.h.b16 %v86
    %v1692 = vunpack.c.l.b16 %v87
    %v1693 = vunpack.c.h.b16 %v87
    %v1694 = vunpack.c.l.b16 %v88
    %v1695 = vunpack.c.h.b16 %v88
    %v1696 = vunpack.c.l.b16 %v89
    %v1697 = vunpack.c.h.b16 %v89
    %v1698 = vunpack.c.l.b16 %v90
    %v1699 = vunpack.c.h.b16 %v90
    %v1700 = vunpack.c.l.b16 %v91
    %v1701 = vunpack.c.h.b16 %v91
    %v1702 = vunpack.c.l.b16 %v92
    %v1703 = vunpack.c.h.b16 %v92
    %v1704 = vunpack.c.l.b16 %v93
    %v1705 = vunpack.c.h.b16 %v93
    %v1706 = vunpack.c.l.b16 %v94
    %v1707 = vunpack.c.h.b16 %v94
    %v1708 = vunpack.c.l.b16 %v95
    %v1709 = vunpack.c.h.b16 %v95
    %v1710 = vunpack.c.l.b16 %v96
    %v1711 = vunpack.c.h.b16 %v96
    %v1712 = vunpack.c.l.b16 %v97
    %v1713 = vunpack.c.h.b16 %v97
    %v1714 = vunpack.c.l.b16 %v98
    %v1715 = vunpack.c.h.b16 %v98
    %v1716 = vunpack.c.l.b16 %v99
    %v1717 = vunpack.c.h.b16 %v99
    %v1718 = vunpack.c.l.b16 %v100
    %v1719 = vunpack.c.h.b16 %v100
    %v1720 = vunpack.c.l.b16 %v101
    %v1721 = vunpack.c.h.b16 %v101
    %v1722 = vunpack.c.l.b16 %v102
    %v1723 = vunpack.c.h.b16 %v102
    %v1724 = vunpack.c.l.b16 %v103
    %v1725 = vunpack.c.h.b16 %v103
    %v1726 = vunpack.c.l.b16 %v104
    %v1727 = vunpack.c.h.b16 %v104
    %v1728 = vunpack.c.l.b16 %v105
    %v1729 = vunpack.c.h.b16 %v105
    %v1730 = vunpack.c.l.b16 %v106
    %v1731 = vunpack.c.h.b16 %v106
    %v1732 = vunpack.c.l.b16 %v107
    %v1733 = vunpack.c.h.b16 %v107
    %v1734 = vunpack.c.l.b16 %v108
    %v1735 = vunpack.c.h.b16 %v108
    %v1736 = vunpack.c.l.b16 %v109
    %v1737 = vunpack.c.h.b16 %v109
    %v1738 = vunpack.c.l.b16 %v110
    %v1739 = vunpack.c.h.b16 %v110
    %v1740 = vunpack.c.l.b16 %v111
    %v1741 = vunpack.c.h.b16 %v111
    %v1742 = vunpack.c.l.b16 %v112
    %v1743 = vunpack.c.h.b16 %v112
    %v1744 = vunpack.c.l.b16 %v113
    %v1745 = vunpack.c.h.b16 %v113
    %v1746 = vunpack.c.l.b16 %v114
    %v1747 = vunpack.c.h.b16 %v114
    %v1748 = vunpack.c.l.b16 %v115
    %v1749 = vunpack.c.h.b16 %v115
    %v1750 = vunpack.c.l.b16 %v116
    %v1751 = vunpack.c.h.b16 %v116
    %v1752 = vunpack.c.l.b16 %v117
    %v1753 = vunpack.c.h.b16 %v117
    %v1754 = vunpack.c.l.b16 %v118
    %v1755 = vunpack.c.h.b16 %v118
    %v1756 = vunpack.c.l.b16 %v119
    %v1757 = vunpack.c.h.b16 %v119
    %v1758 = vunpack.c.l.b16 %v120
    %v1759 = vunpack.c.h.b16 %v120
    %v1760 = vunpack.c.l.b16 %v121
    %v1761 = vunpack.c.h.b16 %v121
    %v1762 = vunpack.c.l.b16 %v122
    %v1763 = vunpack.c.h.b16 %v122
    %v1764 = vunpack.c.l.b16 %v123
    %v1765 = vunpack.c.h.b16 %v123
    %v1766 = vunpack.c.l.b16 %v124
    %v1767 = vunpack.c.h.b16 %v124
    %v1768 = vunpack.c.l.b16 %v125
    %v1769 = vunpack.c.h.b16 %v125
    %v1770 = vunpack.c.l.b16 %v126
    %v1771 = vunpack.c.h.b16 %v126
    %v1772 = vunpack.c.l.b16 %v127
    %v1773 = vunpack.c.h.b16 %v127
    %v1774 = vunpack.c.l.b16 %v128
    %v1775 = vunpack.c.h.b16 %v128
    %v1776 = vunpack.c.l.b16 %v129
    %v1777 = vunpack.c.h.b16 %v129
    %v1778 = vunpack.c.l.b16 %v130
    %v1779 = vunpack.c.h.b16 %v130
    %v1780 = vunpack.c.l.b16 %v131
    %v1781 = vunpack.c.h.b16 %v131
    %v1782 = vunpack.c.l.b16 %v132
    %v1783 = vunpack.c.h.b16 %v132
    %v1784 = vunpack.c.l.b16 %v133
    %v1785 = vunpack.c.h.b16 %v133
    %v1786 = vunpack.c.l.b16 %v134
    %v1787 = vunpack.c.h.b16 %v134
    %v1788 = vunpack.c.l.b16 %v135
    %v1789 = vunpack.c.h.b16 %v135
    %v1790 = vunpack.c.l.b16 %v136
    %v1791 = vunpack.c.h.b16 %v136
    %v1792 = vunpack.c.l.b16 %v137
    %v1793 = vunpack.c.h.b16 %v137
    %v1794 = vunpack.c.l.b16 %v138
    %v1795 = vunpack.c.h.b16 %v138
    %v1796 = vunpack.c.l.b16 %v139
    %v1797 = vunpack.c.h.b16 %v139
    %v1798 = vunpack.c.l.b16 %v140
    %v1799 = vunpack.c.h.b16 %v140
    %v1800 = vunpack.c.l.b16 %v141
    %v1801 = vunpack.c.h.b16 %v141
    %v1802 = vunpack.c.l.b16 %v142
    %v1803 = vunpack.c.h.b16 %v142
    %v1804 = vunpack.c.l.b16 %v143
    %v1805 = vunpack.c.h.b16 %v143
    %v1806 = vunpack.c.l.b16 %v144
    %v1807 = vunpack.c.h.b16 %v144
    %v1808 = vunpack.c.l.b16 %v145
    %v1809 = vunpack.c.h.b16 %v145
    %v1810 = vunpack.c.l.b16 %v146
    %v1811 = vunpack.c.h.b16 %v146
    %v1812 = vunpack.c.l.b16 %v147
    %v1813 = vunpack.c.h.b16 %v147
    %v1814 = vunpack.c.l.b16 %v148
    %v1815 = vunpack.c.h.b16 %v148
    %v1816 = vunpack.c.l.b16 %v149
    %v1817 = vunpack.c.h.b16 %v149
    %v1818 = vunpack.c.l.b16 %v150
    %v1819 = vunpack.c.h.b16 %v150
    %v1820 = vunpack.c.l.b16 %v151
    %v1821 = vunpack.c.h.b16 %v151
    %v1822 = vunpack.c.l.b16 %v152
    %v1823 = vunpack.c.h.b16 %v152
    %v1824 = vunpack.c.l.b16 %v153
    %v1825 = vunpack.c.h.b16 %v153
    %v1826 = vunpack.c.l.b16 %v154
    %v1827 = vunpack.c.h.b16 %v154
    %v1828 = vunpack.c.l.b16 %v155
    %v1829 = vunpack.c.h.b16 %v155
    %v1830 = vunpack.c.l.b16 %v156
    %v1831 = vunpack.c.h.b16 %v156
    %v1832 = vunpack.c.l.b16 %v157
    %v1833 = vunpack.c.h.b16 %v157
    %v1834 = vunpack.c.l.b16 %v158
    %v1835 = vunpack.c.h.b16 %v158
    %v1836 = vunpack.c.l.b16 %v159
    %v1837 = vunpack.c.h.b16 %v159
    %v1838 = vunpack.c.l.b16 %v160
    %v1839 = vunpack.c.h.b16 %v160
    %v1840 = vunpack.c.l.b16 %v161
    %v1841 = vunpack.c.h.b16 %v161
    %v1842 = vunpack.c.l.b16 %v162
    %v1843 = vunpack.c.h.b16 %v162
    %v1844 = vunpack.c.l.b16 %v163
    %v1845 = vunpack.c.h.b16 %v163
    %v1846 = vunpack.c.l.b16 %v164
    %v1847 = vunpack.c.h.b16 %v164
    %v1848 = vunpack.c.l.b16 %v165
    %v1849 = vunpack.c.h.b16 %v165
    %v1850 = vunpack.c.l.b16 %v166
    %v1851 = vunpack.c.h.b16 %v166
    %v1852 = vunpack.c.l.b16 %v167
    %v1853 = vunpack.c.h.b16 %v167
    %v1854 = vunpack.c.l.b16 %v168
    %v1855 = vunpack.c.h.b16 %v168
    %v1856 = vunpack.c.l.b16 %v169
    %v1857 = vunpack.c.h.b16 %v169
    %v1858 = vunpack.c.l.b16 %v170
    %v1859 = vunpack.c.h.b16 %v170
    %v1860 = vunpack.c.l.b16 %v171
    %v1861 = vunpack.c.h.b16 %v171
    %v1862 = vunpack.c.l.b16 %v172
    %v1863 = vunpack.c.h.b16 %v172
    %v1864 = vunpack.c.l.b16 %v173
    %v1865 = vunpack.c.h.b16 %v173
    %v1866 = vunpack.c.l.b16 %v174
    %v1867 = vunpack.c.h.b16 %v174
    %v1868 = vunpack.c.l.b16 %v175
    %v1869 = vunpack.c.h.b16 %v175
    %v1870 = vunpack.c.l.b16 %v176
    %v1871 = vunpack.c.h.b16 %v176
    %v1872 = vunpack.c.l.b16 %v177
    %v1873 = vunpack.c.h.b16 %v177
    %v1874 = vunpack.c.l.b16 %v178
    %v1875 = vunpack.c.h.b16 %v178
    %v1876 = vunpack.c.l.b16 %v179
    %v1877 = vunpack.c.h.b16 %v179
    %v1878 = vunpack.c.l.b16 %v180
    %v1879 = vunpack.c.h.b16 %v180
    %v1880 = vunpack.c.l.b16 %v181
    %v1881 = vunpack.c.h.b16 %v181
    %v1882 = vunpack.c.l.b16 %v182
    %v1883 = vunpack.c.h.b16 %v182
    %v1884 = vunpack.c.l.b16 %v183
    %v1885 = vunpack.c.h.b16 %v183
    %v1886 = vunpack.c.l.b16 %v184
    %v1887 = vunpack.c.h.b16 %v184
    %v1888 = vunpack.c.l.b16 %v185
    %v1889 = vunpack.c.h.b16 %v185
    %v1890 = vunpack.c.l.b16 %v186
    %v1891 = vunpack.c.h.b16 %v186
    %v1892 = vunpack.c.l.b16 %v187
    %v1893 = vunpack.c.h.b16 %v187
    %v1894 = vunpack.c.l.b16 %v188
    %v1895 = vunpack.c.h.b16 %v188
    %v1896 = vunpack.c.l.b16 %v189
    %v1897 = vunpack.c.h.b16 %v189
    %v1898 = vunpack.c.l.b16 %v190
    %v1899 = vunpack.c.h.b16 %v190
    %v1900 = vunpack.c.l.b16 %v191
    %v1901 = vunpack.c.h.b16 %v191
    %v1902 = vunpack.c.l.b16 %v192
    %v1903 = vunpack.c.h.b16 %v192
    %v1904 = vunpack.c.l.b16 %v193
    %v1905 = vunpack.c.h.b16 %v193
    %v1906 = vunpack.c.l.b16 %v194
    %v1907 = vunpack.c.h.b16 %v194
    %v1908 = vunpack.c.l.b16 %v195
    %v1909 = vunpack.c.h.b16 %v195
    %v1910 = vunpack.c.l.b16 %v196
    %v1911 = vunpack.c.h.b16 %v196
    %v1912 = vunpack.c.l.b16 %v197
    %v1913 = vunpack.c.h.b16 %v197
    %v1914 = vunpack.c.l.b16 %v198
    %v1915 = vunpack.c.h.b16 %v198
    %v1916 = vunpack.c.l.b16 %v199
    %v1917 = vunpack.c.h.b16 %v199
    %v1918 = vunpack.c.l.b16 %v200
    %v1919 = vunpack.c.h.b16 %v200
    %v1920 = vunpack.c.l.b16 %v201
    %v1921 = vunpack.c.h.b16 %v201
    %v1922 = vunpack.c.l.b16 %v202
    %v1923 = vunpack.c.h.b16 %v202
    %v1924 = vunpack.c.l.b16 %v203
    %v1925 = vunpack.c.h.b16 %v203
    %v1926 = vunpack.c.l.b16 %v204
    %v1927 = vunpack.c.h.b16 %v204
    %v1928 = vunpack.c.l.b16 %v205
    %v1929 = vunpack.c.h.b16 %v205
    %v1930 = vunpack.c.l.b16 %v206
    %v1931 = vunpack.c.h.b16 %v206
    %v1932 = vunpack.c.l.b16 %v207
    %v1933 = vunpack.c.h.b16 %v207
    %v1934 = vunpack.c.l.b16 %v208
    %v1935 = vunpack.c.h.b16 %v208
    %v1936 = vunpack.c.l.b16 %v209
    %v1937 = vunpack.c.h.b16 %v209
    %v1938 = vunpack.c.l.b16 %v210
    %v1939 = vunpack.c.h.b16 %v210
    %v1940 = vunpack.c.l.b16 %v211
    %v1941 = vunpack.c.h.b16 %v211
    %v1942 = vunpack.c.l.b16 %v212
    %v1943 = vunpack.c.h.b16 %v212
    %v1944 = vunpack.c.l.b16 %v213
    %v1945 = vunpack.c.h.b16 %v213
    %v1946 = vunpack.c.l.b16 %v214
    %v1947 = vunpack.c.h.b16 %v214
    %v1948 = vunpack.c.l.b16 %v215
    %v1949 = vunpack.c.h.b16 %v215
    %v1950 = vunpack.c.l.b16 %v216
    %v1951 = vunpack.c.h.b16 %v216
    %v1952 = vunpack.c.l.b16 %v217
    %v1953 = vunpack.c.h.b16 %v217
    %v1954 = vunpack.c.l.b16 %v218
    %v1955 = vunpack.c.h.b16 %v218
    %v1956 = vunpack.c.l.b16 %v219
    %v1957 = vunpack.c.h.b16 %v219
    %v1958 = vunpack.c.l.b16 %v220
    %v1959 = vunpack.c.h.b16 %v220
    %v1960 = vunpack.c.l.b16 %v221
    %v1961 = vunpack.c.h.b16 %v221
    %v1962 = vunpack.c.l.b16 %v222
    %v1963 = vunpack.c.h.b16 %v222
    %v1964 = vunpack.c.l.b16 %v223
    %v1965 = vunpack.c.h.b16 %v223
    %v1966 = vunpack.c.l.b16 %v224
    %v1967 = vunpack.c.h.b16 %v224
    %v1968 = vunpack.c.l.b16 %v225
    %v1969 = vunpack.c.h.b16 %v225
    %v1970 = vunpack.c.l.b16 %v226
    %v1971 = vunpack.c.h.b16 %v226
    %v1972 = vunpack.c.l.b16 %v227
    %v1973 = vunpack.c.h.b16 %v227
    %v1974 = vunpack.c.l.b16 %v228
    %v1975 = vunpack.c.h.b16 %v228
    %v1976 = vunpack.c.l.b16 %v229
    %v1977 = vunpack.c.h.b16 %v229
    %v1978 = vunpack.c.l.b16 %v230
    %v1979 = vunpack.c.h.b16 %v230
    %v1980 = vunpack.c.l.b16 %v231
    %v1981 = vunpack.c.h.b16 %v231
    %v1982 = vunpack.c.l.b16 %v232
    %v1983 = vunpack.c.h.b16 %v232
    %v1984 = vunpack.c.l.b16 %v233
    %v1985 = vunpack.c.h.b16 %v233
    %v1986 = vunpack.c.l.b16 %v234
    %v1987 = vunpack.c.h.b16 %v234
    %v1988 = vunpack.c.l.b16 %v235
    %v1989 = vunpack.c.h.b16 %v235
    %v1990 = vunpack.c.l.b16 %v236
    %v1991 = vunpack.c.h.b16 %v236
    %v1992 = vunpack.c.l.b16 %v237
    %v1993 = vunpack.c.h.b16 %v237
    %v1994 = vunpack.c.l.b16 %v238
    %v1995 = vunpack.c.h.b16 %v238
    %v1996 = vunpack.c.l.b16 %v239
    %v1997 = vunpack.c.h.b16 %v239
    %v1998 = vunpack.c.l.b16 %v240
    %v1999 = vunpack.c.h.b16 %v240
    %v2000 = vunpack.c.l.b16 %v241
    %v2001 = vunpack.c.h.b16 %v241
    %v2002 = vunpack.c.l.b16 %v242
    %v2003 = vunpack.c.h.b16 %v242
    %v2004 = vunpack.c.l.b16 %v243
    %v2005 = vunpack.c.h.b16 %v243
    %v2006 = vunpack.c.l.b16 %v244
    %v2007 = vunpack.c.h.b16 %v244
    %v2008 = vunpack.c.l.b16 %v245
    %v2009 = vunpack.c.h.b16 %v245
    %v2010 = vunpack.c.l.b16 %v246
    %v2011 = vunpack.c.h.b16 %v246
    %v2012 = vunpack.c.l.b16 %v247
    %v2013 = vunpack.c.h.b16 %v247
    %v2014 = vunpack.c.l.b16 %v248
    %v2015 = vunpack.c.h.b16 %v248
    %v2016 = vunpack.c.l.b16 %v249
    %v2017 = vunpack.c.h.b16 %v249
    %v2018 = vunpack.c.l.b16 %v250
    %v2019 = vunpack.c.h.b16 %v250
    %v2020 = vunpack.c.l.b16 %v251
    %v2021 = vunpack.c.h.b16 %v251
    %v2022 = vunpack.c.l.b16 %v252
    %v2023 = vunpack.c.h.b16 %v252
    %v2024 = vunpack.c.l.b16 %v253
    %v2025 = vunpack.c.h.b16 %v253
    %v2026 = vunpack.c.l.b16 %v254
    %v2027 = vunpack.c.h.b16 %v254
    %v2028 = vunpack.c.l.b16 %v255
    %v2029 = vunpack.c.h.b16 %v255
    %v2030 = vunpack.c.l.b16 %v256
    %v2031 = vunpack.c.h.b16 %v256
    %v2032 = vunpack.c.l.b16 %v257
    %v2033 = vunpack.c.h.b16 %v257
    %v2034 = vunpack.c.l.b16 %v258
    %v2035 = vunpack.c.h.b16 %v258
    %v2036 = vunpack.c.l.b16 %v259
    %v2037 = vunpack.c.h.b16 %v259
    %v2038 = vunpack.c.l.b16 %v260
    %v2039 = vunpack.c.h.b16 %v260
    %v2040 = vunpack.c.l.b16 %v261
    %v2041 = vunpack.c.h.b16 %v261
    %v2042 = vunpack.c.l.b16 %v262
    %v2043 = vunpack.c.h.b16 %v262
    %v2044 = vunpack.c.l.b16 %v263
    %v2045 = vunpack.c.h.b16 %v263
    %v2046 = vunpack.c.l.b16 %v264
    %v2047 = vunpack.c.h.b16 %v264
    %v2048 = vunpack.c.l.b16 %v265
    %v2049 = vunpack.c.h.b16 %v265
    %v2050 = vunpack.c.l.b16 %v266
    %v2051 = vunpack.c.h.b16 %v266
    %v2052 = vunpack.c.l.b16 %v267
    %v2053 = vunpack.c.h.b16 %v267
    %v2054 = vunpack.c.l.b16 %v268
    %v2055 = vunpack.c.h.b16 %v268
    %v2056 = vunpack.c.l.b16 %v269
    %v2057 = vunpack.c.h.b16 %v269
    %v2058 = vunpack.c.l.b16 %v270
    %v2059 = vunpack.c.h.b16 %v270
    %v2060 = vunpack.c.l.b16 %v271
    %v2061 = vunpack.c.h.b16 %v271
    %v2062 = vunpack.c.l.b16 %v272
    %v2063 = vunpack.c.h.b16 %v272
    %v2064 = vunpack.c.l.b16 %v273
    %v2065 = vunpack.c.h.b16 %v273
    %v2066 = vunpack.c.l.b16 %v274
    %v2067 = vunpack.c.h.b16 %v274
    %v2068 = vunpack.c.l.b16 %v275
    %v2069 = vunpack.c.h.b16 %v275
    %v2070 = vunpack.c.l.b16 %v276
    %v2071 = vunpack.c.h.b16 %v276
    %v2072 = vunpack.c.l.b16 %v277
    %v2073 = vunpack.c.h.b16 %v277
    %v2074 = vunpack.c.l.b16 %v278
    %v2075 = vunpack.c.h.b16 %v278
    %v2076 = vunpack.c.l.b16 %v279
    %v2077 = vunpack.c.h.b16 %v279
    %v2078 = vunpack.c.l.b16 %v280
    %v2079 = vunpack.c.h.b16 %v280
    %v2080 = vunpack.c.l.b16 %v281
    %v2081 = vunpack.c.h.b16 %v281
    %v2082 = vunpack.c.l.b16 %v282
    %v2083 = vunpack.c.h.b16 %v282
    %v2084 = vunpack.c.l.b16 %v283
    %v2085 = vunpack.c.h.b16 %v283
    %v2086 = vunpack.c.l.b16 %v284
    %v2087 = vunpack.c.h.b16 %v284
    %v2088 = vunpack.c.l.b16 %v285
    %v2089 = vunpack.c.h.b16 %v285
    %v2090 = vunpack.c.l.b16 %v286
    %v2091 = vunpack.c.h.b16 %v286
    %v2092 = vunpack.c.l.b16 %v287
    %v2093 = vunpack.c.h.b16 %v287
    %v2094 = vunpack.c.l.b16 %v288
    %v2095 = vunpack.c.h.b16 %v288
    %v2096 = vunpack.c.l.b16 %v289
    %v2097 = vunpack.c.h.b16 %v289
    %v2098 = vunpack.c.l.b16 %v290
    %v2099 = vunpack.c.h.b16 %v290
    %v2100 = vunpack.c.l.b16 %v291
    %v2101 = vunpack.c.h.b16 %v291
    %v2102 = vunpack.c.l.b16 %v292
    %v2103 = vunpack.c.h.b16 %v292
    %v2104 = vunpack.c.l.b16 %v293
    %v2105 = vunpack.c.h.b16 %v293
    %v2106 = vunpack.c.l.b16 %v294
    %v2107 = vunpack.c.h.b16 %v294
    %v2108 = vunpack.c.l.b16 %v295
    %v2109 = vunpack.c.h.b16 %v295
    %v2110 = vunpack.c.l.b16 %v296
    %v2111 = vunpack.c.h.b16 %v296
    %v2112 = vunpack.c.l.b16 %v297
    %v2113 = vunpack.c.h.b16 %v297
    %v2114 = vunpack.c.l.b16 %v298
    %v2115 = vunpack.c.h.b16 %v298
    %v2116 = vunpack.c.l.b16 %v299
    %v2117 = vunpack.c.h.b16 %v299
    %v2118 = vunpack.c.l.b16 %v300
    %v2119 = vunpack.c.h.b16 %v300
    %v2120 = vunpack.c.l.b16 %v301
    %v2121 = vunpack.c.h.b16 %v301
    %v2122 = vunpack.c.l.b16 %v302
    %v2123 = vunpack.c.h.b16 %v302
    %v2124 = vunpack.c.l.b16 %v303
    %v2125 = vunpack.c.h.b16 %v303
    %v2126 = vunpack.c.l.b16 %v304
    %v2127 = vunpack.c.h.b16 %v304
    %v2128 = vunpack.c.l.b16 %v305
    %v2129 = vunpack.c.h.b16 %v305
    %v2130 = vunpack.c.l.b16 %v306
    %v2131 = vunpack.c.h.b16 %v306
    %v2132 = vunpack.c.l.b16 %v307
    %v2133 = vunpack.c.h.b16 %v307
    %v2134 = vunpack.c.l.b16 %v308
    %v2135 = vunpack.c.h.b16 %v308
    %v2136 = vunpack.c.l.b16 %v309
    %v2137 = vunpack.c.h.b16 %v309
    %v2138 = vunpack.c.l.b16 %v310
    %v2139 = vunpack.c.h.b16 %v310
    %v2140 = vunpack.c.l.b16 %v311
    %v2141 = vunpack.c.h.b16 %v311
    %v2142 = vunpack.c.l.b16 %v312
    %v2143 = vunpack.c.h.b16 %v312
    %v2144 = vunpack.c.l.b16 %v313
    %v2145 = vunpack.c.h.b16 %v313
    %v2146 = vunpack.c.l.b16 %v314
    %v2147 = vunpack.c.h.b16 %v314
    %v2148 = vunpack.c.l.b16 %v315
    %v2149 = vunpack.c.h.b16 %v315
    %v2150 = vunpack.c.l.b16 %v316
    %v2151 = vunpack.c.h.b16 %v316
    %v2152 = vunpack.c.l.b16 %v317
    %v2153 = vunpack.c.h.b16 %v317
    %v2154 = vunpack.c.l.b16 %v318
    %v2155 = vunpack.c.h.b16 %v318
    %v2156 = vunpack.c.l.b16 %v319
    %v2157 = vunpack.c.h.b16 %v319
    %v2158 = vunpack.c.l.b16 %v320
    %v2159 = vunpack.c.h.b16 %v320
    %v2160 = vunpack.c.l.b16 %v321
    %v2161 = vunpack.c.h.b16 %v321
    %v2162 = vunpack.c.l.b16 %v322
    %v2163 = vunpack.c.h.b16 %v322
    %v2164 = vunpack.c.l.b16 %v323
    %v2165 = vunpack.c.h.b16 %v323
    %v2166 = vunpack.c.l.b16 %v324
    %v2167 = vunpack.c.h.b16 %v324
    %v2168 = vunpack.c.l.b16 %v325
    %v2169 = vunpack.c.h.b16 %v325
    %v2170 = vunpack.c.l.b16 %v326
    %v2171 = vunpack.c.h.b16 %v326
    %v2172 = vunpack.c.l.b16 %v327
    %v2173 = vunpack.c.h.b16 %v327
    %v2174 = vunpack.c.l.b16 %v328
    %v2175 = vunpack.c.h.b16 %v328
    %v2176 = vunpack.c.l.b16 %v329
    %v2177 = vunpack.c.h.b16 %v329
    %v2178 = vunpack.c.l.b16 %v330
    %v2179 = vunpack.c.h.b16 %v330
    %v2180 = vunpack.c.l.b16 %v331
    %v2181 = vunpack.c.h.b16 %v331
    %v2182 = vunpack.c.l.b16 %v332
    %v2183 = vunpack.c.h.b16 %v332
    %v2184 = vunpack.c.l.b16 %v333
    %v2185 = vunpack.c.h.b16 %v333
    %v2186 = vunpack.c.l.b16 %v334
    %v2187 = vunpack.c.h.b16 %v334
    %v2188 = vunpack.c.l.b16 %v335
    %v2189 = vunpack.c.h.b16 %v335
    %v2190 = vunpack.c.l.b16 %v336
    %v2191 = vunpack.c.h.b16 %v336
    %v2192 = vunpack.c.l.b16 %v337
    %v2193 = vunpack.c.h.b16 %v337
    %v2194 = vunpack.c.l.b16 %v338
    %v2195 = vunpack.c.h.b16 %v338
    %v2196 = vunpack.c.l.b16 %v339
    %v2197 = vunpack.c.h.b16 %v339
    %v2198 = vunpack.c.l.b16 %v340
    %v2199 = vunpack.c.h.b16 %v340
    %v2200 = vunpack.c.l.b16 %v341
    %v2201 = vunpack.c.h.b16 %v341
    %v2202 = vunpack.c.l.b16 %v342
    %v2203 = vunpack.c.h.b16 %v342
    %v2204 = vunpack.c.l.b16 %v343
    %v2205 = vunpack.c.h.b16 %v343
    %v2206 = vunpack.c.l.b16 %v344
    %v2207 = vunpack.c.h.b16 %v344
    %v2208 = vunpack.c.l.b16 %v345
    %v2209 = vunpack.c.h.b16 %v345
    %v2210 = vunpack.c.l.b16 %v346
    %v2211 = vunpack.c.h.b16 %v346
    %v2212 = vunpack.c.l.b16 %v347
    %v2213 = vunpack.c.h.b16 %v347
    %v2214 = vunpack.c.l.b16 %v348
    %v2215 = vunpack.c.h.b16 %v348
    %v2216 = vunpack.c.l.b16 %v349
    %v2217 = vunpack.c.h.b16 %v349
    %v2218 = vunpack.c.l.b16 %v350
    %v2219 = vunpack.c.h.b16 %v350
    %v2220 = vunpack.c.l.b16 %v351
    %v2221 = vunpack.c.h.b16 %v351
    %v2222 = vunpack.c.l.b16 %v352
    %v2223 = vunpack.c.h.b16 %v352
    %v2224 = vunpack.c.l.b16 %v353
    %v2225 = vunpack.c.h.b16 %v353
    %v2226 = vunpack.c.l.b16 %v354
    %v2227 = vunpack.c.h.b16 %v354
    %v2228 = vunpack.c.l.b16 %v355
    %v2229 = vunpack.c.h.b16 %v355
    %v2230 = vunpack.c.l.b16 %v356
    %v2231 = vunpack.c.h.b16 %v356
    %v2232 = vunpack.c.l.b16 %v357
    %v2233 = vunpack.c.h.b16 %v357
    %v2234 = vunpack.c.l.b16 %v358
    %v2235 = vunpack.c.h.b16 %v358
    %v2236 = vunpack.c.l.b16 %v359
    %v2237 = vunpack.c.h.b16 %v359
    %v2238 = vunpack.c.l.b16 %v360
    %v2239 = vunpack.c.h.b16 %v360
    %v2240 = vunpack.c.l.b16 %v361
    %v2241 = vunpack.c.h.b16 %v361
    %v2242 = vunpack.c.l.b16 %v362
    %v2243 = vunpack.c.h.b16 %v362
    %v2244 = vunpack.c.l.b16 %v363
    %v2245 = vunpack.c.h.b16 %v363
    %v2246 = vunpack.c.l.b16 %v364
    %v2247 = vunpack.c.h.b16 %v364
    %v2248 = vunpack.c.l.b16 %v365
    %v2249 = vunpack.c.h.b16 %v365
    %v2250 = vunpack.c.l.b16 %v366
    %v2251 = vunpack.c.h.b16 %v366
    %v2252 = vunpack.c.l.b16 %v367
    %v2253 = vunpack.c.h.b16 %v367
    %v2254 = vunpack.c.l.b16 %v368
    %v2255 = vunpack.c.h.b16 %v368
    %v2256 = vunpack.c.l.b16 %v369
    %v2257 = vunpack.c.h.b16 %v369
    %v2258 = vunpack.c.l.b16 %v370
    %v2259 = vunpack.c.h.b16 %v370
    %v2260 = vunpack.c.l.b16 %v371
    %v2261 = vunpack.c.h.b16 %v371
    %v2262 = vunpack.c.l.b16 %v372
    %v2263 = vunpack.c.h.b16 %v372
    %v2264 = vunpack.c.l.b16 %v373
    %v2265 = vunpack.c.h.b16 %v373
    %v2266 = vunpack.c.l.b16 %v374
    %v2267 = vunpack.c.h.b16 %v374
    %v2268 = vunpack.c.l.b16 %v375
    %v2269 = vunpack.c.h.b16 %v375
    %v2270 = vunpack.c.l.b16 %v376
    %v2271 = vunpack.c.h.b16 %v376
    %v2272 = vunpack.c.l.b16 %v377
    %v2273 = vunpack.c.h.b16 %v377
    %v2274 = vunpack.c.l.b16 %v378
    %v2275 = vunpack.c.h.b16 %v378
    %v2276 = vunpack.c.l.b16 %v379
    %v2277 = vunpack.c.h.b16 %v379
    %v2278 = vunpack.c.l.b16 %v380
    %v2279 = vunpack.c.h.b16 %v380
    %v2280 = vunpack.c.l.b16 %v381
    %v2281 = vunpack.c.h.b16 %v381
    %v2282 = vunpack.c.l.b16 %v382
    %v2283 = vunpack.c.h.b16 %v382
    %v2284 = vunpack.c.l.b16 %v383
    %v2285 = vunpack.c.h.b16 %v383
    %v2286 = vunpack.c.l.b16 %v384
    %v2287 = vunpack.c.h.b16 %v384
    %v2288 = vunpack.c.l.b16 %v385
    %v2289 = vunpack.c.h.b16 %v385
    %v2290 = vunpack.c.l.b16 %v386
    %v2291 = vunpack.c.h.b16 %v386
    %v2292 = vunpack.c.l.b16 %v387
    %v2293 = vunpack.c.h.b16 %v387
    %v2294 = vunpack.c.l.b16 %v388
    %v2295 = vunpack.c.h.b16 %v388
    %v2296 = vunpack.c.l.b16 %v389
    %v2297 = vunpack.c.h.b16 %v389
    %v2298 = vunpack.c.l.b16 %v390
    %v2299 = vunpack.c.h.b16 %v390
    %v2300 = vunpack.c.l.b16 %v391
    %v2301 = vunpack.c.h.b16 %v391
    %v2302 = vunpack.c.l.b16 %v392
    %v2303 = vunpack.c.h.b16 %v392
    %v2304 = vunpack.c.l.b16 %v393
    %v2305 = vunpack.c.h.b16 %v393
    %v2306 = vunpack.c.l.b16 %v394
    %v2307 = vunpack.c.h.b16 %v394
    %v2308 = vunpack.c.l.b16 %v395
    %v2309 = vunpack.c.h.b16 %v395
    %v2310 = vunpack.c.l.b16 %v396
    %v2311 = vunpack.c.h.b16 %v396
    %v2312 = vunpack.c.l.b16 %v397
    %v2313 = vunpack.c.h.b16 %v397
    %v2314 = vunpack.c.l.b16 %v398
    %v2315 = vunpack.c.h.b16 %v398
    %v2316 = vunpack.c.l.b16 %v399
    %v2317 = vunpack.c.h.b16 %v399
    %v2318 = vunpack.c.l.b16 %v400
    %v2319 = vunpack.c.h.b16 %v400
    %v2320 = vunpack.c.l.b16 %v401
    %v2321 = vunpack.c.h.b16 %v401
    %v2322 = vunpack.c.l.b16 %v402
    %v2323 = vunpack.c.h.b16 %v402
    %v2324 = vunpack.c.l.b16 %v403
    %v2325 = vunpack.c.h.b16 %v403
    %v2326 = vunpack.c.l.b16 %v404
    %v2327 = vunpack.c.h.b16 %v404
    %v2328 = vunpack.c.l.b16 %v405
    %v2329 = vunpack.c.h.b16 %v405
    %v2330 = vunpack.c.l.b16 %v406
    %v2331 = vunpack.c.h.b16 %v406
    %v2332 = vunpack.c.l.b16 %v407
    %v2333 = vunpack.c.h.b16 %v407
    %v2334 = vunpack.c.l.b16 %v408
    %v2335 = vunpack.c.h.b16 %v408
    %v2336 = vunpack.c.l.b16 %v409
    %v2337 = vunpack.c.h.b16 %v409
    %v2338 = vunpack.c.l.b16 %v410
    %v2339 = vunpack.c.h.b16 %v410
    %v2340 = vunpack.c.l.b16 %v411
    %v2341 = vunpack.c.h.b16 %v411
    %v2342 = vunpack.c.l.b16 %v412
    %v2343 = vunpack.c.h.b16 %v412
    %v2344 = vunpack.c.l.b16 %v413
    %v2345 = vunpack.c.h.b16 %v413
    %v2346 = vunpack.c.l.b16 %v414
    %v2347 = vunpack.c.h.b16 %v414
    %v2348 = vunpack.c.l.b16 %v415
    %v2349 = vunpack.c.h.b16 %v415
    %v2350 = vunpack.c.l.b16 %v416
    %v2351 = vunpack.c.h.b16 %v416
    %v2352 = vunpack.c.l.b16 %v417
    %v2353 = vunpack.c.h.b16 %v417
    %v2354 = vunpack.c.l.b16 %v418
    %v2355 = vunpack.c.h.b16 %v418
    %v2356 = vunpack.c.l.b16 %v419
    %v2357 = vunpack.c.h.b16 %v419
    %v2358 = vunpack.c.l.b16 %v420
    %v2359 = vunpack.c.h.b16 %v420
    %v2360 = vunpack.c.l.b16 %v421
    %v2361 = vunpack.c.h.b16 %v421
    %v2362 = vunpack.c.l.b16 %v422
    %v2363 = vunpack.c.h.b16 %v422
    %v2364 = vunpack.c.l.b16 %v423
    %v2365 = vunpack.c.h.b16 %v423
    %v2366 = vunpack.c.l.b16 %v424
    %v2367 = vunpack.c.h.b16 %v424
    %v2368 = vunpack.c.l.b16 %v425
    %v2369 = vunpack.c.h.b16 %v425
    %v2370 = vunpack.c.l.b16 %v426
    %v2371 = vunpack.c.h.b16 %v426
    %v2372 = vunpack.c.l.b16 %v427
    %v2373 = vunpack.c.h.b16 %v427
    %v2374 = vunpack.c.l.b16 %v428
    %v2375 = vunpack.c.h.b16 %v428
    %v2376 = vunpack.c.l.b16 %v429
    %v2377 = vunpack.c.h.b16 %v429
    %v2378 = vunpack.c.l.b16 %v430
    %v2379 = vunpack.c.h.b16 %v430
    %v2380 = vunpack.c.l.b16 %v431
    %v2381 = vunpack.c.h.b16 %v431
    %v2382 = vunpack.c.l.b16 %v432
    %v2383 = vunpack.c.h.b16 %v432
    %v2384 = vunpack.c.l.b16 %v433
    %v2385 = vunpack.c.h.b16 %v433
    %v2386 = vunpack.c.l.b16 %v434
    %v2387 = vunpack.c.h.b16 %v434
    %v2388 = vunpack.c.l.b16 %v435
    %v2389 = vunpack.c.h.b16 %v435
    %v2390 = vunpack.c.l.b16 %v436
    %v2391 = vunpack.c.h.b16 %v436
    %v2392 = vunpack.c.l.b16 %v437
    %v2393 = vunpack.c.h.b16 %v437
    %v2394 = vunpack.c.l.b16 %v438
    %v2395 = vunpack.c.h.b16 %v438
    %v2396 = vunpack.c.l.b16 %v439
    %v2397 = vunpack.c.h.b16 %v439
    %v2398 = vunpack.c.l.b16 %v440
    %v2399 = vunpack.c.h.b16 %v440
    %v2400 = vunpack.c.l.b16 %v441
    %v2401 = vunpack.c.h.b16 %v441
    %v2402 = vunpack.c.l.b16 %v442
    %v2403 = vunpack.c.h.b16 %v442
    %v2404 = vunpack.c.l.b16 %v443
    %v2405 = vunpack.c.h.b16 %v443
    %v2406 = vunpack.c.l.b16 %v444
    %v2407 = vunpack.c.h.b16 %v444
    %v2408 = vunpack.c.l.b16 %v445
    %v2409 = vunpack.c.h.b16 %v445
    %v2410 = vunpack.c.l.b16 %v446
    %v2411 = vunpack.c.h.b16 %v446
    %v2412 = vunpack.c.l.b16 %v447
    %v2413 = vunpack.c.h.b16 %v447
    %v2414 = vunpack.c.l.b16 %v448
    %v2415 = vunpack.c.h.b16 %v448
    %v2416 = vunpack.c.l.b16 %v449
    %v2417 = vunpack.c.h.b16 %v449
    %v2418 = vunpack.c.l.b16 %v450
    %v2419 = vunpack.c.h.b16 %v450
    %v2420 = vunpack.c.l.b16 %v451
    %v2421 = vunpack.c.h.b16 %v451
    %v2422 = vunpack.c.l.b16 %v452
    %v2423 = vunpack.c.h.b16 %v452
    %v2424 = vunpack.c.l.b16 %v453
    %v2425 = vunpack.c.h.b16 %v453
    %v2426 = vunpack.c.l.b16 %v454
    %v2427 = vunpack.c.h.b16 %v454
    %v2428 = vunpack.c.l.b16 %v455
    %v2429 = vunpack.c.h.b16 %v455
    %v2430 = vunpack.c.l.b16 %v456
    %v2431 = vunpack.c.h.b16 %v456
    %v2432 = vunpack.c.l.b16 %v457
    %v2433 = vunpack.c.h.b16 %v457
    %v2434 = vunpack.c.l.b16 %v458
    %v2435 = vunpack.c.h.b16 %v458
    %v2436 = vunpack.c.l.b16 %v459
    %v2437 = vunpack.c.h.b16 %v459
    %v2438 = vunpack.c.l.b16 %v460
    %v2439 = vunpack.c.h.b16 %v460
    %v2440 = vunpack.c.l.b16 %v461
    %v2441 = vunpack.c.h.b16 %v461
    %v2442 = vunpack.c.l.b16 %v462
    %v2443 = vunpack.c.h.b16 %v462
    %v2444 = vunpack.c.l.b16 %v463
    %v2445 = vunpack.c.h.b16 %v463
    %v2446 = vunpack.c.l.b16 %v464
    %v2447 = vunpack.c.h.b16 %v464
    %v2448 = vunpack.c.l.b16 %v465
    %v2449 = vunpack.c.h.b16 %v465
    %v2450 = vunpack.c.l.b16 %v466
    %v2451 = vunpack.c.h.b16 %v466
    %v2452 = vunpack.c.l.b16 %v467
    %v2453 = vunpack.c.h.b16 %v467
    %v2454 = vunpack.c.l.b16 %v468
    %v2455 = vunpack.c.h.b16 %v468
    %v2456 = vunpack.c.l.b16 %v469
    %v2457 = vunpack.c.h.b16 %v469
    %v2458 = vunpack.c.l.b16 %v470
    %v2459 = vunpack.c.h.b16 %v470
    %v2460 = vunpack.c.l.b16 %v471
    %v2461 = vunpack.c.h.b16 %v471
    %v2462 = vunpack.c.l.b16 %v472
    %v2463 = vunpack.c.h.b16 %v472
    %v2464 = vunpack.c.l.b16 %v473
    %v2465 = vunpack.c.h.b16 %v473
    %v2466 = vunpack.c.l.b16 %v474
    %v2467 = vunpack.c.h.b16 %v474
    %v2468 = vunpack.c.l.b16 %v475
    %v2469 = vunpack.c.h.b16 %v475
    %v2470 = vunpack.c.l.b16 %v476
    %v2471 = vunpack.c.h.b16 %v476
    %v2472 = vunpack.c.l.b16 %v477
    %v2473 = vunpack.c.h.b16 %v477
    %v2474 = vunpack.c.l.b16 %v478
    %v2475 = vunpack.c.h.b16 %v478
    %v2476 = vunpack.c.l.b16 %v479
    %v2477 = vunpack.c.h.b16 %v479
    %v2478 = vunpack.c.l.b16 %v480
    %v2479 = vunpack.c.h.b16 %v480
    %v2480 = vunpack.c.l.b16 %v481
    %v2481 = vunpack.c.h.b16 %v481
    %v2482 = vunpack.c.l.b16 %v482
    %v2483 = vunpack.c.h.b16 %v482
    %v2484 = vunpack.c.l.b16 %v483
    %v2485 = vunpack.c.h.b16 %v483
    %v2486 = vunpack.c.l.b16 %v484
    %v2487 = vunpack.c.h.b16 %v484
    %v2488 = vunpack.c.l.b16 %v485
    %v2489 = vunpack.c.h.b16 %v485
    %v2490 = vunpack.c.l.b16 %v486
    %v2491 = vunpack.c.h.b16 %v486
    %v2492 = vunpack.c.l.b16 %v487
    %v2493 = vunpack.c.h.b16 %v487
    %v2494 = vunpack.c.l.b16 %v488
    %v2495 = vunpack.c.h.b16 %v488
    %v2496 = vunpack.c.l.b16 %v489
    %v2497 = vunpack.c.h.b16 %v489
    %v2498 = vunpack.c.l.b16 %v490
    %v2499 = vunpack.c.h.b16 %v490
    %v2500 = vunpack.c.l.b16 %v491
    %v2501 = vunpack.c.h.b16 %v491
    %v2502 = vunpack.c.l.b16 %v492
    %v2503 = vunpack.c.h.b16 %v492
    %v2504 = vunpack.c.l.b16 %v493
    %v2505 = vunpack.c.h.b16 %v493
    %v2506 = vunpack.c.l.b16 %v494
    %v2507 = vunpack.c.h.b16 %v494
    %v2508 = vunpack.c.l.b16 %v495
    %v2509 = vunpack.c.h.b16 %v495
    %v2510 = vunpack.c.l.b16 %v496
    %v2511 = vunpack.c.h.b16 %v496
    %v2512 = vunpack.c.l.b16 %v497
    %v2513 = vunpack.c.h.b16 %v497
    %v2514 = vunpack.c.l.b16 %v498
    %v2515 = vunpack.c.h.b16 %v498
    %v2516 = vunpack.c.l.b16 %v499
    %v2517 = vunpack.c.h.b16 %v499
    %v2518 = vunpack.c.l.b16 %v500
    %v2519 = vunpack.c.h.b16 %v500
    %v2520 = vunpack.c.l.b16 %v501
    %v2521 = vunpack.c.h.b16 %v501
    %v2522 = vunpack.c.l.b16 %v502
    %v2523 = vunpack.c.h.b16 %v502
    %v2524 = vunpack.c.l.b16 %v503
    %v2525 = vunpack.c.h.b16 %v503
    %v2526 = vunpack.c.l.b16 %v504
    %v2527 = vunpack.c.h.b16 %v504
    %v2528 = vunpack.c.l.b16 %v505
    %v2529 = vunpack.c.h.b16 %v505
    %v2530 = vunpack.c.l.b16 %v506
    %v2531 = vunpack.c.h.b16 %v506
    %v2532 = vunpack.c.l.b16 %v507
    %v2533 = vunpack.c.h.b16 %v507
    %v2534 = vunpack.c.l.b16 %v508
    %v2535 = vunpack.c.h.b16 %v508
    %v2536 = vunpack.c.l.b16 %v509
    %v2537 = vunpack.c.h.b16 %v509
    %v2538 = vunpack.c.l.b16 %v510
    %v2539 = vunpack.c.h.b16 %v510
    %v2540 = vunpack.c.l.b16 %v511
    %v2541 = vunpack.c.h.b16 %v511
    %v2542 = vunpack.c.l.b16 %v512
    %v2543 = vunpack.c.h.b16 %v512
    %v2544 = vunpack.c.l.b16 %v513
    %v2545 = vunpack.c.h.b16 %v513
    %v2546 = vunpack.c.l.b16 %v514
    %v2547 = vunpack.c.h.b16 %v514
    %v2548 = vunpack.c.l.b16 %v515
    %v2549 = vunpack.c.h.b16 %v515
    %v2550 = vunpack.c.l.b16 %v516
    %v2551 = vunpack.c.h.b16 %v516
    %v2552 = vunpack.c.l.b16 %v517
    %v2553 = vunpack.c.h.b16 %v517
    %v2554 = vunpack.c.l.b16 %v518
    %v2555 = vunpack.c.h.b16 %v518
    %v2556 = vunpack.c.l.b16 %v519
    %v2557 = vunpack.c.h.b16 %v519
    %v2558 = vunpack.c.l.b16 %v520
    %v2559 = vunpack.c.h.b16 %v520
    %v2560 = vunpack.c.l.b16 %v521
    %v2561 = vunpack.c.h.b16 %v521
    %v2562 = vunpack.c.l.b16 %v522
    %v2563 = vunpack.c.h.b16 %v522
    %v2564 = vunpack.c.l.b16 %v523
    %v2565 = vunpack.c.h.b16 %v523
    %v2566 = vunpack.c.l.b16 %v524
    %v2567 = vunpack.c.h.b16 %v524
    %v2568 = vunpack.c.l.b16 %v525
    %v2569 = vunpack.c.h.b16 %v525
    %v2570 = vunpack.c.l.b16 %v526
    %v2571 = vunpack.c.h.b16 %v526
    %v2572 = vunpack.c.l.b16 %v527
    %v2573 = vunpack.c.h.b16 %v527
    %v2574 = vunpack.c.l.b16 %v528
    %v2575 = vunpack.c.h.b16 %v528
    %v2576 = vunpack.c.l.b16 %v529
    %v2577 = vunpack.c.h.b16 %v529
    %v2578 = vunpack.c.l.b16 %v530
    %v2579 = vunpack.c.h.b16 %v530
    %v2580 = vunpack.c.l.b16 %v531
    %v2581 = vunpack.c.h.b16 %v531
    %v2582 = vunpack.c.l.b16 %v532
    %v2583 = vunpack.c.h.b16 %v532
    %v2584 = vunpack.c.l.b16 %v533
    %v2585 = vunpack.c.h.b16 %v533
    %v2586 = vunpack.c.l.b16 %v534
    %v2587 = vunpack.c.h.b16 %v534
    %v2588 = vunpack.c.l.b16 %v535
    %v2589 = vunpack.c.h.b16 %v535
    %v2590 = vunpack.c.l.b16 %v536
    %v2591 = vunpack.c.h.b16 %v536
    %v2592 = vunpack.c.l.b16 %v537
    %v2593 = vunpack.c.h.b16 %v537
    %v2594 = vunpack.c.l.b16 %v538
    %v2595 = vunpack.c.h.b16 %v538
    %v2596 = vunpack.c.l.b16 %v539
    %v2597 = vunpack.c.h.b16 %v539
    %v2598 = vunpack.c.l.b16 %v540
    %v2599 = vunpack.c.h.b16 %v540
    %v2600 = vunpack.c.l.b16 %v541
    %v2601 = vunpack.c.h.b16 %v541
    %v2602 = vunpack.c.l.b16 %v542
    %v2603 = vunpack.c.h.b16 %v542
    %v2604 = vunpack.c.l.b16 %v543
    %v2605 = vunpack.c.h.b16 %v543
    %v2606 = vunpack.c.l.b16 %v544
    %v2607 = vunpack.c.h.b16 %v544
    %v2608 = vunpack.c.l.b16 %v545
    %v2609 = vunpack.c.h.b16 %v545
    %v2610 = vunpack.c.l.b16 %v546
    %v2611 = vunpack.c.h.b16 %v546
    %v2612 = vunpack.c.l.b16 %v547
    %v2613 = vunpack.c.h.b16 %v547
    %v2614 = vunpack.c.l.b16 %v548
    %v2615 = vunpack.c.h.b16 %v548
    %v2616 = vunpack.c.l.b16 %v549
    %v2617 = vunpack.c.h.b16 %v549
    %v2618 = vunpack.c.l.b16 %v550
    %v2619 = vunpack.c.h.b16 %v550
    %v2620 = vunpack.c.l.b16 %v551
    %v2621 = vunpack.c.h.b16 %v551
    %v2622 = vunpack.c.l.b16 %v552
    %v2623 = vunpack.c.h.b16 %v552
    %v2624 = vunpack.c.l.b16 %v553
    %v2625 = vunpack.c.h.b16 %v553
    %v2626 = vunpack.c.l.b16 %v554
    %v2627 = vunpack.c.h.b16 %v554
    %v2628 = vunpack.c.l.b16 %v555
    %v2629 = vunpack.c.h.b16 %v555
    %v2630 = vunpack.c.l.b16 %v556
    %v2631 = vunpack.c.h.b16 %v556
    %v2632 = vunpack.c.l.b16 %v557
    %v2633 = vunpack.c.h.b16 %v557
    %v2634 = vunpack.c.l.b16 %v558
    %v2635 = vunpack.c.h.b16 %v558
    %v2636 = vunpack.c.l.b16 %v559
    %v2637 = vunpack.c.h.b16 %v559
    %v2638 = vunpack.c.l.b16 %v560
    %v2639 = vunpack.c.h.b16 %v560
    %v2640 = vunpack.c.l.b16 %v561
    %v2641 = vunpack.c.h.b16 %v561
    %v2642 = vunpack.c.l.b16 %v562
    %v2643 = vunpack.c.h.b16 %v562
    %v2644 = vunpack.c.l.b16 %v563
    %v2645 = vunpack.c.h.b16 %v563
    %v2646 = vunpack.c.l.b16 %v564
    %v2647 = vunpack.c.h.b16 %v564
    %v2648 = vunpack.c.l.b16 %v565
    %v2649 = vunpack.c.h.b16 %v565
    %v2650 = vunpack.c.l.b16 %v566
    %v2651 = vunpack.c.h.b16 %v566
    %v2652 = vunpack.c.l.b16 %v567
    %v2653 = vunpack.c.h.b16 %v567
    %v2654 = vunpack.c.l.b16 %v568
    %v2655 = vunpack.c.h.b16 %v568
    %v2656 = vunpack.c.l.b16 %v569
    %v2657 = vunpack.c.h.b16 %v569
    %v2658 = vunpack.c.l.b16 %v570
    %v2659 = vunpack.c.h.b16 %v570
    %v2660 = vunpack.c.l.b16 %v571
    %v2661 = vunpack.c.h.b16 %v571
    %v2662 = vunpack.c.l.b16 %v572
    %v2663 = vunpack.c.h.b16 %v572
    %v2664 = vunpack.c.l.b16 %v573
    %v2665 = vunpack.c.h.b16 %v573
    %v2666 = vunpack.c.l.b16 %v574
    %v2667 = vunpack.c.h.b16 %v574
    %v2668 = vunpack.c.l.b16 %v575
    %v2669 = vunpack.c.h.b16 %v575
    %v2670 = vunpack.c.l.b16 %v576
    %v2671 = vunpack.c.h.b16 %v576
    %v2672 = vunpack.c.l.b16 %v577
    %v2673 = vunpack.c.h.b16 %v577
    %v2674 = vunpack.c.l.b16 %v578
    %v2675 = vunpack.c.h.b16 %v578
    %v2676 = vunpack.c.l.b16 %v579
    %v2677 = vunpack.c.h.b16 %v579
    %v2678 = vunpack.c.l.b16 %v580
    %v2679 = vunpack.c.h.b16 %v580
    %v2680 = vunpack.c.l.b16 %v581
    %v2681 = vunpack.c.h.b16 %v581
    %v2682 = vunpack.c.l.b16 %v582
    %v2683 = vunpack.c.h.b16 %v582
    %v2684 = vunpack.c.l.b16 %v583
    %v2685 = vunpack.c.h.b16 %v583
    %v2686 = vunpack.c.l.b16 %v584
    %v2687 = vunpack.c.h.b16 %v584
    %v2688 = vunpack.c.l.b16 %v585
    %v2689 = vunpack.c.h.b16 %v585
    %v2690 = vunpack.c.l.b16 %v586
    %v2691 = vunpack.c.h.b16 %v586
    %v2692 = vunpack.c.l.b16 %v587
    %v2693 = vunpack.c.h.b16 %v587
    %v2694 = vunpack.c.l.b16 %v588
    %v2695 = vunpack.c.h.b16 %v588
    %v2696 = vunpack.c.l.b16 %v589
    %v2697 = vunpack.c.h.b16 %v589
    %v2698 = vunpack.c.l.b16 %v590
    %v2699 = vunpack.c.h.b16 %v590
    %v2700 = vunpack.c.l.b16 %v591
    %v2701 = vunpack.c.h.b16 %v591
    %v2702 = vunpack.c.l.b16 %v592
    %v2703 = vunpack.c.h.b16 %v592
    %v2704 = vunpack.c.l.b16 %v593
    %v2705 = vunpack.c.h.b16 %v593
    %v2706 = vunpack.c.l.b16 %v594
    %v2707 = vunpack.c.h.b16 %v594
    %v2708 = vunpack.c.l.b16 %v595
    %v2709 = vunpack.c.h.b16 %v595
    %v2710 = vunpack.c.l.b16 %v596
    %v2711 = vunpack.c.h.b16 %v596
    %v2712 = vunpack.c.l.b16 %v597
    %v2713 = vunpack.c.h.b16 %v597
    %v2714 = vunpack.c.l.b16 %v598
    %v2715 = vunpack.c.h.b16 %v598
    %v2716 = vunpack.c.l.b16 %v599
    %v2717 = vunpack.c.h.b16 %v599
    %v2718 = vunpack.c.l.b16 %v600
    %v2719 = vunpack.c.h.b16 %v600
    %v2720 = vunpack.c.l.b16 %v601
    %v2721 = vunpack.c.h.b16 %v601
    %v2722 = vunpack.c.l.b16 %v602
    %v2723 = vunpack.c.h.b16 %v602
    %v2724 = vunpack.c.l.b16 %v603
    %v2725 = vunpack.c.h.b16 %v603
    %v2726 = vunpack.c.l.b16 %v604
    %v2727 = vunpack.c.h.b16 %v604
    %v2728 = vunpack.c.l.b16 %v605
    %v2729 = vunpack.c.h.b16 %v605
    %v2730 = vunpack.c.l.b16 %v606
    %v2731 = vunpack.c.h.b16 %v606
    %v2732 = vunpack.c.l.b16 %v607
    %v2733 = vunpack.c.h.b16 %v607
    %v2734 = vunpack.c.l.b16 %v608
    %v2735 = vunpack.c.h.b16 %v608
    %v2736 = vunpack.c.l.b16 %v609
    %v2737 = vunpack.c.h.b16 %v609
    %v2738 = vunpack.c.l.b16 %v610
    %v2739 = vunpack.c.h.b16 %v610
    %v2740 = vunpack.c.l.b16 %v611
    %v2741 = vunpack.c.h.b16 %v611
    %v2742 = vunpack.c.l.b16 %v612
    %v2743 = vunpack.c.h.b16 %v612
    %v2744 = vunpack.c.l.b16 %v613
    %v2745 = vunpack.c.h.b16 %v613
    %v2746 = vunpack.c.l.b16 %v614
    %v2747 = vunpack.c.h.b16 %v614
    %v2748 = vunpack.c.l.b16 %v615
    %v2749 = vunpack.c.h.b16 %v615
    %v2750 = vunpack.c.l.b16 %v616
    %v2751 = vunpack.c.h.b16 %v616
    %v2752 = vunpack.c.l.b16 %v617
    %v2753 = vunpack.c.h.b16 %v617
    %v2754 = vunpack.c.l.b16 %v618
    %v2755 = vunpack.c.h.b16 %v618
    %v2756 = vunpack.c.l.b16 %v619
    %v2757 = vunpack.c.h.b16 %v619
    %v2758 = vunpack.c.l.b16 %v620
    %v2759 = vunpack.c.h.b16 %v620
    %v2760 = vunpack.c.l.b16 %v621
    %v2761 = vunpack.c.h.b16 %v621
    %v2762 = vunpack.c.l.b16 %v622
    %v2763 = vunpack.c.h.b16 %v622
    %v2764 = vunpack.c.l.b16 %v623
    %v2765 = vunpack.c.h.b16 %v623
    %v2766 = vunpack.c.l.b16 %v624
    %v2767 = vunpack.c.h.b16 %v624
    %v2768 = vunpack.c.l.b16 %v625
    %v2769 = vunpack.c.h.b16 %v625
    %v2770 = vunpack.c.l.b16 %v626
    %v2771 = vunpack.c.h.b16 %v626
    %v2772 = vunpack.c.l.b16 %v627
    %v2773 = vunpack.c.h.b16 %v627
    %v2774 = vunpack.c.l.b16 %v628
    %v2775 = vunpack.c.h.b16 %v628
    %v2776 = vunpack.c.l.b16 %v629
    %v2777 = vunpack.c.h.b16 %v629
    %v2778 = vunpack.c.l.b16 %v630
    %v2779 = vunpack.c.h.b16 %v630
    %v2780 = vunpack.c.l.b16 %v631
    %v2781 = vunpack.c.h.b16 %v631
    %v2782 = vunpack.c.l.b16 %v632
    %v2783 = vunpack.c.h.b16 %v632
    %v2784 = vunpack.c.l.b16 %v633
    %v2785 = vunpack.c.h.b16 %v633
    %v2786 = vunpack.c.l.b16 %v634
    %v2787 = vunpack.c.h.b16 %v634
    %v2788 = vunpack.c.l.b16 %v635
    %v2789 = vunpack.c.h.b16 %v635
    %v2790 = vunpack.c.l.b16 %v636
    %v2791 = vunpack.c.h.b16 %v636
    %v2792 = vunpack.c.l.b16 %v637
    %v2793 = vunpack.c.h.b16 %v637
    %v2794 = vunpack.c.l.b16 %v638
    %v2795 = vunpack.c.h.b16 %v638
    %v2796 = vunpack.c.l.b16 %v639
    %v2797 = vunpack.c.h.b16 %v639
    %v2798 = vunpack.c.l.b16 %v640
    %v2799 = vunpack.c.h.b16 %v640
    %v2800 = vunpack.c.l.b16 %v641
    %v2801 = vunpack.c.h.b16 %v641
    %v2802 = vunpack.c.l.b16 %v642
    %v2803 = vunpack.c.h.b16 %v642
    %v2804 = vunpack.c.l.b16 %v643
    %v2805 = vunpack.c.h.b16 %v643
    %v2806 = vunpack.c.l.b16 %v644
    %v2807 = vunpack.c.h.b16 %v644
    %v2808 = vunpack.c.l.b16 %v645
    %v2809 = vunpack.c.h.b16 %v645
    %v2810 = vunpack.c.l.b16 %v646
    %v2811 = vunpack.c.h.b16 %v646
    %v2812 = vunpack.c.l.b16 %v647
    %v2813 = vunpack.c.h.b16 %v647
    %v2814 = vunpack.c.l.b16 %v648
    %v2815 = vunpack.c.h.b16 %v648
    %v2816 = vunpack.c.l.b16 %v649
    %v2817 = vunpack.c.h.b16 %v649
    %v2818 = vunpack.c.l.b16 %v650
    %v2819 = vunpack.c.h.b16 %v650
    %v2820 = vunpack.c.l.b16 %v651
    %v2821 = vunpack.c.h.b16 %v651
    %v2822 = vunpack.c.l.b16 %v652
    %v2823 = vunpack.c.h.b16 %v652
    %v2824 = vunpack.c.l.b16 %v653
    %v2825 = vunpack.c.h.b16 %v653
    %v2826 = vunpack.c.l.b16 %v654
    %v2827 = vunpack.c.h.b16 %v654
    %v2828 = vunpack.c.l.b16 %v655
    %v2829 = vunpack.c.h.b16 %v655
    %v2830 = vunpack.c.l.b16 %v656
    %v2831 = vunpack.c.h.b16 %v656
    %v2832 = vunpack.c.l.b16 %v657
    %v2833 = vunpack.c.h.b16 %v657
    %v2834 = vunpack.c.l.b16 %v658
    %v2835 = vunpack.c.h.b16 %v658
    %v2836 = vunpack.c.l.b16 %v659
    %v2837 = vunpack.c.h.b16 %v659
    %v2838 = vunpack.c.l.b16 %v660
    %v2839 = vunpack.c.h.b16 %v660
    %v2840 = vunpack.c.l.b16 %v661
    %v2841 = vunpack.c.h.b16 %v661
    %v2842 = vunpack.c.l.b16 %v662
    %v2843 = vunpack.c.h.b16 %v662
    %v2844 = vunpack.c.l.b16 %v663
    %v2845 = vunpack.c.h.b16 %v663
    %v2846 = vunpack.c.l.b16 %v664
    %v2847 = vunpack.c.h.b16 %v664
    %v2848 = vunpack.c.l.b16 %v665
    %v2849 = vunpack.c.h.b16 %v665
    %v2850 = vunpack.c.l.b16 %v666
    %v2851 = vunpack.c.h.b16 %v666
    %v2852 = vunpack.c.l.b16 %v667
    %v2853 = vunpack.c.h.b16 %v667
    %v2854 = vunpack.c.l.b16 %v668
    %v2855 = vunpack.c.h.b16 %v668
    %v2856 = vunpack.c.l.b16 %v669
    %v2857 = vunpack.c.h.b16 %v669
    %v2858 = vunpack.c.l.b16 %v670
    %v2859 = vunpack.c.h.b16 %v670
    %v2860 = vunpack.c.l.b16 %v671
    %v2861 = vunpack.c.h.b16 %v671
    %v2862 = vunpack.c.l.b16 %v672
    %v2863 = vunpack.c.h.b16 %v672
    %v2864 = vunpack.c.l.b16 %v673
    %v2865 = vunpack.c.h.b16 %v673
    %v2866 = vunpack.c.l.b16 %v674
    %v2867 = vunpack.c.h.b16 %v674
    %v2868 = vunpack.c.l.b16 %v675
    %v2869 = vunpack.c.h.b16 %v675
    %v2870 = vunpack.c.l.b16 %v676
    %v2871 = vunpack.c.h.b16 %v676
    %v2872 = vunpack.c.l.b16 %v677
    %v2873 = vunpack.c.h.b16 %v677
    %v2874 = vunpack.c.l.b16 %v678
    %v2875 = vunpack.c.h.b16 %v678
    %v2876 = vunpack.c.l.b16 %v679
    %v2877 = vunpack.c.h.b16 %v679
    %v2878 = vunpack.c.l.b16 %v680
    %v2879 = vunpack.c.h.b16 %v680
    %v2880 = vunpack.c.l.b16 %v681
    %v2881 = vunpack.c.h.b16 %v681
    %v2882 = vunpack.c.l.b16 %v682
    %v2883 = vunpack.c.h.b16 %v682
    %v2884 = vunpack.c.l.b16 %v683
    %v2885 = vunpack.c.h.b16 %v683
    %v2886 = vunpack.c.l.b16 %v684
    %v2887 = vunpack.c.h.b16 %v684
    %v2888 = vunpack.c.l.b16 %v685
    %v2889 = vunpack.c.h.b16 %v685
    %v2890 = vunpack.c.l.b16 %v686
    %v2891 = vunpack.c.h.b16 %v686
    %v2892 = vunpack.c.l.b16 %v687
    %v2893 = vunpack.c.h.b16 %v687
    %v2894 = vunpack.c.l.b16 %v688
    %v2895 = vunpack.c.h.b16 %v688
    %v2896 = vunpack.c.l.b16 %v689
    %v2897 = vunpack.c.h.b16 %v689
    %v2898 = vunpack.c.l.b16 %v690
    %v2899 = vunpack.c.h.b16 %v690
    %v2900 = vunpack.c.l.b16 %v691
    %v2901 = vunpack.c.h.b16 %v691
    %v2902 = vunpack.c.l.b16 %v692
    %v2903 = vunpack.c.h.b16 %v692
    %v2904 = vunpack.c.l.b16 %v693
    %v2905 = vunpack.c.h.b16 %v693
    %v2906 = vunpack.c.l.b16 %v694
    %v2907 = vunpack.c.h.b16 %v694
    %v2908 = vunpack.c.l.b16 %v695
    %v2909 = vunpack.c.h.b16 %v695
    %v2910 = vunpack.c.l.b16 %v696
    %v2911 = vunpack.c.h.b16 %v696
    %v2912 = vunpack.c.l.b16 %v697
    %v2913 = vunpack.c.h.b16 %v697
    %v2914 = vunpack.c.l.b16 %v698
    %v2915 = vunpack.c.h.b16 %v698
    %v2916 = vunpack.c.l.b16 %v699
    %v2917 = vunpack.c.h.b16 %v699
    %v2918 = vunpack.c.l.b16 %v700
    %v2919 = vunpack.c.h.b16 %v700
    %v2920 = vpack.c.b16 %v1572, %v1568
    %v2921 = vpack.c.b16 %v1573, %v1569
    %v2922 = vpack.c.b16 %v1574, %v1570
    %v2923 = vpack.c.b16 %v1575, %v1571
    %v2924 = vpack.c.b16 %v1580, %v1576
    %v2925 = vpack.c.b16 %v1581, %v1577
    %v2926 = vpack.c.b16 %v1582, %v1578
    %v2927 = vpack.c.b16 %v1583, %v1579
    %v2928 = vpack.c.b16 %v1588, %v1584
    %v2929 = vpack.c.b16 %v1589, %v1585
    %v2930 = vpack.c.b16 %v1590, %v1586
    %v2931 = vpack.c.b16 %v1591, %v1587
    %v2932 = vpack.c.b16 %v1596, %v1592
    %v2933 = vpack.c.b16 %v1597, %v1593
    %v2934 = vpack.c.b16 %v1598, %v1594
    %v2935 = vpack.c.b16 %v1599, %v1595
    %v2936 = vpack.c.b16 %v1604, %v1600
    %v2937 = vpack.c.b16 %v1605, %v1601
    %v2938 = vpack.c.b16 %v1606, %v1602
    %v2939 = vpack.c.b16 %v1607, %v1603
    %v2940 = vpack.c.b16 %v1612, %v1608
    %v2941 = vpack.c.b16 %v1613, %v1609
    %v2942 = vpack.c.b16 %v1614, %v1610
    %v2943 = vpack.c.b16 %v1615, %v1611
    %v2944 = vpack.c.b16 %v1620, %v1616
    %v2945 = vpack.c.b16 %v1621, %v1617
    %v2946 = vpack.c.b16 %v1622, %v1618
    %v2947 = vpack.c.b16 %v1623, %v1619
    %v2948 = vpack.c.b16 %v1628, %v1624
    %v2949 = vpack.c.b16 %v1629, %v1625
    %v2950 = vpack.c.b16 %v1630, %v1626
    %v2951 = vpack.c.b16 %v1631, %v1627
    %v2952 = vpack.c.b16 %v1636, %v1632
    %v2953 = vpack.c.b16 %v1637, %v1633
    %v2954 = vpack.c.b16 %v1638, %v1634
    %v2955 = vpack.c.b16 %v1639, %v1635
    %v2956 = vpack.c.b16 %v1644, %v1640
    %v2957 = vpack.c.b16 %v1645, %v1641
    %v2958 = vpack.c.b16 %v1646, %v1642
    %v2959 = vpack.c.b16 %v1647, %v1643
    %v2960 = vpack.c.b16 %v1652, %v1648
    %v2961 = vpack.c.b16 %v1653, %v1649
    %v2962 = vpack.c.b16 %v1654, %v1650
    %v2963 = vpack.c.b16 %v1655, %v1651
    %v2964 = vpack.c.b16 %v1660, %v1656
    %v2965 = vpack.c.b16 %v1661, %v1657
    %v2966 = vpack.c.b16 %v1662, %v1658
    %v2967 = vpack.c.b16 %v1663, %v1659
    %v2968 = vpack.c.b16 %v1668, %v1664
    %v2969 = vpack.c.b16 %v1669, %v1665
    %v2970 = vpack.c.b16 %v1670, %v1666
    %v2971 = vpack.c.b16 %v1671, %v1667
    %v2972 = vpack.c.b16 %v1676, %v1672
    %v2973 = vpack.c.b16 %v1677, %v1673
    %v2974 = vpack.c.b16 %v1678, %v1674
    %v2975 = vpack.c.b16 %v1679, %v1675
    %v2976 = vpack.c.b16 %v1684, %v1680
    %v2977 = vpack.c.b16 %v1685, %v1681
    %v2978 = vpack.c.b16 %v1686, %v1682
    %v2979 = vpack.c.b16 %v1687, %v1683
    %v2980 = vpack.c.b16 %v1692, %v1688
    %v2981 = vpack.c.b16 %v1693, %v1689
    %v2982 = vpack.c.b16 %v1694, %v1690
    %v2983 = vpack.c.b16 %v1695, %v1691
    %v2984 = vpack.c.b16 %v1700, %v1696
    %v2985 = vpack.c.b16 %v1701, %v1697
    %v2986 = vpack.c.b16 %v1702, %v1698
    %v2987 = vpack.c.b16 %v1703, %v1699
    %v2988 = vpack.c.b16 %v1708, %v1704
    %v2989 = vpack.c.b16 %v1709, %v1705
    %v2990 = vpack.c.b16 %v1710, %v1706
    %v2991 = vpack.c.b16 %v1711, %v1707
    %v2992 = vpack.c.b16 %v1716, %v1712
    %v2993 = vpack.c.b16 %v1717, %v1713
    %v2994 = vpack.c.b16 %v1718, %v1714
    %v2995 = vpack.c.b16 %v1719, %v1715
    %v2996 = vpack.c.b16 %v1724, %v1720
    %v2997 = vpack.c.b16 %v1725, %v1721
    %v2998 = vpack.c.b16 %v1726, %v1722
    %v2999 = vpack.c.b16 %v1727, %v1723
    %v3000 = vpack.c.b16 %v1732, %v1728
    %v3001 = vpack.c.b16 %v1733, %v1729
    %v3002 = vpack.c.b16 %v1734, %v1730
    %v3003 = vpack.c.b16 %v1735, %v1731
    %v3004 = vpack.c.b16 %v1740, %v1736
    %v3005 = vpack.c.b16 %v1741, %v1737
    %v3006 = vpack.c.b16 %v1742, %v1738
    %v3007 = vpack.c.b16 %v1743, %v1739
    %v3008 = vpack.c.b16 %v1748, %v1744
    %v3009 = vpack.c.b16 %v1749, %v1745
    %v3010 = vpack.c.b16 %v1750, %v1746
    %v3011 = vpack.c.b16 %v1751, %v1747
    %v3012 = vpack.c.b16 %v1756, %v1752
    %v3013 = vpack.c.b16 %v1757, %v1753
    %v3014 = vpack.c.b16 %v1758, %v1754
    %v3015 = vpack.c.b16 %v1759, %v1755
    %v3016 = vpack.c.b16 %v1764, %v1760
    %v3017 = vpack.c.b16 %v1765, %v1761
    %v3018 = vpack.c.b16 %v1766, %v1762
    %v3019 = vpack.c.b16 %v1767, %v1763
    %v3020 = vpack.c.b16 %v1772, %v1768
    %v3021 = vpack.c.b16 %v1773, %v1769
    %v3022 = vpack.c.b16 %v1774, %v1770
    %v3023 = vpack.c.b16 %v1775, %v1771
    %v3024 = vpack.c.b16 %v1780, %v1776
    %v3025 = vpack.c.b16 %v1781, %v1777
    %v3026 = vpack.c.b16 %v1782, %v1778
    %v3027 = vpack.c.b16 %v1783, %v1779
    %v3028 = vpack.c.b16 %v1788, %v1784
    %v3029 = vpack.c.b16 %v1789, %v1785
    %v3030 = vpack.c.b16 %v1790, %v1786
    %v3031 = vpack.c.b16 %v1791, %v1787
    %v3032 = vpack.c.b16 %v1796, %v1792
    %v3033 = vpack.c.b16 %v1797, %v1793
    %v3034 = vpack.c.b16 %v1798, %v1794
    %v3035 = vpack.c.b16 %v1799, %v1795
    %v3036 = vpack.c.b16 %v1804, %v1800
    %v3037 = vpack.c.b16 %v1805, %v1801
    %v3038 = vpack.c.b16 %v1806, %v1802
    %v3039 = vpack.c.b16 %v1807, %v1803
    %v3040 = vpack.c.b16 %v1812, %v1808
    %v3041 = vpack.c.b16 %v1813, %v1809
    %v3042 = vpack.c.b16 %v1814, %v1810
    %v3043 = vpack.c.b16 %v1815, %v1811
    %v3044 = vpack.c.b16 %v1820, %v1816
    %v3045 = vpack.c.b16 %v1821, %v1817
    %v3046 = vpack.c.b16 %v1822, %v1818
    %v3047 = vpack.c.b16 %v1823, %v1819
    %v3048 = vpack.c.b16 %v1828, %v1824
    %v3049 = vpack.c.b16 %v1829, %v1825
    %v3050 = vpack.c.b16 %v1830, %v1826
    %v3051 = vpack.c.b16 %v1831, %v1827
    %v3052 = vpack.c.b16 %v1836, %v1832
    %v3053 = vpack.c.b16 %v1837, %v1833
    %v3054 = vpack.c.b16 %v1838, %v1834
    %v3055 = vpack.c.b16 %v1839, %v1835
    %v3056 = vpack.c.b16 %v1844, %v1840
    %v3057 = vpack.c.b16 %v1845, %v1841
    %v3058 = vpack.c.b16 %v1846, %v1842
    %v3059 = vpack.c.b16 %v1847, %v1843
    %v3060 = vpack.c.b16 %v1852, %v1848
    %v3061 = vpack.c.b16 %v1853, %v1849
    %v3062 = vpack.c.b16 %v1854, %v1850
    %v3063 = vpack.c.b16 %v1855, %v1851
    %v3064 = vpack.c.b16 %v1860, %v1856
    %v3065 = vpack.c.b16 %v1861, %v1857
    %v3066 = vpack.c.b16 %v1862, %v1858
    %v3067 = vpack.c.b16 %v1863, %v1859
    %v3068 = vpack.c.b16 %v1868, %v1864
    %v3069 = vpack.c.b16 %v1869, %v1865
    %v3070 = vpack.c.b16 %v1870, %v1866
    %v3071 = vpack.c.b16 %v1871, %v1867
    %v3072 = vpack.c.b16 %v1876, %v1872
    %v3073 = vpack.c.b16 %v1877, %v1873
    %v3074 = vpack.c.b16 %v1878, %v1874
    %v3075 = vpack.c.b16 %v1879, %v1875
    %v3076 = vpack.c.b16 %v1884, %v1880
    %v3077 = vpack.c.b16 %v1885, %v1881
    %v3078 = vpack.c.b16 %v1886, %v1882
    %v3079 = vpack.c.b16 %v1887, %v1883
    %v3080 = vpack.c.b16 %v1892, %v1888
    %v3081 = vpack.c.b16 %v1893, %v1889
    %v3082 = vpack.c.b16 %v1894, %v1890
    %v3083 = vpack.c.b16 %v1895, %v1891
    %v3084 = vpack.c.b16 %v1900, %v1896
    %v3085 = vpack.c.b16 %v1901, %v1897
    %v3086 = vpack.c.b16 %v1902, %v1898
    %v3087 = vpack.c.b16 %v1903, %v1899
    %v3088 = vpack.c.b16 %v1908, %v1904
    %v3089 = vpack.c.b16 %v1909, %v1905
    %v3090 = vpack.c.b16 %v1910, %v1906
    %v3091 = vpack.c.b16 %v1911, %v1907
    %v3092 = vpack.c.b16 %v1916, %v1912
    %v3093 = vpack.c.b16 %v1917, %v1913
    %v3094 = vpack.c.b16 %v1918, %v1914
    %v3095 = vpack.c.b16 %v1919, %v1915
    %v3096 = vpack.c.b16 %v1924, %v1920
    %v3097 = vpack.c.b16 %v1925, %v1921
    %v3098 = vpack.c.b16 %v1926, %v1922
    %v3099 = vpack.c.b16 %v1927, %v1923
    %v3100 = vpack.c.b16 %v1932, %v1928
    %v3101 = vpack.c.b16 %v1933, %v1929
    %v3102 = vpack.c.b16 %v1934, %v1930
    %v3103 = vpack.c.b16 %v1935, %v1931
    %v3104 = vpack.c.b16 %v1940, %v1936
    %v3105 = vpack.c.b16 %v1941, %v1937
    %v3106 = vpack.c.b16 %v1942, %v1938
    %v3107 = vpack.c.b16 %v1943, %v1939
    %v3108 = vpack.c.b16 %v1948, %v1944
    %v3109 = vpack.c.b16 %v1949, %v1945
    %v3110 = vpack.c.b16 %v1950, %v1946
    %v3111 = vpack.c.b16 %v1951, %v1947
    %v3112 = vpack.c.b16 %v1956, %v1952
    %v3113 = vpack.c.b16 %v1957, %v1953
    %v3114 = vpack.c.b16 %v1958, %v1954
    %v3115 = vpack.c.b16 %v1959, %v1955
    %v3116 = vpack.c.b16 %v1964, %v1960
    %v3117 = vpack.c.b16 %v1965, %v1961
    %v3118 = vpack.c.b16 %v1966, %v1962
    %v3119 = vpack.c.b16 %v1967, %v1963
    %v3120 = vpack.c.b16 %v1972, %v1968
    %v3121 = vpack.c.b16 %v1973, %v1969
    %v3122 = vpack.c.b16 %v1974, %v1970
    %v3123 = vpack.c.b16 %v1975, %v1971
    %v3124 = vpack.c.b16 %v1980, %v1976
    %v3125 = vpack.c.b16 %v1981, %v1977
    %v3126 = vpack.c.b16 %v1982, %v1978
    %v3127 = vpack.c.b16 %v1983, %v1979
    %v3128 = vpack.c.b16 %v1988, %v1984
    %v3129 = vpack.c.b16 %v1989, %v1985
    %v3130 = vpack.c.b16 %v1990, %v1986
    %v3131 = vpack.c.b16 %v1991, %v1987
    %v3132 = vpack.c.b16 %v1996, %v1992
    %v3133 = vpack.c.b16 %v1997, %v1993
    %v3134 = vpack.c.b16 %v1998, %v1994
    %v3135 = vpack.c.b16 %v1999, %v1995
    %v3136 = vpack.c.b16 %v2004, %v2000
    %v3137 = vpack.c.b16 %v2005, %v2001
    %v3138 = vpack.c.b16 %v2006, %v2002
    %v3139 = vpack.c.b16 %v2007, %v2003
    %v3140 = vpack.c.b16 %v2012, %v2008
    %v3141 = vpack.c.b16 %v2013, %v2009
    %v3142 = vpack.c.b16 %v2014, %v2010
    %v3143 = vpack.c.b16 %v2015, %v2011
    %v3144 = vpack.c.b16 %v2020, %v2016
    %v3145 = vpack.c.b16 %v2021, %v2017
    %v3146 = vpack.c.b16 %v2022, %v2018
    %v3147 = vpack.c.b16 %v2023, %v2019
    %v3148 = vpack.c.b16 %v2028, %v2024
    %v3149 = vpack.c.b16 %v2029, %v2025
    %v3150 = vpack.c.b16 %v2030, %v2026
    %v3151 = vpack.c.b16 %v2031, %v2027
    %v3152 = vpack.c.b16 %v2036, %v2032
    %v3153 = vpack.c.b16 %v2037, %v2033
    %v3154 = vpack.c.b16 %v2038, %v2034
    %v3155 = vpack.c.b16 %v2039, %v2035
    %v3156 = vpack.c.b16 %v2044, %v2040
    %v3157 = vpack.c.b16 %v2045, %v2041
    %v3158 = vpack.c.b16 %v2046, %v2042
    %v3159 = vpack.c.b16 %v2047, %v2043
    %v3160 = vpack.c.b16 %v2052, %v2048
    %v3161 = vpack.c.b16 %v2053, %v2049
    %v3162 = vpack.c.b16 %v2054, %v2050
    %v3163 = vpack.c.b16 %v2055, %v2051
    %v3164 = vpack.c.b16 %v2060, %v2056
    %v3165 = vpack.c.b16 %v2061, %v2057
    %v3166 = vpack.c.b16 %v2062, %v2058
    %v3167 = vpack.c.b16 %v2063, %v2059
    %v3168 = vpack.c.b16 %v2068, %v2064
    %v3169 = vpack.c.b16 %v2069, %v2065
    %v3170 = vpack.c.b16 %v2070, %v2066
    %v3171 = vpack.c.b16 %v2071, %v2067
    %v3172 = vpack.c.b16 %v2076, %v2072
    %v3173 = vpack.c.b16 %v2077, %v2073
    %v3174 = vpack.c.b16 %v2078, %v2074
    %v3175 = vpack.c.b16 %v2079, %v2075
    %v3176 = vpack.c.b16 %v2084, %v2080
    %v3177 = vpack.c.b16 %v2085, %v2081
    %v3178 = vpack.c.b16 %v2086, %v2082
    %v3179 = vpack.c.b16 %v2087, %v2083
    %v3180 = vpack.c.b16 %v2092, %v2088
    %v3181 = vpack.c.b16 %v2093, %v2089
    %v3182 = vpack.c.b16 %v2094, %v2090
    %v3183 = vpack.c.b16 %v2095, %v2091
    %v3184 = vpack.c.b16 %v2100, %v2096
    %v3185 = vpack.c.b16 %v2101, %v2097
    %v3186 = vpack.c.b16 %v2102, %v2098
    %v3187 = vpack.c.b16 %v2103, %v2099
    %v3188 = vpack.c.b16 %v2108, %v2104
    %v3189 = vpack.c.b16 %v2109, %v2105
    %v3190 = vpack.c.b16 %v2110, %v2106
    %v3191 = vpack.c.b16 %v2111, %v2107
    %v3192 = vpack.c.b16 %v2116, %v2112
    %v3193 = vpack.c.b16 %v2117, %v2113
    %v3194 = vpack.c.b16 %v2118, %v2114
    %v3195 = vpack.c.b16 %v2119, %v2115
    %v3196 = vpack.c.b16 %v2124, %v2120
    %v3197 = vpack.c.b16 %v2125, %v2121
    %v3198 = vpack.c.b16 %v2126, %v2122
    %v3199 = vpack.c.b16 %v2127, %v2123
    %v3200 = vpack.c.b16 %v2132, %v2128
    %v3201 = vpack.c.b16 %v2133, %v2129
    %v3202 = vpack.c.b16 %v2134, %v2130
    %v3203 = vpack.c.b16 %v2135, %v2131
    %v3204 = vpack.c.b16 %v2140, %v2136
    %v3205 = vpack.c.b16 %v2141, %v2137
    %v3206 = vpack.c.b16 %v2142, %v2138
    %v3207 = vpack.c.b16 %v2143, %v2139
    %v3208 = vpack.c.b16 %v2148, %v2144
    %v3209 = vpack.c.b16 %v2149, %v2145
    %v3210 = vpack.c.b16 %v2150, %v2146
    %v3211 = vpack.c.b16 %v2151, %v2147
    %v3212 = vpack.c.b16 %v2156, %v2152
    %v3213 = vpack.c.b16 %v2157, %v2153
    %v3214 = vpack.c.b16 %v2158, %v2154
    %v3215 = vpack.c.b16 %v2159, %v2155
    %v3216 = vpack.c.b16 %v2164, %v2160
    %v3217 = vpack.c.b16 %v2165, %v2161
    %v3218 = vpack.c.b16 %v2166, %v2162
    %v3219 = vpack.c.b16 %v2167, %v2163
    %v3220 = vpack.c.b16 %v2172, %v2168
    %v3221 = vpack.c.b16 %v2173, %v2169
    %v3222 = vpack.c.b16 %v2174, %v2170
    %v3223 = vpack.c.b16 %v2175, %v2171
    %v3224 = vpack.c.b16 %v2180, %v2176
    %v3225 = vpack.c.b16 %v2181, %v2177
    %v3226 = vpack.c.b16 %v2182, %v2178
    %v3227 = vpack.c.b16 %v2183, %v2179
    %v3228 = vpack.c.b16 %v2188, %v2184
    %v3229 = vpack.c.b16 %v2189, %v2185
    %v3230 = vpack.c.b16 %v2190, %v2186
    %v3231 = vpack.c.b16 %v2191, %v2187
    %v3232 = vpack.c.b16 %v2196, %v2192
    %v3233 = vpack.c.b16 %v2197, %v2193
    %v3234 = vpack.c.b16 %v2198, %v2194
    %v3235 = vpack.c.b16 %v2199, %v2195
    %v3236 = vpack.c.b16 %v2204, %v2200
    %v3237 = vpack.c.b16 %v2205, %v2201
    %v3238 = vpack.c.b16 %v2206, %v2202
    %v3239 = vpack.c.b16 %v2207, %v2203
    %v3240 = vpack.c.b16 %v2212, %v2208
    %v3241 = vpack.c.b16 %v2213, %v2209
    %v3242 = vpack.c.b16 %v2214, %v2210
    %v3243 = vpack.c.b16 %v2215, %v2211
    %v3244 = vpack.c.b16 %v2220, %v2216
    %v3245 = vpack.c.b16 %v2221, %v2217
    %v3246 = vpack.c.b16 %v2222, %v2218
    %v3247 = vpack.c.b16 %v2223, %v2219
    %v3248 = vpack.c.b16 %v2228, %v2224
    %v3249 = vpack.c.b16 %v2229, %v2225
    %v3250 = vpack.c.b16 %v2230, %v2226
    %v3251 = vpack.c.b16 %v2231, %v2227
    %v3252 = vpack.c.b16 %v2236, %v2232
    %v3253 = vpack.c.b16 %v2237, %v2233
    %v3254 = vpack.c.b16 %v2238, %v2234
    %v3255 = vpack.c.b16 %v2239, %v2235
    %v3256 = vpack.c.b16 %v2244, %v2240
    %v3257 = vpack.c.b16 %v2245, %v2241
    %v3258 = vpack.c.b16 %v2246, %v2242
    %v3259 = vpack.c.b16 %v2247, %v2243
    %v3260 = vpack.c.b16 %v2252, %v2248
    %v3261 = vpack.c.b16 %v2253, %v2249
    %v3262 = vpack.c.b16 %v2254, %v2250
    %v3263 = vpack.c.b16 %v2255, %v2251
    %v3264 = vpack.c.b16 %v2260, %v2256
    %v3265 = vpack.c.b16 %v2261, %v2257
    %v3266 = vpack.c.b16 %v2262, %v2258
    %v3267 = vpack.c.b16 %v2263, %v2259
    %v3268 = vpack.c.b16 %v2268, %v2264
    %v3269 = vpack.c.b16 %v2269, %v2265
    %v3270 = vpack.c.b16 %v2270, %v2266
    %v3271 = vpack.c.b16 %v2271, %v2267
    %v3272 = vpack.c.b16 %v2276, %v2272
    %v3273 = vpack.c.b16 %v2277, %v2273
    %v3274 = vpack.c.b16 %v2278, %v2274
    %v3275 = vpack.c.b16 %v2279, %v2275
    %v3276 = vpack.c.b16 %v2284, %v2280
    %v3277 = vpack.c.b16 %v2285, %v2281
    %v3278 = vpack.c.b16 %v2286, %v2282
    %v3279 = vpack.c.b16 %v2287, %v2283
    %v3280 = vpack.c.b16 %v2292, %v2288
    %v3281 = vpack.c.b16 %v2293, %v2289
    %v3282 = vpack.c.b16 %v2294, %v2290
    %v3283 = vpack.c.b16 %v2295, %v2291
    %v3284 = vpack.c.b16 %v2300, %v2296
    %v3285 = vpack.c.b16 %v2301, %v2297
    %v3286 = vpack.c.b16 %v2302, %v2298
    %v3287 = vpack.c.b16 %v2303, %v2299
    %v3288 = vpack.c.b16 %v2308, %v2304
    %v3289 = vpack.c.b16 %v2309, %v2305
    %v3290 = vpack.c.b16 %v2310, %v2306
    %v3291 = vpack.c.b16 %v2311, %v2307
    %v3292 = vpack.c.b16 %v2316, %v2312
    %v3293 = vpack.c.b16 %v2317, %v2313
    %v3294 = vpack.c.b16 %v2318, %v2314
    %v3295 = vpack.c.b16 %v2319, %v2315
    %v3296 = vpack.c.b16 %v2324, %v2320
    %v3297 = vpack.c.b16 %v2325, %v2321
    %v3298 = vpack.c.b16 %v2326, %v2322
    %v3299 = vpack.c.b16 %v2327, %v2323
    %v3300 = vpack.c.b16 %v2332, %v2328
    %v3301 = vpack.c.b16 %v2333, %v2329
    %v3302 = vpack.c.b16 %v2334, %v2330
    %v3303 = vpack.c.b16 %v2335, %v2331
    %v3304 = vpack.c.b16 %v2340, %v2336
    %v3305 = vpack.c.b16 %v2341, %v2337
    %v3306 = vpack.c.b16 %v2342, %v2338
    %v3307 = vpack.c.b16 %v2343, %v2339
    %v3308 = vpack.c.b16 %v2348, %v2344
    %v3309 = vpack.c.b16 %v2349, %v2345
    %v3310 = vpack.c.b16 %v2350, %v2346
    %v3311 = vpack.c.b16 %v2351, %v2347
    %v3312 = vpack.c.b16 %v2356, %v2352
    %v3313 = vpack.c.b16 %v2357, %v2353
    %v3314 = vpack.c.b16 %v2358, %v2354
    %v3315 = vpack.c.b16 %v2359, %v2355
    %v3316 = vpack.c.b16 %v2364, %v2360
    %v3317 = vpack.c.b16 %v2365, %v2361
    %v3318 = vpack.c.b16 %v2366, %v2362
    %v3319 = vpack.c.b16 %v2367, %v2363
    %v3320 = vpack.c.b16 %v2372, %v2368
    %v3321 = vpack.c.b16 %v2373, %v2369
    %v3322 = vpack.c.b16 %v2374, %v2370
    %v3323 = vpack.c.b16 %v2375, %v2371
    %v3324 = vpack.c.b16 %v2380, %v2376
    %v3325 = vpack.c.b16 %v2381, %v2377
    %v3326 = vpack.c.b16 %v2382, %v2378
    %v3327 = vpack.c.b16 %v2383, %v2379
    %v3328 = vpack.c.b16 %v2388, %v2384
    %v3329 = vpack.c.b16 %v2389, %v2385
    %v3330 = vpack.c.b16 %v2390, %v2386
    %v3331 = vpack.c.b16 %v2391, %v2387
    %v3332 = vpack.c.b16 %v2396, %v2392
    %v3333 = vpack.c.b16 %v2397, %v2393
    %v3334 = vpack.c.b16 %v2398, %v2394
    %v3335 = vpack.c.b16 %v2399, %v2395
    %v3336 = vpack.c.b16 %v2404, %v2400
    %v3337 = vpack.c.b16 %v2405, %v2401
    %v3338 = vpack.c.b16 %v2406, %v2402
    %v3339 = vpack.c.b16 %v2407, %v2403
    %v3340 = vpack.c.b16 %v2412, %v2408
    %v3341 = vpack.c.b16 %v2413, %v2409
    %v3342 = vpack.c.b16 %v2414, %v2410
    %v3343 = vpack.c.b16 %v2415, %v2411
    %v3344 = vpack.c.b16 %v2420, %v2416
    %v3345 = vpack.c.b16 %v2421, %v2417
    %v3346 = vpack.c.b16 %v2422, %v2418
    %v3347 = vpack.c.b16 %v2423, %v2419
    %v3348 = vpack.c.b16 %v2428, %v2424
    %v3349 = vpack.c.b16 %v2429, %v2425
    %v3350 = vpack.c.b16 %v2430, %v2426
    %v3351 = vpack.c.b16 %v2431, %v2427
    %v3352 = vpack.c.b16 %v2436, %v2432
    %v3353 = vpack.c.b16 %v2437, %v2433
    %v3354 = vpack.c.b16 %v2438, %v2434
    %v3355 = vpack.c.b16 %v2439, %v2435
    %v3356 = vpack.c.b16 %v2444, %v2440
    %v3357 = vpack.c.b16 %v2445, %v2441
    %v3358 = vpack.c.b16 %v2446, %v2442
    %v3359 = vpack.c.b16 %v2447, %v2443
    %v3360 = vpack.c.b16 %v2452, %v2448
    %v3361 = vpack.c.b16 %v2453, %v2449
    %v3362 = vpack.c.b16 %v2454, %v2450
    %v3363 = vpack.c.b16 %v2455, %v2451
    %v3364 = vpack.c.b16 %v2460, %v2456
    %v3365 = vpack.c.b16 %v2461, %v2457
    %v3366 = vpack.c.b16 %v2462, %v2458
    %v3367 = vpack.c.b16 %v2463, %v2459
    %v3368 = vpack.c.b16 %v2468, %v2464
    %v3369 = vpack.c.b16 %v2469, %v2465
    %v3370 = vpack.c.b16 %v2470, %v2466
    %v3371 = vpack.c.b16 %v2471, %v2467
    %v3372 = vpack.c.b16 %v2476, %v2472
    %v3373 = vpack.c.b16 %v2477, %v2473
    %v3374 = vpack.c.b16 %v2478, %v2474
    %v3375 = vpack.c.b16 %v2479, %v2475
    %v3376 = vpack.c.b16 %v2484, %v2480
    %v3377 = vpack.c.b16 %v2485, %v2481
    %v3378 = vpack.c.b16 %v2486, %v2482
    %v3379 = vpack.c.b16 %v2487, %v2483
    %v3380 = vpack.c.b16 %v2492, %v2488
    %v3381 = vpack.c.b16 %v2493, %v2489
    %v3382 = vpack.c.b16 %v2494, %v2490
    %v3383 = vpack.c.b16 %v2495, %v2491
    %v3384 = vpack.c.b16 %v2500, %v2496
    %v3385 = vpack.c.b16 %v2501, %v2497
    %v3386 = vpack.c.b16 %v2502, %v2498
    %v3387 = vpack.c.b16 %v2503, %v2499
    %v3388 = vpack.c.b16 %v2508, %v2504
    %v3389 = vpack.c.b16 %v2509, %v2505
    %v3390 = vpack.c.b16 %v2510, %v2506
    %v3391 = vpack.c.b16 %v2511, %v2507
    %v3392 = vpack.c.b16 %v2516, %v2512
    %v3393 = vpack.c.b16 %v2517, %v2513
    %v3394 = vpack.c.b16 %v2518, %v2514
    %v3395 = vpack.c.b16 %v2519, %v2515
    %v3396 = vpack.c.b16 %v2524, %v2520
    %v3397 = vpack.c.b16 %v2525, %v2521
    %v3398 = vpack.c.b16 %v2526, %v2522
    %v3399 = vpack.c.b16 %v2527, %v2523
    %v3400 = vpack.c.b16 %v2532, %v2528
    %v3401 = vpack.c.b16 %v2533, %v2529
    %v3402 = vpack.c.b16 %v2534, %v2530
    %v3403 = vpack.c.b16 %v2535, %v2531
    %v3404 = vpack.c.b16 %v2540, %v2536
    %v3405 = vpack.c.b16 %v2541, %v2537
    %v3406 = vpack.c.b16 %v2542, %v2538
    %v3407 = vpack.c.b16 %v2543, %v2539
    %v3408 = vpack.c.b16 %v2548, %v2544
    %v3409 = vpack.c.b16 %v2549, %v2545
    %v3410 = vpack.c.b16 %v2550, %v2546
    %v3411 = vpack.c.b16 %v2551, %v2547
    %v3412 = vpack.c.b16 %v2556, %v2552
    %v3413 = vpack.c.b16 %v2557, %v2553
    %v3414 = vpack.c.b16 %v2558, %v2554
    %v3415 = vpack.c.b16 %v2559, %v2555
    %v3416 = vpack.c.b16 %v2564, %v2560
    %v3417 = vpack.c.b16 %v2565, %v2561
    %v3418 = vpack.c.b16 %v2566, %v2562
    %v3419 = vpack.c.b16 %v2567, %v2563
    %v3420 = vpack.c.b16 %v2572, %v2568
    %v3421 = vpack.c.b16 %v2573, %v2569
    %v3422 = vpack.c.b16 %v2574, %v2570
    %v3423 = vpack.c.b16 %v2575, %v2571
    %v3424 = vpack.c.b16 %v2580, %v2576
    %v3425 = vpack.c.b16 %v2581, %v2577
    %v3426 = vpack.c.b16 %v2582, %v2578
    %v3427 = vpack.c.b16 %v2583, %v2579
    %v3428 = vpack.c.b16 %v2588, %v2584
    %v3429 = vpack.c.b16 %v2589, %v2585
    %v3430 = vpack.c.b16 %v2590, %v2586
    %v3431 = vpack.c.b16 %v2591, %v2587
    %v3432 = vpack.c.b16 %v2596, %v2592
    %v3433 = vpack.c.b16 %v2597, %v2593
    %v3434 = vpack.c.b16 %v2598, %v2594
    %v3435 = vpack.c.b16 %v2599, %v2595
    %v3436 = vpack.c.b16 %v2604, %v2600
    %v3437 = vpack.c.b16 %v2605, %v2601
    %v3438 = vpack.c.b16 %v2606, %v2602
    %v3439 = vpack.c.b16 %v2607, %v2603
    %v3440 = vpack.c.b16 %v2612, %v2608
    %v3441 = vpack.c.b16 %v2613, %v2609
    %v3442 = vpack.c.b16 %v2614, %v2610
    %v3443 = vpack.c.b16 %v2615, %v2611
    %v3444 = vpack.c.b16 %v2620, %v2616
    %v3445 = vpack.c.b16 %v2621, %v2617
    %v3446 = vpack.c.b16 %v2622, %v2618
    %v3447 = vpack.c.b16 %v2623, %v2619
    %v3448 = vpack.c.b16 %v2628, %v2624
    %v3449 = vpack.c.b16 %v2629, %v2625
    %v3450 = vpack.c.b16 %v2630, %v2626
    %v3451 = vpack.c.b16 %v2631, %v2627
    %v3452 = vpack.c.b16 %v2636, %v2632
    %v3453 = vpack.c.b16 %v2637, %v2633
    %v3454 = vpack.c.b16 %v2638, %v2634
    %v3455 = vpack.c.b16 %v2639, %v2635
    %v3456 = vpack.c.b16 %v2644, %v2640
    %v3457 = vpack.c.b16 %v2645, %v2641
    %v3458 = vpack.c.b16 %v2646, %v2642
    %v3459 = vpack.c.b16 %v2647, %v2643
    %v3460 = vpack.c.b16 %v2652, %v2648
    %v3461 = vpack.c.b16 %v2653, %v2649
    %v3462 = vpack.c.b16 %v2654, %v2650
    %v3463 = vpack.c.b16 %v2655, %v2651
    %v3464 = vpack.c.b16 %v2660, %v2656
    %v3465 = vpack.c.b16 %v2661, %v2657
    %v3466 = vpack.c.b16 %v2662, %v2658
    %v3467 = vpack.c.b16 %v2663, %v2659
    %v3468 = vpack.c.b16 %v2668, %v2664
    %v3469 = vpack.c.b16 %v2669, %v2665
    %v3470 = vpack.c.b16 %v2670, %v2666
    %v3471 = vpack.c.b16 %v2671, %v2667
    %v3472 = vpack.c.b16 %v2676, %v2672
    %v3473 = vpack.c.b16 %v2677, %v2673
    %v3474 = vpack.c.b16 %v2678, %v2674
    %v3475 = vpack.c.b16 %v2679, %v2675
    %v3476 = vpack.c.b16 %v2684, %v2680
    %v3477 = vpack.c.b16 %v2685, %v2681
    %v3478 = vpack.c.b16 %v2686, %v2682
    %v3479 = vpack.c.b16 %v2687, %v2683
    %v3480 = vpack.c.b16 %v2692, %v2688
    %v3481 = vpack.c.b16 %v2693, %v2689
    %v3482 = vpack.c.b16 %v2694, %v2690
    %v3483 = vpack.c.b16 %v2695, %v2691
    %v3484 = vpack.c.b16 %v2700, %v2696
    %v3485 = vpack.c.b16 %v2701, %v2697
    %v3486 = vpack.c.b16 %v2702, %v2698
    %v3487 = vpack.c.b16 %v2703, %v2699
    %v3488 = vpack.c.b16 %v2708, %v2704
    %v3489 = vpack.c.b16 %v2709, %v2705
    %v3490 = vpack.c.b16 %v2710, %v2706
    %v3491 = vpack.c.b16 %v2711, %v2707
    %v3492 = vpack.c.b16 %v2716, %v2712
    %v3493 = vpack.c.b16 %v2717, %v2713
    %v3494 = vpack.c.b16 %v2718, %v2714
    %v3495 = vpack.c.b16 %v2719, %v2715
    %v3496 = vpack.c.b16 %v2724, %v2720
    %v3497 = vpack.c.b16 %v2725, %v2721
    %v3498 = vpack.c.b16 %v2726, %v2722
    %v3499 = vpack.c.b16 %v2727, %v2723
    %v3500 = vpack.c.b16 %v2732, %v2728
    %v3501 = vpack.c.b16 %v2733, %v2729
    %v3502 = vpack.c.b16 %v2734, %v2730
    %v3503 = vpack.c.b16 %v2735, %v2731
    %v3504 = vpack.c.b16 %v2740, %v2736
    %v3505 = vpack.c.b16 %v2741, %v2737
    %v3506 = vpack.c.b16 %v2742, %v2738
    %v3507 = vpack.c.b16 %v2743, %v2739
    %v3508 = vpack.c.b16 %v2748, %v2744
    %v3509 = vpack.c.b16 %v2749, %v2745
    %v3510 = vpack.c.b16 %v2750, %v2746
    %v3511 = vpack.c.b16 %v2751, %v2747
    %v3512 = vpack.c.b16 %v2756, %v2752
    %v3513 = vpack.c.b16 %v2757, %v2753
    %v3514 = vpack.c.b16 %v2758, %v2754
    %v3515 = vpack.c.b16 %v2759, %v2755
    %v3516 = vpack.c.b16 %v2764, %v2760
    %v3517 = vpack.c.b16 %v2765, %v2761
    %v3518 = vpack.c.b16 %v2766, %v2762
    %v3519 = vpack.c.b16 %v2767, %v2763
    %v3520 = vpack.c.b16 %v2772, %v2768
    %v3521 = vpack.c.b16 %v2773, %v2769
    %v3522 = vpack.c.b16 %v2774, %v2770
    %v3523 = vpack.c.b16 %v2775, %v2771
    %v3524 = vpack.c.b16 %v2780, %v2776
    %v3525 = vpack.c.b16 %v2781, %v2777
    %v3526 = vpack.c.b16 %v2782, %v2778
    %v3527 = vpack.c.b16 %v2783, %v2779
    %v3528 = vpack.c.b16 %v2788, %v2784
    %v3529 = vpack.c.b16 %v2789, %v2785
    %v3530 = vpack.c.b16 %v2790, %v2786
    %v3531 = vpack.c.b16 %v2791, %v2787
    %v3532 = vpack.c.b16 %v2796, %v2792
    %v3533 = vpack.c.b16 %v2797, %v2793
    %v3534 = vpack.c.b16 %v2798, %v2794
    %v3535 = vpack.c.b16 %v2799, %v2795
    %v3536 = vpack.c.b16 %v2804, %v2800
    %v3537 = vpack.c.b16 %v2805, %v2801
    %v3538 = vpack.c.b16 %v2806, %v2802
    %v3539 = vpack.c.b16 %v2807, %v2803
    %v3540 = vpack.c.b16 %v2812, %v2808
    %v3541 = vpack.c.b16 %v2813, %v2809
    %v3542 = vpack.c.b16 %v2814, %v2810
    %v3543 = vpack.c.b16 %v2815, %v2811
    %v3544 = vpack.c.b16 %v2820, %v2816
    %v3545 = vpack.c.b16 %v2821, %v2817
    %v3546 = vpack.c.b16 %v2822, %v2818
    %v3547 = vpack.c.b16 %v2823, %v2819
    %v3548 = vpack.c.b16 %v2828, %v2824
    %v3549 = vpack.c.b16 %v2829, %v2825
    %v3550 = vpack.c.b16 %v2830, %v2826
    %v3551 = vpack.c.b16 %v2831, %v2827
    %v3552 = vpack.c.b16 %v2836, %v2832
    %v3553 = vpack.c.b16 %v2837, %v2833
    %v3554 = vpack.c.b16 %v2838, %v2834
    %v3555 = vpack.c.b16 %v2839, %v2835
    %v3556 = vpack.c.b16 %v2844, %v2840
    %v3557 = vpack.c.b16 %v2845, %v2841
    %v3558 = vpack.c.b16 %v2846, %v2842
    %v3559 = vpack.c.b16 %v2847, %v2843
    %v3560 = vpack.c.b16 %v2852, %v2848
    %v3561 = vpack.c.b16 %v2853, %v2849
    %v3562 = vpack.c.b16 %v2854, %v2850
    %v3563 = vpack.c.b16 %v2855, %v2851
    %v3564 = vpack.c.b16 %v2860, %v2856
    %v3565 = vpack.c.b16 %v2861, %v2857
    %v3566 = vpack.c.b16 %v2862, %v2858
    %v3567 = vpack.c.b16 %v2863, %v2859
    %v3568 = vpack.c.b16 %v2868, %v2864
    %v3569 = vpack.c.b16 %v2869, %v2865
    %v3570 = vpack.c.b16 %v2870, %v2866
    %v3571 = vpack.c.b16 %v2871, %v2867
    %v3572 = vpack.c.b16 %v2876, %v2872
    %v3573 = vpack.c.b16 %v2877, %v2873
    %v3574 = vpack.c.b16 %v2878, %v2874
    %v3575 = vpack.c.b16 %v2879, %v2875
    %v3576 = vpack.c.b16 %v2884, %v2880
    %v3577 = vpack.c.b16 %v2885, %v2881
    %v3578 = vpack.c.b16 %v2886, %v2882
    %v3579 = vpack.c.b16 %v2887, %v2883
    %v3580 = vpack.c.b16 %v2892, %v2888
    %v3581 = vpack.c.b16 %v2893, %v2889
    %v3582 = vpack.c.b16 %v2894, %v2890
    %v3583 = vpack.c.b16 %v2895, %v2891
    %v3584 = vpack.c.b16 %v2900, %v2896
    %v3585 = vpack.c.b16 %v2901, %v2897
    %v3586 = vpack.c.b16 %v2902, %v2898
    %v3587 = vpack.c.b16 %v2903, %v2899
    %v3588 = vpack.c.b16 %v2908, %v2904
    %v3589 = vpack.c.b16 %v2909, %v2905
    %v3590 = vpack.c.b16 %v2910, %v2906
    %v3591 = vpack.c.b16 %v2911, %v2907
    %v3592 = vpack.c.b16 %v2916, %v2912
    %v3593 = vpack.c.b16 %v2917, %v2913
    %v3594 = vpack.c.b16 %v2918, %v2914
    %v3595 = vpack.c.b16 %v2919, %v2915
    %vm4272 = vcmask 130048
    %v4274 = vsel %vm4272, %v868, 0
    %4276 = vmatprep.subr.bf16.mxu0 %v2921
    %4277 = vmatpush1.bf16.msra.mxu0 %v2920
    %4278 = vmatprep.subr.bf16.mxu0 %v2925
    %4279 = vmatpush1.bf16.msra.mxu0 %v2924
    %4280 = vmatprep.subr.bf16.mxu0 %v2929
    %4281 = vmatpush1.bf16.msra.mxu0 %v2928
    %4282 = vmatprep.subr.bf16.mxu0 %v2933
    %4283 = vmatpush1.bf16.msra.mxu0 %v2932
    %4284 = vmatprep.subr.bf16.mxu0 %v2937
    %4285 = vmatpush1.bf16.msra.mxu0 %v2936
    %4286 = vmatprep.subr.bf16.mxu0 %v2941
    %4287 = vmatpush1.bf16.msra.mxu0 %v2940
    %4288 = vmatprep.subr.bf16.mxu0 %v2945
    %4289 = vmatpush1.bf16.msra.mxu0 %v2944
    %4290 = vmatprep.subr.bf16.mxu0 %v2949
    %4291 = vmatpush1.bf16.msra.mxu0 %v2948
    %4292 = vmatprep.subr.bf16.mxu0 %v2953
    %4293 = vmatpush1.bf16.msra.mxu0 %v2952
    %4294 = vmatprep.subr.bf16.mxu0 %v2957
    %4295 = vmatpush1.bf16.msra.mxu0 %v2956
    %4296 = vmatprep.subr.bf16.mxu0 %v2961
    %4297 = vmatpush1.bf16.msra.mxu0 %v2960
    %4298 = vmatprep.subr.bf16.mxu0 %v2965
    %4299 = vmatpush1.bf16.msra.mxu0 %v2964
    %4300 = vmatprep.subr.bf16.mxu0 %v2969
    %4301 = vmatpush1.bf16.msra.mxu0 %v2968
    %4302 = vmatprep.subr.bf16.mxu0 %v2973
    %4303 = vmatpush1.bf16.msra.mxu0 %v2972
    %4304 = vmatprep.subr.bf16.mxu0 %v2977
    %4305 = vmatpush1.bf16.msra.mxu0 %v2976
    %4306 = vmatprep.subr.bf16.mxu0 %v2981
    %4307 = vmatpush1.bf16.msra.mxu0 %v2980
    %4308 = vmatprep.mubr.bf16.mxu0 %v763
    %4309 = vmatmul.mubr.bf16.gmra.mrb[0].mxu0 %v749
    %v4310 = vpop.f32.mrb[0].mxu0
    %v4311 = vadd.f32 %v706, %v4310
    %v4312 = vpop.f32.mrb[0].mxu0
    %v4313 = vadd.f32 %v710, %v4312
    %v4314 = vpop.f32.mrb[0].mxu0
    %v4315 = vpop.f32.mrb[0].mxu0
    %4316 = vdwg.mxu0
    %4317 = vmatprep.subr.bf16.mxu0 %v2985
    %4318 = vmatpush1.bf16.msra.mxu0 %v2984
    %4319 = vmatprep.subr.bf16.mxu0 %v2989
    %4320 = vmatpush1.bf16.msra.mxu0 %v2988
    %4321 = vmatprep.subr.bf16.mxu0 %v2993
    %4322 = vmatpush1.bf16.msra.mxu0 %v2992
    %4323 = vmatprep.subr.bf16.mxu0 %v2997
    %4324 = vmatpush1.bf16.msra.mxu0 %v2996
    %4325 = vmatprep.subr.bf16.mxu0 %v3001
    %4326 = vmatpush1.bf16.msra.mxu0 %v3000
    %4327 = vmatprep.subr.bf16.mxu0 %v3005
    %4328 = vmatpush1.bf16.msra.mxu0 %v3004
    %4329 = vmatprep.subr.bf16.mxu0 %v3009
    %4330 = vmatpush1.bf16.msra.mxu0 %v3008
    %4331 = vmatprep.subr.bf16.mxu0 %v3013
    %4332 = vmatpush1.bf16.msra.mxu0 %v3012
    %4333 = vmatprep.subr.bf16.mxu0 %v3017
    %4334 = vmatpush1.bf16.msra.mxu0 %v3016
    %4335 = vmatprep.subr.bf16.mxu0 %v3021
    %4336 = vmatpush1.bf16.msra.mxu0 %v3020
    %4337 = vmatprep.subr.bf16.mxu0 %v3025
    %4338 = vmatpush1.bf16.msra.mxu0 %v3024
    %4339 = vmatprep.subr.bf16.mxu0 %v3029
    %4340 = vmatpush1.bf16.msra.mxu0 %v3028
    %4341 = vmatprep.subr.bf16.mxu0 %v3033
    %4342 = vmatpush1.bf16.msra.mxu0 %v3032
    %4343 = vmatprep.subr.bf16.mxu0 %v3037
    %4344 = vmatpush1.bf16.msra.mxu0 %v3036
    %4345 = vmatprep.subr.bf16.mxu0 %v3041
    %4346 = vmatpush1.bf16.msra.mxu0 %v3040
    %4347 = vmatprep.subr.bf16.mxu0 %v3045
    %4348 = vmatpush1.bf16.msra.mxu0 %v3044
    %4349 = vmatprep.mubr.bf16.mxu0 %v773
    %4350 = vmatmul.mubr.bf16.gmra.mrb[0].mxu0 %v771
    %v4351 = vpop.f32.mrb[0].mxu0
    %v4352 = vadd.f32 %v4311, %v4351
    %v4353 = vpop.f32.mrb[0].mxu0
    %v4354 = vadd.f32 %v4313, %v4353
    %v4355 = vpop.f32.mrb[0].mxu0
    %v4356 = vpop.f32.mrb[0].mxu0
    %4357 = vdwg.mxu0
    %4358 = vmatprep.subr.bf16.mxu0 %v3049
    %4359 = vmatpush1.bf16.msra.mxu0 %v3048
    %4360 = vmatprep.subr.bf16.mxu0 %v3053
    %4361 = vmatpush1.bf16.msra.mxu0 %v3052
    %4362 = vmatprep.subr.bf16.mxu0 %v3057
    %4363 = vmatpush1.bf16.msra.mxu0 %v3056
    %4364 = vmatprep.subr.bf16.mxu0 %v3061
    %4365 = vmatpush1.bf16.msra.mxu0 %v3060
    %4366 = vmatprep.subr.bf16.mxu0 %v3065
    %4367 = vmatpush1.bf16.msra.mxu0 %v3064
    %4368 = vmatprep.subr.bf16.mxu0 %v3069
    %4369 = vmatpush1.bf16.msra.mxu0 %v3068
    %4370 = vmatprep.subr.bf16.mxu0 %v3073
    %4371 = vmatpush1.bf16.msra.mxu0 %v3072
    %4372 = vmatprep.subr.bf16.mxu0 %v3077
    %4373 = vmatpush1.bf16.msra.mxu0 %v3076
    %4374 = vmatprep.subr.bf16.mxu0 %v3081
    %4375 = vmatpush1.bf16.msra.mxu0 %v3080
    %4376 = vmatprep.subr.bf16.mxu0 %v3085
    %4377 = vmatpush1.bf16.msra.mxu0 %v3084
    %4378 = vmatprep.subr.bf16.mxu0 %v3089
    %4379 = vmatpush1.bf16.msra.mxu0 %v3088
    %4380 = vmatprep.subr.bf16.mxu0 %v3093
    %4381 = vmatpush1.bf16.msra.mxu0 %v3092
    %4382 = vmatprep.subr.bf16.mxu0 %v3097
    %4383 = vmatpush1.bf16.msra.mxu0 %v3096
    %4384 = vmatprep.subr.bf16.mxu0 %v3101
    %4385 = vmatpush1.bf16.msra.mxu0 %v3100
    %4386 = vmatprep.subr.bf16.mxu0 %v3105
    %4387 = vmatpush1.bf16.msra.mxu0 %v3104
    %4388 = vmatprep.subr.bf16.mxu0 %v3109
    %4389 = vmatpush1.bf16.msra.mxu0 %v3108
    %4390 = vmatprep.mubr.bf16.mxu0 %v770
    %4391 = vmatmul.mubr.bf16.gmra.mrb[0].mxu0 %v756
    %v4392 = vpop.f32.mrb[0].mxu0
    %v4393 = vadd.f32 %v4352, %v4392
    %v4394 = vpop.f32.mrb[0].mxu0
    %v4395 = vadd.f32 %v4354, %v4394
    %v4396 = vpop.f32.mrb[0].mxu0
    %v4397 = vpop.f32.mrb[0].mxu0
    %4398 = vdwg.mxu0
    %4399 = vmatprep.subr.bf16.mxu0 %v3113
    %4400 = vmatpush1.bf16.msra.mxu0 %v3112
    %4401 = vmatprep.subr.bf16.mxu0 %v3117
    %4402 = vmatpush1.bf16.msra.mxu0 %v3116
    %4403 = vmatprep.subr.bf16.mxu0 %v3121
    %4404 = vmatpush1.bf16.msra.mxu0 %v3120
    %4405 = vmatprep.subr.bf16.mxu0 %v3125
    %4406 = vmatpush1.bf16.msra.mxu0 %v3124
    %4407 = vmatprep.subr.bf16.mxu0 %v3129
    %4408 = vmatpush1.bf16.msra.mxu0 %v3128
    %4409 = vmatprep.subr.bf16.mxu0 %v3133
    %4410 = vmatpush1.bf16.msra.mxu0 %v3132
    %4411 = vmatprep.subr.bf16.mxu0 %v3137
    %4412 = vmatpush1.bf16.msra.mxu0 %v3136
    %4413 = vmatprep.subr.bf16.mxu0 %v3141
    %4414 = vmatpush1.bf16.msra.mxu0 %v3140
    %4415 = vmatprep.subr.bf16.mxu0 %v3145
    %4416 = vmatpush1.bf16.msra.mxu0 %v3144
    %4417 = vmatprep.subr.bf16.mxu0 %v3149
    %4418 = vmatpush1.bf16.msra.mxu0 %v3148
    %4419 = vmatprep.subr.bf16.mxu0 %v3153
    %4420 = vmatpush1.bf16.msra.mxu0 %v3152
    %4421 = vmatprep.subr.bf16.mxu0 %v3157
    %4422 = vmatpush1.bf16.msra.mxu0 %v3156
    %4423 = vmatprep.subr.bf16.mxu0 %v3161
    %4424 = vmatpush1.bf16.msra.mxu0 %v3160
    %4425 = vmatprep.subr.bf16.mxu0 %v3165
    %4426 = vmatpush1.bf16.msra.mxu0 %v3164
    %4427 = vmatprep.subr.bf16.mxu0 %v3169
    %4428 = vmatpush1.bf16.msra.mxu0 %v3168
    %4429 = vmatprep.subr.bf16.mxu0 %v3173
    %4430 = vmatpush1.bf16.msra.mxu0 %v3172
    %4431 = vmatprep.mubr.bf16.mxu0 %v774
    %4432 = vmatmul.mubr.bf16.gmra.mrb[0].mxu0 %v772
    %v4433 = vpop.f32.mrb[0].mxu0
    %v4434 = vadd.f32 %v4393, %v4433
    %v4435 = vpop.f32.mrb[0].mxu0
    %v4436 = vadd.f32 %v4395, %v4435
    %v4437 = vpop.f32.mrb[0].mxu0
    %v4438 = vpop.f32.mrb[0].mxu0
    %4439 = vdwg.mxu0
    %4440 = vmatprep.subr.bf16.mxu0 %v3177
    %4441 = vmatpush1.bf16.msra.mxu0 %v3176
    %4442 = vmatprep.subr.bf16.mxu0 %v3181
    %4443 = vmatpush1.bf16.msra.mxu0 %v3180
    %4444 = vmatprep.subr.bf16.mxu0 %v3185
    %4445 = vmatpush1.bf16.msra.mxu0 %v3184
    %4446 = vmatprep.subr.bf16.mxu0 %v3189
    %4447 = vmatpush1.bf16.msra.mxu0 %v3188
    %4448 = vmatprep.subr.bf16.mxu0 %v3193
    %4449 = vmatpush1.bf16.msra.mxu0 %v3192
    %4450 = vmatprep.subr.bf16.mxu0 %v3197
    %4451 = vmatpush1.bf16.msra.mxu0 %v3196
    %4452 = vmatprep.subr.bf16.mxu0 %v3201
    %4453 = vmatpush1.bf16.msra.mxu0 %v3200
    %4454 = vmatprep.subr.bf16.mxu0 %v3205
    %4455 = vmatpush1.bf16.msra.mxu0 %v3204
    %4456 = vmatprep.subr.bf16.mxu0 %v3209
    %4457 = vmatpush1.bf16.msra.mxu0 %v3208
    %4458 = vmatprep.subr.bf16.mxu0 %v3213
    %4459 = vmatpush1.bf16.msra.mxu0 %v3212
    %4460 = vmatprep.subr.bf16.mxu0 %v3217
    %4461 = vmatpush1.bf16.msra.mxu0 %v3216
    %4462 = vmatprep.subr.bf16.mxu0 %v3221
    %4463 = vmatpush1.bf16.msra.mxu0 %v3220
    %4464 = vmatprep.subr.bf16.mxu0 %v3225
    %4465 = vmatpush1.bf16.msra.mxu0 %v3224
    %4466 = vmatprep.subr.bf16.mxu0 %v3229
    %4467 = vmatpush1.bf16.msra.mxu0 %v3228
    %4468 = vmatprep.subr.bf16.mxu0 %v3233
    %4469 = vmatpush1.bf16.msra.mxu0 %v3232
    %4470 = vmatprep.subr.bf16.mxu0 %v3237
    %4471 = vmatpush1.bf16.msra.mxu0 %v3236
    %4472 = vmatprep.mubr.bf16.mxu0 %v812
    %4473 = vmatmul.mubr.bf16.gmra.mrb[0].mxu0 %v798
    %v4474 = vpop.f32.mrb[0].mxu0
    %v4475 = vadd.f32 %v4434, %v4474
    %v4476 = vpop.f32.mrb[0].mxu0
    %v4477 = vadd.f32 %v4436, %v4476
    %v4478 = vpop.f32.mrb[0].mxu0
    %v4479 = vpop.f32.mrb[0].mxu0
    %4480 = vdwg.mxu0
    %4481 = vmatprep.subr.bf16.mxu0 %v3241
    %4482 = vmatpush1.bf16.msra.mxu0 %v3240
    %4483 = vmatprep.subr.bf16.mxu0 %v3245
    %4484 = vmatpush1.bf16.msra.mxu0 %v3244
    %4485 = vmatprep.subr.bf16.mxu0 %v3249
    %4486 = vmatpush1.bf16.msra.mxu0 %v3248
    %4487 = vmatprep.subr.bf16.mxu0 %v3253
    %4488 = vmatpush1.bf16.msra.mxu0 %v3252
    %4489 = vmatprep.subr.bf16.mxu0 %v3257
    %4490 = vmatpush1.bf16.msra.mxu0 %v3256
    %4491 = vmatprep.subr.bf16.mxu0 %v3261
    %4492 = vmatpush1.bf16.msra.mxu0 %v3260
    %4493 = vmatprep.subr.bf16.mxu0 %v3265
    %4494 = vmatpush1.bf16.msra.mxu0 %v3264
    %4495 = vmatprep.subr.bf16.mxu0 %v3269
    %4496 = vmatpush1.bf16.msra.mxu0 %v3268
    %4497 = vmatprep.subr.bf16.mxu0 %v3273
    %4498 = vmatpush1.bf16.msra.mxu0 %v3272
    %4499 = vmatprep.subr.bf16.mxu0 %v3277
    %4500 = vmatpush1.bf16.msra.mxu0 %v3276
    %4501 = vmatprep.subr.bf16.mxu0 %v3281
    %4502 = vmatpush1.bf16.msra.mxu0 %v3280
    %4503 = vmatprep.subr.bf16.mxu0 %v3285
    %4504 = vmatpush1.bf16.msra.mxu0 %v3284
    %4505 = vmatprep.subr.bf16.mxu0 %v3289
    %4506 = vmatpush1.bf16.msra.mxu0 %v3288
    %4507 = vmatprep.subr.bf16.mxu0 %v3293
    %4508 = vmatpush1.bf16.msra.mxu0 %v3292
    %4509 = vmatprep.subr.bf16.mxu0 %v3297
    %4510 = vmatpush1.bf16.msra.mxu0 %v3296
    %4511 = vmatprep.subr.bf16.mxu0 %v3301
    %4512 = vmatpush1.bf16.msra.mxu0 %v3300
    %4513 = vmatprep.mubr.bf16.mxu0 %v822
    %4514 = vmatmul.mubr.bf16.gmra.mrb[0].mxu0 %v820
    %v4515 = vpop.f32.mrb[0].mxu0
    %v4516 = vadd.f32 %v4475, %v4515
    %v4517 = vpop.f32.mrb[0].mxu0
    %v4518 = vadd.f32 %v4477, %v4517
    %v4519 = vpop.f32.mrb[0].mxu0
    %v4520 = vpop.f32.mrb[0].mxu0
    %4521 = vdwg.mxu0
    %4522 = vmatprep.subr.bf16.mxu0 %v3305
    %4523 = vmatpush1.bf16.msra.mxu0 %v3304
    %4524 = vmatprep.subr.bf16.mxu0 %v3309
    %4525 = vmatpush1.bf16.msra.mxu0 %v3308
    %4526 = vmatprep.subr.bf16.mxu0 %v3313
    %4527 = vmatpush1.bf16.msra.mxu0 %v3312
    %4528 = vmatprep.subr.bf16.mxu0 %v3317
    %4529 = vmatpush1.bf16.msra.mxu0 %v3316
    %4530 = vmatprep.subr.bf16.mxu0 %v3321
    %4531 = vmatpush1.bf16.msra.mxu0 %v3320
    %4532 = vmatprep.subr.bf16.mxu0 %v3325
    %4533 = vmatpush1.bf16.msra.mxu0 %v3324
    %4534 = vmatprep.subr.bf16.mxu0 %v3329
    %4535 = vmatpush1.bf16.msra.mxu0 %v3328
    %4536 = vmatprep.subr.bf16.mxu0 %v3333
    %4537 = vmatpush1.bf16.msra.mxu0 %v3332
    %4538 = vmatprep.subr.bf16.mxu0 %v3337
    %4539 = vmatpush1.bf16.msra.mxu0 %v3336
    %4540 = vmatprep.subr.bf16.mxu0 %v3341
    %4541 = vmatpush1.bf16.msra.mxu0 %v3340
    %4542 = vmatprep.subr.bf16.mxu0 %v3345
    %4543 = vmatpush1.bf16.msra.mxu0 %v3344
    %4544 = vmatprep.subr.bf16.mxu0 %v3349
    %4545 = vmatpush1.bf16.msra.mxu0 %v3348
    %4546 = vmatprep.subr.bf16.mxu0 %v3353
    %4547 = vmatpush1.bf16.msra.mxu0 %v3352
    %4548 = vmatprep.subr.bf16.mxu0 %v3357
    %4549 = vmatpush1.bf16.msra.mxu0 %v3356
    %4550 = vmatprep.subr.bf16.mxu0 %v3361
    %4551 = vmatpush1.bf16.msra.mxu0 %v3360
    %4552 = vmatprep.subr.bf16.mxu0 %v3365
    %4553 = vmatpush1.bf16.msra.mxu0 %v3364
    %4554 = vmatprep.mubr.bf16.mxu0 %v819
    %4555 = vmatmul.mubr.bf16.gmra.mrb[0].mxu0 %v805
    %v4556 = vpop.f32.mrb[0].mxu0
    %v4557 = vadd.f32 %v4516, %v4556
    %v4558 = vpop.f32.mrb[0].mxu0
    %v4559 = vadd.f32 %v4518, %v4558
    %v4560 = vpop.f32.mrb[0].mxu0
    %v4561 = vpop.f32.mrb[0].mxu0
    %4562 = vdwg.mxu0
    %4563 = vmatprep.subr.bf16.mxu0 %v3369
    %4564 = vmatpush1.bf16.msra.mxu0 %v3368
    %4565 = vmatprep.subr.bf16.mxu0 %v3373
    %4566 = vmatpush1.bf16.msra.mxu0 %v3372
    %4567 = vmatprep.subr.bf16.mxu0 %v3377
    %4568 = vmatpush1.bf16.msra.mxu0 %v3376
    %4569 = vmatprep.subr.bf16.mxu0 %v3381
    %4570 = vmatpush1.bf16.msra.mxu0 %v3380
    %4571 = vmatprep.subr.bf16.mxu0 %v3385
    %4572 = vmatpush1.bf16.msra.mxu0 %v3384
    %4573 = vmatprep.subr.bf16.mxu0 %v3389
    %4574 = vmatpush1.bf16.msra.mxu0 %v3388
    %4575 = vmatprep.subr.bf16.mxu0 %v3393
    %4576 = vmatpush1.bf16.msra.mxu0 %v3392
    %4577 = vmatprep.subr.bf16.mxu0 %v3397
    %4578 = vmatpush1.bf16.msra.mxu0 %v3396
    %4579 = vmatprep.subr.bf16.mxu0 %v3401
    %4580 = vmatpush1.bf16.msra.mxu0 %v3400
    %4581 = vmatprep.subr.bf16.mxu0 %v3405
    %4582 = vmatpush1.bf16.msra.mxu0 %v3404
    %4583 = vmatprep.subr.bf16.mxu0 %v3409
    %4584 = vmatpush1.bf16.msra.mxu0 %v3408
    %4585 = vmatprep.subr.bf16.mxu0 %v3413
    %4586 = vmatpush1.bf16.msra.mxu0 %v3412
    %4587 = vmatprep.subr.bf16.mxu0 %v3417
    %4588 = vmatpush1.bf16.msra.mxu0 %v3416
    %4589 = vmatprep.subr.bf16.mxu0 %v3421
    %4590 = vmatpush1.bf16.msra.mxu0 %v3420
    %4591 = vmatprep.subr.bf16.mxu0 %v3425
    %4592 = vmatpush1.bf16.msra.mxu0 %v3424
    %4593 = vmatprep.subr.bf16.mxu0 %v3429
    %4594 = vmatpush1.bf16.msra.mxu0 %v3428
    %4595 = vmatprep.mubr.bf16.mxu0 %v823
    %4596 = vmatmul.mubr.bf16.gmra.mrb[0].mxu0 %v821
    %v4597 = vpop.f32.mrb[0].mxu0
    %v4598 = vadd.f32 %v4557, %v4597
    %v4599 = vpop.f32.mrb[0].mxu0
    %v4600 = vadd.f32 %v4559, %v4599
    %v4601 = vpop.f32.mrb[0].mxu0
    %v4602 = vpop.f32.mrb[0].mxu0
    %4603 = vdwg.mxu0
    %4604 = vmatprep.subr.bf16.mxu0 %v3433
    %4605 = vmatpush1.bf16.msra.mxu0 %v3432
    %4606 = vmatprep.subr.bf16.mxu0 %v3437
    %4607 = vmatpush1.bf16.msra.mxu0 %v3436
    %4608 = vmatprep.subr.bf16.mxu0 %v3441
    %4609 = vmatpush1.bf16.msra.mxu0 %v3440
    %4610 = vmatprep.subr.bf16.mxu0 %v3445
    %4611 = vmatpush1.bf16.msra.mxu0 %v3444
    %4612 = vmatprep.subr.bf16.mxu0 %v3449
    %4613 = vmatpush1.bf16.msra.mxu0 %v3448
    %4614 = vmatprep.subr.bf16.mxu0 %v3453
    %4615 = vmatpush1.bf16.msra.mxu0 %v3452
    %4616 = vmatprep.subr.bf16.mxu0 %v3457
    %4617 = vmatpush1.bf16.msra.mxu0 %v3456
    %4618 = vmatprep.subr.bf16.mxu0 %v3461
    %4619 = vmatpush1.bf16.msra.mxu0 %v3460
    %4620 = vmatprep.subr.bf16.mxu0 %v3465
    %4621 = vmatpush1.bf16.msra.mxu0 %v3464
    %4622 = vmatprep.subr.bf16.mxu0 %v3469
    %4623 = vmatpush1.bf16.msra.mxu0 %v3468
    %4624 = vmatprep.subr.bf16.mxu0 %v3473
    %4625 = vmatpush1.bf16.msra.mxu0 %v3472
    %4626 = vmatprep.subr.bf16.mxu0 %v3477
    %4627 = vmatpush1.bf16.msra.mxu0 %v3476
    %4628 = vmatprep.subr.bf16.mxu0 %v3481
    %4629 = vmatpush1.bf16.msra.mxu0 %v3480
    %4630 = vmatprep.subr.bf16.mxu0 %v3485
    %4631 = vmatpush1.bf16.msra.mxu0 %v3484
    %4632 = vmatprep.subr.bf16.mxu0 %v3489
    %4633 = vmatpush1.bf16.msra.mxu0 %v3488
    %4634 = vmatprep.subr.bf16.mxu0 %v3493
    %4635 = vmatpush1.bf16.msra.mxu0 %v3492
    %4636 = vmatprep.mubr.bf16.mxu0 %v861
    %4637 = vmatmul.mubr.bf16.gmra.mrb[0].mxu0 %v847
    %v4638 = vpop.f32.mrb[0].mxu0
    %v4639 = vadd.f32 %v4598, %v4638
    %v4640 = vpop.f32.mrb[0].mxu0
    %v4641 = vadd.f32 %v4600, %v4640
    %v4642 = vpop.f32.mrb[0].mxu0
    %v4643 = vpop.f32.mrb[0].mxu0
    %4644 = vdwg.mxu0
    %4645 = vmatprep.subr.bf16.mxu0 %v3497
    %4646 = vmatpush1.bf16.msra.mxu0 %v3496
    %4647 = vmatprep.subr.bf16.mxu0 %v3501
    %4648 = vmatpush1.bf16.msra.mxu0 %v3500
    %4649 = vmatprep.subr.bf16.mxu0 %v3505
    %4650 = vmatpush1.bf16.msra.mxu0 %v3504
    %4651 = vmatprep.subr.bf16.mxu0 %v3509
    %4652 = vmatpush1.bf16.msra.mxu0 %v3508
    %4653 = vmatprep.subr.bf16.mxu0 %v3513
    %4654 = vmatpush1.bf16.msra.mxu0 %v3512
    %4655 = vmatprep.subr.bf16.mxu0 %v3517
    %4656 = vmatpush1.bf16.msra.mxu0 %v3516
    %4657 = vmatprep.subr.bf16.mxu0 %v3521
    %4658 = vmatpush1.bf16.msra.mxu0 %v3520
    %4659 = vmatprep.subr.bf16.mxu0 %v3525
    %4660 = vmatpush1.bf16.msra.mxu0 %v3524
    %4661 = vmatprep.subr.bf16.mxu0 %v3529
    %4662 = vmatpush1.bf16.msra.mxu0 %v3528
    %4663 = vmatprep.subr.bf16.mxu0 %v3533
    %4664 = vmatpush1.bf16.msra.mxu0 %v3532
    %4665 = vmatprep.subr.bf16.mxu0 %v3537
    %4666 = vmatpush1.bf16.msra.mxu0 %v3536
    %4667 = vmatprep.subr.bf16.mxu0 %v3541
    %4668 = vmatpush1.bf16.msra.mxu0 %v3540
    %4669 = vmatprep.subr.bf16.mxu0 %v3545
    %4670 = vmatpush1.bf16.msra.mxu0 %v3544
    %4671 = vmatprep.subr.bf16.mxu0 %v3549
    %4672 = vmatpush1.bf16.msra.mxu0 %v3548
    %4673 = vmatprep.subr.bf16.mxu0 %v3553
    %4674 = vmatpush1.bf16.msra.mxu0 %v3552
    %4675 = vmatprep.subr.bf16.mxu0 %v3557
    %4676 = vmatpush1.bf16.msra.mxu0 %v3556
    %4677 = vmatprep.mubr.bf16.mxu0 %v870
    %4678 = vmatmul.mubr.bf16.gmra.mrb[0].mxu0 %v869
    %v4679 = vpop.f32.mrb[0].mxu0
    %v4680 = vadd.f32 %v4639, %v4679
    %v4681 = vpop.f32.mrb[0].mxu0
    %v4682 = vadd.f32 %v4641, %v4681
    %v4683 = vpop.f32.mrb[0].mxu0
    %v4684 = vpop.f32.mrb[0].mxu0
    %4685 = vdwg.mxu0
    %4686 = vmatprep.subr.bf16.mxu0 %v3561
    %4687 = vmatpush1.bf16.msra.mxu0 %v3560
    %4688 = vmatprep.subr.bf16.mxu0 %v3565
    %4689 = vmatpush1.bf16.msra.mxu0 %v3564
    %4690 = vmatprep.subr.bf16.mxu0 %v3569
    %4691 = vmatpush1.bf16.msra.mxu0 %v3568
    %4692 = vmatprep.subr.bf16.mxu0 %v3573
    %4693 = vmatpush1.bf16.msra.mxu0 %v3572
    %4694 = vmatprep.subr.bf16.mxu0 %v3577
    %4695 = vmatpush1.bf16.msra.mxu0 %v3576
    %4696 = vmatprep.subr.bf16.mxu0 %v3581
    %4697 = vmatpush1.bf16.msra.mxu0 %v3580
    %4698 = vmatprep.subr.bf16.mxu0 %v3585
    %4699 = vmatpush1.bf16.msra.mxu0 %v3584
    %4700 = vmatprep.subr.bf16.mxu0 %v3589
    %4701 = vmatpush1.bf16.msra.mxu0 %v3588
    %4702 = vmatprep.subr.bf16.mxu0 %v3593
    %4703 = vmatpush1.bf16.msra.mxu0 %v3592
    %4704 = vmatprep.subr.bf16.mxu0 0
    %4705 = vmatpush1.bf16.msra.mxu0 0
    %4706 = vmatprep.subr.bf16.mxu0 0
    %4707 = vmatpush1.bf16.msra.mxu0 0
    %4708 = vmatprep.subr.bf16.mxu0 0
    %4709 = vmatpush1.bf16.msra.mxu0 0
    %4710 = vmatprep.subr.bf16.mxu0 0
    %4711 = vmatpush1.bf16.msra.mxu0 0
    %4712 = vmatprep.subr.bf16.mxu0 0
    %4713 = vmatpush1.bf16.msra.mxu0 0
    %4714 = vmatprep.subr.bf16.mxu0 0
    %4715 = vmatpush1.bf16.msra.mxu0 0
    %4716 = vmatprep.subr.bf16.mxu0 0
    %4717 = vmatpush1.bf16.msra.mxu0 0
    %4718 = vmatprep.mubr.bf16.mxu0 %v4274
    %4719 = vmatmul.mubr.bf16.gmra.mrb[0].mxu0 %v854
    %v4720 = vpop.f32.mrb[0].mxu0
    %v4721 = vadd.f32 %v4680, %v4720
    %v4722 = vpop.f32.mrb[0].mxu0
    %v4723 = vadd.f32 %v4682, %v4722
    %v4724 = vpop.f32.mrb[0].mxu0
    %v4725 = vpop.f32.mrb[0].mxu0
    %4726 = vdwg.mxu0
    %4727 = vmatprep.subr.bf16.mxu0 %v2923
    %4728 = vmatpush1.bf16.msra.mxu0 %v2922
    %4729 = vmatprep.subr.bf16.mxu0 %v2927
    %4730 = vmatpush1.bf16.msra.mxu0 %v2926
    %4731 = vmatprep.subr.bf16.mxu0 %v2931
    %4732 = vmatpush1.bf16.msra.mxu0 %v2930
    %4733 = vmatprep.subr.bf16.mxu0 %v2935
    %4734 = vmatpush1.bf16.msra.mxu0 %v2934
    %4735 = vmatprep.subr.bf16.mxu0 %v2939
    %4736 = vmatpush1.bf16.msra.mxu0 %v2938
    %4737 = vmatprep.subr.bf16.mxu0 %v2943
    %4738 = vmatpush1.bf16.msra.mxu0 %v2942
    %4739 = vmatprep.subr.bf16.mxu0 %v2947
    %4740 = vmatpush1.bf16.msra.mxu0 %v2946
    %4741 = vmatprep.subr.bf16.mxu0 %v2951
    %4742 = vmatpush1.bf16.msra.mxu0 %v2950
    %4743 = vmatprep.subr.bf16.mxu0 %v2955
    %4744 = vmatpush1.bf16.msra.mxu0 %v2954
    %4745 = vmatprep.subr.bf16.mxu0 %v2959
    %4746 = vmatpush1.bf16.msra.mxu0 %v2958
    %4747 = vmatprep.subr.bf16.mxu0 %v2963
    %4748 = vmatpush1.bf16.msra.mxu0 %v2962
    %4749 = vmatprep.subr.bf16.mxu0 %v2967
    %4750 = vmatpush1.bf16.msra.mxu0 %v2966
    %4751 = vmatprep.subr.bf16.mxu0 %v2971
    %4752 = vmatpush1.bf16.msra.mxu0 %v2970
    %4753 = vmatprep.subr.bf16.mxu0 %v2975
    %4754 = vmatpush1.bf16.msra.mxu0 %v2974
    %4755 = vmatprep.subr.bf16.mxu0 %v2979
    %4756 = vmatpush1.bf16.msra.mxu0 %v2978
    %4757 = vmatprep.subr.bf16.mxu0 %v2983
    %4758 = vmatpush1.bf16.msra.mxu0 %v2982
    %4759 = vmatprep.mubr.bf16.mxu0 %v763
    %4760 = vmatmul.mubr.bf16.gmra.mrb[0].mxu0 %v749
    %v4761 = vpop.f32.mrb[0].mxu0
    %v4762 = vadd.f32 %v714, %v4761
    %v4763 = vpop.f32.mrb[0].mxu0
    %v4764 = vadd.f32 %v718, %v4763
    %v4765 = vpop.f32.mrb[0].mxu0
    %v4766 = vpop.f32.mrb[0].mxu0
    %4767 = vdwg.mxu0
    %4768 = vmatprep.subr.bf16.mxu0 %v2987
    %4769 = vmatpush1.bf16.msra.mxu0 %v2986
    %4770 = vmatprep.subr.bf16.mxu0 %v2991
    %4771 = vmatpush1.bf16.msra.mxu0 %v2990
    %4772 = vmatprep.subr.bf16.mxu0 %v2995
    %4773 = vmatpush1.bf16.msra.mxu0 %v2994
    %4774 = vmatprep.subr.bf16.mxu0 %v2999
    %4775 = vmatpush1.bf16.msra.mxu0 %v2998
    %4776 = vmatprep.subr.bf16.mxu0 %v3003
    %4777 = vmatpush1.bf16.msra.mxu0 %v3002
    %4778 = vmatprep.subr.bf16.mxu0 %v3007
    %4779 = vmatpush1.bf16.msra.mxu0 %v3006
    %4780 = vmatprep.subr.bf16.mxu0 %v3011
    %4781 = vmatpush1.bf16.msra.mxu0 %v3010
    %4782 = vmatprep.subr.bf16.mxu0 %v3015
    %4783 = vmatpush1.bf16.msra.mxu0 %v3014
    %4784 = vmatprep.subr.bf16.mxu0 %v3019
    %4785 = vmatpush1.bf16.msra.mxu0 %v3018
    %4786 = vmatprep.subr.bf16.mxu0 %v3023
    %4787 = vmatpush1.bf16.msra.mxu0 %v3022
    %4788 = vmatprep.subr.bf16.mxu0 %v3027
    %4789 = vmatpush1.bf16.msra.mxu0 %v3026
    %4790 = vmatprep.subr.bf16.mxu0 %v3031
    %4791 = vmatpush1.bf16.msra.mxu0 %v3030
    %4792 = vmatprep.subr.bf16.mxu0 %v3035
    %4793 = vmatpush1.bf16.msra.mxu0 %v3034
    %4794 = vmatprep.subr.bf16.mxu0 %v3039
    %4795 = vmatpush1.bf16.msra.mxu0 %v3038
    %4796 = vmatprep.subr.bf16.mxu0 %v3043
    %4797 = vmatpush1.bf16.msra.mxu0 %v3042
    %4798 = vmatprep.subr.bf16.mxu0 %v3047
    %4799 = vmatpush1.bf16.msra.mxu0 %v3046
    %4800 = vmatprep.mubr.bf16.mxu0 %v773
    %4801 = vmatmul.mubr.bf16.gmra.mrb[0].mxu0 %v771
    %v4802 = vpop.f32.mrb[0].mxu0
    %v4803 = vadd.f32 %v4762, %v4802
    %v4804 = vpop.f32.mrb[0].mxu0
    %v4805 = vadd.f32 %v4764, %v4804
    %v4806 = vpop.f32.mrb[0].mxu0
    %v4807 = vpop.f32.mrb[0].mxu0
    %4808 = vdwg.mxu0
    %4809 = vmatprep.subr.bf16.mxu0 %v3051
    %4810 = vmatpush1.bf16.msra.mxu0 %v3050
    %4811 = vmatprep.subr.bf16.mxu0 %v3055
    %4812 = vmatpush1.bf16.msra.mxu0 %v3054
    %4813 = vmatprep.subr.bf16.mxu0 %v3059
    %4814 = vmatpush1.bf16.msra.mxu0 %v3058
    %4815 = vmatprep.subr.bf16.mxu0 %v3063
    %4816 = vmatpush1.bf16.msra.mxu0 %v3062
    %4817 = vmatprep.subr.bf16.mxu0 %v3067
    %4818 = vmatpush1.bf16.msra.mxu0 %v3066
    %4819 = vmatprep.subr.bf16.mxu0 %v3071
    %4820 = vmatpush1.bf16.msra.mxu0 %v3070
    %4821 = vmatprep.subr.bf16.mxu0 %v3075
    %4822 = vmatpush1.bf16.msra.mxu0 %v3074
    %4823 = vmatprep.subr.bf16.mxu0 %v3079
    %4824 = vmatpush1.bf16.msra.mxu0 %v3078
    %4825 = vmatprep.subr.bf16.mxu0 %v3083
    %4826 = vmatpush1.bf16.msra.mxu0 %v3082
    %4827 = vmatprep.subr.bf16.mxu0 %v3087
    %4828 = vmatpush1.bf16.msra.mxu0 %v3086
    %4829 = vmatprep.subr.bf16.mxu0 %v3091
    %4830 = vmatpush1.bf16.msra.mxu0 %v3090
    %4831 = vmatprep.subr.bf16.mxu0 %v3095
    %4832 = vmatpush1.bf16.msra.mxu0 %v3094
    %4833 = vmatprep.subr.bf16.mxu0 %v3099
    %4834 = vmatpush1.bf16.msra.mxu0 %v3098
    %4835 = vmatprep.subr.bf16.mxu0 %v3103
    %4836 = vmatpush1.bf16.msra.mxu0 %v3102
    %4837 = vmatprep.subr.bf16.mxu0 %v3107
    %4838 = vmatpush1.bf16.msra.mxu0 %v3106
    %4839 = vmatprep.subr.bf16.mxu0 %v3111
    %4840 = vmatpush1.bf16.msra.mxu0 %v3110
    %4841 = vmatprep.mubr.bf16.mxu0 %v770
    %4842 = vmatmul.mubr.bf16.gmra.mrb[0].mxu0 %v756
    %v4843 = vpop.f32.mrb[0].mxu0
    %v4844 = vadd.f32 %v4803, %v4843
    %v4845 = vpop.f32.mrb[0].mxu0
    %v4846 = vadd.f32 %v4805, %v4845
    %v4847 = vpop.f32.mrb[0].mxu0
    %v4848 = vpop.f32.mrb[0].mxu0
    %4849 = vdwg.mxu0
    %4850 = vmatprep.subr.bf16.mxu0 %v3115
    %4851 = vmatpush1.bf16.msra.mxu0 %v3114
    %4852 = vmatprep.subr.bf16.mxu0 %v3119
    %4853 = vmatpush1.bf16.msra.mxu0 %v3118
    %4854 = vmatprep.subr.bf16.mxu0 %v3123
    %4855 = vmatpush1.bf16.msra.mxu0 %v3122
    %4856 = vmatprep.subr.bf16.mxu0 %v3127
    %4857 = vmatpush1.bf16.msra.mxu0 %v3126
    %4858 = vmatprep.subr.bf16.mxu0 %v3131
    %4859 = vmatpush1.bf16.msra.mxu0 %v3130
    %4860 = vmatprep.subr.bf16.mxu0 %v3135
    %4861 = vmatpush1.bf16.msra.mxu0 %v3134
    %4862 = vmatprep.subr.bf16.mxu0 %v3139
    %4863 = vmatpush1.bf16.msra.mxu0 %v3138
    %4864 = vmatprep.subr.bf16.mxu0 %v3143
    %4865 = vmatpush1.bf16.msra.mxu0 %v3142
    %4866 = vmatprep.subr.bf16.mxu0 %v3147
    %4867 = vmatpush1.bf16.msra.mxu0 %v3146
    %4868 = vmatprep.subr.bf16.mxu0 %v3151
    %4869 = vmatpush1.bf16.msra.mxu0 %v3150
    %4870 = vmatprep.subr.bf16.mxu0 %v3155
    %4871 = vmatpush1.bf16.msra.mxu0 %v3154
    %4872 = vmatprep.subr.bf16.mxu0 %v3159
    %4873 = vmatpush1.bf16.msra.mxu0 %v3158
    %4874 = vmatprep.subr.bf16.mxu0 %v3163
    %4875 = vmatpush1.bf16.msra.mxu0 %v3162
    %4876 = vmatprep.subr.bf16.mxu0 %v3167
    %4877 = vmatpush1.bf16.msra.mxu0 %v3166
    %4878 = vmatprep.subr.bf16.mxu0 %v3171
    %4879 = vmatpush1.bf16.msra.mxu0 %v3170
    %4880 = vmatprep.subr.bf16.mxu0 %v3175
    %4881 = vmatpush1.bf16.msra.mxu0 %v3174
    %4882 = vmatprep.mubr.bf16.mxu0 %v774
    %4883 = vmatmul.mubr.bf16.gmra.mrb[0].mxu0 %v772
    %v4884 = vpop.f32.mrb[0].mxu0
    %v4885 = vadd.f32 %v4844, %v4884
    %v4886 = vpop.f32.mrb[0].mxu0
    %v4887 = vadd.f32 %v4846, %v4886
    %v4888 = vpop.f32.mrb[0].mxu0
    %v4889 = vpop.f32.mrb[0].mxu0
    %4890 = vdwg.mxu0
    %4891 = vmatprep.subr.bf16.mxu0 %v3179
    %4892 = vmatpush1.bf16.msra.mxu0 %v3178
    %4893 = vmatprep.subr.bf16.mxu0 %v3183
    %4894 = vmatpush1.bf16.msra.mxu0 %v3182
    %4895 = vmatprep.subr.bf16.mxu0 %v3187
    %4896 = vmatpush1.bf16.msra.mxu0 %v3186
    %4897 = vmatprep.subr.bf16.mxu0 %v3191
    %4898 = vmatpush1.bf16.msra.mxu0 %v3190
    %4899 = vmatprep.subr.bf16.mxu0 %v3195
    %4900 = vmatpush1.bf16.msra.mxu0 %v3194
    %4901 = vmatprep.subr.bf16.mxu0 %v3199
    %4902 = vmatpush1.bf16.msra.mxu0 %v3198
    %4903 = vmatprep.subr.bf16.mxu0 %v3203
    %4904 = vmatpush1.bf16.msra.mxu0 %v3202
    %4905 = vmatprep.subr.bf16.mxu0 %v3207
    %4906 = vmatpush1.bf16.msra.mxu0 %v3206
    %4907 = vmatprep.subr.bf16.mxu0 %v3211
    %4908 = vmatpush1.bf16.msra.mxu0 %v3210
    %4909 = vmatprep.subr.bf16.mxu0 %v3215
    %4910 = vmatpush1.bf16.msra.mxu0 %v3214
    %4911 = vmatprep.subr.bf16.mxu0 %v3219
    %4912 = vmatpush1.bf16.msra.mxu0 %v3218
    %4913 = vmatprep.subr.bf16.mxu0 %v3223
    %4914 = vmatpush1.bf16.msra.mxu0 %v3222
    %4915 = vmatprep.subr.bf16.mxu0 %v3227
    %4916 = vmatpush1.bf16.msra.mxu0 %v3226
    %4917 = vmatprep.subr.bf16.mxu0 %v3231
    %4918 = vmatpush1.bf16.msra.mxu0 %v3230
    %4919 = vmatprep.subr.bf16.mxu0 %v3235
    %4920 = vmatpush1.bf16.msra.mxu0 %v3234
    %4921 = vmatprep.subr.bf16.mxu0 %v3239
    %4922 = vmatpush1.bf16.msra.mxu0 %v3238
    %4923 = vmatprep.mubr.bf16.mxu0 %v812
    %4924 = vmatmul.mubr.bf16.gmra.mrb[0].mxu0 %v798
    %v4925 = vpop.f32.mrb[0].mxu0
    %v4926 = vadd.f32 %v4885, %v4925
    %v4927 = vpop.f32.mrb[0].mxu0
    %v4928 = vadd.f32 %v4887, %v4927
    %v4929 = vpop.f32.mrb[0].mxu0
    %v4930 = vpop.f32.mrb[0].mxu0
    %4931 = vdwg.mxu0
    %4932 = vmatprep.subr.bf16.mxu0 %v3243
    %4933 = vmatpush1.bf16.msra.mxu0 %v3242
    %4934 = vmatprep.subr.bf16.mxu0 %v3247
    %4935 = vmatpush1.bf16.msra.mxu0 %v3246
    %4936 = vmatprep.subr.bf16.mxu0 %v3251
    %4937 = vmatpush1.bf16.msra.mxu0 %v3250
    %4938 = vmatprep.subr.bf16.mxu0 %v3255
    %4939 = vmatpush1.bf16.msra.mxu0 %v3254
    %4940 = vmatprep.subr.bf16.mxu0 %v3259
    %4941 = vmatpush1.bf16.msra.mxu0 %v3258
    %4942 = vmatprep.subr.bf16.mxu0 %v3263
    %4943 = vmatpush1.bf16.msra.mxu0 %v3262
    %4944 = vmatprep.subr.bf16.mxu0 %v3267
    %4945 = vmatpush1.bf16.msra.mxu0 %v3266
    %4946 = vmatprep.subr.bf16.mxu0 %v3271
    %4947 = vmatpush1.bf16.msra.mxu0 %v3270
    %4948 = vmatprep.subr.bf16.mxu0 %v3275
    %4949 = vmatpush1.bf16.msra.mxu0 %v3274
    %4950 = vmatprep.subr.bf16.mxu0 %v3279
    %4951 = vmatpush1.bf16.msra.mxu0 %v3278
    %4952 = vmatprep.subr.bf16.mxu0 %v3283
    %4953 = vmatpush1.bf16.msra.mxu0 %v3282
    %4954 = vmatprep.subr.bf16.mxu0 %v3287
    %4955 = vmatpush1.bf16.msra.mxu0 %v3286
    %4956 = vmatprep.subr.bf16.mxu0 %v3291
    %4957 = vmatpush1.bf16.msra.mxu0 %v3290
    %4958 = vmatprep.subr.bf16.mxu0 %v3295
    %4959 = vmatpush1.bf16.msra.mxu0 %v3294
    %4960 = vmatprep.subr.bf16.mxu0 %v3299
    %4961 = vmatpush1.bf16.msra.mxu0 %v3298
    %4962 = vmatprep.subr.bf16.mxu0 %v3303
    %4963 = vmatpush1.bf16.msra.mxu0 %v3302
    %4964 = vmatprep.mubr.bf16.mxu0 %v822
    %4965 = vmatmul.mubr.bf16.gmra.mrb[0].mxu0 %v820
    %v4966 = vpop.f32.mrb[0].mxu0
    %v4967 = vadd.f32 %v4926, %v4966
    %v4968 = vpop.f32.mrb[0].mxu0
    %v4969 = vadd.f32 %v4928, %v4968
    %v4970 = vpop.f32.mrb[0].mxu0
    %v4971 = vpop.f32.mrb[0].mxu0
    %4972 = vdwg.mxu0
    %4973 = vmatprep.subr.bf16.mxu0 %v3307
    %4974 = vmatpush1.bf16.msra.mxu0 %v3306
    %4975 = vmatprep.subr.bf16.mxu0 %v3311
    %4976 = vmatpush1.bf16.msra.mxu0 %v3310
    %4977 = vmatprep.subr.bf16.mxu0 %v3315
    %4978 = vmatpush1.bf16.msra.mxu0 %v3314
    %4979 = vmatprep.subr.bf16.mxu0 %v3319
    %4980 = vmatpush1.bf16.msra.mxu0 %v3318
    %4981 = vmatprep.subr.bf16.mxu0 %v3323
    %4982 = vmatpush1.bf16.msra.mxu0 %v3322
    %4983 = vmatprep.subr.bf16.mxu0 %v3327
    %4984 = vmatpush1.bf16.msra.mxu0 %v3326
    %4985 = vmatprep.subr.bf16.mxu0 %v3331
    %4986 = vmatpush1.bf16.msra.mxu0 %v3330
    %4987 = vmatprep.subr.bf16.mxu0 %v3335
    %4988 = vmatpush1.bf16.msra.mxu0 %v3334
    %4989 = vmatprep.subr.bf16.mxu0 %v3339
    %4990 = vmatpush1.bf16.msra.mxu0 %v3338
    %4991 = vmatprep.subr.bf16.mxu0 %v3343
    %4992 = vmatpush1.bf16.msra.mxu0 %v3342
    %4993 = vmatprep.subr.bf16.mxu0 %v3347
    %4994 = vmatpush1.bf16.msra.mxu0 %v3346
    %4995 = vmatprep.subr.bf16.mxu0 %v3351
    %4996 = vmatpush1.bf16.msra.mxu0 %v3350
    %4997 = vmatprep.subr.bf16.mxu0 %v3355
    %4998 = vmatpush1.bf16.msra.mxu0 %v3354
    %4999 = vmatprep.subr.bf16.mxu0 %v3359
    %5000 = vmatpush1.bf16.msra.mxu0 %v3358
    %5001 = vmatprep.subr.bf16.mxu0 %v3363
    %5002 = vmatpush1.bf16.msra.mxu0 %v3362
    %5003 = vmatprep.subr.bf16.mxu0 %v3367
    %5004 = vmatpush1.bf16.msra.mxu0 %v3366
    %5005 = vmatprep.mubr.bf16.mxu0 %v819
    %5006 = vmatmul.mubr.bf16.gmra.mrb[0].mxu0 %v805
    %v5007 = vpop.f32.mrb[0].mxu0
    %v5008 = vadd.f32 %v4967, %v5007
    %v5009 = vpop.f32.mrb[0].mxu0
    %v5010 = vadd.f32 %v4969, %v5009
    %v5011 = vpop.f32.mrb[0].mxu0
    %v5012 = vpop.f32.mrb[0].mxu0
    %5013 = vdwg.mxu0
    %5014 = vmatprep.subr.bf16.mxu0 %v3371
    %5015 = vmatpush1.bf16.msra.mxu0 %v3370
    %5016 = vmatprep.subr.bf16.mxu0 %v3375
    %5017 = vmatpush1.bf16.msra.mxu0 %v3374
    %5018 = vmatprep.subr.bf16.mxu0 %v3379
    %5019 = vmatpush1.bf16.msra.mxu0 %v3378
    %5020 = vmatprep.subr.bf16.mxu0 %v3383
    %5021 = vmatpush1.bf16.msra.mxu0 %v3382
    %5022 = vmatprep.subr.bf16.mxu0 %v3387
    %5023 = vmatpush1.bf16.msra.mxu0 %v3386
    %5024 = vmatprep.subr.bf16.mxu0 %v3391
    %5025 = vmatpush1.bf16.msra.mxu0 %v3390
    %5026 = vmatprep.subr.bf16.mxu0 %v3395
    %5027 = vmatpush1.bf16.msra.mxu0 %v3394
    %5028 = vmatprep.subr.bf16.mxu0 %v3399
    %5029 = vmatpush1.bf16.msra.mxu0 %v3398
    %5030 = vmatprep.subr.bf16.mxu0 %v3403
    %5031 = vmatpush1.bf16.msra.mxu0 %v3402
    %5032 = vmatprep.subr.bf16.mxu0 %v3407
    %5033 = vmatpush1.bf16.msra.mxu0 %v3406
    %5034 = vmatprep.subr.bf16.mxu0 %v3411
    %5035 = vmatpush1.bf16.msra.mxu0 %v3410
    %5036 = vmatprep.subr.bf16.mxu0 %v3415
    %5037 = vmatpush1.bf16.msra.mxu0 %v3414
    %5038 = vmatprep.subr.bf16.mxu0 %v3419
    %5039 = vmatpush1.bf16.msra.mxu0 %v3418
    %5040 = vmatprep.subr.bf16.mxu0 %v3423
    %5041 = vmatpush1.bf16.msra.mxu0 %v3422
    %5042 = vmatprep.subr.bf16.mxu0 %v3427
    %5043 = vmatpush1.bf16.msra.mxu0 %v3426
    %5044 = vmatprep.subr.bf16.mxu0 %v3431
    %5045 = vmatpush1.bf16.msra.mxu0 %v3430
    %5046 = vmatprep.mubr.bf16.mxu0 %v823
    %5047 = vmatmul.mubr.bf16.gmra.mrb[0].mxu0 %v821
    %v5048 = vpop.f32.mrb[0].mxu0
    %v5049 = vadd.f32 %v5008, %v5048
    %v5050 = vpop.f32.mrb[0].mxu0
    %v5051 = vadd.f32 %v5010, %v5050
    %v5052 = vpop.f32.mrb[0].mxu0
    %v5053 = vpop.f32.mrb[0].mxu0
    %5054 = vdwg.mxu0
    %5055 = vmatprep.subr.bf16.mxu0 %v3435
    %5056 = vmatpush1.bf16.msra.mxu0 %v3434
    %5057 = vmatprep.subr.bf16.mxu0 %v3439
    %5058 = vmatpush1.bf16.msra.mxu0 %v3438
    %5059 = vmatprep.subr.bf16.mxu0 %v3443
    %5060 = vmatpush1.bf16.msra.mxu0 %v3442
    %5061 = vmatprep.subr.bf16.mxu0 %v3447
    %5062 = vmatpush1.bf16.msra.mxu0 %v3446
    %5063 = vmatprep.subr.bf16.mxu0 %v3451
    %5064 = vmatpush1.bf16.msra.mxu0 %v3450
    %5065 = vmatprep.subr.bf16.mxu0 %v3455
    %5066 = vmatpush1.bf16.msra.mxu0 %v3454
    %5067 = vmatprep.subr.bf16.mxu0 %v3459
    %5068 = vmatpush1.bf16.msra.mxu0 %v3458
    %5069 = vmatprep.subr.bf16.mxu0 %v3463
    %5070 = vmatpush1.bf16.msra.mxu0 %v3462
    %5071 = vmatprep.subr.bf16.mxu0 %v3467
    %5072 = vmatpush1.bf16.msra.mxu0 %v3466
    %5073 = vmatprep.subr.bf16.mxu0 %v3471
    %5074 = vmatpush1.bf16.msra.mxu0 %v3470
    %5075 = vmatprep.subr.bf16.mxu0 %v3475
    %5076 = vmatpush1.bf16.msra.mxu0 %v3474
    %5077 = vmatprep.subr.bf16.mxu0 %v3479
    %5078 = vmatpush1.bf16.msra.mxu0 %v3478
    %5079 = vmatprep.subr.bf16.mxu0 %v3483
    %5080 = vmatpush1.bf16.msra.mxu0 %v3482
    %5081 = vmatprep.subr.bf16.mxu0 %v3487
    %5082 = vmatpush1.bf16.msra.mxu0 %v3486
    %5083 = vmatprep.subr.bf16.mxu0 %v3491
    %5084 = vmatpush1.bf16.msra.mxu0 %v3490
    %5085 = vmatprep.subr.bf16.mxu0 %v3495
    %5086 = vmatpush1.bf16.msra.mxu0 %v3494
    %5087 = vmatprep.mubr.bf16.mxu0 %v861
    %5088 = vmatmul.mubr.bf16.gmra.mrb[0].mxu0 %v847
    %v5089 = vpop.f32.mrb[0].mxu0
    %v5090 = vadd.f32 %v5049, %v5089
    %v5091 = vpop.f32.mrb[0].mxu0
    %v5092 = vadd.f32 %v5051, %v5091
    %v5093 = vpop.f32.mrb[0].mxu0
    %v5094 = vpop.f32.mrb[0].mxu0
    %5095 = vdwg.mxu0
    %5096 = vmatprep.subr.bf16.mxu0 %v3499
    %5097 = vmatpush1.bf16.msra.mxu0 %v3498
    %5098 = vmatprep.subr.bf16.mxu0 %v3503
    %5099 = vmatpush1.bf16.msra.mxu0 %v3502
    %5100 = vmatprep.subr.bf16.mxu0 %v3507
    %5101 = vmatpush1.bf16.msra.mxu0 %v3506
    %5102 = vmatprep.subr.bf16.mxu0 %v3511
    %5103 = vmatpush1.bf16.msra.mxu0 %v3510
    %5104 = vmatprep.subr.bf16.mxu0 %v3515
    %5105 = vmatpush1.bf16.msra.mxu0 %v3514
    %5106 = vmatprep.subr.bf16.mxu0 %v3519
    %5107 = vmatpush1.bf16.msra.mxu0 %v3518
    %5108 = vmatprep.subr.bf16.mxu0 %v3523
    %5109 = vmatpush1.bf16.msra.mxu0 %v3522
    %5110 = vmatprep.subr.bf16.mxu0 %v3527
    %5111 = vmatpush1.bf16.msra.mxu0 %v3526
    %5112 = vmatprep.subr.bf16.mxu0 %v3531
    %5113 = vmatpush1.bf16.msra.mxu0 %v3530
    %5114 = vmatprep.subr.bf16.mxu0 %v3535
    %5115 = vmatpush1.bf16.msra.mxu0 %v3534
    %5116 = vmatprep.subr.bf16.mxu0 %v3539
    %5117 = vmatpush1.bf16.msra.mxu0 %v3538
    %5118 = vmatprep.subr.bf16.mxu0 %v3543
    %5119 = vmatpush1.bf16.msra.mxu0 %v3542
    %5120 = vmatprep.subr.bf16.mxu0 %v3547
    %5121 = vmatpush1.bf16.msra.mxu0 %v3546
    %5122 = vmatprep.subr.bf16.mxu0 %v3551
    %5123 = vmatpush1.bf16.msra.mxu0 %v3550
    %5124 = vmatprep.subr.bf16.mxu0 %v3555
    %5125 = vmatpush1.bf16.msra.mxu0 %v3554
    %5126 = vmatprep.subr.bf16.mxu0 %v3559
    %5127 = vmatpush1.bf16.msra.mxu0 %v3558
    %5128 = vmatprep.mubr.bf16.mxu0 %v870
    %5129 = vmatmul.mubr.bf16.gmra.mrb[0].mxu0 %v869
    %v5130 = vpop.f32.mrb[0].mxu0
    %v5131 = vadd.f32 %v5090, %v5130
    %v5132 = vpop.f32.mrb[0].mxu0
    %v5133 = vadd.f32 %v5092, %v5132
    %v5134 = vpop.f32.mrb[0].mxu0
    %v5135 = vpop.f32.mrb[0].mxu0
    %5136 = vdwg.mxu0
    %5137 = vmatprep.subr.bf16.mxu0 %v3563
    %5138 = vmatpush1.bf16.msra.mxu0 %v3562
    %5139 = vmatprep.subr.bf16.mxu0 %v3567
    %5140 = vmatpush1.bf16.msra.mxu0 %v3566
    %5141 = vmatprep.subr.bf16.mxu0 %v3571
    %5142 = vmatpush1.bf16.msra.mxu0 %v3570
    %5143 = vmatprep.subr.bf16.mxu0 %v3575
    %5144 = vmatpush1.bf16.msra.mxu0 %v3574
    %5145 = vmatprep.subr.bf16.mxu0 %v3579
    %5146 = vmatpush1.bf16.msra.mxu0 %v3578
    %5147 = vmatprep.subr.bf16.mxu0 %v3583
    %5148 = vmatpush1.bf16.msra.mxu0 %v3582
    %5149 = vmatprep.subr.bf16.mxu0 %v3587
    %5150 = vmatpush1.bf16.msra.mxu0 %v3586
    %5151 = vmatprep.subr.bf16.mxu0 %v3591
    %5152 = vmatpush1.bf16.msra.mxu0 %v3590
    %5153 = vmatprep.subr.bf16.mxu0 %v3595
    %5154 = vmatpush1.bf16.msra.mxu0 %v3594
    %5155 = vmatprep.subr.bf16.mxu0 0
    %5156 = vmatpush1.bf16.msra.mxu0 0
    %5157 = vmatprep.subr.bf16.mxu0 0
    %5158 = vmatpush1.bf16.msra.mxu0 0
    %5159 = vmatprep.subr.bf16.mxu0 0
    %5160 = vmatpush1.bf16.msra.mxu0 0
    %5161 = vmatprep.subr.bf16.mxu0 0
    %5162 = vmatpush1.bf16.msra.mxu0 0
    %5163 = vmatprep.subr.bf16.mxu0 0
    %5164 = vmatpush1.bf16.msra.mxu0 0
    %5165 = vmatprep.subr.bf16.mxu0 0
    %5166 = vmatpush1.bf16.msra.mxu0 0
    %5167 = vmatprep.subr.bf16.mxu0 0
    %5168 = vmatpush1.bf16.msra.mxu0 0
    %5169 = vmatprep.mubr.bf16.mxu0 %v4274
    %5170 = vmatmul.mubr.bf16.gmra.mrb[0].mxu0 %v854
    %v5171 = vpop.f32.mrb[0].mxu0
    %v5172 = vadd.f32 %v5131, %v5171
    %v5173 = vpop.f32.mrb[0].mxu0
    %v5174 = vadd.f32 %v5133, %v5173
    %v5175 = vpop.f32.mrb[0].mxu0
    %v5176 = vpop.f32.mrb[0].mxu0
    %5177 = vdwg.mxu0
    %vm5178 = vcmp.gt.f32.partialorder %v4721, 0.0
    %vm5179 = vcmp.gt.f32.partialorder %v4723, 0.0
    %vm5180 = vcmp.gt.f32.partialorder %v5172, 0.0
    %vm5181 = vcmp.gt.f32.partialorder %v5174, 0.0
    %v5182 = vmul.f32 %v4721, 0.01
    %v5183 = vmul.f32 %v4723, 0.01
    %v5184 = vmul.f32 %v5172, 0.01
    %v5185 = vmul.f32 %v5174, 0.01
    %v5186 = vsel %vm5178, %v4721, %v5182
    %v5187 = vsel %vm5179, %v4723, %v5183
    %v5188 = vsel %vm5180, %v5172, %v5184
    %v5189 = vsel %vm5181, %v5174, %v5185
    %v5190 = vpack.c.bf16 %v5186, %v5186
    %v5191 = vpack.c.bf16 %v5187, %v5187
    %v5192 = vpack.c.bf16 %v5188, %v5188
    %v5193 = vpack.c.bf16 %v5189, %v5189
    %v5194 = vld [vmem:[%s3] sm:$0xf]
    %v5195 = vld [vmem:[%s3 + $0x4] sm:$0xf]
    %v5196 = vld [vmem:[%s3 + $0x8] sm:$0xf]
    %v5197 = vld [vmem:[%s3 + $0xc] sm:$0xf]
    %v5198 = vld [vmem:[%s3 + $0x10] sm:$0xf]
    %v5199 = vld [vmem:[%s3 + $0x14] sm:$0xf]
    %v5200 = vld [vmem:[%s3 + $0x18] sm:$0xf]
    %v5201 = vld [vmem:[%s3 + $0x1c] sm:$0xf]
    %v5202 = vld [vmem:[%s3 + $0x20] sm:$0xf]
    %v5203 = vld [vmem:[%s3 + $0x24] sm:$0xf]
    %v5204 = vld [vmem:[%s3 + $0x28] sm:$0xf]
    %v5205 = vld [vmem:[%s3 + $0x2c] sm:$0xf]
    %v5206 = vld [vmem:[%s3 + $0x30] sm:$0xf]
    %v5207 = vld [vmem:[%s3 + $0x34] sm:$0xf]
    %v5208 = vld [vmem:[%s3 + $0x38] sm:$0xf]
    %v5209 = vld [vmem:[%s3 + $0x3c] sm:$0xf]
    %v5210 = vld [vmem:[%s3 + $0x40] sm:$0xf]
    %v5211 = vld [vmem:[%s3 + $0x44] sm:$0xf]
    %v5212 = vld [vmem:[%s3 + $0x48] sm:$0xf]
    %v5213 = vld [vmem:[%s3 + $0x4c] sm:$0xf]
    %v5214 = vld [vmem:[%s3 + $0x50] sm:$0xf]
    %v5215 = vld [vmem:[%s3 + $0x54] sm:$0xf]
    %v5216 = vld [vmem:[%s3 + $0x58] sm:$0xf]
    %v5217 = vld [vmem:[%s3 + $0x5c] sm:$0xf]
    %v5218 = vld [vmem:[%s3 + $0x60] sm:$0xf]
    %v5219 = vld [vmem:[%s3 + $0x64] sm:$0xf]
    %v5220 = vld [vmem:[%s3 + $0x68] sm:$0xf]
    %v5221 = vld [vmem:[%s3 + $0x6c] sm:$0xf]
    %v5222 = vld [vmem:[%s3 + $0x70] sm:$0xf]
    %v5223 = vld [vmem:[%s3 + $0x74] sm:$0xf]
    %v5224 = vld [vmem:[%s3 + $0x78] sm:$0xf]
    %v5225 = vld [vmem:[%s3 + $0x7c] sm:$0xf]
    %v5226 = vld [vmem:[%s3 + $0x80] sm:$0xf]
    %v5227 = vld [vmem:[%s3 + $0x84] sm:$0xf]
    %v5228 = vld [vmem:[%s3 + $0x88] sm:$0xf]
    %v5229 = vld [vmem:[%s3 + $0x8c] sm:$0xf]
    %v5230 = vld [vmem:[%s3 + $0x90] sm:$0xf]
    %v5231 = vld [vmem:[%s3 + $0x94] sm:$0xf]
    %v5232 = vld [vmem:[%s3 + $0x98] sm:$0xf]
    %v5233 = vld [vmem:[%s3 + $0x9c] sm:$0xf]
    %v5234 = vld [vmem:[%s3 + $0xa0] sm:$0xf]
    %v5235 = vld [vmem:[%s3 + $0xa4] sm:$0xf]
    %v5236 = vld [vmem:[%s3 + $0xa8] sm:$0xf]
    %v5237 = vld [vmem:[%s3 + $0xac] sm:$0xf]
    %v5238 = vld [vmem:[%s3 + $0xb0] sm:$0xf]
    %v5239 = vld [vmem:[%s3 + $0xb4] sm:$0xf]
    %v5240 = vld [vmem:[%s3 + $0xb8] sm:$0xf]
    %v5241 = vld [vmem:[%s3 + $0xbc] sm:$0xf]
    %v5242 = vld [vmem:[%s3 + $0xc0] sm:$0xf]
    %v5243 = vld [vmem:[%s3 + $0xc4] sm:$0xf]
    %v5244 = vld [vmem:[%s3 + $0xc8] sm:$0xf]
    %v5245 = vld [vmem:[%s3 + $0xcc] sm:$0xf]
    %v5246 = vld [vmem:[%s3 + $0xd0] sm:$0xf]
    %v5247 = vld [vmem:[%s3 + $0xd4] sm:$0xf]
    %v5248 = vld [vmem:[%s3 + $0xd8] sm:$0xf]
    %v5249 = vld [vmem:[%s3 + $0xdc] sm:$0xf]
    %v5250 = vld [vmem:[%s3 + $0xe0] sm:$0xf]
    %v5251 = vld [vmem:[%s3 + $0xe4] sm:$0xf]
    %v5252 = vld [vmem:[%s3 + $0xe8] sm:$0xf]
    %v5253 = vld [vmem:[%s3 + $0xec] sm:$0xf]
    %v5254 = vld [vmem:[%s3 + $0xf0] sm:$0xf]
    %v5255 = vld [vmem:[%s3 + $0xf4] sm:$0xf]
    %v5256 = vld [vmem:[%s3 + $0xf8] sm:$0xf]
    %v5257 = vld [vmem:[%s3 + $0xfc] sm:$0xf]
    %v5258 = vld [vmem:[%s4] sm:$0x1]
    %v5260 = vlaneseq
    %v5261 = vshrl.u32 %v5260, 7
    %v5262 = vsub.s32 0, %v5261
    %v5263 = vrot.slane %v5258, %v5262
    %v5329 = vunpack.c.l.b16 %v5194
    %v5330 = vunpack.c.l.b16 %v5195
    %v5331 = vunpack.c.l.b16 %v5196
    %v5332 = vunpack.c.l.b16 %v5197
    %v5333 = vunpack.c.l.b16 %v5198
    %v5334 = vunpack.c.l.b16 %v5199
    %v5335 = vunpack.c.l.b16 %v5200
    %v5336 = vunpack.c.l.b16 %v5201
    %v5337 = vunpack.c.l.b16 %v5202
    %v5338 = vunpack.c.l.b16 %v5203
    %v5339 = vunpack.c.l.b16 %v5204
    %v5340 = vunpack.c.l.b16 %v5205
    %v5341 = vunpack.c.l.b16 %v5206
    %v5342 = vunpack.c.l.b16 %v5207
    %v5343 = vunpack.c.l.b16 %v5208
    %v5344 = vunpack.c.l.b16 %v5209
    %v5345 = vunpack.c.l.b16 %v5210
    %v5346 = vunpack.c.l.b16 %v5211
    %v5347 = vunpack.c.l.b16 %v5212
    %v5348 = vunpack.c.l.b16 %v5213
    %v5349 = vunpack.c.l.b16 %v5214
    %v5350 = vunpack.c.l.b16 %v5215
    %v5351 = vunpack.c.l.b16 %v5216
    %v5352 = vunpack.c.l.b16 %v5217
    %v5353 = vunpack.c.l.b16 %v5218
    %v5354 = vunpack.c.l.b16 %v5219
    %v5355 = vunpack.c.l.b16 %v5220
    %v5356 = vunpack.c.l.b16 %v5221
    %v5357 = vunpack.c.l.b16 %v5222
    %v5358 = vunpack.c.l.b16 %v5223
    %v5359 = vunpack.c.l.b16 %v5224
    %v5360 = vunpack.c.l.b16 %v5225
    %v5361 = vunpack.c.l.b16 %v5226
    %v5362 = vunpack.c.l.b16 %v5227
    %v5363 = vunpack.c.l.b16 %v5228
    %v5364 = vunpack.c.l.b16 %v5229
    %v5365 = vunpack.c.l.b16 %v5230
    %v5366 = vunpack.c.l.b16 %v5231
    %v5367 = vunpack.c.l.b16 %v5232
    %v5368 = vunpack.c.l.b16 %v5233
    %v5369 = vunpack.c.l.b16 %v5234
    %v5370 = vunpack.c.l.b16 %v5235
    %v5371 = vunpack.c.l.b16 %v5236
    %v5372 = vunpack.c.l.b16 %v5237
    %v5373 = vunpack.c.l.b16 %v5238
    %v5374 = vunpack.c.l.b16 %v5239
    %v5375 = vunpack.c.l.b16 %v5240
    %v5376 = vunpack.c.l.b16 %v5241
    %v5377 = vunpack.c.l.b16 %v5242
    %v5378 = vunpack.c.l.b16 %v5243
    %v5379 = vunpack.c.l.b16 %v5244
    %v5380 = vunpack.c.l.b16 %v5245
    %v5381 = vunpack.c.l.b16 %v5246
    %v5382 = vunpack.c.l.b16 %v5247
    %v5383 = vunpack.c.l.b16 %v5248
    %v5384 = vunpack.c.l.b16 %v5249
    %v5385 = vunpack.c.l.b16 %v5250
    %v5386 = vunpack.c.l.b16 %v5251
    %v5387 = vunpack.c.l.b16 %v5252
    %v5388 = vunpack.c.l.b16 %v5253
    %v5389 = vunpack.c.l.b16 %v5254
    %v5390 = vunpack.c.l.b16 %v5255
    %v5391 = vunpack.c.l.b16 %v5256
    %v5392 = vunpack.c.l.b16 %v5257
    %v5393 = vpack.c.b16 %v5330, %v5329
    %v5394 = vpack.c.b16 %v5332, %v5331
    %v5395 = vpack.c.b16 %v5334, %v5333
    %v5396 = vpack.c.b16 %v5336, %v5335
    %v5397 = vpack.c.b16 %v5338, %v5337
    %v5398 = vpack.c.b16 %v5340, %v5339
    %v5399 = vpack.c.b16 %v5342, %v5341
    %v5400 = vpack.c.b16 %v5344, %v5343
    %v5401 = vpack.c.b16 %v5346, %v5345
    %v5402 = vpack.c.b16 %v5348, %v5347
    %v5403 = vpack.c.b16 %v5350, %v5349
    %v5404 = vpack.c.b16 %v5352, %v5351
    %v5405 = vpack.c.b16 %v5354, %v5353
    %v5406 = vpack.c.b16 %v5356, %v5355
    %v5407 = vpack.c.b16 %v5358, %v5357
    %v5408 = vpack.c.b16 %v5360, %v5359
    %v5409 = vpack.c.b16 %v5362, %v5361
    %v5410 = vpack.c.b16 %v5364, %v5363
    %v5411 = vpack.c.b16 %v5366, %v5365
    %v5412 = vpack.c.b16 %v5368, %v5367
    %v5413 = vpack.c.b16 %v5370, %v5369
    %v5414 = vpack.c.b16 %v5372, %v5371
    %v5415 = vpack.c.b16 %v5374, %v5373
    %v5416 = vpack.c.b16 %v5376, %v5375
    %v5417 = vpack.c.b16 %v5378, %v5377
    %v5418 = vpack.c.b16 %v5380, %v5379
    %v5419 = vpack.c.b16 %v5382, %v5381
    %v5420 = vpack.c.b16 %v5384, %v5383
    %v5421 = vpack.c.b16 %v5386, %v5385
    %v5422 = vpack.c.b16 %v5388, %v5387
    %v5423 = vpack.c.b16 %v5390, %v5389
    %v5424 = vpack.c.b16 %v5392, %v5391
    %5457 = vmatprep.subr.bf16.mxu0 0
    %5458 = vmatpush1.bf16.msra.mxu0 %v5393
    %5459 = vmatprep.subr.bf16.mxu0 0
    %5460 = vmatpush1.bf16.msra.mxu0 %v5394
    %5461 = vmatprep.subr.bf16.mxu0 0
    %5462 = vmatpush1.bf16.msra.mxu0 %v5395
    %5463 = vmatprep.subr.bf16.mxu0 0
    %5464 = vmatpush1.bf16.msra.mxu0 %v5396
    %5465 = vmatprep.subr.bf16.mxu0 0
    %5466 = vmatpush1.bf16.msra.mxu0 %v5397
    %5467 = vmatprep.subr.bf16.mxu0 0
    %5468 = vmatpush1.bf16.msra.mxu0 %v5398
    %5469 = vmatprep.subr.bf16.mxu0 0
    %5470 = vmatpush1.bf16.msra.mxu0 %v5399
    %5471 = vmatprep.subr.bf16.mxu0 0
    %5472 = vmatpush1.bf16.msra.mxu0 %v5400
    %5473 = vmatprep.subr.bf16.mxu0 0
    %5474 = vmatpush1.bf16.msra.mxu0 %v5401
    %5475 = vmatprep.subr.bf16.mxu0 0
    %5476 = vmatpush1.bf16.msra.mxu0 %v5402
    %5477 = vmatprep.subr.bf16.mxu0 0
    %5478 = vmatpush1.bf16.msra.mxu0 %v5403
    %5479 = vmatprep.subr.bf16.mxu0 0
    %5480 = vmatpush1.bf16.msra.mxu0 %v5404
    %5481 = vmatprep.subr.bf16.mxu0 0
    %5482 = vmatpush1.bf16.msra.mxu0 %v5405
    %5483 = vmatprep.subr.bf16.mxu0 0
    %5484 = vmatpush1.bf16.msra.mxu0 %v5406
    %5485 = vmatprep.subr.bf16.mxu0 0
    %5486 = vmatpush1.bf16.msra.mxu0 %v5407
    %5487 = vmatprep.subr.bf16.mxu0 0
    %5488 = vmatpush1.bf16.msra.mxu0 %v5408
    %5489 = vmatprep.mubr.bf16.mxu0 %v5191
    %5490 = vmatmul.mubr.bf16.gmra.mrb[0].mxu0 %v5190
    %v5491 = vpop.f32.mrb[0].mxu0
    %v5492 = vadd.f32 %v5263, %v5491
    %v5493 = vpop.f32.mrb[0].mxu0
    %v5494 = vpop.f32.mrb[0].mxu0
    %v5495 = vpop.f32.mrb[0].mxu0
    %5496 = vdwg.mxu0
    %5497 = vmatprep.subr.bf16.mxu0 0
    %5498 = vmatpush1.bf16.msra.mxu0 %v5409
    %5499 = vmatprep.subr.bf16.mxu0 0
    %5500 = vmatpush1.bf16.msra.mxu0 %v5410
    %5501 = vmatprep.subr.bf16.mxu0 0
    %5502 = vmatpush1.bf16.msra.mxu0 %v5411
    %5503 = vmatprep.subr.bf16.mxu0 0
    %5504 = vmatpush1.bf16.msra.mxu0 %v5412
    %5505 = vmatprep.subr.bf16.mxu0 0
    %5506 = vmatpush1.bf16.msra.mxu0 %v5413
    %5507 = vmatprep.subr.bf16.mxu0 0
    %5508 = vmatpush1.bf16.msra.mxu0 %v5414
    %5509 = vmatprep.subr.bf16.mxu0 0
    %5510 = vmatpush1.bf16.msra.mxu0 %v5415
    %5511 = vmatprep.subr.bf16.mxu0 0
    %5512 = vmatpush1.bf16.msra.mxu0 %v5416
    %5513 = vmatprep.subr.bf16.mxu0 0
    %5514 = vmatpush1.bf16.msra.mxu0 %v5417
    %5515 = vmatprep.subr.bf16.mxu0 0
    %5516 = vmatpush1.bf16.msra.mxu0 %v5418
    %5517 = vmatprep.subr.bf16.mxu0 0
    %5518 = vmatpush1.bf16.msra.mxu0 %v5419
    %5519 = vmatprep.subr.bf16.mxu0 0
    %5520 = vmatpush1.bf16.msra.mxu0 %v5420
    %5521 = vmatprep.subr.bf16.mxu0 0
    %5522 = vmatpush1.bf16.msra.mxu0 %v5421
    %5523 = vmatprep.subr.bf16.mxu0 0
    %5524 = vmatpush1.bf16.msra.mxu0 %v5422
    %5525 = vmatprep.subr.bf16.mxu0 0
    %5526 = vmatpush1.bf16.msra.mxu0 %v5423
    %5527 = vmatprep.subr.bf16.mxu0 0
    %5528 = vmatpush1.bf16.msra.mxu0 %v5424
    %5529 = vmatprep.mubr.bf16.mxu0 %v5193
    %5530 = vmatmul.mubr.bf16.gmra.mrb[0].mxu0 %v5192
    %v5531 = vpop.f32.mrb[0].mxu0
    %v5532 = vadd.f32 %v5492, %v5531
    %v5533 = vpop.f32.mrb[0].mxu0
    %v5534 = vpop.f32.mrb[0].mxu0
    %v5535 = vpop.f32.mrb[0].mxu0
    %5536 = vdwg.mxu0
    %5537 = vst [vmem:[#allocation2] sm:$0x3] %v5532
    // Predicated region
    $region22: #{encoder_forward.9} parent=1 // pred_check
      _
    $region23: #{encoder_forward.9} parent=1 // pred_check_branch
      %5539 = sbr.rel (0) target = $region25
    $region24: #{encoder_forward.9} parent=1 // pred_region
      %s5541 = ssub.s32 32, 32
      %5542 = vsyncadd [#allocation3], %s5541
      %s5544 = sshll.u32 [#allocation2], 4
      %s5545 = int_to_ptr.vmem [resolvable:$true] %s5544
      %5547 = dma.vmem_to_hbm [thread:$0]  %s5545, 32, %s5, [#allocation3]
    $region25: #{encoder_forward.9} parent=1 // pred_fallthru
      _
    // Predicated region
    $region26: #{encoder_forward.9} parent=1 // pred_check
      _
    $region27: #{encoder_forward.9} parent=1 // pred_check_branch
      %5549 = sbr.rel (0) target = $region29
    $region28: #{encoder_forward.9} parent=1 // pred_region
      %5550 = dma.done [#allocation3], 32
    $region29: #{encoder_forward.9} parent=1 // pred_fallthru
      _
    %5551 = vsyncpa [#allocation3], 1

</llo_original>
